<compile_context>
chip_gen: v7x
topology: tpu7x:2x2x1
jax: 0.10.0
libtpu: 0.0.40
codegen_flags: <defaults>
</compile_context>

<pallas_src>
import jax
import jax.numpy as jnp
import numpy as np
from jax.experimental import pallas as pl
from jax.experimental.pallas import tpu as pltpu

# ----- small synthetic config consistent with the module -----
LATENT_DIM = 32
IMG_SIZE = 16
CHANNELS = 3
INIT_SIZE = IMG_SIZE // 4          # 4
MID_SIZE = 2 * INIT_SIZE           # 8
LRELU_SLOPE = 0.2
C0 = 128                           # channels after l1 / conv1
C1 = 64                            # real channels after conv2
CL = 128                           # lane-padded channel width used in-kernel

_VMEM = pl.BlockSpec(memory_space=pltpu.MemorySpace.VMEM)  # whole array in VMEM


# ---------------- host-side helpers (run once, not per forward) ----------------
def _upsample_matrix(B, Hin, Win, in_spatial_major):
    """0/1 row-gather matrix implementing nearest-neighbour 2x upsample.

    Output rows are batch-major: r_out = b*(2Hin*2Win) + i*(2Win) + j.
    Input rows are either spatial-major (s*B + b) or batch-major (b*Hin*Win + s).
    """
    Hout, Wout = 2 * Hin, 2 * Win
    n_out, n_in = B * Hout * Wout, B * Hin * Win
    r = np.arange(n_out)
    b = r // (Hout * Wout)
    ij = r % (Hout * Wout)
    i, j = ij // Wout, ij % Wout
    s = (i // 2) * Win + (j // 2)
    cols = s * B + b if in_spatial_major else b * (Hin * Win) + s
    U = np.zeros((n_out, n_in), np.float32)
    U[r, cols] = 1.0
    return jnp.asarray(U)


def _conv_weight_im2col(w, cin_pad, cout_pad):
    """torch OIHW conv weight -> (9*cin_pad, cout_pad) im2col matrix (zero padded)."""
    co, ci, kh, kw = w.shape
    w_hwio = jnp.transpose(w, (2, 3, 1, 0)).astype(jnp.float32)   # (3,3,ci,co)
    full = jnp.zeros((kh, kw, cin_pad, cout_pad), jnp.float32)
    full = full.at[:, :, :ci, :co].set(w_hwio)
    return full.reshape(kh * kw * cin_pad, cout_pad)


def _pad_row(v, width):
    out = jnp.zeros((1, width), jnp.float32)
    return out.at[0, : v.shape[0]].set(v)


# ---------------- fused generator kernel ----------------
def _make_generator_kernel(B):
    S0 = INIT_SIZE * INIT_SIZE       # 16 spatial positions after l1
    H1 = W1 = MID_SIZE               # 8
    H2 = W2 = IMG_SIZE               # 16

    def bn(x, g, b, eps, lrelu):
        # Training-mode BatchNorm over rows (= batch*spatial), biased variance,
        # single pass (sum + sum of squares).  f32 accumulation throughout.
        inv_n = 1.0 / float(x.shape[0])
        mean = jnp.sum(x, axis=0, keepdims=True) * inv_n
        var = jnp.sum(x * x, axis=0, keepdims=True) * inv_n - mean * mean
        y = (x - mean) * jax.lax.rsqrt(var + eps) * g + b
        if lrelu:
            y = jnp.where(y >= 0, y, LRELU_SLOPE * y)
        return y

    def kernel(z_ref, w1_ref, b1_ref, g0_ref, be0_ref,
               u1_ref, w2_ref, b2_ref, g1_ref, be1_ref,
               u2_ref, w3_ref, b3_ref, g2_ref, be2_ref,
               w4_ref, b4_ref,
               o_ref, pad_ref):
        # Zero the shared padded scratch exactly once.  Each conv only rewrites
        # the interior, so the zero halo stays valid for all three convs
        # (conv1 uses the top-left 10x10 sub-window, conv2/conv3 the 18x18 one,
        # and every later interior write fully covers the earlier ones).
        pad_ref[...] = jnp.zeros_like(pad_ref)

        def conv3x3(x2d, H, W, w_ref, b_ref):
            # x2d: (B*H*W, CL) rows in (b, i, j) order.  The 9 taps are
            # lane-concatenated into an im2col slab and contracted in ONE
            # deep-K matmul (K = 9*CL).
            x4d = x2d.reshape(B, H, W, CL)
            pad_ref[:, 1:H + 1, 1:W + 1, :] = x4d
            taps = []
            for dy in range(3):
                for dx in range(3):
                    taps.append(
                        pad_ref[:, dy:dy + H, dx:dx + W, :].reshape(B * H * W, CL))
            slab = jnp.concatenate(taps, axis=1)                  # (B*H*W, 9*CL)
            return (jnp.dot(slab, w_ref[...],
                            preferred_element_type=jnp.float32) + b_ref[...])

        # ---- Linear (l1).  w1 is pre-permuted so its output columns are in
        #      NHWC order (the torch view + NCHW->NHWC transpose is folded in).
        h = (jnp.dot(z_ref[...], w1_ref[...], preferred_element_type=jnp.float32)
             + b1_ref[...])                                        # (B, 16*128)
        # un-flatten to (16*B, 128) rows (spatial-major) via 128-aligned lane slices
        x0 = jnp.concatenate(
            [h[:, s * C0:(s + 1) * C0] for s in range(S0)], axis=0)
        x0 = bn(x0, g0_ref[...], be0_ref[...], 1e-5, False)        # BatchNorm2d(128)

        # ---- Upsample x2 (nearest) as a 0/1 row-gather matmul on the MXU ----
        up1 = jnp.dot(u1_ref[...], x0,
                      preferred_element_type=jnp.float32)          # (B*8*8, 128)

        # ---- Conv2d(128,128,3,p=1) + BN(128, eps=0.8) + LeakyReLU(0.2) ----
        x1 = conv3x3(up1, H1, W1, w2_ref, b2_ref)
        x1 = bn(x1, g1_ref[...], be1_ref[...], 0.8, True)

        # ---- Upsample x2 ----
        up2 = jnp.dot(u2_ref[...], x1,
                      preferred_element_type=jnp.float32)          # (B*16*16, 128)

        # ---- Conv2d(128,64,3,p=1) + BN(64, eps=0.8) + LeakyReLU (lane-padded) ----
        x2 = conv3x3(up2, H2, W2, w3_ref, b3_ref)
        x2 = bn(x2, g2_ref[...], be2_ref[...], 0.8, True)

        # ---- Conv2d(64,channels,3,p=1) + Tanh, lane-dense (128-wide) output ----
        x3 = conv3x3(x2, H2, W2, w4_ref, b4_ref)
        o_ref[...] = jnp.tanh(x3)

    return kernel


# ---------------- parameter init (matches torch defaults in spirit) ----------------
def init_params(key):
    ks = jax.random.split(key, 8)

    def u(k, shape, fan_in):
        bound = 1.0 / jnp.sqrt(float(fan_in))
        return jax.random.uniform(k, shape, jnp.float32, -bound, bound)

    p = {}
    p["l1_w"] = u(ks[0], (128 * INIT_SIZE ** 2, LATENT_DIM), LATENT_DIM)
    p["l1_b"] = u(ks[1], (128 * INIT_SIZE ** 2,), LATENT_DIM)
    p["bn0_g"] = jnp.ones((128,), jnp.float32)
    p["bn0_b"] = jnp.zeros((128,), jnp.float32)
    p["conv1_w"] = u(ks[2], (128, 128, 3, 3), 128 * 9)
    p["conv1_b"] = u(ks[3], (128,), 128 * 9)
    p["bn1_g"] = jnp.ones((128,), jnp.float32)
    p["bn1_b"] = jnp.zeros((128,), jnp.float32)
    p["conv2_w"] = u(ks[4], (64, 128, 3, 3), 128 * 9)
    p["conv2_b"] = u(ks[5], (64,), 128 * 9)
    p["bn2_g"] = jnp.ones((64,), jnp.float32)
    p["bn2_b"] = jnp.zeros((64,), jnp.float32)
    p["conv3_w"] = u(ks[6], (CHANNELS, 64, 3, 3), 64 * 9)
    p["conv3_b"] = u(ks[7], (CHANNELS,), 64 * 9)
    return p


# ---------------- build: one-time prep + fused pallas_call ----------------
def build_generator(params, batch):
    B = batch
    S0 = INIT_SIZE * INIT_SIZE
    N_OUT = B * IMG_SIZE * IMG_SIZE

    # ----- hoisted layout transforms (done once, not per forward) -----
    # Linear: fold torch's view(B,128,4,4) + NCHW->NHWC permute into the weight.
    w1p = jnp.transpose(
        params["l1_w"].reshape(C0, INIT_SIZE, INIT_SIZE, LATENT_DIM),
        (1, 2, 0, 3)).reshape(S0 * C0, LATENT_DIM).T               # (latent, 16*128)
    b1p = jnp.transpose(
        params["l1_b"].reshape(C0, INIT_SIZE, INIT_SIZE),
        (1, 2, 0)).reshape(1, S0 * C0)

    w2p = _conv_weight_im2col(params["conv1_w"], C0, C0)           # (1152, 128)
    w3p = _conv_weight_im2col(params["conv2_w"], C0, CL)           # (1152, 128) out 64->128
    w4p = _conv_weight_im2col(params["conv3_w"], CL, CL)           # (1152, 128) in 64->128, out 3->128

    b2p = params["conv1_b"].reshape(1, C0)
    b3p = _pad_row(params["conv2_b"], CL)
    b4p = _pad_row(params["conv3_b"], CL)
    g0 = params["bn0_g"].reshape(1, C0)
    be0 = params["bn0_b"].reshape(1, C0)
    g1 = params["bn1_g"].reshape(1, C0)
    be1 = params["bn1_b"].reshape(1, C0)
    g2 = jnp.ones((1, CL), jnp.float32).at[0, :C1].set(params["bn2_g"])
    be2 = _pad_row(params["bn2_b"], CL)

    u1 = _upsample_matrix(B, INIT_SIZE, INIT_SIZE, in_spatial_major=True)   # (B*64, B*16)
    u2 = _upsample_matrix(B, MID_SIZE, MID_SIZE, in_spatial_major=False)    # (B*256, B*64)

    kernel = _make_generator_kernel(B)
    fused = pl.pallas_call(
        kernel,
        out_shape=jax.ShapeDtypeStruct((N_OUT, CL), jnp.float32),
        in_specs=[_VMEM] * 17,
        out_specs=_VMEM,
        scratch_shapes=[
            # one shared zero-padded activation buffer, reused by all 3 convs
            pltpu.VMEM((B, IMG_SIZE + 2, IMG_SIZE + 2, CL), jnp.float32),
        ],
        compiler_params=pltpu.CompilerParams(vmem_limit_bytes=32 * 1024 * 1024),
    )
    # TODO(synk): for large B / IMG_SIZE add a grid over batch with
    # dimension_semantics=("parallel",) (v7x dual-TC) and tile activations so the
    # working set stays inside v7x's 64 MiB VMEM; at B=2 a single program is best.

    weights = (w1p, b1p, g0, be0, u1, w2p, b2p, g1, be1,
               u2, w3p, b3p, g2, be2, w4p, b4p)

    @jax.jit
    def forward(z):
        out = fused(z, *weights)                                   # (B*16*16, 128) lane-dense
        img = out.reshape(B, IMG_SIZE, IMG_SIZE, CL)[:, :, :, :CHANNELS]
        return jnp.transpose(img, (0, 3, 1, 2))                    # NCHW like torch

    return forward


# ---------------- pure-JAX reference (structural correctness check) ----------------
def reference_forward(params, z):
    B = z.shape[0]
    out = z @ params["l1_w"].T + params["l1_b"]
    x = jnp.transpose(out.reshape(B, 128, INIT_SIZE, INIT_SIZE), (0, 2, 3, 1))  # NHWC

    def bn(x, g, b, eps):
        m = jnp.mean(x, axis=(0, 1, 2), keepdims=True)
        v = jnp.var(x, axis=(0, 1, 2), keepdims=True)
        return (x - m) * jax.lax.rsqrt(v + eps) * g + b

    def up2(x):
        x = jnp.repeat(x, 2, axis=1)
        return jnp.repeat(x, 2, axis=2)

    def conv(x, w, b):
        return jax.lax.conv_general_dilated(
            x, jnp.transpose(w, (2, 3, 1, 0)), (1, 1), ((1, 1), (1, 1)),
            dimension_numbers=("NHWC", "HWIO", "NHWC")) + b

    x = bn(x, params["bn0_g"], params["bn0_b"], 1e-5)
    x = up2(x)
    x = conv(x, params["conv1_w"], params["conv1_b"])
    x = bn(x, params["bn1_g"], params["bn1_b"], 0.8)
    x = jnp.where(x >= 0, x, LRELU_SLOPE * x)
    x = up2(x)
    x = conv(x, params["conv2_w"], params["conv2_b"])
    x = bn(x, params["bn2_g"], params["bn2_b"], 0.8)
    x = jnp.where(x >= 0, x, LRELU_SLOPE * x)
    x = conv(x, params["conv3_w"], params["conv3_b"])
    x = jnp.tanh(x)
    return jnp.transpose(x, (0, 3, 1, 2))                          # NCHW


if __name__ == "__main__":
    key = jax.random.PRNGKey(0)
    pkey, zkey = jax.random.split(key)
    params = init_params(pkey)
    B = 2
    z = jax.random.normal(zkey, (B, LATENT_DIM), jnp.float32)

    forward = build_generator(params, B)
    img = jax.block_until_ready(forward(z))

    assert img.shape == (B, CHANNELS, IMG_SIZE, IMG_SIZE), img.shape
    assert bool(jnp.all(jnp.isfinite(img)))
    assert bool(jnp.all(jnp.abs(img) <= 1.0 + 1e-6))  # tanh output range

    ref = jax.block_until_ready(reference_forward(params, z))
    max_err = float(jnp.max(jnp.abs(img - ref)))
    assert max_err < 1e-1, f"mismatch vs pure-JAX reference: {max_err}"

    print("KERNEL_OK")
</pallas_src>

<mosaic_0001>
module attributes {stable_mosaic.version = 11 : i64} {
  func.func @kernel(%arg0: memref<2x32xf32, #tpu.memory_space<vmem>>, %arg1: memref<32x2048xf32, #tpu.memory_space<vmem>>, %arg2: memref<1x2048xf32, #tpu.memory_space<vmem>>, %arg3: memref<1x128xf32, #tpu.memory_space<vmem>>, %arg4: memref<1x128xf32, #tpu.memory_space<vmem>>, %arg5: memref<128x32xf32, #tpu.memory_space<vmem>>, %arg6: memref<1152x128xf32, #tpu.memory_space<vmem>>, %arg7: memref<1x128xf32, #tpu.memory_space<vmem>>, %arg8: memref<1x128xf32, #tpu.memory_space<vmem>>, %arg9: memref<1x128xf32, #tpu.memory_space<vmem>>, %arg10: memref<512x128xf32, #tpu.memory_space<vmem>>, %arg11: memref<1152x128xf32, #tpu.memory_space<vmem>>, %arg12: memref<1x128xf32, #tpu.memory_space<vmem>>, %arg13: memref<1x128xf32, #tpu.memory_space<vmem>>, %arg14: memref<1x128xf32, #tpu.memory_space<vmem>>, %arg15: memref<1152x128xf32, #tpu.memory_space<vmem>>, %arg16: memref<1x128xf32, #tpu.memory_space<vmem>>, %arg17: memref<512x128xf32, #tpu.memory_space<vmem>>, %arg18: memref<2x18x18x128xf32, #tpu.memory_space<vmem>>) attributes {dimension_semantics = [], scalar_prefetch = 0 : i64, scratch_operands = 1 : i64, tpu.core_type = #tpu.core_type<tc>} {
    %cst = arith.constant 0.000000e+00 : f32
    %0 = vector.broadcast %cst : f32 to vector<2x18x18x128xf32>
    %c0 = arith.constant 0 : index
    %c0_0 = arith.constant 0 : index
    %c0_1 = arith.constant 0 : index
    %c0_2 = arith.constant 0 : index
    %1 = vector.load %arg18[%c0, %c0_0, %c0_1, %c0_2] : memref<2x18x18x128xf32, #tpu.memory_space<vmem>>, vector<2x18x18x128xf32>
    tpu.vector_store %arg18[%c0, %c0_0, %c0_1, %c0_2], %0 {strides = array<i32>} : memref<2x18x18x128xf32, #tpu.memory_space<vmem>>, vector<2x18x18x128xf32>,
    %c0_3 = arith.constant 0 : index
    %c0_4 = arith.constant 0 : index
    %2 = vector.load %arg0[%c0_3, %c0_4] : memref<2x32xf32, #tpu.memory_space<vmem>>, vector<2x32xf32>
    %c0_5 = arith.constant 0 : index
    %c0_6 = arith.constant 0 : index
    %3 = vector.load %arg1[%c0_5, %c0_6] : memref<32x2048xf32, #tpu.memory_space<vmem>>, vector<32x2048xf32>
    %cst_7 = arith.constant dense<0.000000e+00> : vector<2x2048xf32>
    %4 = tpu.matmul %2, %3, %cst_7 {dimension_numbers = #tpu.dot_dimension_numbers<[1], [0], [0], [1], [0, 0, 1, 1], [], []>} : vector<2x32xf32>, vector<32x2048xf32>, vector<2x2048xf32> -> vector<2x2048xf32>
    %c0_8 = arith.constant 0 : index
    %c0_9 = arith.constant 0 : index
    %5 = vector.load %arg2[%c0_8, %c0_9] : memref<1x2048xf32, #tpu.memory_space<vmem>>, vector<1x2048xf32>
    %6 = vector.broadcast %5 : vector<1x2048xf32> to vector<2x2048xf32>
    %7 = arith.addf %4, %6 : vector<2x2048xf32>
    %8 = vector.extract_strided_slice %7 {offsets = [0, 0], sizes = [2, 128], strides = [1, 1]} : vector<2x2048xf32> to vector<2x128xf32>
    %9 = vector.extract_strided_slice %7 {offsets = [0, 128], sizes = [2, 128], strides = [1, 1]} : vector<2x2048xf32> to vector<2x128xf32>
    %10 = vector.extract_strided_slice %7 {offsets = [0, 256], sizes = [2, 128], strides = [1, 1]} : vector<2x2048xf32> to vector<2x128xf32>
    %11 = vector.extract_strided_slice %7 {offsets = [0, 384], sizes = [2, 128], strides = [1, 1]} : vector<2x2048xf32> to vector<2x128xf32>
    %12 = vector.extract_strided_slice %7 {offsets = [0, 512], sizes = [2, 128], strides = [1, 1]} : vector<2x2048xf32> to vector<2x128xf32>
    %13 = vector.extract_strided_slice %7 {offsets = [0, 640], sizes = [2, 128], strides = [1, 1]} : vector<2x2048xf32> to vector<2x128xf32>
    %14 = vector.extract_strided_slice %7 {offsets = [0, 768], sizes = [2, 128], strides = [1, 1]} : vector<2x2048xf32> to vector<2x128xf32>
    %15 = vector.extract_strided_slice %7 {offsets = [0, 896], sizes = [2, 128], strides = [1, 1]} : vector<2x2048xf32> to vector<2x128xf32>
    %16 = vector.extract_strided_slice %7 {offsets = [0, 1024], sizes = [2, 128], strides = [1, 1]} : vector<2x2048xf32> to vector<2x128xf32>
    %17 = vector.extract_strided_slice %7 {offsets = [0, 1152], sizes = [2, 128], strides = [1, 1]} : vector<2x2048xf32> to vector<2x128xf32>
    %18 = vector.extract_strided_slice %7 {offsets = [0, 1280], sizes = [2, 128], strides = [1, 1]} : vector<2x2048xf32> to vector<2x128xf32>
    %19 = vector.extract_strided_slice %7 {offsets = [0, 1408], sizes = [2, 128], strides = [1, 1]} : vector<2x2048xf32> to vector<2x128xf32>
    %20 = vector.extract_strided_slice %7 {offsets = [0, 1536], sizes = [2, 128], strides = [1, 1]} : vector<2x2048xf32> to vector<2x128xf32>
    %21 = vector.extract_strided_slice %7 {offsets = [0, 1664], sizes = [2, 128], strides = [1, 1]} : vector<2x2048xf32> to vector<2x128xf32>
    %22 = vector.extract_strided_slice %7 {offsets = [0, 1792], sizes = [2, 128], strides = [1, 1]} : vector<2x2048xf32> to vector<2x128xf32>
    %23 = vector.extract_strided_slice %7 {offsets = [0, 1920], sizes = [2, 128], strides = [1, 1]} : vector<2x2048xf32> to vector<2x128xf32>
    %24 = tpu.concatenate %8, %9, %10, %11, %12, %13, %14, %15, %16, %17, %18, %19, %20, %21, %22, %23 in 0 : vector<2x128xf32>, vector<2x128xf32>, vector<2x128xf32>, vector<2x128xf32>, vector<2x128xf32>, vector<2x128xf32>, vector<2x128xf32>, vector<2x128xf32>, vector<2x128xf32>, vector<2x128xf32>, vector<2x128xf32>, vector<2x128xf32>, vector<2x128xf32>, vector<2x128xf32>, vector<2x128xf32>, vector<2x128xf32> -> vector<32x128xf32>
    %c0_10 = arith.constant 0 : index
    %c0_11 = arith.constant 0 : index
    %25 = vector.load %arg3[%c0_10, %c0_11] : memref<1x128xf32, #tpu.memory_space<vmem>>, vector<1x128xf32>
    %c0_12 = arith.constant 0 : index
    %c0_13 = arith.constant 0 : index
    %26 = vector.load %arg4[%c0_12, %c0_13] : memref<1x128xf32, #tpu.memory_space<vmem>>, vector<1x128xf32>
    %cst_14 = arith.constant dense<0.000000e+00> : vector<128xf32>
    %27 = vector.multi_reduction <add>, %24, %cst_14 [0] : vector<32x128xf32> to vector<128xf32>
    %28 = vector.shape_cast %27 : vector<128xf32> to vector<1x128xf32>
    %cst_15 = arith.constant 3.125000e-02 : f32
    %29 = vector.broadcast %cst_15 : f32 to vector<1x128xf32>
    %30 = arith.mulf %28, %29 : vector<1x128xf32>
    %31 = arith.mulf %24, %24 : vector<32x128xf32>
    %cst_16 = arith.constant dense<0.000000e+00> : vector<128xf32>
    %32 = vector.multi_reduction <add>, %31, %cst_16 [0] : vector<32x128xf32> to vector<128xf32>
    %33 = vector.shape_cast %32 : vector<128xf32> to vector<1x128xf32>
    %cst_17 = arith.constant 3.125000e-02 : f32
    %34 = vector.broadcast %cst_17 : f32 to vector<1x128xf32>
    %35 = arith.mulf %33, %34 : vector<1x128xf32>
    %36 = arith.mulf %30, %30 : vector<1x128xf32>
    %37 = arith.subf %35, %36 : vector<1x128xf32>
    %38 = vector.broadcast %30 : vector<1x128xf32> to vector<32x128xf32>
    %39 = arith.subf %24, %38 : vector<32x128xf32>
    %cst_18 = arith.constant 9.99999974E-6 : f32
    %40 = vector.broadcast %cst_18 : f32 to vector<1x128xf32>
    %41 = arith.addf %37, %40 : vector<1x128xf32>
    %42 = math.rsqrt %41 : vector<1x128xf32>
    %43 = vector.broadcast %42 : vector<1x128xf32> to vector<32x128xf32>
    %44 = arith.mulf %39, %43 : vector<32x128xf32>
    %45 = vector.broadcast %25 : vector<1x128xf32> to vector<32x128xf32>
    %46 = arith.mulf %44, %45 : vector<32x128xf32>
    %47 = vector.broadcast %26 : vector<1x128xf32> to vector<32x128xf32>
    %48 = arith.addf %46, %47 : vector<32x128xf32>
    %c0_19 = arith.constant 0 : index
    %c0_20 = arith.constant 0 : index
    %49 = vector.load %arg5[%c0_19, %c0_20] : memref<128x32xf32, #tpu.memory_space<vmem>>, vector<128x32xf32>
    %cst_21 = arith.constant dense<0.000000e+00> : vector<128x128xf32>
    %50 = tpu.matmul %49, %48, %cst_21 {dimension_numbers = #tpu.dot_dimension_numbers<[1], [0], [0], [1], [0, 0, 1, 1], [], []>} : vector<128x32xf32>, vector<32x128xf32>, vector<128x128xf32> -> vector<128x128xf32>
    %51 = vector.shape_cast %50 : vector<128x128xf32> to vector<2x8x8x128xf32>
    %c0_22 = arith.constant 0 : index
    %c1 = arith.constant 1 : index
    %c1_23 = arith.constant 1 : index
    %c0_24 = arith.constant 0 : index
    %52 = vector.load %arg18[%c0_22, %c1, %c1_23, %c0_24] : memref<2x18x18x128xf32, #tpu.memory_space<vmem>>, vector<2x8x8x128xf32>
    tpu.vector_store %arg18[%c0_22, %c1, %c1_23, %c0_24], %51 {strides = array<i32>} : memref<2x18x18x128xf32, #tpu.memory_space<vmem>>, vector<2x8x8x128xf32>,
    %c0_25 = arith.constant 0 : index
    %c0_26 = arith.constant 0 : index
    %c0_27 = arith.constant 0 : index
    %c0_28 = arith.constant 0 : index
    %53 = vector.load %arg18[%c0_25, %c0_26, %c0_27, %c0_28] : memref<2x18x18x128xf32, #tpu.memory_space<vmem>>, vector<2x8x8x128xf32>
    %54 = vector.shape_cast %53 : vector<2x8x8x128xf32> to vector<128x128xf32>
    %c0_29 = arith.constant 0 : index
    %c0_30 = arith.constant 0 : index
    %c1_31 = arith.constant 1 : index
    %c0_32 = arith.constant 0 : index
    %55 = vector.load %arg18[%c0_29, %c0_30, %c1_31, %c0_32] : memref<2x18x18x128xf32, #tpu.memory_space<vmem>>, vector<2x8x8x128xf32>
    %56 = vector.shape_cast %55 : vector<2x8x8x128xf32> to vector<128x128xf32>
    %c0_33 = arith.constant 0 : index
    %c0_34 = arith.constant 0 : index
    %c2 = arith.constant 2 : index
    %c0_35 = arith.constant 0 : index
    %57 = vector.load %arg18[%c0_33, %c0_34, %c2, %c0_35] : memref<2x18x18x128xf32, #tpu.memory_space<vmem>>, vector<2x8x8x128xf32>
    %58 = vector.shape_cast %57 : vector<2x8x8x128xf32> to vector<128x128xf32>
    %c0_36 = arith.constant 0 : index
    %c1_37 = arith.constant 1 : index
    %c0_38 = arith.constant 0 : index
    %c0_39 = arith.constant 0 : index
    %59 = vector.load %arg18[%c0_36, %c1_37, %c0_38, %c0_39] : memref<2x18x18x128xf32, #tpu.memory_space<vmem>>, vector<2x8x8x128xf32>
    %60 = vector.shape_cast %59 : vector<2x8x8x128xf32> to vector<128x128xf32>
    %c0_40 = arith.constant 0 : index
    %c1_41 = arith.constant 1 : index
    %c1_42 = arith.constant 1 : index
    %c0_43 = arith.constant 0 : index
    %61 = vector.load %arg18[%c0_40, %c1_41, %c1_42, %c0_43] : memref<2x18x18x128xf32, #tpu.memory_space<vmem>>, vector<2x8x8x128xf32>
    %62 = vector.shape_cast %61 : vector<2x8x8x128xf32> to vector<128x128xf32>
    %c0_44 = arith.constant 0 : index
    %c1_45 = arith.constant 1 : index
    %c2_46 = arith.constant 2 : index
    %c0_47 = arith.constant 0 : index
    %63 = vector.load %arg18[%c0_44, %c1_45, %c2_46, %c0_47] : memref<2x18x18x128xf32, #tpu.memory_space<vmem>>, vector<2x8x8x128xf32>
    %64 = vector.shape_cast %63 : vector<2x8x8x128xf32> to vector<128x128xf32>
    %c0_48 = arith.constant 0 : index
    %c2_49 = arith.constant 2 : index
    %c0_50 = arith.constant 0 : index
    %c0_51 = arith.constant 0 : index
    %65 = vector.load %arg18[%c0_48, %c2_49, %c0_50, %c0_51] : memref<2x18x18x128xf32, #tpu.memory_space<vmem>>, vector<2x8x8x128xf32>
    %66 = vector.shape_cast %65 : vector<2x8x8x128xf32> to vector<128x128xf32>
    %c0_52 = arith.constant 0 : index
    %c2_53 = arith.constant 2 : index
    %c1_54 = arith.constant 1 : index
    %c0_55 = arith.constant 0 : index
    %67 = vector.load %arg18[%c0_52, %c2_53, %c1_54, %c0_55] : memref<2x18x18x128xf32, #tpu.memory_space<vmem>>, vector<2x8x8x128xf32>
    %68 = vector.shape_cast %67 : vector<2x8x8x128xf32> to vector<128x128xf32>
    %c0_56 = arith.constant 0 : index
    %c2_57 = arith.constant 2 : index
    %c2_58 = arith.constant 2 : index
    %c0_59 = arith.constant 0 : index
    %69 = vector.load %arg18[%c0_56, %c2_57, %c2_58, %c0_59] : memref<2x18x18x128xf32, #tpu.memory_space<vmem>>, vector<2x8x8x128xf32>
    %70 = vector.shape_cast %69 : vector<2x8x8x128xf32> to vector<128x128xf32>
    %71 = tpu.concatenate %54, %56, %58, %60, %62, %64, %66, %68, %70 in 1 : vector<128x128xf32>, vector<128x128xf32>, vector<128x128xf32>, vector<128x128xf32>, vector<128x128xf32>, vector<128x128xf32>, vector<128x128xf32>, vector<128x128xf32>, vector<128x128xf32> -> vector<128x1152xf32>
    %c0_60 = arith.constant 0 : index
    %c0_61 = arith.constant 0 : index
    %72 = vector.load %arg6[%c0_60, %c0_61] : memref<1152x128xf32, #tpu.memory_space<vmem>>, vector<1152x128xf32>
    %cst_62 = arith.constant dense<0.000000e+00> : vector<128x128xf32>
    %73 = tpu.matmul %71, %72, %cst_62 {dimension_numbers = #tpu.dot_dimension_numbers<[1], [0], [0], [1], [0, 0, 1, 1], [], []>} : vector<128x1152xf32>, vector<1152x128xf32>, vector<128x128xf32> -> vector<128x128xf32>
    %c0_63 = arith.constant 0 : index
    %c0_64 = arith.constant 0 : index
    %74 = vector.load %arg7[%c0_63, %c0_64] : memref<1x128xf32, #tpu.memory_space<vmem>>, vector<1x128xf32>
    %75 = vector.broadcast %74 : vector<1x128xf32> to vector<128x128xf32>
    %76 = arith.addf %73, %75 : vector<128x128xf32>
    %c0_65 = arith.constant 0 : index
    %c0_66 = arith.constant 0 : index
    %77 = vector.load %arg8[%c0_65, %c0_66] : memref<1x128xf32, #tpu.memory_space<vmem>>, vector<1x128xf32>
    %c0_67 = arith.constant 0 : index
    %c0_68 = arith.constant 0 : index
    %78 = vector.load %arg9[%c0_67, %c0_68] : memref<1x128xf32, #tpu.memory_space<vmem>>, vector<1x128xf32>
    %cst_69 = arith.constant dense<0.000000e+00> : vector<128xf32>
    %79 = vector.multi_reduction <add>, %76, %cst_69 [0] : vector<128x128xf32> to vector<128xf32>
    %80 = vector.shape_cast %79 : vector<128xf32> to vector<1x128xf32>
    %cst_70 = arith.constant 7.812500e-03 : f32
    %81 = vector.broadcast %cst_70 : f32 to vector<1x128xf32>
    %82 = arith.mulf %80, %81 : vector<1x128xf32>
    %83 = arith.mulf %76, %76 : vector<128x128xf32>
    %cst_71 = arith.constant dense<0.000000e+00> : vector<128xf32>
    %84 = vector.multi_reduction <add>, %83, %cst_71 [0] : vector<128x128xf32> to vector<128xf32>
    %85 = vector.shape_cast %84 : vector<128xf32> to vector<1x128xf32>
    %cst_72 = arith.constant 7.812500e-03 : f32
    %86 = vector.broadcast %cst_72 : f32 to vector<1x128xf32>
    %87 = arith.mulf %85, %86 : vector<1x128xf32>
    %88 = arith.mulf %82, %82 : vector<1x128xf32>
    %89 = arith.subf %87, %88 : vector<1x128xf32>
    %90 = vector.broadcast %82 : vector<1x128xf32> to vector<128x128xf32>
    %91 = arith.subf %76, %90 : vector<128x128xf32>
    %cst_73 = arith.constant 8.000000e-01 : f32
    %92 = vector.broadcast %cst_73 : f32 to vector<1x128xf32>
    %93 = arith.addf %89, %92 : vector<1x128xf32>
    %94 = math.rsqrt %93 : vector<1x128xf32>
    %95 = vector.broadcast %94 : vector<1x128xf32> to vector<128x128xf32>
    %96 = arith.mulf %91, %95 : vector<128x128xf32>
    %97 = vector.broadcast %77 : vector<1x128xf32> to vector<128x128xf32>
    %98 = arith.mulf %96, %97 : vector<128x128xf32>
    %99 = vector.broadcast %78 : vector<1x128xf32> to vector<128x128xf32>
    %100 = arith.addf %98, %99 : vector<128x128xf32>
    %cst_74 = arith.constant 0.000000e+00 : f32
    %101 = vector.broadcast %cst_74 : f32 to vector<128x128xf32>
    %102 = arith.cmpf oge, %100, %101 : vector<128x128xf32>
    %cst_75 = arith.constant 2.000000e-01 : f32
    %103 = vector.broadcast %cst_75 : f32 to vector<128x128xf32>
    %104 = arith.mulf %103, %100 : vector<128x128xf32>
    %105 = arith.select %102, %100, %104 : vector<128x128xi1>, vector<128x128xf32>
    %c0_76 = arith.constant 0 : index
    %c0_77 = arith.constant 0 : index
    %106 = vector.load %arg10[%c0_76, %c0_77] : memref<512x128xf32, #tpu.memory_space<vmem>>, vector<512x128xf32>
    %cst_78 = arith.constant dense<0.000000e+00> : vector<512x128xf32>
    %107 = tpu.matmul %106, %105, %cst_78 {dimension_numbers = #tpu.dot_dimension_numbers<[1], [0], [0], [1], [0, 0, 1, 1], [], []>} : vector<512x128xf32>, vector<128x128xf32>, vector<512x128xf32> -> vector<512x128xf32>
    %108 = vector.shape_cast %107 : vector<512x128xf32> to vector<2x16x16x128xf32>
    %c0_79 = arith.constant 0 : index
    %c1_80 = arith.constant 1 : index
    %c1_81 = arith.constant 1 : index
    %c0_82 = arith.constant 0 : index
    %109 = vector.load %arg18[%c0_79, %c1_80, %c1_81, %c0_82] : memref<2x18x18x128xf32, #tpu.memory_space<vmem>>, vector<2x16x16x128xf32>
    tpu.vector_store %arg18[%c0_79, %c1_80, %c1_81, %c0_82], %108 {strides = array<i32>} : memref<2x18x18x128xf32, #tpu.memory_space<vmem>>, vector<2x16x16x128xf32>,
    %c0_83 = arith.constant 0 : index
    %c0_84 = arith.constant 0 : index
    %c0_85 = arith.constant 0 : index
    %c0_86 = arith.constant 0 : index
    %110 = vector.load %arg18[%c0_83, %c0_84, %c0_85, %c0_86] : memref<2x18x18x128xf32, #tpu.memory_space<vmem>>, vector<2x16x16x128xf32>
    %111 = vector.shape_cast %110 : vector<2x16x16x128xf32> to vector<512x128xf32>
    %c0_87 = arith.constant 0 : index
    %c0_88 = arith.constant 0 : index
    %c1_89 = arith.constant 1 : index
    %c0_90 = arith.constant 0 : index
    %112 = vector.load %arg18[%c0_87, %c0_88, %c1_89, %c0_90] : memref<2x18x18x128xf32, #tpu.memory_space<vmem>>, vector<2x16x16x128xf32>
    %113 = vector.shape_cast %112 : vector<2x16x16x128xf32> to vector<512x128xf32>
    %c0_91 = arith.constant 0 : index
    %c0_92 = arith.constant 0 : index
    %c2_93 = arith.constant 2 : index
    %c0_94 = arith.constant 0 : index
    %114 = vector.load %arg18[%c0_91, %c0_92, %c2_93, %c0_94] : memref<2x18x18x128xf32, #tpu.memory_space<vmem>>, vector<2x16x16x128xf32>
    %115 = vector.shape_cast %114 : vector<2x16x16x128xf32> to vector<512x128xf32>
    %c0_95 = arith.constant 0 : index
    %c1_96 = arith.constant 1 : index
    %c0_97 = arith.constant 0 : index
    %c0_98 = arith.constant 0 : index
    %116 = vector.load %arg18[%c0_95, %c1_96, %c0_97, %c0_98] : memref<2x18x18x128xf32, #tpu.memory_space<vmem>>, vector<2x16x16x128xf32>
    %117 = vector.shape_cast %116 : vector<2x16x16x128xf32> to vector<512x128xf32>
    %c0_99 = arith.constant 0 : index
    %c1_100 = arith.constant 1 : index
    %c1_101 = arith.constant 1 : index
    %c0_102 = arith.constant 0 : index
    %118 = vector.load %arg18[%c0_99, %c1_100, %c1_101, %c0_102] : memref<2x18x18x128xf32, #tpu.memory_space<vmem>>, vector<2x16x16x128xf32>
    %119 = vector.shape_cast %118 : vector<2x16x16x128xf32> to vector<512x128xf32>
    %c0_103 = arith.constant 0 : index
    %c1_104 = arith.constant 1 : index
    %c2_105 = arith.constant 2 : index
    %c0_106 = arith.constant 0 : index
    %120 = vector.load %arg18[%c0_103, %c1_104, %c2_105, %c0_106] : memref<2x18x18x128xf32, #tpu.memory_space<vmem>>, vector<2x16x16x128xf32>
    %121 = vector.shape_cast %120 : vector<2x16x16x128xf32> to vector<512x128xf32>
    %c0_107 = arith.constant 0 : index
    %c2_108 = arith.constant 2 : index
    %c0_109 = arith.constant 0 : index
    %c0_110 = arith.constant 0 : index
    %122 = vector.load %arg18[%c0_107, %c2_108, %c0_109, %c0_110] : memref<2x18x18x128xf32, #tpu.memory_space<vmem>>, vector<2x16x16x128xf32>
    %123 = vector.shape_cast %122 : vector<2x16x16x128xf32> to vector<512x128xf32>
    %c0_111 = arith.constant 0 : index
    %c2_112 = arith.constant 2 : index
    %c1_113 = arith.constant 1 : index
    %c0_114 = arith.constant 0 : index
    %124 = vector.load %arg18[%c0_111, %c2_112, %c1_113, %c0_114] : memref<2x18x18x128xf32, #tpu.memory_space<vmem>>, vector<2x16x16x128xf32>
    %125 = vector.shape_cast %124 : vector<2x16x16x128xf32> to vector<512x128xf32>
    %c0_115 = arith.constant 0 : index
    %c2_116 = arith.constant 2 : index
    %c2_117 = arith.constant 2 : index
    %c0_118 = arith.constant 0 : index
    %126 = vector.load %arg18[%c0_115, %c2_116, %c2_117, %c0_118] : memref<2x18x18x128xf32, #tpu.memory_space<vmem>>, vector<2x16x16x128xf32>
    %127 = vector.shape_cast %126 : vector<2x16x16x128xf32> to vector<512x128xf32>
    %128 = tpu.concatenate %111, %113, %115, %117, %119, %121, %123, %125, %127 in 1 : vector<512x128xf32>, vector<512x128xf32>, vector<512x128xf32>, vector<512x128xf32>, vector<512x128xf32>, vector<512x128xf32>, vector<512x128xf32>, vector<512x128xf32>, vector<512x128xf32> -> vector<512x1152xf32>
    %c0_119 = arith.constant 0 : index
    %c0_120 = arith.constant 0 : index
    %129 = vector.load %arg11[%c0_119, %c0_120] : memref<1152x128xf32, #tpu.memory_space<vmem>>, vector<1152x128xf32>
    %cst_121 = arith.constant dense<0.000000e+00> : vector<512x128xf32>
    %130 = tpu.matmul %128, %129, %cst_121 {dimension_numbers = #tpu.dot_dimension_numbers<[1], [0], [0], [1], [0, 0, 1, 1], [], []>} : vector<512x1152xf32>, vector<1152x128xf32>, vector<512x128xf32> -> vector<512x128xf32>
    %c0_122 = arith.constant 0 : index
    %c0_123 = arith.constant 0 : index
    %131 = vector.load %arg12[%c0_122, %c0_123] : memref<1x128xf32, #tpu.memory_space<vmem>>, vector<1x128xf32>
    %132 = vector.broadcast %131 : vector<1x128xf32> to vector<512x128xf32>
    %133 = arith.addf %130, %132 : vector<512x128xf32>
    %c0_124 = arith.constant 0 : index
    %c0_125 = arith.constant 0 : index
    %134 = vector.load %arg13[%c0_124, %c0_125] : memref<1x128xf32, #tpu.memory_space<vmem>>, vector<1x128xf32>
    %c0_126 = arith.constant 0 : index
    %c0_127 = arith.constant 0 : index
    %135 = vector.load %arg14[%c0_126, %c0_127] : memref<1x128xf32, #tpu.memory_space<vmem>>, vector<1x128xf32>
    %cst_128 = arith.constant dense<0.000000e+00> : vector<128xf32>
    %136 = vector.multi_reduction <add>, %133, %cst_128 [0] : vector<512x128xf32> to vector<128xf32>
    %137 = vector.shape_cast %136 : vector<128xf32> to vector<1x128xf32>
    %cst_129 = arith.constant 0.001953125 : f32
    %138 = vector.broadcast %cst_129 : f32 to vector<1x128xf32>
    %139 = arith.mulf %137, %138 : vector<1x128xf32>
    %140 = arith.mulf %133, %133 : vector<512x128xf32>
    %cst_130 = arith.constant dense<0.000000e+00> : vector<128xf32>
    %141 = vector.multi_reduction <add>, %140, %cst_130 [0] : vector<512x128xf32> to vector<128xf32>
    %142 = vector.shape_cast %141 : vector<128xf32> to vector<1x128xf32>
    %cst_131 = arith.constant 0.001953125 : f32
    %143 = vector.broadcast %cst_131 : f32 to vector<1x128xf32>
    %144 = arith.mulf %142, %143 : vector<1x128xf32>
    %145 = arith.mulf %139, %139 : vector<1x128xf32>
    %146 = arith.subf %144, %145 : vector<1x128xf32>
    %147 = vector.broadcast %139 : vector<1x128xf32> to vector<512x128xf32>
    %148 = arith.subf %133, %147 : vector<512x128xf32>
    %cst_132 = arith.constant 8.000000e-01 : f32
    %149 = vector.broadcast %cst_132 : f32 to vector<1x128xf32>
    %150 = arith.addf %146, %149 : vector<1x128xf32>
    %151 = math.rsqrt %150 : vector<1x128xf32>
    %152 = vector.broadcast %151 : vector<1x128xf32> to vector<512x128xf32>
    %153 = arith.mulf %148, %152 : vector<512x128xf32>
    %154 = vector.broadcast %134 : vector<1x128xf32> to vector<512x128xf32>
    %155 = arith.mulf %153, %154 : vector<512x128xf32>
    %156 = vector.broadcast %135 : vector<1x128xf32> to vector<512x128xf32>
    %157 = arith.addf %155, %156 : vector<512x128xf32>
    %cst_133 = arith.constant 0.000000e+00 : f32
    %158 = vector.broadcast %cst_133 : f32 to vector<512x128xf32>
    %159 = arith.cmpf oge, %157, %158 : vector<512x128xf32>
    %cst_134 = arith.constant 2.000000e-01 : f32
    %160 = vector.broadcast %cst_134 : f32 to vector<512x128xf32>
    %161 = arith.mulf %160, %157 : vector<512x128xf32>
    %162 = arith.select %159, %157, %161 : vector<512x128xi1>, vector<512x128xf32>
    %163 = vector.shape_cast %162 : vector<512x128xf32> to vector<2x16x16x128xf32>
    %c0_135 = arith.constant 0 : index
    %c1_136 = arith.constant 1 : index
    %c1_137 = arith.constant 1 : index
    %c0_138 = arith.constant 0 : index
    %164 = vector.load %arg18[%c0_135, %c1_136, %c1_137, %c0_138] : memref<2x18x18x128xf32, #tpu.memory_space<vmem>>, vector<2x16x16x128xf32>
    tpu.vector_store %arg18[%c0_135, %c1_136, %c1_137, %c0_138], %163 {strides = array<i32>} : memref<2x18x18x128xf32, #tpu.memory_space<vmem>>, vector<2x16x16x128xf32>,
    %c0_139 = arith.constant 0 : index
    %c0_140 = arith.constant 0 : index
    %c0_141 = arith.constant 0 : index
    %c0_142 = arith.constant 0 : index
    %165 = vector.load %arg18[%c0_139, %c0_140, %c0_141, %c0_142] : memref<2x18x18x128xf32, #tpu.memory_space<vmem>>, vector<2x16x16x128xf32>
    %166 = vector.shape_cast %165 : vector<2x16x16x128xf32> to vector<512x128xf32>
    %c0_143 = arith.constant 0 : index
    %c0_144 = arith.constant 0 : index
    %c1_145 = arith.constant 1 : index
    %c0_146 = arith.constant 0 : index
    %167 = vector.load %arg18[%c0_143, %c0_144, %c1_145, %c0_146] : memref<2x18x18x128xf32, #tpu.memory_space<vmem>>, vector<2x16x16x128xf32>
    %168 = vector.shape_cast %167 : vector<2x16x16x128xf32> to vector<512x128xf32>
    %c0_147 = arith.constant 0 : index
    %c0_148 = arith.constant 0 : index
    %c2_149 = arith.constant 2 : index
    %c0_150 = arith.constant 0 : index
    %169 = vector.load %arg18[%c0_147, %c0_148, %c2_149, %c0_150] : memref<2x18x18x128xf32, #tpu.memory_space<vmem>>, vector<2x16x16x128xf32>
    %170 = vector.shape_cast %169 : vector<2x16x16x128xf32> to vector<512x128xf32>
    %c0_151 = arith.constant 0 : index
    %c1_152 = arith.constant 1 : index
    %c0_153 = arith.constant 0 : index
    %c0_154 = arith.constant 0 : index
    %171 = vector.load %arg18[%c0_151, %c1_152, %c0_153, %c0_154] : memref<2x18x18x128xf32, #tpu.memory_space<vmem>>, vector<2x16x16x128xf32>
    %172 = vector.shape_cast %171 : vector<2x16x16x128xf32> to vector<512x128xf32>
    %c0_155 = arith.constant 0 : index
    %c1_156 = arith.constant 1 : index
    %c1_157 = arith.constant 1 : index
    %c0_158 = arith.constant 0 : index
    %173 = vector.load %arg18[%c0_155, %c1_156, %c1_157, %c0_158] : memref<2x18x18x128xf32, #tpu.memory_space<vmem>>, vector<2x16x16x128xf32>
    %174 = vector.shape_cast %173 : vector<2x16x16x128xf32> to vector<512x128xf32>
    %c0_159 = arith.constant 0 : index
    %c1_160 = arith.constant 1 : index
    %c2_161 = arith.constant 2 : index
    %c0_162 = arith.constant 0 : index
    %175 = vector.load %arg18[%c0_159, %c1_160, %c2_161, %c0_162] : memref<2x18x18x128xf32, #tpu.memory_space<vmem>>, vector<2x16x16x128xf32>
    %176 = vector.shape_cast %175 : vector<2x16x16x128xf32> to vector<512x128xf32>
    %c0_163 = arith.constant 0 : index
    %c2_164 = arith.constant 2 : index
    %c0_165 = arith.constant 0 : index
    %c0_166 = arith.constant 0 : index
    %177 = vector.load %arg18[%c0_163, %c2_164, %c0_165, %c0_166] : memref<2x18x18x128xf32, #tpu.memory_space<vmem>>, vector<2x16x16x128xf32>
    %178 = vector.shape_cast %177 : vector<2x16x16x128xf32> to vector<512x128xf32>
    %c0_167 = arith.constant 0 : index
    %c2_168 = arith.constant 2 : index
    %c1_169 = arith.constant 1 : index
    %c0_170 = arith.constant 0 : index
    %179 = vector.load %arg18[%c0_167, %c2_168, %c1_169, %c0_170] : memref<2x18x18x128xf32, #tpu.memory_space<vmem>>, vector<2x16x16x128xf32>
    %180 = vector.shape_cast %179 : vector<2x16x16x128xf32> to vector<512x128xf32>
    %c0_171 = arith.constant 0 : index
    %c2_172 = arith.constant 2 : index
    %c2_173 = arith.constant 2 : index
    %c0_174 = arith.constant 0 : index
    %181 = vector.load %arg18[%c0_171, %c2_172, %c2_173, %c0_174] : memref<2x18x18x128xf32, #tpu.memory_space<vmem>>, vector<2x16x16x128xf32>
    %182 = vector.shape_cast %181 : vector<2x16x16x128xf32> to vector<512x128xf32>
    %183 = tpu.concatenate %166, %168, %170, %172, %174, %176, %178, %180, %182 in 1 : vector<512x128xf32>, vector<512x128xf32>, vector<512x128xf32>, vector<512x128xf32>, vector<512x128xf32>, vector<512x128xf32>, vector<512x128xf32>, vector<512x128xf32>, vector<512x128xf32> -> vector<512x1152xf32>
    %c0_175 = arith.constant 0 : index
    %c0_176 = arith.constant 0 : index
    %184 = vector.load %arg15[%c0_175, %c0_176] : memref<1152x128xf32, #tpu.memory_space<vmem>>, vector<1152x128xf32>
    %cst_177 = arith.constant dense<0.000000e+00> : vector<512x128xf32>
    %185 = tpu.matmul %183, %184, %cst_177 {dimension_numbers = #tpu.dot_dimension_numbers<[1], [0], [0], [1], [0, 0, 1, 1], [], []>} : vector<512x1152xf32>, vector<1152x128xf32>, vector<512x128xf32> -> vector<512x128xf32>
    %c0_178 = arith.constant 0 : index
    %c0_179 = arith.constant 0 : index
    %186 = vector.load %arg16[%c0_178, %c0_179] : memref<1x128xf32, #tpu.memory_space<vmem>>, vector<1x128xf32>
    %187 = vector.broadcast %186 : vector<1x128xf32> to vector<512x128xf32>
    %188 = arith.addf %185, %187 : vector<512x128xf32>
    %189 = math.tanh %188 : vector<512x128xf32>
    %c0_180 = arith.constant 0 : index
    %c0_181 = arith.constant 0 : index
    %190 = vector.load %arg17[%c0_180, %c0_181] : memref<512x128xf32, #tpu.memory_space<vmem>>, vector<512x128xf32>
    tpu.vector_store %arg17[%c0_180, %c0_181], %189 {strides = array<i32>} : memref<512x128xf32, #tpu.memory_space<vmem>>, vector<512x128xf32>,
    return
  }
}

</mosaic_0001>

<llo_original>
// kernel: forward.1
$region0: #{forward.1}
  #allocation0 [shape = 'u32[]', space=smem, size = 0x4, offset = 0x4, fixed_abs, tag = 'smem constant byte address 0x4 - core index']
  #allocation1 [shape = 'u32[144,128]{1,0:T(1,128)}', space=vmem, size = 0x12000, scoped, tag = 'internal scratch']
  #allocation2 [shape = 'f32[2,18,18,128]{3,2,1,0:T(8,128)}', space=vmem, size = 0x6c000, scoped, tag = 'scratch operand']
  %s0 = inlined_call_operand.vmem [shape: f32[2,32], index: 0, kind: input, shape index: {}]
  %s1 = inlined_call_operand.hbm [shape: f32[32,2048], index: 1, kind: input, shape index: {}]
  %s2 = inlined_call_operand.vmem [shape: f32[1,2048], index: 2, kind: input, shape index: {}]
  %s3 = inlined_call_operand.vmem [shape: f32[1,128], index: 3, kind: input, shape index: {}, may-alias: {3,8,13}]
  %s4 = inlined_call_operand.vmem [shape: f32[1,128], index: 4, kind: input, shape index: {}, may-alias: {4,9,14}]
  %s5 = inlined_call_operand.hbm [shape: f32[128,32], index: 5, kind: input, shape index: {}]
  %s6 = inlined_call_operand.hbm [shape: f32[1152,128], index: 6, kind: input, shape index: {}]
  %s7 = inlined_call_operand.vmem [shape: f32[1,128], index: 7, kind: input, shape index: {}]
  %s8 = inlined_call_operand.vmem [shape: f32[1,128], index: 8, kind: input, shape index: {}, may-alias: {3,8,13}]
  %s9 = inlined_call_operand.vmem [shape: f32[1,128], index: 9, kind: input, shape index: {}, may-alias: {4,9,14}]
  %s10 = inlined_call_operand.hbm [shape: f32[512,128], index: 10, kind: input, shape index: {}]
  %s11 = inlined_call_operand.hbm [shape: f32[1152,128], index: 11, kind: input, shape index: {}]
  %s12 = inlined_call_operand.vmem [shape: f32[1,128], index: 12, kind: input, shape index: {}]
  %s13 = inlined_call_operand.vmem [shape: f32[1,128], index: 13, kind: input, shape index: {}, may-alias: {3,8,13}]
  %s14 = inlined_call_operand.vmem [shape: f32[1,128], index: 14, kind: input, shape index: {}, may-alias: {4,9,14}]
  %s15 = inlined_call_operand.hbm [shape: f32[1152,128], index: 15, kind: input, shape index: {}]
  %s16 = inlined_call_operand.vmem [shape: f32[1,128], index: 16, kind: input, shape index: {}]
  %s17 = inlined_call_operand.vmem [shape: f32[512,128], index: 17, kind: output, shape index: {}]
  %s18 = sld [smem:[#allocation0]]
  $region102: #{forward.1} parent=0
    _
  %s20 = ssub.s32 1, %s18
  %s21 = scalar_select 0, %s20, %s18
  $region1: #{forward.1} parent=0
    #allocation3 [shape = 'u8[262144]{0}', space=vmem, size = 0x40000, scoped, tag = 'input window, operand 1, single buffered']
    #allocation4 [shape = 's32[1]{0}', space=sflag, size = 0x4, scoped, tag = 'scoped memory for forward.1']
    #allocation5 [shape = 'u8[65536]{0}', space=vmem, size = 0x10000, scoped, tag = 'input window, operand 5, single buffered']
    #allocation6 [shape = 's32[1]{0}', space=sflag, size = 0x4, scoped, tag = 'scoped memory for forward.1']
    #allocation7 [shape = 'u8[589824]{0}', space=vmem, size = 0x90000, scoped, tag = 'input window, operand 6, single buffered']
    #allocation8 [shape = 'u8[262144]{0}', space=vmem, size = 0x40000, scoped, tag = 'input window, operand 10, single buffered']
    #allocation9 [shape = 's32[1]{0}', space=sflag, size = 0x4, scoped, tag = 'scoped memory for forward.1']
    #allocation10 [shape = 'u8[589824]{0}', space=vmem, size = 0x90000, scoped, tag = 'input window, operand 11, single buffered']
    #allocation11 [shape = 'u8[589824]{0}', space=vmem, size = 0x90000, scoped, tag = 'input window, operand 15, single buffered']
    #allocation12 [shape = 's32[1]{0}', space=sflag, size = 0x4, scoped, tag = 'scoped memory for forward.1']
    %22 = vsyncpa [#allocation4], 0
    %23 = vsyncpa [#allocation6], 0
    %24 = vsyncpa [#allocation9], 0
    %25 = vsyncpa [#allocation12], 0
    // Predicated region
    $region2: #{forward.1} parent=1 // pred_check
      _
    $region3: #{forward.1} parent=1 // pred_check_branch
      %27 = sbr.rel (0) target = $region5
    $region4: #{forward.1} parent=1 // pred_region
      _
    $region5: #{forward.1} parent=1 // pred_fallthru
      _
    // Predicated region
    $region6: #{forward.1} parent=1 // pred_check
      _
    $region7: #{forward.1} parent=1 // pred_check_branch
      %29 = sbr.rel (0) target = $region9
    $region8: #{forward.1} parent=1 // pred_region
      %s31 = ssub.s32 8192, 8192
      %32 = vsyncadd [#allocation4], %s31
      %s33 = sshll.u32 [#allocation3], 4
      %s34 = int_to_ptr.vmem [resolvable:$true] %s33
      %39 = dma.hbm_to_vmem [thread:$0]  %s1, 8192, %s34, [#allocation4], 2048, 2048, 128
    $region9: #{forward.1} parent=1 // pred_fallthru
      _
    // Predicated region
    $region10: #{forward.1} parent=1 // pred_check
      _
    $region11: #{forward.1} parent=1 // pred_check_branch
      %41 = sbr.rel (0) target = $region13
    $region12: #{forward.1} parent=1 // pred_region
      _
    $region13: #{forward.1} parent=1 // pred_fallthru
      _
    // Predicated region
    $region14: #{forward.1} parent=1 // pred_check
      _
    $region15: #{forward.1} parent=1 // pred_check_branch
      %43 = sbr.rel (0) target = $region17
    $region16: #{forward.1} parent=1 // pred_region
      _
    $region17: #{forward.1} parent=1 // pred_fallthru
      _
    // Predicated region
    $region18: #{forward.1} parent=1 // pred_check
      _
    $region19: #{forward.1} parent=1 // pred_check_branch
      %45 = sbr.rel (0) target = $region21
    $region20: #{forward.1} parent=1 // pred_region
      _
    $region21: #{forward.1} parent=1 // pred_fallthru
      _
    // Predicated region
    $region22: #{forward.1} parent=1 // pred_check
      _
    $region23: #{forward.1} parent=1 // pred_check_branch
      %47 = sbr.rel (0) target = $region25
    $region24: #{forward.1} parent=1 // pred_region
      %s49 = ssub.s32 2048, 2048
      %50 = vsyncadd [#allocation6], %s49
      %s51 = sshll.u32 [#allocation5], 4
      %s52 = int_to_ptr.vmem [resolvable:$true] %s51
      %57 = dma.hbm_to_vmem [thread:$0]  %s5, 2048, %s52, [#allocation6], 128, 128, 8
    $region25: #{forward.1} parent=1 // pred_fallthru
      _
    // Predicated region
    $region26: #{forward.1} parent=1 // pred_check
      _
    $region27: #{forward.1} parent=1 // pred_check_branch
      %59 = sbr.rel (0) target = $region29
    $region28: #{forward.1} parent=1 // pred_region
      %s61 = ssub.s32 18432, 18432
      %62 = vsyncadd [#allocation6], %s61
      %s63 = sshll.u32 [#allocation7], 4
      %s64 = int_to_ptr.vmem [resolvable:$true] %s63
      %69 = dma.hbm_to_vmem [thread:$0]  %s6, 18432, %s64, [#allocation6], 128, 128, 8
    $region29: #{forward.1} parent=1 // pred_fallthru
      _
    // Predicated region
    $region30: #{forward.1} parent=1 // pred_check
      _
    $region31: #{forward.1} parent=1 // pred_check_branch
      %71 = sbr.rel (0) target = $region33
    $region32: #{forward.1} parent=1 // pred_region
      _
    $region33: #{forward.1} parent=1 // pred_fallthru
      _
    // Predicated region
    $region34: #{forward.1} parent=1 // pred_check
      _
    $region35: #{forward.1} parent=1 // pred_check_branch
      %73 = sbr.rel (0) target = $region37
    $region36: #{forward.1} parent=1 // pred_region
      _
    $region37: #{forward.1} parent=1 // pred_fallthru
      _
    // Predicated region
    $region38: #{forward.1} parent=1 // pred_check
      _
    $region39: #{forward.1} parent=1 // pred_check_branch
      %75 = sbr.rel (0) target = $region41
    $region40: #{forward.1} parent=1 // pred_region
      _
    $region41: #{forward.1} parent=1 // pred_fallthru
      _
    // Predicated region
    $region42: #{forward.1} parent=1 // pred_check
      _
    $region43: #{forward.1} parent=1 // pred_check_branch
      %77 = sbr.rel (0) target = $region45
    $region44: #{forward.1} parent=1 // pred_region
      %s79 = ssub.s32 8192, 8192
      %80 = vsyncadd [#allocation9], %s79
      %s81 = sshll.u32 [#allocation8], 4
      %s82 = int_to_ptr.vmem [resolvable:$true] %s81
      %87 = dma.hbm_to_vmem [thread:$0]  %s10, 8192, %s82, [#allocation9], 128, 128, 8
    $region45: #{forward.1} parent=1 // pred_fallthru
      _
    // Predicated region
    $region46: #{forward.1} parent=1 // pred_check
      _
    $region47: #{forward.1} parent=1 // pred_check_branch
      %89 = sbr.rel (0) target = $region49
    $region48: #{forward.1} parent=1 // pred_region
      %s91 = ssub.s32 18432, 18432
      %92 = vsyncadd [#allocation9], %s91
      %s93 = sshll.u32 [#allocation10], 4
      %s94 = int_to_ptr.vmem [resolvable:$true] %s93
      %99 = dma.hbm_to_vmem [thread:$0]  %s11, 18432, %s94, [#allocation9], 128, 128, 8
    $region49: #{forward.1} parent=1 // pred_fallthru
      _
    // Predicated region
    $region50: #{forward.1} parent=1 // pred_check
      _
    $region51: #{forward.1} parent=1 // pred_check_branch
      %101 = sbr.rel (0) target = $region53
    $region52: #{forward.1} parent=1 // pred_region
      _
    $region53: #{forward.1} parent=1 // pred_fallthru
      _
    // Predicated region
    $region54: #{forward.1} parent=1 // pred_check
      _
    $region55: #{forward.1} parent=1 // pred_check_branch
      %103 = sbr.rel (0) target = $region57
    $region56: #{forward.1} parent=1 // pred_region
      _
    $region57: #{forward.1} parent=1 // pred_fallthru
      _
    // Predicated region
    $region58: #{forward.1} parent=1 // pred_check
      _
    $region59: #{forward.1} parent=1 // pred_check_branch
      %105 = sbr.rel (0) target = $region61
    $region60: #{forward.1} parent=1 // pred_region
      _
    $region61: #{forward.1} parent=1 // pred_fallthru
      _
    // Predicated region
    $region62: #{forward.1} parent=1 // pred_check
      _
    $region63: #{forward.1} parent=1 // pred_check_branch
      %107 = sbr.rel (0) target = $region65
    $region64: #{forward.1} parent=1 // pred_region
      %s109 = ssub.s32 18432, 18432
      %110 = vsyncadd [#allocation12], %s109
      %s111 = sshll.u32 [#allocation11], 4
      %s112 = int_to_ptr.vmem [resolvable:$true] %s111
      %117 = dma.hbm_to_vmem [thread:$0]  %s15, 18432, %s112, [#allocation12], 128, 128, 8
    $region65: #{forward.1} parent=1 // pred_fallthru
      _
    // Predicated region
    $region66: #{forward.1} parent=1 // pred_check
      _
    $region67: #{forward.1} parent=1 // pred_check_branch
      %119 = sbr.rel (0) target = $region69
    $region68: #{forward.1} parent=1 // pred_region
      _
    $region69: #{forward.1} parent=1 // pred_fallthru
      _
    // Predicated region
    $region70: #{forward.1} parent=1 // pred_check
      _
    $region71: #{forward.1} parent=1 // pred_check_branch
      %121 = sbr.rel (0) target = $region73
    $region72: #{forward.1} parent=1 // pred_region
      %122 = dma.done [#allocation4], 8192
    $region73: #{forward.1} parent=1 // pred_fallthru
      _
    // Predicated region
    $region74: #{forward.1} parent=1 // pred_check
      _
    $region75: #{forward.1} parent=1 // pred_check_branch
      %124 = sbr.rel (0) target = $region77
    $region76: #{forward.1} parent=1 // pred_region
      %125 = dma.done [#allocation6], 2048
    $region77: #{forward.1} parent=1 // pred_fallthru
      _
    // Predicated region
    $region78: #{forward.1} parent=1 // pred_check
      _
    $region79: #{forward.1} parent=1 // pred_check_branch
      %127 = sbr.rel (0) target = $region81
    $region80: #{forward.1} parent=1 // pred_region
      %128 = dma.done [#allocation6], 18432
    $region81: #{forward.1} parent=1 // pred_fallthru
      _
    // Predicated region
    $region82: #{forward.1} parent=1 // pred_check
      _
    $region83: #{forward.1} parent=1 // pred_check_branch
      %130 = sbr.rel (0) target = $region85
    $region84: #{forward.1} parent=1 // pred_region
      %131 = dma.done [#allocation9], 8192
    $region85: #{forward.1} parent=1 // pred_fallthru
      _
    // Predicated region
    $region86: #{forward.1} parent=1 // pred_check
      _
    $region87: #{forward.1} parent=1 // pred_check_branch
      %133 = sbr.rel (0) target = $region89
    $region88: #{forward.1} parent=1 // pred_region
      %134 = dma.done [#allocation9], 18432
    $region89: #{forward.1} parent=1 // pred_fallthru
      _
    // Predicated region
    $region90: #{forward.1} parent=1 // pred_check
      _
    $region91: #{forward.1} parent=1 // pred_check_branch
      %136 = sbr.rel (0) target = $region93
    $region92: #{forward.1} parent=1 // pred_region
      %137 = dma.done [#allocation12], 18432
    $region93: #{forward.1} parent=1 // pred_fallthru
      _
    %138 = vst [vmem:[#allocation2] sm:$0xff] 0.0
    %139 = vst [vmem:[#allocation2 + $0x8] sm:$0xff] 0.0
    %140 = vst [vmem:[#allocation2 + $0x10] sm:$0x3] 0.0
    %141 = vst [vmem:[#allocation2 + $0x18] sm:$0xff] 0.0
    %142 = vst [vmem:[#allocation2 + $0x20] sm:$0xff] 0.0
    %143 = vst [vmem:[#allocation2 + $0x28] sm:$0x3] 0.0
    %144 = vst [vmem:[#allocation2 + $0x30] sm:$0xff] 0.0
    %145 = vst [vmem:[#allocation2 + $0x38] sm:$0xff] 0.0
    %146 = vst [vmem:[#allocation2 + $0x40] sm:$0x3] 0.0
    %147 = vst [vmem:[#allocation2 + $0x48] sm:$0xff] 0.0
    %148 = vst [vmem:[#allocation2 + $0x50] sm:$0xff] 0.0
    %149 = vst [vmem:[#allocation2 + $0x58] sm:$0x3] 0.0
    %150 = vst [vmem:[#allocation2 + $0x60] sm:$0xff] 0.0
    %151 = vst [vmem:[#allocation2 + $0x68] sm:$0xff] 0.0
    %152 = vst [vmem:[#allocation2 + $0x70] sm:$0x3] 0.0
    %153 = vst [vmem:[#allocation2 + $0x78] sm:$0xff] 0.0
    %154 = vst [vmem:[#allocation2 + $0x80] sm:$0xff] 0.0
    %155 = vst [vmem:[#allocation2 + $0x88] sm:$0x3] 0.0
    %156 = vst [vmem:[#allocation2 + $0x90] sm:$0xff] 0.0
    %157 = vst [vmem:[#allocation2 + $0x98] sm:$0xff] 0.0
    %158 = vst [vmem:[#allocation2 + $0xa0] sm:$0x3] 0.0
    %159 = vst [vmem:[#allocation2 + $0xa8] sm:$0xff] 0.0
    %160 = vst [vmem:[#allocation2 + $0xb0] sm:$0xff] 0.0
    %161 = vst [vmem:[#allocation2 + $0xb8] sm:$0x3] 0.0
    %162 = vst [vmem:[#allocation2 + $0xc0] sm:$0xff] 0.0
    %163 = vst [vmem:[#allocation2 + $0xc8] sm:$0xff] 0.0
    %164 = vst [vmem:[#allocation2 + $0xd0] sm:$0x3] 0.0
    %165 = vst [vmem:[#allocation2 + $0xd8] sm:$0xff] 0.0
    %166 = vst [vmem:[#allocation2 + $0xe0] sm:$0xff] 0.0
    %167 = vst [vmem:[#allocation2 + $0xe8] sm:$0x3] 0.0
    %168 = vst [vmem:[#allocation2 + $0xf0] sm:$0xff] 0.0
    %169 = vst [vmem:[#allocation2 + $0xf8] sm:$0xff] 0.0
    %170 = vst [vmem:[#allocation2 + $0x100] sm:$0x3] 0.0
    %171 = vst [vmem:[#allocation2 + $0x108] sm:$0xff] 0.0
    %172 = vst [vmem:[#allocation2 + $0x110] sm:$0xff] 0.0
    %173 = vst [vmem:[#allocation2 + $0x118] sm:$0x3] 0.0
    %174 = vst [vmem:[#allocation2 + $0x120] sm:$0xff] 0.0
    %175 = vst [vmem:[#allocation2 + $0x128] sm:$0xff] 0.0
    %176 = vst [vmem:[#allocation2 + $0x130] sm:$0x3] 0.0
    %177 = vst [vmem:[#allocation2 + $0x138] sm:$0xff] 0.0
    %178 = vst [vmem:[#allocation2 + $0x140] sm:$0xff] 0.0
    %179 = vst [vmem:[#allocation2 + $0x148] sm:$0x3] 0.0
    %180 = vst [vmem:[#allocation2 + $0x150] sm:$0xff] 0.0
    %181 = vst [vmem:[#allocation2 + $0x158] sm:$0xff] 0.0
    %182 = vst [vmem:[#allocation2 + $0x160] sm:$0x3] 0.0
    %183 = vst [vmem:[#allocation2 + $0x168] sm:$0xff] 0.0
    %184 = vst [vmem:[#allocation2 + $0x170] sm:$0xff] 0.0
    %185 = vst [vmem:[#allocation2 + $0x178] sm:$0x3] 0.0
    %186 = vst [vmem:[#allocation2 + $0x180] sm:$0xff] 0.0
    %187 = vst [vmem:[#allocation2 + $0x188] sm:$0xff] 0.0
    %188 = vst [vmem:[#allocation2 + $0x190] sm:$0x3] 0.0
    %189 = vst [vmem:[#allocation2 + $0x198] sm:$0xff] 0.0
    %190 = vst [vmem:[#allocation2 + $0x1a0] sm:$0xff] 0.0
    %191 = vst [vmem:[#allocation2 + $0x1a8] sm:$0x3] 0.0
    %192 = vst [vmem:[#allocation2 + $0x1b0] sm:$0xff] 0.0
    %193 = vst [vmem:[#allocation2 + $0x1b8] sm:$0xff] 0.0
    %194 = vst [vmem:[#allocation2 + $0x1c0] sm:$0x3] 0.0
    %195 = vst [vmem:[#allocation2 + $0x1c8] sm:$0xff] 0.0
    %196 = vst [vmem:[#allocation2 + $0x1d0] sm:$0xff] 0.0
    %197 = vst [vmem:[#allocation2 + $0x1d8] sm:$0x3] 0.0
    %198 = vst [vmem:[#allocation2 + $0x1e0] sm:$0xff] 0.0
    %199 = vst [vmem:[#allocation2 + $0x1e8] sm:$0xff] 0.0
    %200 = vst [vmem:[#allocation2 + $0x1f0] sm:$0x3] 0.0
    %201 = vst [vmem:[#allocation2 + $0x1f8] sm:$0xff] 0.0
    %202 = vst [vmem:[#allocation2 + $0x200] sm:$0xff] 0.0
    %203 = vst [vmem:[#allocation2 + $0x208] sm:$0x3] 0.0
    %204 = vst [vmem:[#allocation2 + $0x210] sm:$0xff] 0.0
    %205 = vst [vmem:[#allocation2 + $0x218] sm:$0xff] 0.0
    %206 = vst [vmem:[#allocation2 + $0x220] sm:$0x3] 0.0
    %207 = vst [vmem:[#allocation2 + $0x228] sm:$0xff] 0.0
    %208 = vst [vmem:[#allocation2 + $0x230] sm:$0xff] 0.0
    %209 = vst [vmem:[#allocation2 + $0x238] sm:$0x3] 0.0
    %210 = vst [vmem:[#allocation2 + $0x240] sm:$0xff] 0.0
    %211 = vst [vmem:[#allocation2 + $0x248] sm:$0xff] 0.0
    %212 = vst [vmem:[#allocation2 + $0x250] sm:$0x3] 0.0
    %213 = vst [vmem:[#allocation2 + $0x258] sm:$0xff] 0.0
    %214 = vst [vmem:[#allocation2 + $0x260] sm:$0xff] 0.0
    %215 = vst [vmem:[#allocation2 + $0x268] sm:$0x3] 0.0
    %216 = vst [vmem:[#allocation2 + $0x270] sm:$0xff] 0.0
    %217 = vst [vmem:[#allocation2 + $0x278] sm:$0xff] 0.0
    %218 = vst [vmem:[#allocation2 + $0x280] sm:$0x3] 0.0
    %219 = vst [vmem:[#allocation2 + $0x288] sm:$0xff] 0.0
    %220 = vst [vmem:[#allocation2 + $0x290] sm:$0xff] 0.0
    %221 = vst [vmem:[#allocation2 + $0x298] sm:$0x3] 0.0
    %222 = vst [vmem:[#allocation2 + $0x2a0] sm:$0xff] 0.0
    %223 = vst [vmem:[#allocation2 + $0x2a8] sm:$0xff] 0.0
    %224 = vst [vmem:[#allocation2 + $0x2b0] sm:$0x3] 0.0
    %225 = vst [vmem:[#allocation2 + $0x2b8] sm:$0xff] 0.0
    %226 = vst [vmem:[#allocation2 + $0x2c0] sm:$0xff] 0.0
    %227 = vst [vmem:[#allocation2 + $0x2c8] sm:$0x3] 0.0
    %228 = vst [vmem:[#allocation2 + $0x2d0] sm:$0xff] 0.0
    %229 = vst [vmem:[#allocation2 + $0x2d8] sm:$0xff] 0.0
    %230 = vst [vmem:[#allocation2 + $0x2e0] sm:$0x3] 0.0
    %231 = vst [vmem:[#allocation2 + $0x2e8] sm:$0xff] 0.0
    %232 = vst [vmem:[#allocation2 + $0x2f0] sm:$0xff] 0.0
    %233 = vst [vmem:[#allocation2 + $0x2f8] sm:$0x3] 0.0
    %234 = vst [vmem:[#allocation2 + $0x300] sm:$0xff] 0.0
    %235 = vst [vmem:[#allocation2 + $0x308] sm:$0xff] 0.0
    %236 = vst [vmem:[#allocation2 + $0x310] sm:$0x3] 0.0
    %237 = vst [vmem:[#allocation2 + $0x318] sm:$0xff] 0.0
    %238 = vst [vmem:[#allocation2 + $0x320] sm:$0xff] 0.0
    %239 = vst [vmem:[#allocation2 + $0x328] sm:$0x3] 0.0
    %240 = vst [vmem:[#allocation2 + $0x330] sm:$0xff] 0.0
    %241 = vst [vmem:[#allocation2 + $0x338] sm:$0xff] 0.0
    %242 = vst [vmem:[#allocation2 + $0x340] sm:$0x3] 0.0
    %243 = vst [vmem:[#allocation2 + $0x348] sm:$0xff] 0.0
    %244 = vst [vmem:[#allocation2 + $0x350] sm:$0xff] 0.0
    %245 = vst [vmem:[#allocation2 + $0x358] sm:$0x3] 0.0
    %v246 = vld [vmem:[%s0] sm:$0x3]
    %v247 = vld [vmem:[#allocation3] sm:$0xff]
    %v248 = vld [vmem:[#allocation3 + $0x8] sm:$0xff]
    %v249 = vld [vmem:[#allocation3 + $0x10] sm:$0xff]
    %v250 = vld [vmem:[#allocation3 + $0x18] sm:$0xff]
    %v251 = vld [vmem:[#allocation3 + $0x20] sm:$0xff]
    %v252 = vld [vmem:[#allocation3 + $0x28] sm:$0xff]
    %v253 = vld [vmem:[#allocation3 + $0x30] sm:$0xff]
    %v254 = vld [vmem:[#allocation3 + $0x38] sm:$0xff]
    %v255 = vld [vmem:[#allocation3 + $0x40] sm:$0xff]
    %v256 = vld [vmem:[#allocation3 + $0x48] sm:$0xff]
    %v257 = vld [vmem:[#allocation3 + $0x50] sm:$0xff]
    %v258 = vld [vmem:[#allocation3 + $0x58] sm:$0xff]
    %v259 = vld [vmem:[#allocation3 + $0x60] sm:$0xff]
    %v260 = vld [vmem:[#allocation3 + $0x68] sm:$0xff]
    %v261 = vld [vmem:[#allocation3 + $0x70] sm:$0xff]
    %v262 = vld [vmem:[#allocation3 + $0x78] sm:$0xff]
    %v263 = vld [vmem:[#allocation3 + $0x80] sm:$0xff]
    %v264 = vld [vmem:[#allocation3 + $0x88] sm:$0xff]
    %v265 = vld [vmem:[#allocation3 + $0x90] sm:$0xff]
    %v266 = vld [vmem:[#allocation3 + $0x98] sm:$0xff]
    %v267 = vld [vmem:[#allocation3 + $0xa0] sm:$0xff]
    %v268 = vld [vmem:[#allocation3 + $0xa8] sm:$0xff]
    %v269 = vld [vmem:[#allocation3 + $0xb0] sm:$0xff]
    %v270 = vld [vmem:[#allocation3 + $0xb8] sm:$0xff]
    %v271 = vld [vmem:[#allocation3 + $0xc0] sm:$0xff]
    %v272 = vld [vmem:[#allocation3 + $0xc8] sm:$0xff]
    %v273 = vld [vmem:[#allocation3 + $0xd0] sm:$0xff]
    %v274 = vld [vmem:[#allocation3 + $0xd8] sm:$0xff]
    %v275 = vld [vmem:[#allocation3 + $0xe0] sm:$0xff]
    %v276 = vld [vmem:[#allocation3 + $0xe8] sm:$0xff]
    %v277 = vld [vmem:[#allocation3 + $0xf0] sm:$0xff]
    %v278 = vld [vmem:[#allocation3 + $0xf8] sm:$0xff]
    %v279 = vld [vmem:[#allocation3 + $0x100] sm:$0xff]
    %v280 = vld [vmem:[#allocation3 + $0x108] sm:$0xff]
    %v281 = vld [vmem:[#allocation3 + $0x110] sm:$0xff]
    %v282 = vld [vmem:[#allocation3 + $0x118] sm:$0xff]
    %v283 = vld [vmem:[#allocation3 + $0x120] sm:$0xff]
    %v284 = vld [vmem:[#allocation3 + $0x128] sm:$0xff]
    %v285 = vld [vmem:[#allocation3 + $0x130] sm:$0xff]
    %v286 = vld [vmem:[#allocation3 + $0x138] sm:$0xff]
    %v287 = vld [vmem:[#allocation3 + $0x140] sm:$0xff]
    %v288 = vld [vmem:[#allocation3 + $0x148] sm:$0xff]
    %v289 = vld [vmem:[#allocation3 + $0x150] sm:$0xff]
    %v290 = vld [vmem:[#allocation3 + $0x158] sm:$0xff]
    %v291 = vld [vmem:[#allocation3 + $0x160] sm:$0xff]
    %v292 = vld [vmem:[#allocation3 + $0x168] sm:$0xff]
    %v293 = vld [vmem:[#allocation3 + $0x170] sm:$0xff]
    %v294 = vld [vmem:[#allocation3 + $0x178] sm:$0xff]
    %v295 = vld [vmem:[#allocation3 + $0x180] sm:$0xff]
    %v296 = vld [vmem:[#allocation3 + $0x188] sm:$0xff]
    %v297 = vld [vmem:[#allocation3 + $0x190] sm:$0xff]
    %v298 = vld [vmem:[#allocation3 + $0x198] sm:$0xff]
    %v299 = vld [vmem:[#allocation3 + $0x1a0] sm:$0xff]
    %v300 = vld [vmem:[#allocation3 + $0x1a8] sm:$0xff]
    %v301 = vld [vmem:[#allocation3 + $0x1b0] sm:$0xff]
    %v302 = vld [vmem:[#allocation3 + $0x1b8] sm:$0xff]
    %v303 = vld [vmem:[#allocation3 + $0x1c0] sm:$0xff]
    %v304 = vld [vmem:[#allocation3 + $0x1c8] sm:$0xff]
    %v305 = vld [vmem:[#allocation3 + $0x1d0] sm:$0xff]
    %v306 = vld [vmem:[#allocation3 + $0x1d8] sm:$0xff]
    %v307 = vld [vmem:[#allocation3 + $0x1e0] sm:$0xff]
    %v308 = vld [vmem:[#allocation3 + $0x1e8] sm:$0xff]
    %v309 = vld [vmem:[#allocation3 + $0x1f0] sm:$0xff]
    %v310 = vld [vmem:[#allocation3 + $0x1f8] sm:$0xff]
    %v311 = vld [vmem:[%s2] sm:$0xff]
    %v312 = vld [vmem:[%s2 + $0x8] sm:$0xff]
    %v315 = vlaneseq
    %v316 = vshrl.u32 %v315, 7
    %v317 = vsub.s32 0, %v316
    %v318 = vrot.slane %v311, %v317
    %v319 = vlaneseq
    %v320 = vshrl.u32 %v319, 7
    %v321 = vsub.s32 1, %v320
    %v322 = vrot.slane %v311, %v321
    %v323 = vlaneseq
    %v324 = vshrl.u32 %v323, 7
    %v325 = vsub.s32 2, %v324
    %v326 = vrot.slane %v311, %v325
    %v327 = vlaneseq
    %v328 = vshrl.u32 %v327, 7
    %v329 = vsub.s32 3, %v328
    %v330 = vrot.slane %v311, %v329
    %v331 = vlaneseq
    %v332 = vshrl.u32 %v331, 7
    %v333 = vsub.s32 4, %v332
    %v334 = vrot.slane %v311, %v333
    %v335 = vlaneseq
    %v336 = vshrl.u32 %v335, 7
    %v337 = vsub.s32 5, %v336
    %v338 = vrot.slane %v311, %v337
    %v339 = vlaneseq
    %v340 = vshrl.u32 %v339, 7
    %v341 = vsub.s32 6, %v340
    %v342 = vrot.slane %v311, %v341
    %v343 = vlaneseq
    %v344 = vshrl.u32 %v343, 7
    %v345 = vsub.s32 7, %v344
    %v346 = vrot.slane %v311, %v345
    %v347 = vlaneseq
    %v348 = vshrl.u32 %v347, 7
    %v349 = vsub.s32 0, %v348
    %v350 = vrot.slane %v312, %v349
    %v351 = vlaneseq
    %v352 = vshrl.u32 %v351, 7
    %v353 = vsub.s32 1, %v352
    %v354 = vrot.slane %v312, %v353
    %v355 = vlaneseq
    %v356 = vshrl.u32 %v355, 7
    %v357 = vsub.s32 2, %v356
    %v358 = vrot.slane %v312, %v357
    %v359 = vlaneseq
    %v360 = vshrl.u32 %v359, 7
    %v361 = vsub.s32 3, %v360
    %v362 = vrot.slane %v312, %v361
    %v363 = vlaneseq
    %v364 = vshrl.u32 %v363, 7
    %v365 = vsub.s32 4, %v364
    %v366 = vrot.slane %v312, %v365
    %v367 = vlaneseq
    %v368 = vshrl.u32 %v367, 7
    %v369 = vsub.s32 5, %v368
    %v370 = vrot.slane %v312, %v369
    %v371 = vlaneseq
    %v372 = vshrl.u32 %v371, 7
    %v373 = vsub.s32 6, %v372
    %v374 = vrot.slane %v312, %v373
    %v375 = vlaneseq
    %v376 = vshrl.u32 %v375, 7
    %v377 = vsub.s32 7, %v376
    %v378 = vrot.slane %v312, %v377
    %vm395 = vcmask 261120
    %v397 = vsel %vm395, %v246, 0
    %399 = vmatprep.subr.mxu0 %v248
    %400 = vmatpush1.msra.mxu0 %v247
    %401 = vmatprep.subr.mxu0 %v264
    %402 = vmatpush1.msra.mxu0 %v263
    %403 = vmatprep.subr.mxu0 %v280
    %404 = vmatpush1.msra.mxu0 %v279
    %405 = vmatprep.subr.mxu0 %v296
    %406 = vmatpush1.msra.mxu0 %v295
    %407 = vmatprep.subr.mxu0 0.0
    %408 = vmatpush1.msra.mxu0 0.0
    %409 = vmatprep.subr.mxu0 0.0
    %410 = vmatpush1.msra.mxu0 0.0
    %411 = vmatprep.subr.mxu0 0.0
    %412 = vmatpush1.msra.mxu0 0.0
    %413 = vmatprep.subr.mxu0 0.0
    %414 = vmatpush1.msra.mxu0 0.0
    %415 = vmatprep.subr.mxu0 0.0
    %416 = vmatpush1.msra.mxu0 0.0
    %417 = vmatprep.subr.mxu0 0.0
    %418 = vmatpush1.msra.mxu0 0.0
    %419 = vmatprep.subr.mxu0 0.0
    %420 = vmatpush1.msra.mxu0 0.0
    %421 = vmatprep.subr.mxu0 0.0
    %422 = vmatpush1.msra.mxu0 0.0
    %423 = vmatprep.subr.mxu0 0.0
    %424 = vmatpush1.msra.mxu0 0.0
    %425 = vmatprep.subr.mxu0 0.0
    %426 = vmatpush1.msra.mxu0 0.0
    %427 = vmatprep.subr.mxu0 0.0
    %428 = vmatpush1.msra.mxu0 0.0
    %429 = vmatprep.subr.mxu0 0.0
    %430 = vmatpush1.msra.mxu0 0.0
    %431 = vmatprep.subr.mxu0 0.0
    %432 = vmatpush1.msra.mxu0 0.0
    %433 = vmatprep.subr.mxu0 0.0
    %434 = vmatpush1.msra.mxu0 0.0
    %435 = vmatprep.subr.mxu0 0.0
    %436 = vmatpush1.msra.mxu0 0.0
    %437 = vmatprep.subr.mxu0 0.0
    %438 = vmatpush1.msra.mxu0 0.0
    %439 = vmatprep.subr.mxu0 0.0
    %440 = vmatpush1.msra.mxu0 0.0
    %441 = vmatprep.subr.mxu0 0.0
    %442 = vmatpush1.msra.mxu0 0.0
    %443 = vmatprep.subr.mxu0 0.0
    %444 = vmatpush1.msra.mxu0 0.0
    %445 = vmatprep.subr.mxu0 0.0
    %446 = vmatpush1.msra.mxu0 0.0
    %447 = vmatprep.subr.mxu0 0.0
    %448 = vmatpush1.msra.mxu0 0.0
    %449 = vmatprep.subr.mxu0 0.0
    %450 = vmatpush1.msra.mxu0 0.0
    %451 = vmatprep.subr.mxu0 0.0
    %452 = vmatpush1.msra.mxu0 0.0
    %453 = vmatprep.subr.mxu0 0.0
    %454 = vmatpush1.msra.mxu0 0.0
    %455 = vmatprep.subr.mxu0 0.0
    %456 = vmatpush1.msra.mxu0 0.0
    %457 = vmatprep.subr.mxu0 0.0
    %458 = vmatpush1.msra.mxu0 0.0
    %459 = vmatprep.subr.mxu0 0.0
    %460 = vmatpush1.msra.mxu0 0.0
    %461 = vmatprep.subr.mxu0 0.0
    %462 = vmatpush1.msra.mxu0 0.0
    %463 = vmatprep.mubr.f32.mxu0 0.0
    %464 = vmatmul.mubr.f32.gmra.mrb[0].mxu0 %v397
    %v465 = vpop.f32.mrb[0].mxu0
    %v466 = vadd.f32 %v318, %v465
    %v467 = vpop.f32.mrb[0].mxu0
    %v468 = vadd.f32 %v322, %v467
    %469 = vdwg.mxu0
    %470 = vmatprep.subr.mxu0 %v250
    %471 = vmatpush1.msra.mxu0 %v249
    %472 = vmatprep.subr.mxu0 %v266
    %473 = vmatpush1.msra.mxu0 %v265
    %474 = vmatprep.subr.mxu0 %v282
    %475 = vmatpush1.msra.mxu0 %v281
    %476 = vmatprep.subr.mxu0 %v298
    %477 = vmatpush1.msra.mxu0 %v297
    %478 = vmatprep.subr.mxu0 0.0
    %479 = vmatpush1.msra.mxu0 0.0
    %480 = vmatprep.subr.mxu0 0.0
    %481 = vmatpush1.msra.mxu0 0.0
    %482 = vmatprep.subr.mxu0 0.0
    %483 = vmatpush1.msra.mxu0 0.0
    %484 = vmatprep.subr.mxu0 0.0
    %485 = vmatpush1.msra.mxu0 0.0
    %486 = vmatprep.subr.mxu0 0.0
    %487 = vmatpush1.msra.mxu0 0.0
    %488 = vmatprep.subr.mxu0 0.0
    %489 = vmatpush1.msra.mxu0 0.0
    %490 = vmatprep.subr.mxu0 0.0
    %491 = vmatpush1.msra.mxu0 0.0
    %492 = vmatprep.subr.mxu0 0.0
    %493 = vmatpush1.msra.mxu0 0.0
    %494 = vmatprep.subr.mxu0 0.0
    %495 = vmatpush1.msra.mxu0 0.0
    %496 = vmatprep.subr.mxu0 0.0
    %497 = vmatpush1.msra.mxu0 0.0
    %498 = vmatprep.subr.mxu0 0.0
    %499 = vmatpush1.msra.mxu0 0.0
    %500 = vmatprep.subr.mxu0 0.0
    %501 = vmatpush1.msra.mxu0 0.0
    %502 = vmatprep.subr.mxu0 0.0
    %503 = vmatpush1.msra.mxu0 0.0
    %504 = vmatprep.subr.mxu0 0.0
    %505 = vmatpush1.msra.mxu0 0.0
    %506 = vmatprep.subr.mxu0 0.0
    %507 = vmatpush1.msra.mxu0 0.0
    %508 = vmatprep.subr.mxu0 0.0
    %509 = vmatpush1.msra.mxu0 0.0
    %510 = vmatprep.subr.mxu0 0.0
    %511 = vmatpush1.msra.mxu0 0.0
    %512 = vmatprep.subr.mxu0 0.0
    %513 = vmatpush1.msra.mxu0 0.0
    %514 = vmatprep.subr.mxu0 0.0
    %515 = vmatpush1.msra.mxu0 0.0
    %516 = vmatprep.subr.mxu0 0.0
    %517 = vmatpush1.msra.mxu0 0.0
    %518 = vmatprep.subr.mxu0 0.0
    %519 = vmatpush1.msra.mxu0 0.0
    %520 = vmatprep.subr.mxu0 0.0
    %521 = vmatpush1.msra.mxu0 0.0
    %522 = vmatprep.subr.mxu0 0.0
    %523 = vmatpush1.msra.mxu0 0.0
    %524 = vmatprep.subr.mxu0 0.0
    %525 = vmatpush1.msra.mxu0 0.0
    %526 = vmatprep.subr.mxu0 0.0
    %527 = vmatpush1.msra.mxu0 0.0
    %528 = vmatprep.subr.mxu0 0.0
    %529 = vmatpush1.msra.mxu0 0.0
    %530 = vmatprep.subr.mxu0 0.0
    %531 = vmatpush1.msra.mxu0 0.0
    %532 = vmatprep.subr.mxu0 0.0
    %533 = vmatpush1.msra.mxu0 0.0
    %534 = vmatprep.mubr.f32.mxu0 0.0
    %535 = vmatmul.mubr.f32.gmra.mrb[0].mxu0 %v397
    %v536 = vpop.f32.mrb[0].mxu0
    %v537 = vadd.f32 %v326, %v536
    %v538 = vpop.f32.mrb[0].mxu0
    %v539 = vadd.f32 %v330, %v538
    %540 = vdwg.mxu0
    %541 = vmatprep.subr.mxu0 %v252
    %542 = vmatpush1.msra.mxu0 %v251
    %543 = vmatprep.subr.mxu0 %v268
    %544 = vmatpush1.msra.mxu0 %v267
    %545 = vmatprep.subr.mxu0 %v284
    %546 = vmatpush1.msra.mxu0 %v283
    %547 = vmatprep.subr.mxu0 %v300
    %548 = vmatpush1.msra.mxu0 %v299
    %549 = vmatprep.subr.mxu0 0.0
    %550 = vmatpush1.msra.mxu0 0.0
    %551 = vmatprep.subr.mxu0 0.0
    %552 = vmatpush1.msra.mxu0 0.0
    %553 = vmatprep.subr.mxu0 0.0
    %554 = vmatpush1.msra.mxu0 0.0
    %555 = vmatprep.subr.mxu0 0.0
    %556 = vmatpush1.msra.mxu0 0.0
    %557 = vmatprep.subr.mxu0 0.0
    %558 = vmatpush1.msra.mxu0 0.0
    %559 = vmatprep.subr.mxu0 0.0
    %560 = vmatpush1.msra.mxu0 0.0
    %561 = vmatprep.subr.mxu0 0.0
    %562 = vmatpush1.msra.mxu0 0.0
    %563 = vmatprep.subr.mxu0 0.0
    %564 = vmatpush1.msra.mxu0 0.0
    %565 = vmatprep.subr.mxu0 0.0
    %566 = vmatpush1.msra.mxu0 0.0
    %567 = vmatprep.subr.mxu0 0.0
    %568 = vmatpush1.msra.mxu0 0.0
    %569 = vmatprep.subr.mxu0 0.0
    %570 = vmatpush1.msra.mxu0 0.0
    %571 = vmatprep.subr.mxu0 0.0
    %572 = vmatpush1.msra.mxu0 0.0
    %573 = vmatprep.subr.mxu0 0.0
    %574 = vmatpush1.msra.mxu0 0.0
    %575 = vmatprep.subr.mxu0 0.0
    %576 = vmatpush1.msra.mxu0 0.0
    %577 = vmatprep.subr.mxu0 0.0
    %578 = vmatpush1.msra.mxu0 0.0
    %579 = vmatprep.subr.mxu0 0.0
    %580 = vmatpush1.msra.mxu0 0.0
    %581 = vmatprep.subr.mxu0 0.0
    %582 = vmatpush1.msra.mxu0 0.0
    %583 = vmatprep.subr.mxu0 0.0
    %584 = vmatpush1.msra.mxu0 0.0
    %585 = vmatprep.subr.mxu0 0.0
    %586 = vmatpush1.msra.mxu0 0.0
    %587 = vmatprep.subr.mxu0 0.0
    %588 = vmatpush1.msra.mxu0 0.0
    %589 = vmatprep.subr.mxu0 0.0
    %590 = vmatpush1.msra.mxu0 0.0
    %591 = vmatprep.subr.mxu0 0.0
    %592 = vmatpush1.msra.mxu0 0.0
    %593 = vmatprep.subr.mxu0 0.0
    %594 = vmatpush1.msra.mxu0 0.0
    %595 = vmatprep.subr.mxu0 0.0
    %596 = vmatpush1.msra.mxu0 0.0
    %597 = vmatprep.subr.mxu0 0.0
    %598 = vmatpush1.msra.mxu0 0.0
    %599 = vmatprep.subr.mxu0 0.0
    %600 = vmatpush1.msra.mxu0 0.0
    %601 = vmatprep.subr.mxu0 0.0
    %602 = vmatpush1.msra.mxu0 0.0
    %603 = vmatprep.subr.mxu0 0.0
    %604 = vmatpush1.msra.mxu0 0.0
    %605 = vmatprep.mubr.f32.mxu0 0.0
    %606 = vmatmul.mubr.f32.gmra.mrb[0].mxu0 %v397
    %v607 = vpop.f32.mrb[0].mxu0
    %v608 = vadd.f32 %v334, %v607
    %v609 = vpop.f32.mrb[0].mxu0
    %v610 = vadd.f32 %v338, %v609
    %611 = vdwg.mxu0
    %612 = vmatprep.subr.mxu0 %v254
    %613 = vmatpush1.msra.mxu0 %v253
    %614 = vmatprep.subr.mxu0 %v270
    %615 = vmatpush1.msra.mxu0 %v269
    %616 = vmatprep.subr.mxu0 %v286
    %617 = vmatpush1.msra.mxu0 %v285
    %618 = vmatprep.subr.mxu0 %v302
    %619 = vmatpush1.msra.mxu0 %v301
    %620 = vmatprep.subr.mxu0 0.0
    %621 = vmatpush1.msra.mxu0 0.0
    %622 = vmatprep.subr.mxu0 0.0
    %623 = vmatpush1.msra.mxu0 0.0
    %624 = vmatprep.subr.mxu0 0.0
    %625 = vmatpush1.msra.mxu0 0.0
    %626 = vmatprep.subr.mxu0 0.0
    %627 = vmatpush1.msra.mxu0 0.0
    %628 = vmatprep.subr.mxu0 0.0
    %629 = vmatpush1.msra.mxu0 0.0
    %630 = vmatprep.subr.mxu0 0.0
    %631 = vmatpush1.msra.mxu0 0.0
    %632 = vmatprep.subr.mxu0 0.0
    %633 = vmatpush1.msra.mxu0 0.0
    %634 = vmatprep.subr.mxu0 0.0
    %635 = vmatpush1.msra.mxu0 0.0
    %636 = vmatprep.subr.mxu0 0.0
    %637 = vmatpush1.msra.mxu0 0.0
    %638 = vmatprep.subr.mxu0 0.0
    %639 = vmatpush1.msra.mxu0 0.0
    %640 = vmatprep.subr.mxu0 0.0
    %641 = vmatpush1.msra.mxu0 0.0
    %642 = vmatprep.subr.mxu0 0.0
    %643 = vmatpush1.msra.mxu0 0.0
    %644 = vmatprep.subr.mxu0 0.0
    %645 = vmatpush1.msra.mxu0 0.0
    %646 = vmatprep.subr.mxu0 0.0
    %647 = vmatpush1.msra.mxu0 0.0
    %648 = vmatprep.subr.mxu0 0.0
    %649 = vmatpush1.msra.mxu0 0.0
    %650 = vmatprep.subr.mxu0 0.0
    %651 = vmatpush1.msra.mxu0 0.0
    %652 = vmatprep.subr.mxu0 0.0
    %653 = vmatpush1.msra.mxu0 0.0
    %654 = vmatprep.subr.mxu0 0.0
    %655 = vmatpush1.msra.mxu0 0.0
    %656 = vmatprep.subr.mxu0 0.0
    %657 = vmatpush1.msra.mxu0 0.0
    %658 = vmatprep.subr.mxu0 0.0
    %659 = vmatpush1.msra.mxu0 0.0
    %660 = vmatprep.subr.mxu0 0.0
    %661 = vmatpush1.msra.mxu0 0.0
    %662 = vmatprep.subr.mxu0 0.0
    %663 = vmatpush1.msra.mxu0 0.0
    %664 = vmatprep.subr.mxu0 0.0
    %665 = vmatpush1.msra.mxu0 0.0
    %666 = vmatprep.subr.mxu0 0.0
    %667 = vmatpush1.msra.mxu0 0.0
    %668 = vmatprep.subr.mxu0 0.0
    %669 = vmatpush1.msra.mxu0 0.0
    %670 = vmatprep.subr.mxu0 0.0
    %671 = vmatpush1.msra.mxu0 0.0
    %672 = vmatprep.subr.mxu0 0.0
    %673 = vmatpush1.msra.mxu0 0.0
    %674 = vmatprep.subr.mxu0 0.0
    %675 = vmatpush1.msra.mxu0 0.0
    %676 = vmatprep.mubr.f32.mxu0 0.0
    %677 = vmatmul.mubr.f32.gmra.mrb[0].mxu0 %v397
    %v678 = vpop.f32.mrb[0].mxu0
    %v679 = vadd.f32 %v342, %v678
    %v680 = vpop.f32.mrb[0].mxu0
    %v681 = vadd.f32 %v346, %v680
    %682 = vdwg.mxu0
    %683 = vmatprep.subr.mxu0 %v256
    %684 = vmatpush1.msra.mxu0 %v255
    %685 = vmatprep.subr.mxu0 %v272
    %686 = vmatpush1.msra.mxu0 %v271
    %687 = vmatprep.subr.mxu0 %v288
    %688 = vmatpush1.msra.mxu0 %v287
    %689 = vmatprep.subr.mxu0 %v304
    %690 = vmatpush1.msra.mxu0 %v303
    %691 = vmatprep.subr.mxu0 0.0
    %692 = vmatpush1.msra.mxu0 0.0
    %693 = vmatprep.subr.mxu0 0.0
    %694 = vmatpush1.msra.mxu0 0.0
    %695 = vmatprep.subr.mxu0 0.0
    %696 = vmatpush1.msra.mxu0 0.0
    %697 = vmatprep.subr.mxu0 0.0
    %698 = vmatpush1.msra.mxu0 0.0
    %699 = vmatprep.subr.mxu0 0.0
    %700 = vmatpush1.msra.mxu0 0.0
    %701 = vmatprep.subr.mxu0 0.0
    %702 = vmatpush1.msra.mxu0 0.0
    %703 = vmatprep.subr.mxu0 0.0
    %704 = vmatpush1.msra.mxu0 0.0
    %705 = vmatprep.subr.mxu0 0.0
    %706 = vmatpush1.msra.mxu0 0.0
    %707 = vmatprep.subr.mxu0 0.0
    %708 = vmatpush1.msra.mxu0 0.0
    %709 = vmatprep.subr.mxu0 0.0
    %710 = vmatpush1.msra.mxu0 0.0
    %711 = vmatprep.subr.mxu0 0.0
    %712 = vmatpush1.msra.mxu0 0.0
    %713 = vmatprep.subr.mxu0 0.0
    %714 = vmatpush1.msra.mxu0 0.0
    %715 = vmatprep.subr.mxu0 0.0
    %716 = vmatpush1.msra.mxu0 0.0
    %717 = vmatprep.subr.mxu0 0.0
    %718 = vmatpush1.msra.mxu0 0.0
    %719 = vmatprep.subr.mxu0 0.0
    %720 = vmatpush1.msra.mxu0 0.0
    %721 = vmatprep.subr.mxu0 0.0
    %722 = vmatpush1.msra.mxu0 0.0
    %723 = vmatprep.subr.mxu0 0.0
    %724 = vmatpush1.msra.mxu0 0.0
    %725 = vmatprep.subr.mxu0 0.0
    %726 = vmatpush1.msra.mxu0 0.0
    %727 = vmatprep.subr.mxu0 0.0
    %728 = vmatpush1.msra.mxu0 0.0
    %729 = vmatprep.subr.mxu0 0.0
    %730 = vmatpush1.msra.mxu0 0.0
    %731 = vmatprep.subr.mxu0 0.0
    %732 = vmatpush1.msra.mxu0 0.0
    %733 = vmatprep.subr.mxu0 0.0
    %734 = vmatpush1.msra.mxu0 0.0
    %735 = vmatprep.subr.mxu0 0.0
    %736 = vmatpush1.msra.mxu0 0.0
    %737 = vmatprep.subr.mxu0 0.0
    %738 = vmatpush1.msra.mxu0 0.0
    %739 = vmatprep.subr.mxu0 0.0
    %740 = vmatpush1.msra.mxu0 0.0
    %741 = vmatprep.subr.mxu0 0.0
    %742 = vmatpush1.msra.mxu0 0.0
    %743 = vmatprep.subr.mxu0 0.0
    %744 = vmatpush1.msra.mxu0 0.0
    %745 = vmatprep.subr.mxu0 0.0
    %746 = vmatpush1.msra.mxu0 0.0
    %747 = vmatprep.mubr.f32.mxu0 0.0
    %748 = vmatmul.mubr.f32.gmra.mrb[0].mxu0 %v397
    %v749 = vpop.f32.mrb[0].mxu0
    %v750 = vadd.f32 %v350, %v749
    %v751 = vpop.f32.mrb[0].mxu0
    %v752 = vadd.f32 %v354, %v751
    %753 = vdwg.mxu0
    %754 = vmatprep.subr.mxu0 %v258
    %755 = vmatpush1.msra.mxu0 %v257
    %756 = vmatprep.subr.mxu0 %v274
    %757 = vmatpush1.msra.mxu0 %v273
    %758 = vmatprep.subr.mxu0 %v290
    %759 = vmatpush1.msra.mxu0 %v289
    %760 = vmatprep.subr.mxu0 %v306
    %761 = vmatpush1.msra.mxu0 %v305
    %762 = vmatprep.subr.mxu0 0.0
    %763 = vmatpush1.msra.mxu0 0.0
    %764 = vmatprep.subr.mxu0 0.0
    %765 = vmatpush1.msra.mxu0 0.0
    %766 = vmatprep.subr.mxu0 0.0
    %767 = vmatpush1.msra.mxu0 0.0
    %768 = vmatprep.subr.mxu0 0.0
    %769 = vmatpush1.msra.mxu0 0.0
    %770 = vmatprep.subr.mxu0 0.0
    %771 = vmatpush1.msra.mxu0 0.0
    %772 = vmatprep.subr.mxu0 0.0
    %773 = vmatpush1.msra.mxu0 0.0
    %774 = vmatprep.subr.mxu0 0.0
    %775 = vmatpush1.msra.mxu0 0.0
    %776 = vmatprep.subr.mxu0 0.0
    %777 = vmatpush1.msra.mxu0 0.0
    %778 = vmatprep.subr.mxu0 0.0
    %779 = vmatpush1.msra.mxu0 0.0
    %780 = vmatprep.subr.mxu0 0.0
    %781 = vmatpush1.msra.mxu0 0.0
    %782 = vmatprep.subr.mxu0 0.0
    %783 = vmatpush1.msra.mxu0 0.0
    %784 = vmatprep.subr.mxu0 0.0
    %785 = vmatpush1.msra.mxu0 0.0
    %786 = vmatprep.subr.mxu0 0.0
    %787 = vmatpush1.msra.mxu0 0.0
    %788 = vmatprep.subr.mxu0 0.0
    %789 = vmatpush1.msra.mxu0 0.0
    %790 = vmatprep.subr.mxu0 0.0
    %791 = vmatpush1.msra.mxu0 0.0
    %792 = vmatprep.subr.mxu0 0.0
    %793 = vmatpush1.msra.mxu0 0.0
    %794 = vmatprep.subr.mxu0 0.0
    %795 = vmatpush1.msra.mxu0 0.0
    %796 = vmatprep.subr.mxu0 0.0
    %797 = vmatpush1.msra.mxu0 0.0
    %798 = vmatprep.subr.mxu0 0.0
    %799 = vmatpush1.msra.mxu0 0.0
    %800 = vmatprep.subr.mxu0 0.0
    %801 = vmatpush1.msra.mxu0 0.0
    %802 = vmatprep.subr.mxu0 0.0
    %803 = vmatpush1.msra.mxu0 0.0
    %804 = vmatprep.subr.mxu0 0.0
    %805 = vmatpush1.msra.mxu0 0.0
    %806 = vmatprep.subr.mxu0 0.0
    %807 = vmatpush1.msra.mxu0 0.0
    %808 = vmatprep.subr.mxu0 0.0
    %809 = vmatpush1.msra.mxu0 0.0
    %810 = vmatprep.subr.mxu0 0.0
    %811 = vmatpush1.msra.mxu0 0.0
    %812 = vmatprep.subr.mxu0 0.0
    %813 = vmatpush1.msra.mxu0 0.0
    %814 = vmatprep.subr.mxu0 0.0
    %815 = vmatpush1.msra.mxu0 0.0
    %816 = vmatprep.subr.mxu0 0.0
    %817 = vmatpush1.msra.mxu0 0.0
    %818 = vmatprep.mubr.f32.mxu0 0.0
    %819 = vmatmul.mubr.f32.gmra.mrb[0].mxu0 %v397
    %v820 = vpop.f32.mrb[0].mxu0
    %v821 = vadd.f32 %v358, %v820
    %v822 = vpop.f32.mrb[0].mxu0
    %v823 = vadd.f32 %v362, %v822
    %824 = vdwg.mxu0
    %825 = vmatprep.subr.mxu0 %v260
    %826 = vmatpush1.msra.mxu0 %v259
    %827 = vmatprep.subr.mxu0 %v276
    %828 = vmatpush1.msra.mxu0 %v275
    %829 = vmatprep.subr.mxu0 %v292
    %830 = vmatpush1.msra.mxu0 %v291
    %831 = vmatprep.subr.mxu0 %v308
    %832 = vmatpush1.msra.mxu0 %v307
    %833 = vmatprep.subr.mxu0 0.0
    %834 = vmatpush1.msra.mxu0 0.0
    %835 = vmatprep.subr.mxu0 0.0
    %836 = vmatpush1.msra.mxu0 0.0
    %837 = vmatprep.subr.mxu0 0.0
    %838 = vmatpush1.msra.mxu0 0.0
    %839 = vmatprep.subr.mxu0 0.0
    %840 = vmatpush1.msra.mxu0 0.0
    %841 = vmatprep.subr.mxu0 0.0
    %842 = vmatpush1.msra.mxu0 0.0
    %843 = vmatprep.subr.mxu0 0.0
    %844 = vmatpush1.msra.mxu0 0.0
    %845 = vmatprep.subr.mxu0 0.0
    %846 = vmatpush1.msra.mxu0 0.0
    %847 = vmatprep.subr.mxu0 0.0
    %848 = vmatpush1.msra.mxu0 0.0
    %849 = vmatprep.subr.mxu0 0.0
    %850 = vmatpush1.msra.mxu0 0.0
    %851 = vmatprep.subr.mxu0 0.0
    %852 = vmatpush1.msra.mxu0 0.0
    %853 = vmatprep.subr.mxu0 0.0
    %854 = vmatpush1.msra.mxu0 0.0
    %855 = vmatprep.subr.mxu0 0.0
    %856 = vmatpush1.msra.mxu0 0.0
    %857 = vmatprep.subr.mxu0 0.0
    %858 = vmatpush1.msra.mxu0 0.0
    %859 = vmatprep.subr.mxu0 0.0
    %860 = vmatpush1.msra.mxu0 0.0
    %861 = vmatprep.subr.mxu0 0.0
    %862 = vmatpush1.msra.mxu0 0.0
    %863 = vmatprep.subr.mxu0 0.0
    %864 = vmatpush1.msra.mxu0 0.0
    %865 = vmatprep.subr.mxu0 0.0
    %866 = vmatpush1.msra.mxu0 0.0
    %867 = vmatprep.subr.mxu0 0.0
    %868 = vmatpush1.msra.mxu0 0.0
    %869 = vmatprep.subr.mxu0 0.0
    %870 = vmatpush1.msra.mxu0 0.0
    %871 = vmatprep.subr.mxu0 0.0
    %872 = vmatpush1.msra.mxu0 0.0
    %873 = vmatprep.subr.mxu0 0.0
    %874 = vmatpush1.msra.mxu0 0.0
    %875 = vmatprep.subr.mxu0 0.0
    %876 = vmatpush1.msra.mxu0 0.0
    %877 = vmatprep.subr.mxu0 0.0
    %878 = vmatpush1.msra.mxu0 0.0
    %879 = vmatprep.subr.mxu0 0.0
    %880 = vmatpush1.msra.mxu0 0.0
    %881 = vmatprep.subr.mxu0 0.0
    %882 = vmatpush1.msra.mxu0 0.0
    %883 = vmatprep.subr.mxu0 0.0
    %884 = vmatpush1.msra.mxu0 0.0
    %885 = vmatprep.subr.mxu0 0.0
    %886 = vmatpush1.msra.mxu0 0.0
    %887 = vmatprep.subr.mxu0 0.0
    %888 = vmatpush1.msra.mxu0 0.0
    %889 = vmatprep.mubr.f32.mxu0 0.0
    %890 = vmatmul.mubr.f32.gmra.mrb[0].mxu0 %v397
    %v891 = vpop.f32.mrb[0].mxu0
    %v892 = vadd.f32 %v366, %v891
    %v893 = vpop.f32.mrb[0].mxu0
    %v894 = vadd.f32 %v370, %v893
    %895 = vdwg.mxu0
    %896 = vmatprep.subr.mxu0 %v262
    %897 = vmatpush1.msra.mxu0 %v261
    %898 = vmatprep.subr.mxu0 %v278
    %899 = vmatpush1.msra.mxu0 %v277
    %900 = vmatprep.subr.mxu0 %v294
    %901 = vmatpush1.msra.mxu0 %v293
    %902 = vmatprep.subr.mxu0 %v310
    %903 = vmatpush1.msra.mxu0 %v309
    %904 = vmatprep.subr.mxu0 0.0
    %905 = vmatpush1.msra.mxu0 0.0
    %906 = vmatprep.subr.mxu0 0.0
    %907 = vmatpush1.msra.mxu0 0.0
    %908 = vmatprep.subr.mxu0 0.0
    %909 = vmatpush1.msra.mxu0 0.0
    %910 = vmatprep.subr.mxu0 0.0
    %911 = vmatpush1.msra.mxu0 0.0
    %912 = vmatprep.subr.mxu0 0.0
    %913 = vmatpush1.msra.mxu0 0.0
    %914 = vmatprep.subr.mxu0 0.0
    %915 = vmatpush1.msra.mxu0 0.0
    %916 = vmatprep.subr.mxu0 0.0
    %917 = vmatpush1.msra.mxu0 0.0
    %918 = vmatprep.subr.mxu0 0.0
    %919 = vmatpush1.msra.mxu0 0.0
    %920 = vmatprep.subr.mxu0 0.0
    %921 = vmatpush1.msra.mxu0 0.0
    %922 = vmatprep.subr.mxu0 0.0
    %923 = vmatpush1.msra.mxu0 0.0
    %924 = vmatprep.subr.mxu0 0.0
    %925 = vmatpush1.msra.mxu0 0.0
    %926 = vmatprep.subr.mxu0 0.0
    %927 = vmatpush1.msra.mxu0 0.0
    %928 = vmatprep.subr.mxu0 0.0
    %929 = vmatpush1.msra.mxu0 0.0
    %930 = vmatprep.subr.mxu0 0.0
    %931 = vmatpush1.msra.mxu0 0.0
    %932 = vmatprep.subr.mxu0 0.0
    %933 = vmatpush1.msra.mxu0 0.0
    %934 = vmatprep.subr.mxu0 0.0
    %935 = vmatpush1.msra.mxu0 0.0
    %936 = vmatprep.subr.mxu0 0.0
    %937 = vmatpush1.msra.mxu0 0.0
    %938 = vmatprep.subr.mxu0 0.0
    %939 = vmatpush1.msra.mxu0 0.0
    %940 = vmatprep.subr.mxu0 0.0
    %941 = vmatpush1.msra.mxu0 0.0
    %942 = vmatprep.subr.mxu0 0.0
    %943 = vmatpush1.msra.mxu0 0.0
    %944 = vmatprep.subr.mxu0 0.0
    %945 = vmatpush1.msra.mxu0 0.0
    %946 = vmatprep.subr.mxu0 0.0
    %947 = vmatpush1.msra.mxu0 0.0
    %948 = vmatprep.subr.mxu0 0.0
    %949 = vmatpush1.msra.mxu0 0.0
    %950 = vmatprep.subr.mxu0 0.0
    %951 = vmatpush1.msra.mxu0 0.0
    %952 = vmatprep.subr.mxu0 0.0
    %953 = vmatpush1.msra.mxu0 0.0
    %954 = vmatprep.subr.mxu0 0.0
    %955 = vmatpush1.msra.mxu0 0.0
    %956 = vmatprep.subr.mxu0 0.0
    %957 = vmatpush1.msra.mxu0 0.0
    %958 = vmatprep.subr.mxu0 0.0
    %959 = vmatpush1.msra.mxu0 0.0
    %960 = vmatprep.mubr.f32.mxu0 0.0
    %961 = vmatmul.mubr.f32.gmra.mrb[0].mxu0 %v397
    %v962 = vpop.f32.mrb[0].mxu0
    %v963 = vadd.f32 %v374, %v962
    %v964 = vpop.f32.mrb[0].mxu0
    %v965 = vadd.f32 %v378, %v964
    %966 = vdwg.mxu0
    %v968 = vrot.slane %v468, 6
    %v971 = vrot.slane %v537, 4
    %v974 = vrot.slane %v539, 2
    %v977 = vrot.slane %v610, 6
    %v980 = vrot.slane %v679, 4
    %v983 = vrot.slane %v681, 2
    %v986 = vrot.slane %v752, 6
    %v989 = vrot.slane %v821, 4
    %v992 = vrot.slane %v823, 2
    %v995 = vrot.slane %v894, 6
    %v998 = vrot.slane %v963, 4
    %v1001 = vrot.slane %v965, 2
    %vm1003 = vcmask 1041408
    %v1004 = vsel %vm1003, %v466, %v968
    %vm1005 = vcmask 1043456
    %v1006 = vsel %vm1005, %v1004, %v971
    %vm1007 = vcmask 1045504
    %v1008 = vsel %vm1007, %v1006, %v974
    %v1009 = vsel %vm1003, %v608, %v977
    %v1010 = vsel %vm1005, %v1009, %v980
    %v1011 = vsel %vm1007, %v1010, %v983
    %v1012 = vsel %vm1003, %v750, %v986
    %v1013 = vsel %vm1005, %v1012, %v989
    %v1014 = vsel %vm1007, %v1013, %v992
    %v1015 = vsel %vm1003, %v892, %v995
    %v1016 = vsel %vm1005, %v1015, %v998
    %v1017 = vsel %vm1007, %v1016, %v1001
    %v1018 = vld [vmem:[%s3] sm:$0x1]
    %v1019 = vld [vmem:[%s4] sm:$0x1]
    %v1020 = vadd.f32 %v1008, %v1011
    %v1021 = vadd.f32 %v1020, %v1014
    %v1022 = vadd.f32 %v1021, %v1017
    %v1023 = vrot.slane %v1022, 4
    %v1024 = vadd.f32 %v1022, %v1023
    %v1025 = vrot.slane %v1024, 2
    %v1026 = vadd.f32 %v1024, %v1025
    %v1027 = vrot.slane %v1026, 1
    %v1028 = vadd.f32 %v1026, %v1027
    %v1029 = vmul.f32 %v1028, 0.03125
    %v1030 = vmul.f32 %v1008, %v1008
    %v1031 = vmul.f32 %v1011, %v1011
    %v1032 = vmul.f32 %v1014, %v1014
    %v1033 = vmul.f32 %v1017, %v1017
    %v1034 = vadd.f32 %v1030, %v1031
    %v1035 = vadd.f32 %v1034, %v1032
    %v1036 = vadd.f32 %v1035, %v1033
    %v1037 = vrot.slane %v1036, 4
    %v1038 = vadd.f32 %v1036, %v1037
    %v1039 = vrot.slane %v1038, 2
    %v1040 = vadd.f32 %v1038, %v1039
    %v1041 = vrot.slane %v1040, 1
    %v1042 = vadd.f32 %v1040, %v1041
    %v1043 = vmul.f32 %v1042, 0.03125
    %v1044 = vmul.f32 %v1029, %v1029
    %v1045 = vsub.f32 %v1043, %v1044
    %v1046 = vsub.f32 %v1008, %v1029
    %v1047 = vsub.f32 %v1011, %v1029
    %v1048 = vsub.f32 %v1014, %v1029
    %v1049 = vsub.f32 %v1017, %v1029
    %v1050 = vadd.f32 %v1045, 1e-05
    %v1051 = vrsqrt.pop %v1050
    %v1052 = vmul.f32 %v1046, %v1051
    %v1053 = vmul.f32 %v1047, %v1051
    %v1054 = vmul.f32 %v1048, %v1051
    %v1055 = vmul.f32 %v1049, %v1051
    %v1057 = vlaneseq
    %v1058 = vshrl.u32 %v1057, 7
    %v1059 = vsub.s32 0, %v1058
    %v1060 = vrot.slane %v1018, %v1059
    %v1062 = vmul.f32 %v1052, %v1060
    %v1063 = vmul.f32 %v1053, %v1060
    %v1064 = vmul.f32 %v1054, %v1060
    %v1065 = vmul.f32 %v1055, %v1060
    %v1067 = vlaneseq
    %v1068 = vshrl.u32 %v1067, 7
    %v1069 = vsub.s32 0, %v1068
    %v1070 = vrot.slane %v1019, %v1069
    %v1072 = vadd.f32 %v1062, %v1070
    %v1073 = vadd.f32 %v1063, %v1070
    %v1074 = vadd.f32 %v1064, %v1070
    %v1075 = vadd.f32 %v1065, %v1070
    %v1076 = vld [vmem:[#allocation5] sm:$0xff]
    %v1077 = vld [vmem:[#allocation5 + $0x8] sm:$0xff]
    %v1078 = vld [vmem:[#allocation5 + $0x10] sm:$0xff]
    %v1079 = vld [vmem:[#allocation5 + $0x18] sm:$0xff]
    %v1080 = vld [vmem:[#allocation5 + $0x20] sm:$0xff]
    %v1081 = vld [vmem:[#allocation5 + $0x28] sm:$0xff]
    %v1082 = vld [vmem:[#allocation5 + $0x30] sm:$0xff]
    %v1083 = vld [vmem:[#allocation5 + $0x38] sm:$0xff]
    %v1084 = vld [vmem:[#allocation5 + $0x40] sm:$0xff]
    %v1085 = vld [vmem:[#allocation5 + $0x48] sm:$0xff]
    %v1086 = vld [vmem:[#allocation5 + $0x50] sm:$0xff]
    %v1087 = vld [vmem:[#allocation5 + $0x58] sm:$0xff]
    %v1088 = vld [vmem:[#allocation5 + $0x60] sm:$0xff]
    %v1089 = vld [vmem:[#allocation5 + $0x68] sm:$0xff]
    %v1090 = vld [vmem:[#allocation5 + $0x70] sm:$0xff]
    %v1091 = vld [vmem:[#allocation5 + $0x78] sm:$0xff]
    %v1093 = vsel %vm395, %v1076, 0
    %v1096 = vsel %vm395, %v1077, 0
    %v1099 = vsel %vm395, %v1078, 0
    %v1102 = vsel %vm395, %v1079, 0
    %v1105 = vsel %vm395, %v1080, 0
    %v1108 = vsel %vm395, %v1081, 0
    %v1111 = vsel %vm395, %v1082, 0
    %v1114 = vsel %vm395, %v1083, 0
    %v1117 = vsel %vm395, %v1084, 0
    %v1120 = vsel %vm395, %v1085, 0
    %v1123 = vsel %vm395, %v1086, 0
    %v1126 = vsel %vm395, %v1087, 0
    %v1129 = vsel %vm395, %v1088, 0
    %v1132 = vsel %vm395, %v1089, 0
    %v1135 = vsel %vm395, %v1090, 0
    %v1138 = vsel %vm395, %v1091, 0
    %1140 = vmatprep.subr.mxu0 0.0
    %1141 = vmatpush1.msra.mxu0 %v1072
    %1142 = vmatprep.subr.mxu0 0.0
    %1143 = vmatpush1.msra.mxu0 %v1073
    %1144 = vmatprep.subr.mxu0 0.0
    %1145 = vmatpush1.msra.mxu0 %v1074
    %1146 = vmatprep.subr.mxu0 0.0
    %1147 = vmatpush1.msra.mxu0 %v1075
    %1148 = vmatprep.subr.mxu0 0.0
    %1149 = vmatpush1.msra.mxu0 0.0
    %1150 = vmatprep.subr.mxu0 0.0
    %1151 = vmatpush1.msra.mxu0 0.0
    %1152 = vmatprep.subr.mxu0 0.0
    %1153 = vmatpush1.msra.mxu0 0.0
    %1154 = vmatprep.subr.mxu0 0.0
    %1155 = vmatpush1.msra.mxu0 0.0
    %1156 = vmatprep.subr.mxu0 0.0
    %1157 = vmatpush1.msra.mxu0 0.0
    %1158 = vmatprep.subr.mxu0 0.0
    %1159 = vmatpush1.msra.mxu0 0.0
    %1160 = vmatprep.subr.mxu0 0.0
    %1161 = vmatpush1.msra.mxu0 0.0
    %1162 = vmatprep.subr.mxu0 0.0
    %1163 = vmatpush1.msra.mxu0 0.0
    %1164 = vmatprep.subr.mxu0 0.0
    %1165 = vmatpush1.msra.mxu0 0.0
    %1166 = vmatprep.subr.mxu0 0.0
    %1167 = vmatpush1.msra.mxu0 0.0
    %1168 = vmatprep.subr.mxu0 0.0
    %1169 = vmatpush1.msra.mxu0 0.0
    %1170 = vmatprep.subr.mxu0 0.0
    %1171 = vmatpush1.msra.mxu0 0.0
    %1172 = vmatprep.subr.mxu0 0.0
    %1173 = vmatpush1.msra.mxu0 0.0
    %1174 = vmatprep.subr.mxu0 0.0
    %1175 = vmatpush1.msra.mxu0 0.0
    %1176 = vmatprep.subr.mxu0 0.0
    %1177 = vmatpush1.msra.mxu0 0.0
    %1178 = vmatprep.subr.mxu0 0.0
    %1179 = vmatpush1.msra.mxu0 0.0
    %1180 = vmatprep.subr.mxu0 0.0
    %1181 = vmatpush1.msra.mxu0 0.0
    %1182 = vmatprep.subr.mxu0 0.0
    %1183 = vmatpush1.msra.mxu0 0.0
    %1184 = vmatprep.subr.mxu0 0.0
    %1185 = vmatpush1.msra.mxu0 0.0
    %1186 = vmatprep.subr.mxu0 0.0
    %1187 = vmatpush1.msra.mxu0 0.0
    %1188 = vmatprep.subr.mxu0 0.0
    %1189 = vmatpush1.msra.mxu0 0.0
    %1190 = vmatprep.subr.mxu0 0.0
    %1191 = vmatpush1.msra.mxu0 0.0
    %1192 = vmatprep.subr.mxu0 0.0
    %1193 = vmatpush1.msra.mxu0 0.0
    %1194 = vmatprep.subr.mxu0 0.0
    %1195 = vmatpush1.msra.mxu0 0.0
    %1196 = vmatprep.subr.mxu0 0.0
    %1197 = vmatpush1.msra.mxu0 0.0
    %1198 = vmatprep.subr.mxu0 0.0
    %1199 = vmatpush1.msra.mxu0 0.0
    %1200 = vmatprep.subr.mxu0 0.0
    %1201 = vmatpush1.msra.mxu0 0.0
    %1202 = vmatprep.subr.mxu0 0.0
    %1203 = vmatpush1.msra.mxu0 0.0
    %1204 = vmatprep.mubr.f32.mxu0 0.0
    %1205 = vmatmul.mubr.f32.gmra.mrb[0].mxu0 %v1093
    %v1206 = vpop.f32.mrb[0].mxu0
    %v1207 = vadd.f32 0.0, %v1206
    %v1208 = vpop.f32.mrb[0].mxu0
    %1209 = vmatprep.mubr.f32.mxu0 0.0
    %1210 = vmatmul.mubr.f32.gmra.mrb[0].mxu0 %v1096
    %v1211 = vpop.f32.mrb[0].mxu0
    %v1212 = vadd.f32 0.0, %v1211
    %v1213 = vpop.f32.mrb[0].mxu0
    %1214 = vmatprep.mubr.f32.mxu0 0.0
    %1215 = vmatmul.mubr.f32.gmra.mrb[0].mxu0 %v1099
    %v1216 = vpop.f32.mrb[0].mxu0
    %v1217 = vadd.f32 0.0, %v1216
    %v1218 = vpop.f32.mrb[0].mxu0
    %1219 = vmatprep.mubr.f32.mxu0 0.0
    %1220 = vmatmul.mubr.f32.gmra.mrb[0].mxu0 %v1102
    %v1221 = vpop.f32.mrb[0].mxu0
    %v1222 = vadd.f32 0.0, %v1221
    %v1223 = vpop.f32.mrb[0].mxu0
    %1224 = vmatprep.mubr.f32.mxu0 0.0
    %1225 = vmatmul.mubr.f32.gmra.mrb[0].mxu0 %v1105
    %v1226 = vpop.f32.mrb[0].mxu0
    %v1227 = vadd.f32 0.0, %v1226
    %v1228 = vpop.f32.mrb[0].mxu0
    %1229 = vmatprep.mubr.f32.mxu0 0.0
    %1230 = vmatmul.mubr.f32.gmra.mrb[0].mxu0 %v1108
    %v1231 = vpop.f32.mrb[0].mxu0
    %v1232 = vadd.f32 0.0, %v1231
    %v1233 = vpop.f32.mrb[0].mxu0
    %1234 = vmatprep.mubr.f32.mxu0 0.0
    %1235 = vmatmul.mubr.f32.gmra.mrb[0].mxu0 %v1111
    %v1236 = vpop.f32.mrb[0].mxu0
    %v1237 = vadd.f32 0.0, %v1236
    %v1238 = vpop.f32.mrb[0].mxu0
    %1239 = vmatprep.mubr.f32.mxu0 0.0
    %1240 = vmatmul.mubr.f32.gmra.mrb[0].mxu0 %v1114
    %v1241 = vpop.f32.mrb[0].mxu0
    %v1242 = vadd.f32 0.0, %v1241
    %v1243 = vpop.f32.mrb[0].mxu0
    %1244 = vmatprep.mubr.f32.mxu0 0.0
    %1245 = vmatmul.mubr.f32.gmra.mrb[0].mxu0 %v1117
    %v1246 = vpop.f32.mrb[0].mxu0
    %v1247 = vadd.f32 0.0, %v1246
    %v1248 = vpop.f32.mrb[0].mxu0
    %1249 = vmatprep.mubr.f32.mxu0 0.0
    %1250 = vmatmul.mubr.f32.gmra.mrb[0].mxu0 %v1120
    %v1251 = vpop.f32.mrb[0].mxu0
    %v1252 = vadd.f32 0.0, %v1251
    %v1253 = vpop.f32.mrb[0].mxu0
    %1254 = vmatprep.mubr.f32.mxu0 0.0
    %1255 = vmatmul.mubr.f32.gmra.mrb[0].mxu0 %v1123
    %v1256 = vpop.f32.mrb[0].mxu0
    %v1257 = vadd.f32 0.0, %v1256
    %v1258 = vpop.f32.mrb[0].mxu0
    %1259 = vmatprep.mubr.f32.mxu0 0.0
    %1260 = vmatmul.mubr.f32.gmra.mrb[0].mxu0 %v1126
    %v1261 = vpop.f32.mrb[0].mxu0
    %v1262 = vadd.f32 0.0, %v1261
    %v1263 = vpop.f32.mrb[0].mxu0
    %1264 = vmatprep.mubr.f32.mxu0 0.0
    %1265 = vmatmul.mubr.f32.gmra.mrb[0].mxu0 %v1129
    %v1266 = vpop.f32.mrb[0].mxu0
    %v1267 = vadd.f32 0.0, %v1266
    %v1268 = vpop.f32.mrb[0].mxu0
    %1269 = vmatprep.mubr.f32.mxu0 0.0
    %1270 = vmatmul.mubr.f32.gmra.mrb[0].mxu0 %v1132
    %v1271 = vpop.f32.mrb[0].mxu0
    %v1272 = vadd.f32 0.0, %v1271
    %v1273 = vpop.f32.mrb[0].mxu0
    %1274 = vmatprep.mubr.f32.mxu0 0.0
    %1275 = vmatmul.mubr.f32.gmra.mrb[0].mxu0 %v1135
    %v1276 = vpop.f32.mrb[0].mxu0
    %v1277 = vadd.f32 0.0, %v1276
    %v1278 = vpop.f32.mrb[0].mxu0
    %1279 = vmatprep.mubr.f32.mxu0 0.0
    %1280 = vmatmul.mubr.f32.gmra.mrb[0].mxu0 %v1138
    %v1281 = vpop.f32.mrb[0].mxu0
    %v1282 = vadd.f32 0.0, %v1281
    %v1283 = vpop.f32.mrb[0].mxu0
    %1284 = vdwg.mxu0
    %s1285 = scalar_lea.vmem [#allocation2], 24
    %1286 = vst [vmem:[%s1285 + $0x1] sm:$0xff] %v1207
    %1287 = vst [vmem:[%s1285 + $0x19] sm:$0xff] %v1212
    %1288 = vst [vmem:[%s1285 + $0x31] sm:$0xff] %v1217
    %1289 = vst [vmem:[%s1285 + $0x49] sm:$0xff] %v1222
    %1290 = vst [vmem:[%s1285 + $0x61] sm:$0xff] %v1227
    %1291 = vst [vmem:[%s1285 + $0x79] sm:$0xff] %v1232
    %1292 = vst [vmem:[%s1285 + $0x91] sm:$0xff] %v1237
    %1293 = vst [vmem:[%s1285 + $0xa9] sm:$0xff] %v1242
    %1294 = vst [vmem:[%s1285 + $0x1b1] sm:$0xff] %v1247
    %1295 = vst [vmem:[%s1285 + $0x1c9] sm:$0xff] %v1252
    %1296 = vst [vmem:[%s1285 + $0x1e1] sm:$0xff] %v1257
    %1297 = vst [vmem:[%s1285 + $0x1f9] sm:$0xff] %v1262
    %1298 = vst [vmem:[%s1285 + $0x211] sm:$0xff] %v1267
    %1299 = vst [vmem:[%s1285 + $0x229] sm:$0xff] %v1272
    %1300 = vst [vmem:[%s1285 + $0x241] sm:$0xff] %v1277
    %1301 = vst [vmem:[%s1285 + $0x259] sm:$0xff] %v1282
    %v1302 = vld [vmem:[#allocation2] sm:$0xff]
    %v1303 = vld [vmem:[#allocation2 + $0x18] sm:$0xff]
    %v1304 = vld [vmem:[#allocation2 + $0x30] sm:$0xff]
    %v1305 = vld [vmem:[#allocation2 + $0x48] sm:$0xff]
    %v1306 = vld [vmem:[#allocation2 + $0x60] sm:$0xff]
    %v1307 = vld [vmem:[#allocation2 + $0x78] sm:$0xff]
    %v1308 = vld [vmem:[#allocation2 + $0x90] sm:$0xff]
    %v1309 = vld [vmem:[#allocation2 + $0xa8] sm:$0xff]
    %v1310 = vld [vmem:[#allocation2 + $0x1b0] sm:$0xff]
    %v1311 = vld [vmem:[#allocation2 + $0x1c8] sm:$0xff]
    %v1312 = vld [vmem:[#allocation2 + $0x1e0] sm:$0xff]
    %v1313 = vld [vmem:[#allocation2 + $0x1f8] sm:$0xff]
    %v1314 = vld [vmem:[#allocation2 + $0x210] sm:$0xff]
    %v1315 = vld [vmem:[#allocation2 + $0x228] sm:$0xff]
    %v1316 = vld [vmem:[#allocation2 + $0x240] sm:$0xff]
    %v1317 = vld [vmem:[#allocation2 + $0x258] sm:$0xff]
    %v1318 = vld [vmem:[#allocation2 + $0x1] sm:$0xff]
    %v1319 = vld [vmem:[#allocation2 + $0x19] sm:$0xff]
    %v1320 = vld [vmem:[#allocation2 + $0x31] sm:$0xff]
    %v1321 = vld [vmem:[#allocation2 + $0x49] sm:$0xff]
    %v1322 = vld [vmem:[#allocation2 + $0x61] sm:$0xff]
    %v1323 = vld [vmem:[#allocation2 + $0x79] sm:$0xff]
    %v1324 = vld [vmem:[#allocation2 + $0x91] sm:$0xff]
    %v1325 = vld [vmem:[#allocation2 + $0xa9] sm:$0xff]
    %v1326 = vld [vmem:[#allocation2 + $0x1b1] sm:$0xff]
    %v1327 = vld [vmem:[#allocation2 + $0x1c9] sm:$0xff]
    %v1328 = vld [vmem:[#allocation2 + $0x1e1] sm:$0xff]
    %v1329 = vld [vmem:[#allocation2 + $0x1f9] sm:$0xff]
    %v1330 = vld [vmem:[#allocation2 + $0x211] sm:$0xff]
    %v1331 = vld [vmem:[#allocation2 + $0x229] sm:$0xff]
    %v1332 = vld [vmem:[#allocation2 + $0x241] sm:$0xff]
    %v1333 = vld [vmem:[#allocation2 + $0x259] sm:$0xff]
    %v1334 = vld [vmem:[#allocation2 + $0x2] sm:$0xff]
    %v1335 = vld [vmem:[#allocation2 + $0x1a] sm:$0xff]
    %v1336 = vld [vmem:[#allocation2 + $0x32] sm:$0xff]
    %v1337 = vld [vmem:[#allocation2 + $0x4a] sm:$0xff]
    %v1338 = vld [vmem:[#allocation2 + $0x62] sm:$0xff]
    %v1339 = vld [vmem:[#allocation2 + $0x7a] sm:$0xff]
    %v1340 = vld [vmem:[#allocation2 + $0x92] sm:$0xff]
    %v1341 = vld [vmem:[#allocation2 + $0xaa] sm:$0xff]
    %v1342 = vld [vmem:[#allocation2 + $0x1b2] sm:$0xff]
    %v1343 = vld [vmem:[#allocation2 + $0x1ca] sm:$0xff]
    %v1344 = vld [vmem:[#allocation2 + $0x1e2] sm:$0xff]
    %v1345 = vld [vmem:[#allocation2 + $0x1fa] sm:$0xff]
    %v1346 = vld [vmem:[#allocation2 + $0x212] sm:$0xff]
    %v1347 = vld [vmem:[#allocation2 + $0x22a] sm:$0xff]
    %v1348 = vld [vmem:[#allocation2 + $0x242] sm:$0xff]
    %v1349 = vld [vmem:[#allocation2 + $0x25a] sm:$0xff]
    %v1350 = vld [vmem:[%s1285] sm:$0xff]
    %v1351 = vld [vmem:[%s1285 + $0x18] sm:$0xff]
    %v1352 = vld [vmem:[%s1285 + $0x30] sm:$0xff]
    %v1353 = vld [vmem:[%s1285 + $0x48] sm:$0xff]
    %v1354 = vld [vmem:[%s1285 + $0x60] sm:$0xff]
    %v1355 = vld [vmem:[%s1285 + $0x78] sm:$0xff]
    %v1356 = vld [vmem:[%s1285 + $0x90] sm:$0xff]
    %v1357 = vld [vmem:[%s1285 + $0xa8] sm:$0xff]
    %v1358 = vld [vmem:[%s1285 + $0x1b0] sm:$0xff]
    %v1359 = vld [vmem:[%s1285 + $0x1c8] sm:$0xff]
    %v1360 = vld [vmem:[%s1285 + $0x1e0] sm:$0xff]
    %v1361 = vld [vmem:[%s1285 + $0x1f8] sm:$0xff]
    %v1362 = vld [vmem:[%s1285 + $0x210] sm:$0xff]
    %v1363 = vld [vmem:[%s1285 + $0x228] sm:$0xff]
    %v1364 = vld [vmem:[%s1285 + $0x240] sm:$0xff]
    %v1365 = vld [vmem:[%s1285 + $0x258] sm:$0xff]
    %v1366 = vld [vmem:[%s1285 + $0x1] sm:$0xff]
    %v1367 = vld [vmem:[%s1285 + $0x19] sm:$0xff]
    %v1368 = vld [vmem:[%s1285 + $0x31] sm:$0xff]
    %v1369 = vld [vmem:[%s1285 + $0x49] sm:$0xff]
    %v1370 = vld [vmem:[%s1285 + $0x61] sm:$0xff]
    %v1371 = vld [vmem:[%s1285 + $0x79] sm:$0xff]
    %v1372 = vld [vmem:[%s1285 + $0x91] sm:$0xff]
    %v1373 = vld [vmem:[%s1285 + $0xa9] sm:$0xff]
    %v1374 = vld [vmem:[%s1285 + $0x1b1] sm:$0xff]
    %v1375 = vld [vmem:[%s1285 + $0x1c9] sm:$0xff]
    %v1376 = vld [vmem:[%s1285 + $0x1e1] sm:$0xff]
    %v1377 = vld [vmem:[%s1285 + $0x1f9] sm:$0xff]
    %v1378 = vld [vmem:[%s1285 + $0x211] sm:$0xff]
    %v1379 = vld [vmem:[%s1285 + $0x229] sm:$0xff]
    %v1380 = vld [vmem:[%s1285 + $0x241] sm:$0xff]
    %v1381 = vld [vmem:[%s1285 + $0x259] sm:$0xff]
    %v1382 = vld [vmem:[%s1285 + $0x2] sm:$0xff]
    %v1383 = vld [vmem:[%s1285 + $0x1a] sm:$0xff]
    %v1384 = vld [vmem:[%s1285 + $0x32] sm:$0xff]
    %v1385 = vld [vmem:[%s1285 + $0x4a] sm:$0xff]
    %v1386 = vld [vmem:[%s1285 + $0x62] sm:$0xff]
    %v1387 = vld [vmem:[%s1285 + $0x7a] sm:$0xff]
    %v1388 = vld [vmem:[%s1285 + $0x92] sm:$0xff]
    %v1389 = vld [vmem:[%s1285 + $0xaa] sm:$0xff]
    %v1390 = vld [vmem:[%s1285 + $0x1b2] sm:$0xff]
    %v1391 = vld [vmem:[%s1285 + $0x1ca] sm:$0xff]
    %v1392 = vld [vmem:[%s1285 + $0x1e2] sm:$0xff]
    %v1393 = vld [vmem:[%s1285 + $0x1fa] sm:$0xff]
    %v1394 = vld [vmem:[%s1285 + $0x212] sm:$0xff]
    %v1395 = vld [vmem:[%s1285 + $0x22a] sm:$0xff]
    %v1396 = vld [vmem:[%s1285 + $0x242] sm:$0xff]
    %v1397 = vld [vmem:[%s1285 + $0x25a] sm:$0xff]
    %s1398 = scalar_lea.vmem [#allocation2], 48
    %v1399 = vld [vmem:[%s1398] sm:$0xff]
    %v1400 = vld [vmem:[%s1398 + $0x18] sm:$0xff]
    %v1401 = vld [vmem:[%s1398 + $0x30] sm:$0xff]
    %v1402 = vld [vmem:[%s1398 + $0x48] sm:$0xff]
    %v1403 = vld [vmem:[%s1398 + $0x60] sm:$0xff]
    %v1404 = vld [vmem:[%s1398 + $0x78] sm:$0xff]
    %v1405 = vld [vmem:[%s1398 + $0x90] sm:$0xff]
    %v1406 = vld [vmem:[%s1398 + $0xa8] sm:$0xff]
    %v1407 = vld [vmem:[%s1398 + $0x1b0] sm:$0xff]
    %v1408 = vld [vmem:[%s1398 + $0x1c8] sm:$0xff]
    %v1409 = vld [vmem:[%s1398 + $0x1e0] sm:$0xff]
    %v1410 = vld [vmem:[%s1398 + $0x1f8] sm:$0xff]
    %v1411 = vld [vmem:[%s1398 + $0x210] sm:$0xff]
    %v1412 = vld [vmem:[%s1398 + $0x228] sm:$0xff]
    %v1413 = vld [vmem:[%s1398 + $0x240] sm:$0xff]
    %v1414 = vld [vmem:[%s1398 + $0x258] sm:$0xff]
    %v1415 = vld [vmem:[%s1398 + $0x1] sm:$0xff]
    %v1416 = vld [vmem:[%s1398 + $0x19] sm:$0xff]
    %v1417 = vld [vmem:[%s1398 + $0x31] sm:$0xff]
    %v1418 = vld [vmem:[%s1398 + $0x49] sm:$0xff]
    %v1419 = vld [vmem:[%s1398 + $0x61] sm:$0xff]
    %v1420 = vld [vmem:[%s1398 + $0x79] sm:$0xff]
    %v1421 = vld [vmem:[%s1398 + $0x91] sm:$0xff]
    %v1422 = vld [vmem:[%s1398 + $0xa9] sm:$0xff]
    %v1423 = vld [vmem:[%s1398 + $0x1b1] sm:$0xff]
    %v1424 = vld [vmem:[%s1398 + $0x1c9] sm:$0xff]
    %v1425 = vld [vmem:[%s1398 + $0x1e1] sm:$0xff]
    %v1426 = vld [vmem:[%s1398 + $0x1f9] sm:$0xff]
    %v1427 = vld [vmem:[%s1398 + $0x211] sm:$0xff]
    %v1428 = vld [vmem:[%s1398 + $0x229] sm:$0xff]
    %v1429 = vld [vmem:[%s1398 + $0x241] sm:$0xff]
    %v1430 = vld [vmem:[%s1398 + $0x259] sm:$0xff]
    %v1431 = vld [vmem:[%s1398 + $0x2] sm:$0xff]
    %v1432 = vld [vmem:[%s1398 + $0x1a] sm:$0xff]
    %v1433 = vld [vmem:[%s1398 + $0x32] sm:$0xff]
    %v1434 = vld [vmem:[%s1398 + $0x4a] sm:$0xff]
    %v1435 = vld [vmem:[%s1398 + $0x62] sm:$0xff]
    %v1436 = vld [vmem:[%s1398 + $0x7a] sm:$0xff]
    %v1437 = vld [vmem:[%s1398 + $0x92] sm:$0xff]
    %v1438 = vld [vmem:[%s1398 + $0xaa] sm:$0xff]
    %v1439 = vld [vmem:[%s1398 + $0x1b2] sm:$0xff]
    %v1440 = vld [vmem:[%s1398 + $0x1ca] sm:$0xff]
    %v1441 = vld [vmem:[%s1398 + $0x1e2] sm:$0xff]
    %v1442 = vld [vmem:[%s1398 + $0x1fa] sm:$0xff]
    %v1443 = vld [vmem:[%s1398 + $0x212] sm:$0xff]
    %v1444 = vld [vmem:[%s1398 + $0x22a] sm:$0xff]
    %v1445 = vld [vmem:[%s1398 + $0x242] sm:$0xff]
    %v1446 = vld [vmem:[%s1398 + $0x25a] sm:$0xff]
    %v1447 = vld [vmem:[#allocation7] sm:$0xff]
    %v1448 = vld [vmem:[#allocation7 + $0x8] sm:$0xff]
    %v1449 = vld [vmem:[#allocation7 + $0x10] sm:$0xff]
    %v1450 = vld [vmem:[#allocation7 + $0x18] sm:$0xff]
    %v1451 = vld [vmem:[#allocation7 + $0x20] sm:$0xff]
    %v1452 = vld [vmem:[#allocation7 + $0x28] sm:$0xff]
    %v1453 = vld [vmem:[#allocation7 + $0x30] sm:$0xff]
    %v1454 = vld [vmem:[#allocation7 + $0x38] sm:$0xff]
    %v1455 = vld [vmem:[#allocation7 + $0x40] sm:$0xff]
    %v1456 = vld [vmem:[#allocation7 + $0x48] sm:$0xff]
    %v1457 = vld [vmem:[#allocation7 + $0x50] sm:$0xff]
    %v1458 = vld [vmem:[#allocation7 + $0x58] sm:$0xff]
    %v1459 = vld [vmem:[#allocation7 + $0x60] sm:$0xff]
    %v1460 = vld [vmem:[#allocation7 + $0x68] sm:$0xff]
    %v1461 = vld [vmem:[#allocation7 + $0x70] sm:$0xff]
    %v1462 = vld [vmem:[#allocation7 + $0x78] sm:$0xff]
    %v1463 = vld [vmem:[#allocation7 + $0x80] sm:$0xff]
    %v1464 = vld [vmem:[#allocation7 + $0x88] sm:$0xff]
    %v1465 = vld [vmem:[#allocation7 + $0x90] sm:$0xff]
    %v1466 = vld [vmem:[#allocation7 + $0x98] sm:$0xff]
    %v1467 = vld [vmem:[#allocation7 + $0xa0] sm:$0xff]
    %v1468 = vld [vmem:[#allocation7 + $0xa8] sm:$0xff]
    %v1469 = vld [vmem:[#allocation7 + $0xb0] sm:$0xff]
    %v1470 = vld [vmem:[#allocation7 + $0xb8] sm:$0xff]
    %v1471 = vld [vmem:[#allocation7 + $0xc0] sm:$0xff]
    %v1472 = vld [vmem:[#allocation7 + $0xc8] sm:$0xff]
    %v1473 = vld [vmem:[#allocation7 + $0xd0] sm:$0xff]
    %v1474 = vld [vmem:[#allocation7 + $0xd8] sm:$0xff]
    %v1475 = vld [vmem:[#allocation7 + $0xe0] sm:$0xff]
    %v1476 = vld [vmem:[#allocation7 + $0xe8] sm:$0xff]
    %v1477 = vld [vmem:[#allocation7 + $0xf0] sm:$0xff]
    %v1478 = vld [vmem:[#allocation7 + $0xf8] sm:$0xff]
    %v1479 = vld [vmem:[#allocation7 + $0x100] sm:$0xff]
    %v1480 = vld [vmem:[#allocation7 + $0x108] sm:$0xff]
    %v1481 = vld [vmem:[#allocation7 + $0x110] sm:$0xff]
    %v1482 = vld [vmem:[#allocation7 + $0x118] sm:$0xff]
    %v1483 = vld [vmem:[#allocation7 + $0x120] sm:$0xff]
    %v1484 = vld [vmem:[#allocation7 + $0x128] sm:$0xff]
    %v1485 = vld [vmem:[#allocation7 + $0x130] sm:$0xff]
    %v1486 = vld [vmem:[#allocation7 + $0x138] sm:$0xff]
    %v1487 = vld [vmem:[#allocation7 + $0x140] sm:$0xff]
    %v1488 = vld [vmem:[#allocation7 + $0x148] sm:$0xff]
    %v1489 = vld [vmem:[#allocation7 + $0x150] sm:$0xff]
    %v1490 = vld [vmem:[#allocation7 + $0x158] sm:$0xff]
    %v1491 = vld [vmem:[#allocation7 + $0x160] sm:$0xff]
    %v1492 = vld [vmem:[#allocation7 + $0x168] sm:$0xff]
    %v1493 = vld [vmem:[#allocation7 + $0x170] sm:$0xff]
    %v1494 = vld [vmem:[#allocation7 + $0x178] sm:$0xff]
    %v1495 = vld [vmem:[#allocation7 + $0x180] sm:$0xff]
    %v1496 = vld [vmem:[#allocation7 + $0x188] sm:$0xff]
    %v1497 = vld [vmem:[#allocation7 + $0x190] sm:$0xff]
    %v1498 = vld [vmem:[#allocation7 + $0x198] sm:$0xff]
    %v1499 = vld [vmem:[#allocation7 + $0x1a0] sm:$0xff]
    %v1500 = vld [vmem:[#allocation7 + $0x1a8] sm:$0xff]
    %v1501 = vld [vmem:[#allocation7 + $0x1b0] sm:$0xff]
    %v1502 = vld [vmem:[#allocation7 + $0x1b8] sm:$0xff]
    %v1503 = vld [vmem:[#allocation7 + $0x1c0] sm:$0xff]
    %v1504 = vld [vmem:[#allocation7 + $0x1c8] sm:$0xff]
    %v1505 = vld [vmem:[#allocation7 + $0x1d0] sm:$0xff]
    %v1506 = vld [vmem:[#allocation7 + $0x1d8] sm:$0xff]
    %v1507 = vld [vmem:[#allocation7 + $0x1e0] sm:$0xff]
    %v1508 = vld [vmem:[#allocation7 + $0x1e8] sm:$0xff]
    %v1509 = vld [vmem:[#allocation7 + $0x1f0] sm:$0xff]
    %v1510 = vld [vmem:[#allocation7 + $0x1f8] sm:$0xff]
    %v1511 = vld [vmem:[#allocation7 + $0x200] sm:$0xff]
    %v1512 = vld [vmem:[#allocation7 + $0x208] sm:$0xff]
    %v1513 = vld [vmem:[#allocation7 + $0x210] sm:$0xff]
    %v1514 = vld [vmem:[#allocation7 + $0x218] sm:$0xff]
    %v1515 = vld [vmem:[#allocation7 + $0x220] sm:$0xff]
    %v1516 = vld [vmem:[#allocation7 + $0x228] sm:$0xff]
    %v1517 = vld [vmem:[#allocation7 + $0x230] sm:$0xff]
    %v1518 = vld [vmem:[#allocation7 + $0x238] sm:$0xff]
    %v1519 = vld [vmem:[#allocation7 + $0x240] sm:$0xff]
    %v1520 = vld [vmem:[#allocation7 + $0x248] sm:$0xff]
    %v1521 = vld [vmem:[#allocation7 + $0x250] sm:$0xff]
    %v1522 = vld [vmem:[#allocation7 + $0x258] sm:$0xff]
    %v1523 = vld [vmem:[#allocation7 + $0x260] sm:$0xff]
    %v1524 = vld [vmem:[#allocation7 + $0x268] sm:$0xff]
    %v1525 = vld [vmem:[#allocation7 + $0x270] sm:$0xff]
    %v1526 = vld [vmem:[#allocation7 + $0x278] sm:$0xff]
    %v1527 = vld [vmem:[#allocation7 + $0x280] sm:$0xff]
    %v1528 = vld [vmem:[#allocation7 + $0x288] sm:$0xff]
    %v1529 = vld [vmem:[#allocation7 + $0x290] sm:$0xff]
    %v1530 = vld [vmem:[#allocation7 + $0x298] sm:$0xff]
    %v1531 = vld [vmem:[#allocation7 + $0x2a0] sm:$0xff]
    %v1532 = vld [vmem:[#allocation7 + $0x2a8] sm:$0xff]
    %v1533 = vld [vmem:[#allocation7 + $0x2b0] sm:$0xff]
    %v1534 = vld [vmem:[#allocation7 + $0x2b8] sm:$0xff]
    %v1535 = vld [vmem:[#allocation7 + $0x2c0] sm:$0xff]
    %v1536 = vld [vmem:[#allocation7 + $0x2c8] sm:$0xff]
    %v1537 = vld [vmem:[#allocation7 + $0x2d0] sm:$0xff]
    %v1538 = vld [vmem:[#allocation7 + $0x2d8] sm:$0xff]
    %v1539 = vld [vmem:[#allocation7 + $0x2e0] sm:$0xff]
    %v1540 = vld [vmem:[#allocation7 + $0x2e8] sm:$0xff]
    %v1541 = vld [vmem:[#allocation7 + $0x2f0] sm:$0xff]
    %v1542 = vld [vmem:[#allocation7 + $0x2f8] sm:$0xff]
    %v1543 = vld [vmem:[#allocation7 + $0x300] sm:$0xff]
    %v1544 = vld [vmem:[#allocation7 + $0x308] sm:$0xff]
    %v1545 = vld [vmem:[#allocation7 + $0x310] sm:$0xff]
    %v1546 = vld [vmem:[#allocation7 + $0x318] sm:$0xff]
    %v1547 = vld [vmem:[#allocation7 + $0x320] sm:$0xff]
    %v1548 = vld [vmem:[#allocation7 + $0x328] sm:$0xff]
    %v1549 = vld [vmem:[#allocation7 + $0x330] sm:$0xff]
    %v1550 = vld [vmem:[#allocation7 + $0x338] sm:$0xff]
    %v1551 = vld [vmem:[#allocation7 + $0x340] sm:$0xff]
    %v1552 = vld [vmem:[#allocation7 + $0x348] sm:$0xff]
    %v1553 = vld [vmem:[#allocation7 + $0x350] sm:$0xff]
    %v1554 = vld [vmem:[#allocation7 + $0x358] sm:$0xff]
    %v1555 = vld [vmem:[#allocation7 + $0x360] sm:$0xff]
    %v1556 = vld [vmem:[#allocation7 + $0x368] sm:$0xff]
    %v1557 = vld [vmem:[#allocation7 + $0x370] sm:$0xff]
    %v1558 = vld [vmem:[#allocation7 + $0x378] sm:$0xff]
    %v1559 = vld [vmem:[#allocation7 + $0x380] sm:$0xff]
    %v1560 = vld [vmem:[#allocation7 + $0x388] sm:$0xff]
    %v1561 = vld [vmem:[#allocation7 + $0x390] sm:$0xff]
    %v1562 = vld [vmem:[#allocation7 + $0x398] sm:$0xff]
    %v1563 = vld [vmem:[#allocation7 + $0x3a0] sm:$0xff]
    %v1564 = vld [vmem:[#allocation7 + $0x3a8] sm:$0xff]
    %v1565 = vld [vmem:[#allocation7 + $0x3b0] sm:$0xff]
    %v1566 = vld [vmem:[#allocation7 + $0x3b8] sm:$0xff]
    %v1567 = vld [vmem:[#allocation7 + $0x3c0] sm:$0xff]
    %v1568 = vld [vmem:[#allocation7 + $0x3c8] sm:$0xff]
    %v1569 = vld [vmem:[#allocation7 + $0x3d0] sm:$0xff]
    %v1570 = vld [vmem:[#allocation7 + $0x3d8] sm:$0xff]
    %v1571 = vld [vmem:[#allocation7 + $0x3e0] sm:$0xff]
    %v1572 = vld [vmem:[#allocation7 + $0x3e8] sm:$0xff]
    %v1573 = vld [vmem:[#allocation7 + $0x3f0] sm:$0xff]
    %v1574 = vld [vmem:[#allocation7 + $0x3f8] sm:$0xff]
    %v1575 = vld [vmem:[#allocation7 + $0x400] sm:$0xff]
    %v1576 = vld [vmem:[#allocation7 + $0x408] sm:$0xff]
    %v1577 = vld [vmem:[#allocation7 + $0x410] sm:$0xff]
    %v1578 = vld [vmem:[#allocation7 + $0x418] sm:$0xff]
    %v1579 = vld [vmem:[#allocation7 + $0x420] sm:$0xff]
    %v1580 = vld [vmem:[#allocation7 + $0x428] sm:$0xff]
    %v1581 = vld [vmem:[#allocation7 + $0x430] sm:$0xff]
    %v1582 = vld [vmem:[#allocation7 + $0x438] sm:$0xff]
    %v1583 = vld [vmem:[#allocation7 + $0x440] sm:$0xff]
    %v1584 = vld [vmem:[#allocation7 + $0x448] sm:$0xff]
    %v1585 = vld [vmem:[#allocation7 + $0x450] sm:$0xff]
    %v1586 = vld [vmem:[#allocation7 + $0x458] sm:$0xff]
    %v1587 = vld [vmem:[#allocation7 + $0x460] sm:$0xff]
    %v1588 = vld [vmem:[#allocation7 + $0x468] sm:$0xff]
    %v1589 = vld [vmem:[#allocation7 + $0x470] sm:$0xff]
    %v1590 = vld [vmem:[#allocation7 + $0x478] sm:$0xff]
    %v1591 = vld [vmem:[%s7] sm:$0x1]
    %v1593 = vlaneseq
    %v1594 = vshrl.u32 %v1593, 7
    %v1595 = vsub.s32 0, %v1594
    %v1596 = vrot.slane %v1591, %v1595
    %1598 = vmatprep.subr.mxu0 0.0
    %1599 = vmatpush1.msra.mxu0 %v1447
    %1600 = vmatprep.subr.mxu0 0.0
    %1601 = vmatpush1.msra.mxu0 %v1448
    %1602 = vmatprep.subr.mxu0 0.0
    %1603 = vmatpush1.msra.mxu0 %v1449
    %1604 = vmatprep.subr.mxu0 0.0
    %1605 = vmatpush1.msra.mxu0 %v1450
    %1606 = vmatprep.subr.mxu0 0.0
    %1607 = vmatpush1.msra.mxu0 %v1451
    %1608 = vmatprep.subr.mxu0 0.0
    %1609 = vmatpush1.msra.mxu0 %v1452
    %1610 = vmatprep.subr.mxu0 0.0
    %1611 = vmatpush1.msra.mxu0 %v1453
    %1612 = vmatprep.subr.mxu0 0.0
    %1613 = vmatpush1.msra.mxu0 %v1454
    %1614 = vmatprep.subr.mxu0 0.0
    %1615 = vmatpush1.msra.mxu0 %v1455
    %1616 = vmatprep.subr.mxu0 0.0
    %1617 = vmatpush1.msra.mxu0 %v1456
    %1618 = vmatprep.subr.mxu0 0.0
    %1619 = vmatpush1.msra.mxu0 %v1457
    %1620 = vmatprep.subr.mxu0 0.0
    %1621 = vmatpush1.msra.mxu0 %v1458
    %1622 = vmatprep.subr.mxu0 0.0
    %1623 = vmatpush1.msra.mxu0 %v1459
    %1624 = vmatprep.subr.mxu0 0.0
    %1625 = vmatpush1.msra.mxu0 %v1460
    %1626 = vmatprep.subr.mxu0 0.0
    %1627 = vmatpush1.msra.mxu0 %v1461
    %1628 = vmatprep.subr.mxu0 0.0
    %1629 = vmatpush1.msra.mxu0 %v1462
    %1630 = vmatprep.subr.mxu0 0.0
    %1631 = vmatpush1.msra.mxu0 %v1463
    %1632 = vmatprep.subr.mxu0 0.0
    %1633 = vmatpush1.msra.mxu0 %v1464
    %1634 = vmatprep.subr.mxu0 0.0
    %1635 = vmatpush1.msra.mxu0 %v1465
    %1636 = vmatprep.subr.mxu0 0.0
    %1637 = vmatpush1.msra.mxu0 %v1466
    %1638 = vmatprep.subr.mxu0 0.0
    %1639 = vmatpush1.msra.mxu0 %v1467
    %1640 = vmatprep.subr.mxu0 0.0
    %1641 = vmatpush1.msra.mxu0 %v1468
    %1642 = vmatprep.subr.mxu0 0.0
    %1643 = vmatpush1.msra.mxu0 %v1469
    %1644 = vmatprep.subr.mxu0 0.0
    %1645 = vmatpush1.msra.mxu0 %v1470
    %1646 = vmatprep.subr.mxu0 0.0
    %1647 = vmatpush1.msra.mxu0 %v1471
    %1648 = vmatprep.subr.mxu0 0.0
    %1649 = vmatpush1.msra.mxu0 %v1472
    %1650 = vmatprep.subr.mxu0 0.0
    %1651 = vmatpush1.msra.mxu0 %v1473
    %1652 = vmatprep.subr.mxu0 0.0
    %1653 = vmatpush1.msra.mxu0 %v1474
    %1654 = vmatprep.subr.mxu0 0.0
    %1655 = vmatpush1.msra.mxu0 %v1475
    %1656 = vmatprep.subr.mxu0 0.0
    %1657 = vmatpush1.msra.mxu0 %v1476
    %1658 = vmatprep.subr.mxu0 0.0
    %1659 = vmatpush1.msra.mxu0 %v1477
    %1660 = vmatprep.subr.mxu0 0.0
    %1661 = vmatpush1.msra.mxu0 %v1478
    %1662 = vmatprep.mubr.f32.mxu0 %v1318
    %1663 = vmatmul.mubr.f32.gmra.mrb[0].mxu0 %v1302
    %v1664 = vpop.f32.mrb[0].mxu0
    %v1665 = vadd.f32 %v1596, %v1664
    %v1666 = vpop.f32.mrb[0].mxu0
    %1667 = vmatprep.mubr.f32.mxu0 %v1319
    %1668 = vmatmul.mubr.f32.gmra.mrb[0].mxu0 %v1303
    %v1669 = vpop.f32.mrb[0].mxu0
    %v1670 = vadd.f32 %v1596, %v1669
    %v1671 = vpop.f32.mrb[0].mxu0
    %1672 = vmatprep.mubr.f32.mxu0 %v1320
    %1673 = vmatmul.mubr.f32.gmra.mrb[0].mxu0 %v1304
    %v1674 = vpop.f32.mrb[0].mxu0
    %v1675 = vadd.f32 %v1596, %v1674
    %v1676 = vpop.f32.mrb[0].mxu0
    %1677 = vmatprep.mubr.f32.mxu0 %v1321
    %1678 = vmatmul.mubr.f32.gmra.mrb[0].mxu0 %v1305
    %v1679 = vpop.f32.mrb[0].mxu0
    %v1680 = vadd.f32 %v1596, %v1679
    %v1681 = vpop.f32.mrb[0].mxu0
    %1682 = vmatprep.mubr.f32.mxu0 %v1322
    %1683 = vmatmul.mubr.f32.gmra.mrb[0].mxu0 %v1306
    %v1684 = vpop.f32.mrb[0].mxu0
    %v1685 = vadd.f32 %v1596, %v1684
    %v1686 = vpop.f32.mrb[0].mxu0
    %1687 = vmatprep.mubr.f32.mxu0 %v1323
    %1688 = vmatmul.mubr.f32.gmra.mrb[0].mxu0 %v1307
    %v1689 = vpop.f32.mrb[0].mxu0
    %v1690 = vadd.f32 %v1596, %v1689
    %v1691 = vpop.f32.mrb[0].mxu0
    %1692 = vmatprep.mubr.f32.mxu0 %v1324
    %1693 = vmatmul.mubr.f32.gmra.mrb[0].mxu0 %v1308
    %v1694 = vpop.f32.mrb[0].mxu0
    %v1695 = vadd.f32 %v1596, %v1694
    %v1696 = vpop.f32.mrb[0].mxu0
    %1697 = vmatprep.mubr.f32.mxu0 %v1325
    %1698 = vmatmul.mubr.f32.gmra.mrb[0].mxu0 %v1309
    %v1699 = vpop.f32.mrb[0].mxu0
    %v1700 = vadd.f32 %v1596, %v1699
    %v1701 = vpop.f32.mrb[0].mxu0
    %1702 = vmatprep.mubr.f32.mxu0 %v1326
    %1703 = vmatmul.mubr.f32.gmra.mrb[0].mxu0 %v1310
    %v1704 = vpop.f32.mrb[0].mxu0
    %v1705 = vadd.f32 %v1596, %v1704
    %v1706 = vpop.f32.mrb[0].mxu0
    %1707 = vmatprep.mubr.f32.mxu0 %v1327
    %1708 = vmatmul.mubr.f32.gmra.mrb[0].mxu0 %v1311
    %v1709 = vpop.f32.mrb[0].mxu0
    %v1710 = vadd.f32 %v1596, %v1709
    %v1711 = vpop.f32.mrb[0].mxu0
    %1712 = vmatprep.mubr.f32.mxu0 %v1328
    %1713 = vmatmul.mubr.f32.gmra.mrb[0].mxu0 %v1312
    %v1714 = vpop.f32.mrb[0].mxu0
    %v1715 = vadd.f32 %v1596, %v1714
    %v1716 = vpop.f32.mrb[0].mxu0
    %1717 = vmatprep.mubr.f32.mxu0 %v1329
    %1718 = vmatmul.mubr.f32.gmra.mrb[0].mxu0 %v1313
    %v1719 = vpop.f32.mrb[0].mxu0
    %v1720 = vadd.f32 %v1596, %v1719
    %v1721 = vpop.f32.mrb[0].mxu0
    %1722 = vmatprep.mubr.f32.mxu0 %v1330
    %1723 = vmatmul.mubr.f32.gmra.mrb[0].mxu0 %v1314
    %v1724 = vpop.f32.mrb[0].mxu0
    %v1725 = vadd.f32 %v1596, %v1724
    %v1726 = vpop.f32.mrb[0].mxu0
    %1727 = vmatprep.mubr.f32.mxu0 %v1331
    %1728 = vmatmul.mubr.f32.gmra.mrb[0].mxu0 %v1315
    %v1729 = vpop.f32.mrb[0].mxu0
    %v1730 = vadd.f32 %v1596, %v1729
    %v1731 = vpop.f32.mrb[0].mxu0
    %1732 = vmatprep.mubr.f32.mxu0 %v1332
    %1733 = vmatmul.mubr.f32.gmra.mrb[0].mxu0 %v1316
    %v1734 = vpop.f32.mrb[0].mxu0
    %v1735 = vadd.f32 %v1596, %v1734
    %v1736 = vpop.f32.mrb[0].mxu0
    %1737 = vmatprep.mubr.f32.mxu0 %v1333
    %1738 = vmatmul.mubr.f32.gmra.mrb[0].mxu0 %v1317
    %v1739 = vpop.f32.mrb[0].mxu0
    %v1740 = vadd.f32 %v1596, %v1739
    %v1741 = vpop.f32.mrb[0].mxu0
    %1742 = vdwg.mxu0
    %1743 = vmatprep.subr.mxu0 0.0
    %1744 = vmatpush1.msra.mxu0 %v1479
    %1745 = vmatprep.subr.mxu0 0.0
    %1746 = vmatpush1.msra.mxu0 %v1480
    %1747 = vmatprep.subr.mxu0 0.0
    %1748 = vmatpush1.msra.mxu0 %v1481
    %1749 = vmatprep.subr.mxu0 0.0
    %1750 = vmatpush1.msra.mxu0 %v1482
    %1751 = vmatprep.subr.mxu0 0.0
    %1752 = vmatpush1.msra.mxu0 %v1483
    %1753 = vmatprep.subr.mxu0 0.0
    %1754 = vmatpush1.msra.mxu0 %v1484
    %1755 = vmatprep.subr.mxu0 0.0
    %1756 = vmatpush1.msra.mxu0 %v1485
    %1757 = vmatprep.subr.mxu0 0.0
    %1758 = vmatpush1.msra.mxu0 %v1486
    %1759 = vmatprep.subr.mxu0 0.0
    %1760 = vmatpush1.msra.mxu0 %v1487
    %1761 = vmatprep.subr.mxu0 0.0
    %1762 = vmatpush1.msra.mxu0 %v1488
    %1763 = vmatprep.subr.mxu0 0.0
    %1764 = vmatpush1.msra.mxu0 %v1489
    %1765 = vmatprep.subr.mxu0 0.0
    %1766 = vmatpush1.msra.mxu0 %v1490
    %1767 = vmatprep.subr.mxu0 0.0
    %1768 = vmatpush1.msra.mxu0 %v1491
    %1769 = vmatprep.subr.mxu0 0.0
    %1770 = vmatpush1.msra.mxu0 %v1492
    %1771 = vmatprep.subr.mxu0 0.0
    %1772 = vmatpush1.msra.mxu0 %v1493
    %1773 = vmatprep.subr.mxu0 0.0
    %1774 = vmatpush1.msra.mxu0 %v1494
    %1775 = vmatprep.subr.mxu0 0.0
    %1776 = vmatpush1.msra.mxu0 %v1495
    %1777 = vmatprep.subr.mxu0 0.0
    %1778 = vmatpush1.msra.mxu0 %v1496
    %1779 = vmatprep.subr.mxu0 0.0
    %1780 = vmatpush1.msra.mxu0 %v1497
    %1781 = vmatprep.subr.mxu0 0.0
    %1782 = vmatpush1.msra.mxu0 %v1498
    %1783 = vmatprep.subr.mxu0 0.0
    %1784 = vmatpush1.msra.mxu0 %v1499
    %1785 = vmatprep.subr.mxu0 0.0
    %1786 = vmatpush1.msra.mxu0 %v1500
    %1787 = vmatprep.subr.mxu0 0.0
    %1788 = vmatpush1.msra.mxu0 %v1501
    %1789 = vmatprep.subr.mxu0 0.0
    %1790 = vmatpush1.msra.mxu0 %v1502
    %1791 = vmatprep.subr.mxu0 0.0
    %1792 = vmatpush1.msra.mxu0 %v1503
    %1793 = vmatprep.subr.mxu0 0.0
    %1794 = vmatpush1.msra.mxu0 %v1504
    %1795 = vmatprep.subr.mxu0 0.0
    %1796 = vmatpush1.msra.mxu0 %v1505
    %1797 = vmatprep.subr.mxu0 0.0
    %1798 = vmatpush1.msra.mxu0 %v1506
    %1799 = vmatprep.subr.mxu0 0.0
    %1800 = vmatpush1.msra.mxu0 %v1507
    %1801 = vmatprep.subr.mxu0 0.0
    %1802 = vmatpush1.msra.mxu0 %v1508
    %1803 = vmatprep.subr.mxu0 0.0
    %1804 = vmatpush1.msra.mxu0 %v1509
    %1805 = vmatprep.subr.mxu0 0.0
    %1806 = vmatpush1.msra.mxu0 %v1510
    %1807 = vmatprep.mubr.f32.mxu0 %v1350
    %1808 = vmatmul.mubr.f32.gmra.mrb[0].mxu0 %v1334
    %v1809 = vpop.f32.mrb[0].mxu0
    %v1810 = vadd.f32 %v1665, %v1809
    %v1811 = vpop.f32.mrb[0].mxu0
    %1812 = vmatprep.mubr.f32.mxu0 %v1351
    %1813 = vmatmul.mubr.f32.gmra.mrb[0].mxu0 %v1335
    %v1814 = vpop.f32.mrb[0].mxu0
    %v1815 = vadd.f32 %v1670, %v1814
    %v1816 = vpop.f32.mrb[0].mxu0
    %1817 = vmatprep.mubr.f32.mxu0 %v1352
    %1818 = vmatmul.mubr.f32.gmra.mrb[0].mxu0 %v1336
    %v1819 = vpop.f32.mrb[0].mxu0
    %v1820 = vadd.f32 %v1675, %v1819
    %v1821 = vpop.f32.mrb[0].mxu0
    %1822 = vmatprep.mubr.f32.mxu0 %v1353
    %1823 = vmatmul.mubr.f32.gmra.mrb[0].mxu0 %v1337
    %v1824 = vpop.f32.mrb[0].mxu0
    %v1825 = vadd.f32 %v1680, %v1824
    %v1826 = vpop.f32.mrb[0].mxu0
    %1827 = vmatprep.mubr.f32.mxu0 %v1354
    %1828 = vmatmul.mubr.f32.gmra.mrb[0].mxu0 %v1338
    %v1829 = vpop.f32.mrb[0].mxu0
    %v1830 = vadd.f32 %v1685, %v1829
    %v1831 = vpop.f32.mrb[0].mxu0
    %1832 = vmatprep.mubr.f32.mxu0 %v1355
    %1833 = vmatmul.mubr.f32.gmra.mrb[0].mxu0 %v1339
    %v1834 = vpop.f32.mrb[0].mxu0
    %v1835 = vadd.f32 %v1690, %v1834
    %v1836 = vpop.f32.mrb[0].mxu0
    %1837 = vmatprep.mubr.f32.mxu0 %v1356
    %1838 = vmatmul.mubr.f32.gmra.mrb[0].mxu0 %v1340
    %v1839 = vpop.f32.mrb[0].mxu0
    %v1840 = vadd.f32 %v1695, %v1839
    %v1841 = vpop.f32.mrb[0].mxu0
    %1842 = vmatprep.mubr.f32.mxu0 %v1357
    %1843 = vmatmul.mubr.f32.gmra.mrb[0].mxu0 %v1341
    %v1844 = vpop.f32.mrb[0].mxu0
    %v1845 = vadd.f32 %v1700, %v1844
    %v1846 = vpop.f32.mrb[0].mxu0
    %1847 = vmatprep.mubr.f32.mxu0 %v1358
    %1848 = vmatmul.mubr.f32.gmra.mrb[0].mxu0 %v1342
    %v1849 = vpop.f32.mrb[0].mxu0
    %v1850 = vadd.f32 %v1705, %v1849
    %v1851 = vpop.f32.mrb[0].mxu0
    %1852 = vmatprep.mubr.f32.mxu0 %v1359
    %1853 = vmatmul.mubr.f32.gmra.mrb[0].mxu0 %v1343
    %v1854 = vpop.f32.mrb[0].mxu0
    %v1855 = vadd.f32 %v1710, %v1854
    %v1856 = vpop.f32.mrb[0].mxu0
    %1857 = vmatprep.mubr.f32.mxu0 %v1360
    %1858 = vmatmul.mubr.f32.gmra.mrb[0].mxu0 %v1344
    %v1859 = vpop.f32.mrb[0].mxu0
    %v1860 = vadd.f32 %v1715, %v1859
    %v1861 = vpop.f32.mrb[0].mxu0
    %1862 = vmatprep.mubr.f32.mxu0 %v1361
    %1863 = vmatmul.mubr.f32.gmra.mrb[0].mxu0 %v1345
    %v1864 = vpop.f32.mrb[0].mxu0
    %v1865 = vadd.f32 %v1720, %v1864
    %v1866 = vpop.f32.mrb[0].mxu0
    %1867 = vmatprep.mubr.f32.mxu0 %v1362
    %1868 = vmatmul.mubr.f32.gmra.mrb[0].mxu0 %v1346
    %v1869 = vpop.f32.mrb[0].mxu0
    %v1870 = vadd.f32 %v1725, %v1869
    %v1871 = vpop.f32.mrb[0].mxu0
    %1872 = vmatprep.mubr.f32.mxu0 %v1363
    %1873 = vmatmul.mubr.f32.gmra.mrb[0].mxu0 %v1347
    %v1874 = vpop.f32.mrb[0].mxu0
    %v1875 = vadd.f32 %v1730, %v1874
    %v1876 = vpop.f32.mrb[0].mxu0
    %1877 = vmatprep.mubr.f32.mxu0 %v1364
    %1878 = vmatmul.mubr.f32.gmra.mrb[0].mxu0 %v1348
    %v1879 = vpop.f32.mrb[0].mxu0
    %v1880 = vadd.f32 %v1735, %v1879
    %v1881 = vpop.f32.mrb[0].mxu0
    %1882 = vmatprep.mubr.f32.mxu0 %v1365
    %1883 = vmatmul.mubr.f32.gmra.mrb[0].mxu0 %v1349
    %v1884 = vpop.f32.mrb[0].mxu0
    %v1885 = vadd.f32 %v1740, %v1884
    %v1886 = vpop.f32.mrb[0].mxu0
    %1887 = vdwg.mxu0
    %1888 = vmatprep.subr.mxu0 0.0
    %1889 = vmatpush1.msra.mxu0 %v1511
    %1890 = vmatprep.subr.mxu0 0.0
    %1891 = vmatpush1.msra.mxu0 %v1512
    %1892 = vmatprep.subr.mxu0 0.0
    %1893 = vmatpush1.msra.mxu0 %v1513
    %1894 = vmatprep.subr.mxu0 0.0
    %1895 = vmatpush1.msra.mxu0 %v1514
    %1896 = vmatprep.subr.mxu0 0.0
    %1897 = vmatpush1.msra.mxu0 %v1515
    %1898 = vmatprep.subr.mxu0 0.0
    %1899 = vmatpush1.msra.mxu0 %v1516
    %1900 = vmatprep.subr.mxu0 0.0
    %1901 = vmatpush1.msra.mxu0 %v1517
    %1902 = vmatprep.subr.mxu0 0.0
    %1903 = vmatpush1.msra.mxu0 %v1518
    %1904 = vmatprep.subr.mxu0 0.0
    %1905 = vmatpush1.msra.mxu0 %v1519
    %1906 = vmatprep.subr.mxu0 0.0
    %1907 = vmatpush1.msra.mxu0 %v1520
    %1908 = vmatprep.subr.mxu0 0.0
    %1909 = vmatpush1.msra.mxu0 %v1521
    %1910 = vmatprep.subr.mxu0 0.0
    %1911 = vmatpush1.msra.mxu0 %v1522
    %1912 = vmatprep.subr.mxu0 0.0
    %1913 = vmatpush1.msra.mxu0 %v1523
    %1914 = vmatprep.subr.mxu0 0.0
    %1915 = vmatpush1.msra.mxu0 %v1524
    %1916 = vmatprep.subr.mxu0 0.0
    %1917 = vmatpush1.msra.mxu0 %v1525
    %1918 = vmatprep.subr.mxu0 0.0
    %1919 = vmatpush1.msra.mxu0 %v1526
    %1920 = vmatprep.subr.mxu0 0.0
    %1921 = vmatpush1.msra.mxu0 %v1527
    %1922 = vmatprep.subr.mxu0 0.0
    %1923 = vmatpush1.msra.mxu0 %v1528
    %1924 = vmatprep.subr.mxu0 0.0
    %1925 = vmatpush1.msra.mxu0 %v1529
    %1926 = vmatprep.subr.mxu0 0.0
    %1927 = vmatpush1.msra.mxu0 %v1530
    %1928 = vmatprep.subr.mxu0 0.0
    %1929 = vmatpush1.msra.mxu0 %v1531
    %1930 = vmatprep.subr.mxu0 0.0
    %1931 = vmatpush1.msra.mxu0 %v1532
    %1932 = vmatprep.subr.mxu0 0.0
    %1933 = vmatpush1.msra.mxu0 %v1533
    %1934 = vmatprep.subr.mxu0 0.0
    %1935 = vmatpush1.msra.mxu0 %v1534
    %1936 = vmatprep.subr.mxu0 0.0
    %1937 = vmatpush1.msra.mxu0 %v1535
    %1938 = vmatprep.subr.mxu0 0.0
    %1939 = vmatpush1.msra.mxu0 %v1536
    %1940 = vmatprep.subr.mxu0 0.0
    %1941 = vmatpush1.msra.mxu0 %v1537
    %1942 = vmatprep.subr.mxu0 0.0
    %1943 = vmatpush1.msra.mxu0 %v1538
    %1944 = vmatprep.subr.mxu0 0.0
    %1945 = vmatpush1.msra.mxu0 %v1539
    %1946 = vmatprep.subr.mxu0 0.0
    %1947 = vmatpush1.msra.mxu0 %v1540
    %1948 = vmatprep.subr.mxu0 0.0
    %1949 = vmatpush1.msra.mxu0 %v1541
    %1950 = vmatprep.subr.mxu0 0.0
    %1951 = vmatpush1.msra.mxu0 %v1542
    %1952 = vmatprep.mubr.f32.mxu0 %v1382
    %1953 = vmatmul.mubr.f32.gmra.mrb[0].mxu0 %v1366
    %v1954 = vpop.f32.mrb[0].mxu0
    %v1955 = vadd.f32 %v1810, %v1954
    %v1956 = vpop.f32.mrb[0].mxu0
    %1957 = vmatprep.mubr.f32.mxu0 %v1383
    %1958 = vmatmul.mubr.f32.gmra.mrb[0].mxu0 %v1367
    %v1959 = vpop.f32.mrb[0].mxu0
    %v1960 = vadd.f32 %v1815, %v1959
    %v1961 = vpop.f32.mrb[0].mxu0
    %1962 = vmatprep.mubr.f32.mxu0 %v1384
    %1963 = vmatmul.mubr.f32.gmra.mrb[0].mxu0 %v1368
    %v1964 = vpop.f32.mrb[0].mxu0
    %v1965 = vadd.f32 %v1820, %v1964
    %v1966 = vpop.f32.mrb[0].mxu0
    %1967 = vmatprep.mubr.f32.mxu0 %v1385
    %1968 = vmatmul.mubr.f32.gmra.mrb[0].mxu0 %v1369
    %v1969 = vpop.f32.mrb[0].mxu0
    %v1970 = vadd.f32 %v1825, %v1969
    %v1971 = vpop.f32.mrb[0].mxu0
    %1972 = vmatprep.mubr.f32.mxu0 %v1386
    %1973 = vmatmul.mubr.f32.gmra.mrb[0].mxu0 %v1370
    %v1974 = vpop.f32.mrb[0].mxu0
    %v1975 = vadd.f32 %v1830, %v1974
    %v1976 = vpop.f32.mrb[0].mxu0
    %1977 = vmatprep.mubr.f32.mxu0 %v1387
    %1978 = vmatmul.mubr.f32.gmra.mrb[0].mxu0 %v1371
    %v1979 = vpop.f32.mrb[0].mxu0
    %v1980 = vadd.f32 %v1835, %v1979
    %v1981 = vpop.f32.mrb[0].mxu0
    %1982 = vmatprep.mubr.f32.mxu0 %v1388
    %1983 = vmatmul.mubr.f32.gmra.mrb[0].mxu0 %v1372
    %v1984 = vpop.f32.mrb[0].mxu0
    %v1985 = vadd.f32 %v1840, %v1984
    %v1986 = vpop.f32.mrb[0].mxu0
    %1987 = vmatprep.mubr.f32.mxu0 %v1389
    %1988 = vmatmul.mubr.f32.gmra.mrb[0].mxu0 %v1373
    %v1989 = vpop.f32.mrb[0].mxu0
    %v1990 = vadd.f32 %v1845, %v1989
    %v1991 = vpop.f32.mrb[0].mxu0
    %1992 = vmatprep.mubr.f32.mxu0 %v1390
    %1993 = vmatmul.mubr.f32.gmra.mrb[0].mxu0 %v1374
    %v1994 = vpop.f32.mrb[0].mxu0
    %v1995 = vadd.f32 %v1850, %v1994
    %v1996 = vpop.f32.mrb[0].mxu0
    %1997 = vmatprep.mubr.f32.mxu0 %v1391
    %1998 = vmatmul.mubr.f32.gmra.mrb[0].mxu0 %v1375
    %v1999 = vpop.f32.mrb[0].mxu0
    %v2000 = vadd.f32 %v1855, %v1999
    %v2001 = vpop.f32.mrb[0].mxu0
    %2002 = vmatprep.mubr.f32.mxu0 %v1392
    %2003 = vmatmul.mubr.f32.gmra.mrb[0].mxu0 %v1376
    %v2004 = vpop.f32.mrb[0].mxu0
    %v2005 = vadd.f32 %v1860, %v2004
    %v2006 = vpop.f32.mrb[0].mxu0
    %2007 = vmatprep.mubr.f32.mxu0 %v1393
    %2008 = vmatmul.mubr.f32.gmra.mrb[0].mxu0 %v1377
    %v2009 = vpop.f32.mrb[0].mxu0
    %v2010 = vadd.f32 %v1865, %v2009
    %v2011 = vpop.f32.mrb[0].mxu0
    %2012 = vmatprep.mubr.f32.mxu0 %v1394
    %2013 = vmatmul.mubr.f32.gmra.mrb[0].mxu0 %v1378
    %v2014 = vpop.f32.mrb[0].mxu0
    %v2015 = vadd.f32 %v1870, %v2014
    %v2016 = vpop.f32.mrb[0].mxu0
    %2017 = vmatprep.mubr.f32.mxu0 %v1395
    %2018 = vmatmul.mubr.f32.gmra.mrb[0].mxu0 %v1379
    %v2019 = vpop.f32.mrb[0].mxu0
    %v2020 = vadd.f32 %v1875, %v2019
    %v2021 = vpop.f32.mrb[0].mxu0
    %2022 = vmatprep.mubr.f32.mxu0 %v1396
    %2023 = vmatmul.mubr.f32.gmra.mrb[0].mxu0 %v1380
    %v2024 = vpop.f32.mrb[0].mxu0
    %v2025 = vadd.f32 %v1880, %v2024
    %v2026 = vpop.f32.mrb[0].mxu0
    %2027 = vmatprep.mubr.f32.mxu0 %v1397
    %2028 = vmatmul.mubr.f32.gmra.mrb[0].mxu0 %v1381
    %v2029 = vpop.f32.mrb[0].mxu0
    %v2030 = vadd.f32 %v1885, %v2029
    %v2031 = vpop.f32.mrb[0].mxu0
    %2032 = vdwg.mxu0
    %2033 = vmatprep.subr.mxu0 0.0
    %2034 = vmatpush1.msra.mxu0 %v1543
    %2035 = vmatprep.subr.mxu0 0.0
    %2036 = vmatpush1.msra.mxu0 %v1544
    %2037 = vmatprep.subr.mxu0 0.0
    %2038 = vmatpush1.msra.mxu0 %v1545
    %2039 = vmatprep.subr.mxu0 0.0
    %2040 = vmatpush1.msra.mxu0 %v1546
    %2041 = vmatprep.subr.mxu0 0.0
    %2042 = vmatpush1.msra.mxu0 %v1547
    %2043 = vmatprep.subr.mxu0 0.0
    %2044 = vmatpush1.msra.mxu0 %v1548
    %2045 = vmatprep.subr.mxu0 0.0
    %2046 = vmatpush1.msra.mxu0 %v1549
    %2047 = vmatprep.subr.mxu0 0.0
    %2048 = vmatpush1.msra.mxu0 %v1550
    %2049 = vmatprep.subr.mxu0 0.0
    %2050 = vmatpush1.msra.mxu0 %v1551
    %2051 = vmatprep.subr.mxu0 0.0
    %2052 = vmatpush1.msra.mxu0 %v1552
    %2053 = vmatprep.subr.mxu0 0.0
    %2054 = vmatpush1.msra.mxu0 %v1553
    %2055 = vmatprep.subr.mxu0 0.0
    %2056 = vmatpush1.msra.mxu0 %v1554
    %2057 = vmatprep.subr.mxu0 0.0
    %2058 = vmatpush1.msra.mxu0 %v1555
    %2059 = vmatprep.subr.mxu0 0.0
    %2060 = vmatpush1.msra.mxu0 %v1556
    %2061 = vmatprep.subr.mxu0 0.0
    %2062 = vmatpush1.msra.mxu0 %v1557
    %2063 = vmatprep.subr.mxu0 0.0
    %2064 = vmatpush1.msra.mxu0 %v1558
    %2065 = vmatprep.subr.mxu0 0.0
    %2066 = vmatpush1.msra.mxu0 %v1559
    %2067 = vmatprep.subr.mxu0 0.0
    %2068 = vmatpush1.msra.mxu0 %v1560
    %2069 = vmatprep.subr.mxu0 0.0
    %2070 = vmatpush1.msra.mxu0 %v1561
    %2071 = vmatprep.subr.mxu0 0.0
    %2072 = vmatpush1.msra.mxu0 %v1562
    %2073 = vmatprep.subr.mxu0 0.0
    %2074 = vmatpush1.msra.mxu0 %v1563
    %2075 = vmatprep.subr.mxu0 0.0
    %2076 = vmatpush1.msra.mxu0 %v1564
    %2077 = vmatprep.subr.mxu0 0.0
    %2078 = vmatpush1.msra.mxu0 %v1565
    %2079 = vmatprep.subr.mxu0 0.0
    %2080 = vmatpush1.msra.mxu0 %v1566
    %2081 = vmatprep.subr.mxu0 0.0
    %2082 = vmatpush1.msra.mxu0 %v1567
    %2083 = vmatprep.subr.mxu0 0.0
    %2084 = vmatpush1.msra.mxu0 %v1568
    %2085 = vmatprep.subr.mxu0 0.0
    %2086 = vmatpush1.msra.mxu0 %v1569
    %2087 = vmatprep.subr.mxu0 0.0
    %2088 = vmatpush1.msra.mxu0 %v1570
    %2089 = vmatprep.subr.mxu0 0.0
    %2090 = vmatpush1.msra.mxu0 %v1571
    %2091 = vmatprep.subr.mxu0 0.0
    %2092 = vmatpush1.msra.mxu0 %v1572
    %2093 = vmatprep.subr.mxu0 0.0
    %2094 = vmatpush1.msra.mxu0 %v1573
    %2095 = vmatprep.subr.mxu0 0.0
    %2096 = vmatpush1.msra.mxu0 %v1574
    %2097 = vmatprep.mubr.f32.mxu0 %v1415
    %2098 = vmatmul.mubr.f32.gmra.mrb[0].mxu0 %v1399
    %v2099 = vpop.f32.mrb[0].mxu0
    %v2100 = vadd.f32 %v1955, %v2099
    %v2101 = vpop.f32.mrb[0].mxu0
    %2102 = vmatprep.mubr.f32.mxu0 %v1416
    %2103 = vmatmul.mubr.f32.gmra.mrb[0].mxu0 %v1400
    %v2104 = vpop.f32.mrb[0].mxu0
    %v2105 = vadd.f32 %v1960, %v2104
    %v2106 = vpop.f32.mrb[0].mxu0
    %2107 = vmatprep.mubr.f32.mxu0 %v1417
    %2108 = vmatmul.mubr.f32.gmra.mrb[0].mxu0 %v1401
    %v2109 = vpop.f32.mrb[0].mxu0
    %v2110 = vadd.f32 %v1965, %v2109
    %v2111 = vpop.f32.mrb[0].mxu0
    %2112 = vmatprep.mubr.f32.mxu0 %v1418
    %2113 = vmatmul.mubr.f32.gmra.mrb[0].mxu0 %v1402
    %v2114 = vpop.f32.mrb[0].mxu0
    %v2115 = vadd.f32 %v1970, %v2114
    %v2116 = vpop.f32.mrb[0].mxu0
    %2117 = vmatprep.mubr.f32.mxu0 %v1419
    %2118 = vmatmul.mubr.f32.gmra.mrb[0].mxu0 %v1403
    %v2119 = vpop.f32.mrb[0].mxu0
    %v2120 = vadd.f32 %v1975, %v2119
    %v2121 = vpop.f32.mrb[0].mxu0
    %2122 = vmatprep.mubr.f32.mxu0 %v1420
    %2123 = vmatmul.mubr.f32.gmra.mrb[0].mxu0 %v1404
    %v2124 = vpop.f32.mrb[0].mxu0
    %v2125 = vadd.f32 %v1980, %v2124
    %v2126 = vpop.f32.mrb[0].mxu0
    %2127 = vmatprep.mubr.f32.mxu0 %v1421
    %2128 = vmatmul.mubr.f32.gmra.mrb[0].mxu0 %v1405
    %v2129 = vpop.f32.mrb[0].mxu0
    %v2130 = vadd.f32 %v1985, %v2129
    %v2131 = vpop.f32.mrb[0].mxu0
    %2132 = vmatprep.mubr.f32.mxu0 %v1422
    %2133 = vmatmul.mubr.f32.gmra.mrb[0].mxu0 %v1406
    %v2134 = vpop.f32.mrb[0].mxu0
    %v2135 = vadd.f32 %v1990, %v2134
    %v2136 = vpop.f32.mrb[0].mxu0
    %2137 = vmatprep.mubr.f32.mxu0 %v1423
    %2138 = vmatmul.mubr.f32.gmra.mrb[0].mxu0 %v1407
    %v2139 = vpop.f32.mrb[0].mxu0
    %v2140 = vadd.f32 %v1995, %v2139
    %v2141 = vpop.f32.mrb[0].mxu0
    %2142 = vmatprep.mubr.f32.mxu0 %v1424
    %2143 = vmatmul.mubr.f32.gmra.mrb[0].mxu0 %v1408
    %v2144 = vpop.f32.mrb[0].mxu0
    %v2145 = vadd.f32 %v2000, %v2144
    %v2146 = vpop.f32.mrb[0].mxu0
    %2147 = vmatprep.mubr.f32.mxu0 %v1425
    %2148 = vmatmul.mubr.f32.gmra.mrb[0].mxu0 %v1409
    %v2149 = vpop.f32.mrb[0].mxu0
    %v2150 = vadd.f32 %v2005, %v2149
    %v2151 = vpop.f32.mrb[0].mxu0
    %2152 = vmatprep.mubr.f32.mxu0 %v1426
    %2153 = vmatmul.mubr.f32.gmra.mrb[0].mxu0 %v1410
    %v2154 = vpop.f32.mrb[0].mxu0
    %v2155 = vadd.f32 %v2010, %v2154
    %v2156 = vpop.f32.mrb[0].mxu0
    %2157 = vmatprep.mubr.f32.mxu0 %v1427
    %2158 = vmatmul.mubr.f32.gmra.mrb[0].mxu0 %v1411
    %v2159 = vpop.f32.mrb[0].mxu0
    %v2160 = vadd.f32 %v2015, %v2159
    %v2161 = vpop.f32.mrb[0].mxu0
    %2162 = vmatprep.mubr.f32.mxu0 %v1428
    %2163 = vmatmul.mubr.f32.gmra.mrb[0].mxu0 %v1412
    %v2164 = vpop.f32.mrb[0].mxu0
    %v2165 = vadd.f32 %v2020, %v2164
    %v2166 = vpop.f32.mrb[0].mxu0
    %2167 = vmatprep.mubr.f32.mxu0 %v1429
    %2168 = vmatmul.mubr.f32.gmra.mrb[0].mxu0 %v1413
    %v2169 = vpop.f32.mrb[0].mxu0
    %v2170 = vadd.f32 %v2025, %v2169
    %v2171 = vpop.f32.mrb[0].mxu0
    %2172 = vmatprep.mubr.f32.mxu0 %v1430
    %2173 = vmatmul.mubr.f32.gmra.mrb[0].mxu0 %v1414
    %v2174 = vpop.f32.mrb[0].mxu0
    %v2175 = vadd.f32 %v2030, %v2174
    %v2176 = vpop.f32.mrb[0].mxu0
    %2177 = vdwg.mxu0
    %2178 = vmatprep.subr.mxu0 0.0
    %2179 = vmatpush1.msra.mxu0 %v1575
    %2180 = vmatprep.subr.mxu0 0.0
    %2181 = vmatpush1.msra.mxu0 %v1576
    %2182 = vmatprep.subr.mxu0 0.0
    %2183 = vmatpush1.msra.mxu0 %v1577
    %2184 = vmatprep.subr.mxu0 0.0
    %2185 = vmatpush1.msra.mxu0 %v1578
    %2186 = vmatprep.subr.mxu0 0.0
    %2187 = vmatpush1.msra.mxu0 %v1579
    %2188 = vmatprep.subr.mxu0 0.0
    %2189 = vmatpush1.msra.mxu0 %v1580
    %2190 = vmatprep.subr.mxu0 0.0
    %2191 = vmatpush1.msra.mxu0 %v1581
    %2192 = vmatprep.subr.mxu0 0.0
    %2193 = vmatpush1.msra.mxu0 %v1582
    %2194 = vmatprep.subr.mxu0 0.0
    %2195 = vmatpush1.msra.mxu0 %v1583
    %2196 = vmatprep.subr.mxu0 0.0
    %2197 = vmatpush1.msra.mxu0 %v1584
    %2198 = vmatprep.subr.mxu0 0.0
    %2199 = vmatpush1.msra.mxu0 %v1585
    %2200 = vmatprep.subr.mxu0 0.0
    %2201 = vmatpush1.msra.mxu0 %v1586
    %2202 = vmatprep.subr.mxu0 0.0
    %2203 = vmatpush1.msra.mxu0 %v1587
    %2204 = vmatprep.subr.mxu0 0.0
    %2205 = vmatpush1.msra.mxu0 %v1588
    %2206 = vmatprep.subr.mxu0 0.0
    %2207 = vmatpush1.msra.mxu0 %v1589
    %2208 = vmatprep.subr.mxu0 0.0
    %2209 = vmatpush1.msra.mxu0 %v1590
    %2210 = vmatprep.subr.mxu0 0.0
    %2211 = vmatpush1.msra.mxu0 0.0
    %2212 = vmatprep.subr.mxu0 0.0
    %2213 = vmatpush1.msra.mxu0 0.0
    %2214 = vmatprep.subr.mxu0 0.0
    %2215 = vmatpush1.msra.mxu0 0.0
    %2216 = vmatprep.subr.mxu0 0.0
    %2217 = vmatpush1.msra.mxu0 0.0
    %2218 = vmatprep.subr.mxu0 0.0
    %2219 = vmatpush1.msra.mxu0 0.0
    %2220 = vmatprep.subr.mxu0 0.0
    %2221 = vmatpush1.msra.mxu0 0.0
    %2222 = vmatprep.subr.mxu0 0.0
    %2223 = vmatpush1.msra.mxu0 0.0
    %2224 = vmatprep.subr.mxu0 0.0
    %2225 = vmatpush1.msra.mxu0 0.0
    %2226 = vmatprep.subr.mxu0 0.0
    %2227 = vmatpush1.msra.mxu0 0.0
    %2228 = vmatprep.subr.mxu0 0.0
    %2229 = vmatpush1.msra.mxu0 0.0
    %2230 = vmatprep.subr.mxu0 0.0
    %2231 = vmatpush1.msra.mxu0 0.0
    %2232 = vmatprep.subr.mxu0 0.0
    %2233 = vmatpush1.msra.mxu0 0.0
    %2234 = vmatprep.subr.mxu0 0.0
    %2235 = vmatpush1.msra.mxu0 0.0
    %2236 = vmatprep.subr.mxu0 0.0
    %2237 = vmatpush1.msra.mxu0 0.0
    %2238 = vmatprep.subr.mxu0 0.0
    %2239 = vmatpush1.msra.mxu0 0.0
    %2240 = vmatprep.subr.mxu0 0.0
    %2241 = vmatpush1.msra.mxu0 0.0
    %2242 = vmatprep.mubr.f32.mxu0 0.0
    %2243 = vmatmul.mubr.f32.gmra.mrb[0].mxu0 %v1431
    %v2244 = vpop.f32.mrb[0].mxu0
    %v2245 = vadd.f32 %v2100, %v2244
    %v2246 = vpop.f32.mrb[0].mxu0
    %2247 = vmatprep.mubr.f32.mxu0 0.0
    %2248 = vmatmul.mubr.f32.gmra.mrb[0].mxu0 %v1432
    %v2249 = vpop.f32.mrb[0].mxu0
    %v2250 = vadd.f32 %v2105, %v2249
    %v2251 = vpop.f32.mrb[0].mxu0
    %2252 = vmatprep.mubr.f32.mxu0 0.0
    %2253 = vmatmul.mubr.f32.gmra.mrb[0].mxu0 %v1433
    %v2254 = vpop.f32.mrb[0].mxu0
    %v2255 = vadd.f32 %v2110, %v2254
    %v2256 = vpop.f32.mrb[0].mxu0
    %2257 = vmatprep.mubr.f32.mxu0 0.0
    %2258 = vmatmul.mubr.f32.gmra.mrb[0].mxu0 %v1434
    %v2259 = vpop.f32.mrb[0].mxu0
    %v2260 = vadd.f32 %v2115, %v2259
    %v2261 = vpop.f32.mrb[0].mxu0
    %2262 = vmatprep.mubr.f32.mxu0 0.0
    %2263 = vmatmul.mubr.f32.gmra.mrb[0].mxu0 %v1435
    %v2264 = vpop.f32.mrb[0].mxu0
    %v2265 = vadd.f32 %v2120, %v2264
    %v2266 = vpop.f32.mrb[0].mxu0
    %2267 = vmatprep.mubr.f32.mxu0 0.0
    %2268 = vmatmul.mubr.f32.gmra.mrb[0].mxu0 %v1436
    %v2269 = vpop.f32.mrb[0].mxu0
    %v2270 = vadd.f32 %v2125, %v2269
    %v2271 = vpop.f32.mrb[0].mxu0
    %2272 = vmatprep.mubr.f32.mxu0 0.0
    %2273 = vmatmul.mubr.f32.gmra.mrb[0].mxu0 %v1437
    %v2274 = vpop.f32.mrb[0].mxu0
    %v2275 = vadd.f32 %v2130, %v2274
    %v2276 = vpop.f32.mrb[0].mxu0
    %2277 = vmatprep.mubr.f32.mxu0 0.0
    %2278 = vmatmul.mubr.f32.gmra.mrb[0].mxu0 %v1438
    %v2279 = vpop.f32.mrb[0].mxu0
    %v2280 = vadd.f32 %v2135, %v2279
    %v2281 = vpop.f32.mrb[0].mxu0
    %2282 = vmatprep.mubr.f32.mxu0 0.0
    %2283 = vmatmul.mubr.f32.gmra.mrb[0].mxu0 %v1439
    %v2284 = vpop.f32.mrb[0].mxu0
    %v2285 = vadd.f32 %v2140, %v2284
    %v2286 = vpop.f32.mrb[0].mxu0
    %2287 = vmatprep.mubr.f32.mxu0 0.0
    %2288 = vmatmul.mubr.f32.gmra.mrb[0].mxu0 %v1440
    %v2289 = vpop.f32.mrb[0].mxu0
    %v2290 = vadd.f32 %v2145, %v2289
    %v2291 = vpop.f32.mrb[0].mxu0
    %2292 = vmatprep.mubr.f32.mxu0 0.0
    %2293 = vmatmul.mubr.f32.gmra.mrb[0].mxu0 %v1441
    %v2294 = vpop.f32.mrb[0].mxu0
    %v2295 = vadd.f32 %v2150, %v2294
    %v2296 = vpop.f32.mrb[0].mxu0
    %2297 = vmatprep.mubr.f32.mxu0 0.0
    %2298 = vmatmul.mubr.f32.gmra.mrb[0].mxu0 %v1442
    %v2299 = vpop.f32.mrb[0].mxu0
    %v2300 = vadd.f32 %v2155, %v2299
    %v2301 = vpop.f32.mrb[0].mxu0
    %2302 = vmatprep.mubr.f32.mxu0 0.0
    %2303 = vmatmul.mubr.f32.gmra.mrb[0].mxu0 %v1443
    %v2304 = vpop.f32.mrb[0].mxu0
    %v2305 = vadd.f32 %v2160, %v2304
    %v2306 = vpop.f32.mrb[0].mxu0
    %2307 = vmatprep.mubr.f32.mxu0 0.0
    %2308 = vmatmul.mubr.f32.gmra.mrb[0].mxu0 %v1444
    %v2309 = vpop.f32.mrb[0].mxu0
    %v2310 = vadd.f32 %v2165, %v2309
    %v2311 = vpop.f32.mrb[0].mxu0
    %2312 = vmatprep.mubr.f32.mxu0 0.0
    %2313 = vmatmul.mubr.f32.gmra.mrb[0].mxu0 %v1445
    %v2314 = vpop.f32.mrb[0].mxu0
    %v2315 = vadd.f32 %v2170, %v2314
    %v2316 = vpop.f32.mrb[0].mxu0
    %2317 = vmatprep.mubr.f32.mxu0 0.0
    %2318 = vmatmul.mubr.f32.gmra.mrb[0].mxu0 %v1446
    %v2319 = vpop.f32.mrb[0].mxu0
    %v2320 = vadd.f32 %v2175, %v2319
    %v2321 = vpop.f32.mrb[0].mxu0
    %2322 = vdwg.mxu0
    %v2323 = vld [vmem:[%s8] sm:$0x1]
    %v2324 = vld [vmem:[%s9] sm:$0x1]
    %v2325 = vadd.f32 %v2245, %v2250
    %v2326 = vadd.f32 %v2325, %v2255
    %v2327 = vadd.f32 %v2326, %v2260
    %v2328 = vadd.f32 %v2327, %v2265
    %v2329 = vadd.f32 %v2328, %v2270
    %v2330 = vadd.f32 %v2329, %v2275
    %v2331 = vadd.f32 %v2330, %v2280
    %v2332 = vadd.f32 %v2331, %v2285
    %v2333 = vadd.f32 %v2332, %v2290
    %v2334 = vadd.f32 %v2333, %v2295
    %v2335 = vadd.f32 %v2334, %v2300
    %v2336 = vadd.f32 %v2335, %v2305
    %v2337 = vadd.f32 %v2336, %v2310
    %v2338 = vadd.f32 %v2337, %v2315
    %v2339 = vadd.f32 %v2338, %v2320
    %v2340 = vrot.slane %v2339, 4
    %v2341 = vadd.f32 %v2339, %v2340
    %v2342 = vrot.slane %v2341, 2
    %v2343 = vadd.f32 %v2341, %v2342
    %v2344 = vrot.slane %v2343, 1
    %v2345 = vadd.f32 %v2343, %v2344
    %v2346 = vmul.f32 %v2345, 0.0078125
    %v2347 = vmul.f32 %v2245, %v2245
    %v2348 = vmul.f32 %v2250, %v2250
    %v2349 = vmul.f32 %v2255, %v2255
    %v2350 = vmul.f32 %v2260, %v2260
    %v2351 = vmul.f32 %v2265, %v2265
    %v2352 = vmul.f32 %v2270, %v2270
    %v2353 = vmul.f32 %v2275, %v2275
    %v2354 = vmul.f32 %v2280, %v2280
    %v2355 = vmul.f32 %v2285, %v2285
    %v2356 = vmul.f32 %v2290, %v2290
    %v2357 = vmul.f32 %v2295, %v2295
    %v2358 = vmul.f32 %v2300, %v2300
    %v2359 = vmul.f32 %v2305, %v2305
    %v2360 = vmul.f32 %v2310, %v2310
    %v2361 = vmul.f32 %v2315, %v2315
    %v2362 = vmul.f32 %v2320, %v2320
    %v2363 = vadd.f32 %v2347, %v2348
    %v2364 = vadd.f32 %v2363, %v2349
    %v2365 = vadd.f32 %v2364, %v2350
    %v2366 = vadd.f32 %v2365, %v2351
    %v2367 = vadd.f32 %v2366, %v2352
    %v2368 = vadd.f32 %v2367, %v2353
    %v2369 = vadd.f32 %v2368, %v2354
    %v2370 = vadd.f32 %v2369, %v2355
    %v2371 = vadd.f32 %v2370, %v2356
    %v2372 = vadd.f32 %v2371, %v2357
    %v2373 = vadd.f32 %v2372, %v2358
    %v2374 = vadd.f32 %v2373, %v2359
    %v2375 = vadd.f32 %v2374, %v2360
    %v2376 = vadd.f32 %v2375, %v2361
    %v2377 = vadd.f32 %v2376, %v2362
    %v2378 = vrot.slane %v2377, 4
    %v2379 = vadd.f32 %v2377, %v2378
    %v2380 = vrot.slane %v2379, 2
    %v2381 = vadd.f32 %v2379, %v2380
    %v2382 = vrot.slane %v2381, 1
    %v2383 = vadd.f32 %v2381, %v2382
    %v2384 = vmul.f32 %v2383, 0.0078125
    %v2385 = vmul.f32 %v2346, %v2346
    %v2386 = vsub.f32 %v2384, %v2385
    %v2387 = vsub.f32 %v2245, %v2346
    %v2388 = vsub.f32 %v2250, %v2346
    %v2389 = vsub.f32 %v2255, %v2346
    %v2390 = vsub.f32 %v2260, %v2346
    %v2391 = vsub.f32 %v2265, %v2346
    %v2392 = vsub.f32 %v2270, %v2346
    %v2393 = vsub.f32 %v2275, %v2346
    %v2394 = vsub.f32 %v2280, %v2346
    %v2395 = vsub.f32 %v2285, %v2346
    %v2396 = vsub.f32 %v2290, %v2346
    %v2397 = vsub.f32 %v2295, %v2346
    %v2398 = vsub.f32 %v2300, %v2346
    %v2399 = vsub.f32 %v2305, %v2346
    %v2400 = vsub.f32 %v2310, %v2346
    %v2401 = vsub.f32 %v2315, %v2346
    %v2402 = vsub.f32 %v2320, %v2346
    %v2403 = vadd.f32 %v2386, 0.8
    %v2404 = vrsqrt.pop %v2403
    %v2405 = vmul.f32 %v2387, %v2404
    %v2406 = vmul.f32 %v2388, %v2404
    %v2407 = vmul.f32 %v2389, %v2404
    %v2408 = vmul.f32 %v2390, %v2404
    %v2409 = vmul.f32 %v2391, %v2404
    %v2410 = vmul.f32 %v2392, %v2404
    %v2411 = vmul.f32 %v2393, %v2404
    %v2412 = vmul.f32 %v2394, %v2404
    %v2413 = vmul.f32 %v2395, %v2404
    %v2414 = vmul.f32 %v2396, %v2404
    %v2415 = vmul.f32 %v2397, %v2404
    %v2416 = vmul.f32 %v2398, %v2404
    %v2417 = vmul.f32 %v2399, %v2404
    %v2418 = vmul.f32 %v2400, %v2404
    %v2419 = vmul.f32 %v2401, %v2404
    %v2420 = vmul.f32 %v2402, %v2404
    %v2422 = vlaneseq
    %v2423 = vshrl.u32 %v2422, 7
    %v2424 = vsub.s32 0, %v2423
    %v2425 = vrot.slane %v2323, %v2424
    %v2427 = vmul.f32 %v2405, %v2425
    %v2428 = vmul.f32 %v2406, %v2425
    %v2429 = vmul.f32 %v2407, %v2425
    %v2430 = vmul.f32 %v2408, %v2425
    %v2431 = vmul.f32 %v2409, %v2425
    %v2432 = vmul.f32 %v2410, %v2425
    %v2433 = vmul.f32 %v2411, %v2425
    %v2434 = vmul.f32 %v2412, %v2425
    %v2435 = vmul.f32 %v2413, %v2425
    %v2436 = vmul.f32 %v2414, %v2425
    %v2437 = vmul.f32 %v2415, %v2425
    %v2438 = vmul.f32 %v2416, %v2425
    %v2439 = vmul.f32 %v2417, %v2425
    %v2440 = vmul.f32 %v2418, %v2425
    %v2441 = vmul.f32 %v2419, %v2425
    %v2442 = vmul.f32 %v2420, %v2425
    %v2444 = vlaneseq
    %v2445 = vshrl.u32 %v2444, 7
    %v2446 = vsub.s32 0, %v2445
    %v2447 = vrot.slane %v2324, %v2446
    %v2449 = vadd.f32 %v2427, %v2447
    %v2450 = vadd.f32 %v2428, %v2447
    %v2451 = vadd.f32 %v2429, %v2447
    %v2452 = vadd.f32 %v2430, %v2447
    %v2453 = vadd.f32 %v2431, %v2447
    %v2454 = vadd.f32 %v2432, %v2447
    %v2455 = vadd.f32 %v2433, %v2447
    %v2456 = vadd.f32 %v2434, %v2447
    %v2457 = vadd.f32 %v2435, %v2447
    %v2458 = vadd.f32 %v2436, %v2447
    %v2459 = vadd.f32 %v2437, %v2447
    %v2460 = vadd.f32 %v2438, %v2447
    %v2461 = vadd.f32 %v2439, %v2447
    %v2462 = vadd.f32 %v2440, %v2447
    %v2463 = vadd.f32 %v2441, %v2447
    %v2464 = vadd.f32 %v2442, %v2447
    %vm2465 = vcmp.ge.f32.partialorder %v2449, 0.0
    %vm2466 = vcmp.ge.f32.partialorder %v2450, 0.0
    %vm2467 = vcmp.ge.f32.partialorder %v2451, 0.0
    %vm2468 = vcmp.ge.f32.partialorder %v2452, 0.0
    %vm2469 = vcmp.ge.f32.partialorder %v2453, 0.0
    %vm2470 = vcmp.ge.f32.partialorder %v2454, 0.0
    %vm2471 = vcmp.ge.f32.partialorder %v2455, 0.0
    %vm2472 = vcmp.ge.f32.partialorder %v2456, 0.0
    %vm2473 = vcmp.ge.f32.partialorder %v2457, 0.0
    %vm2474 = vcmp.ge.f32.partialorder %v2458, 0.0
    %vm2475 = vcmp.ge.f32.partialorder %v2459, 0.0
    %vm2476 = vcmp.ge.f32.partialorder %v2460, 0.0
    %vm2477 = vcmp.ge.f32.partialorder %v2461, 0.0
    %vm2478 = vcmp.ge.f32.partialorder %v2462, 0.0
    %vm2479 = vcmp.ge.f32.partialorder %v2463, 0.0
    %vm2480 = vcmp.ge.f32.partialorder %v2464, 0.0
    %v2481 = vmul.f32 %v2449, 0.2
    %v2482 = vmul.f32 %v2450, 0.2
    %v2483 = vmul.f32 %v2451, 0.2
    %v2484 = vmul.f32 %v2452, 0.2
    %v2485 = vmul.f32 %v2453, 0.2
    %v2486 = vmul.f32 %v2454, 0.2
    %v2487 = vmul.f32 %v2455, 0.2
    %v2488 = vmul.f32 %v2456, 0.2
    %v2489 = vmul.f32 %v2457, 0.2
    %v2490 = vmul.f32 %v2458, 0.2
    %v2491 = vmul.f32 %v2459, 0.2
    %v2492 = vmul.f32 %v2460, 0.2
    %v2493 = vmul.f32 %v2461, 0.2
    %v2494 = vmul.f32 %v2462, 0.2
    %v2495 = vmul.f32 %v2463, 0.2
    %v2496 = vmul.f32 %v2464, 0.2
    %v2497 = vsel %vm2465, %v2449, %v2481
    %v2498 = vsel %vm2466, %v2450, %v2482
    %v2499 = vsel %vm2467, %v2451, %v2483
    %v2500 = vsel %vm2468, %v2452, %v2484
    %v2501 = vsel %vm2469, %v2453, %v2485
    %v2502 = vsel %vm2470, %v2454, %v2486
    %v2503 = vsel %vm2471, %v2455, %v2487
    %v2504 = vsel %vm2472, %v2456, %v2488
    %v2505 = vsel %vm2473, %v2457, %v2489
    %v2506 = vsel %vm2474, %v2458, %v2490
    %v2507 = vsel %vm2475, %v2459, %v2491
    %v2508 = vsel %vm2476, %v2460, %v2492
    %v2509 = vsel %vm2477, %v2461, %v2493
    %v2510 = vsel %vm2478, %v2462, %v2494
    %v2511 = vsel %vm2479, %v2463, %v2495
    %v2512 = vsel %vm2480, %v2464, %v2496
    %v2513 = vld [vmem:[#allocation8] sm:$0xff]
    %v2514 = vld [vmem:[#allocation8 + $0x8] sm:$0xff]
    %v2515 = vld [vmem:[#allocation8 + $0x10] sm:$0xff]
    %v2516 = vld [vmem:[#allocation8 + $0x18] sm:$0xff]
    %v2517 = vld [vmem:[#allocation8 + $0x20] sm:$0xff]
    %v2518 = vld [vmem:[#allocation8 + $0x28] sm:$0xff]
    %v2519 = vld [vmem:[#allocation8 + $0x30] sm:$0xff]
    %v2520 = vld [vmem:[#allocation8 + $0x38] sm:$0xff]
    %v2521 = vld [vmem:[#allocation8 + $0x40] sm:$0xff]
    %v2522 = vld [vmem:[#allocation8 + $0x48] sm:$0xff]
    %v2523 = vld [vmem:[#allocation8 + $0x50] sm:$0xff]
    %v2524 = vld [vmem:[#allocation8 + $0x58] sm:$0xff]
    %v2525 = vld [vmem:[#allocation8 + $0x60] sm:$0xff]
    %v2526 = vld [vmem:[#allocation8 + $0x68] sm:$0xff]
    %v2527 = vld [vmem:[#allocation8 + $0x70] sm:$0xff]
    %v2528 = vld [vmem:[#allocation8 + $0x78] sm:$0xff]
    %v2529 = vld [vmem:[#allocation8 + $0x80] sm:$0xff]
    %v2530 = vld [vmem:[#allocation8 + $0x88] sm:$0xff]
    %v2531 = vld [vmem:[#allocation8 + $0x90] sm:$0xff]
    %v2532 = vld [vmem:[#allocation8 + $0x98] sm:$0xff]
    %v2533 = vld [vmem:[#allocation8 + $0xa0] sm:$0xff]
    %v2534 = vld [vmem:[#allocation8 + $0xa8] sm:$0xff]
    %v2535 = vld [vmem:[#allocation8 + $0xb0] sm:$0xff]
    %v2536 = vld [vmem:[#allocation8 + $0xb8] sm:$0xff]
    %v2537 = vld [vmem:[#allocation8 + $0xc0] sm:$0xff]
    %v2538 = vld [vmem:[#allocation8 + $0xc8] sm:$0xff]
    %v2539 = vld [vmem:[#allocation8 + $0xd0] sm:$0xff]
    %v2540 = vld [vmem:[#allocation8 + $0xd8] sm:$0xff]
    %v2541 = vld [vmem:[#allocation8 + $0xe0] sm:$0xff]
    %v2542 = vld [vmem:[#allocation8 + $0xe8] sm:$0xff]
    %v2543 = vld [vmem:[#allocation8 + $0xf0] sm:$0xff]
    %v2544 = vld [vmem:[#allocation8 + $0xf8] sm:$0xff]
    %v2545 = vld [vmem:[#allocation8 + $0x100] sm:$0xff]
    %v2546 = vld [vmem:[#allocation8 + $0x108] sm:$0xff]
    %v2547 = vld [vmem:[#allocation8 + $0x110] sm:$0xff]
    %v2548 = vld [vmem:[#allocation8 + $0x118] sm:$0xff]
    %v2549 = vld [vmem:[#allocation8 + $0x120] sm:$0xff]
    %v2550 = vld [vmem:[#allocation8 + $0x128] sm:$0xff]
    %v2551 = vld [vmem:[#allocation8 + $0x130] sm:$0xff]
    %v2552 = vld [vmem:[#allocation8 + $0x138] sm:$0xff]
    %v2553 = vld [vmem:[#allocation8 + $0x140] sm:$0xff]
    %v2554 = vld [vmem:[#allocation8 + $0x148] sm:$0xff]
    %v2555 = vld [vmem:[#allocation8 + $0x150] sm:$0xff]
    %v2556 = vld [vmem:[#allocation8 + $0x158] sm:$0xff]
    %v2557 = vld [vmem:[#allocation8 + $0x160] sm:$0xff]
    %v2558 = vld [vmem:[#allocation8 + $0x168] sm:$0xff]
    %v2559 = vld [vmem:[#allocation8 + $0x170] sm:$0xff]
    %v2560 = vld [vmem:[#allocation8 + $0x178] sm:$0xff]
    %v2561 = vld [vmem:[#allocation8 + $0x180] sm:$0xff]
    %v2562 = vld [vmem:[#allocation8 + $0x188] sm:$0xff]
    %v2563 = vld [vmem:[#allocation8 + $0x190] sm:$0xff]
    %v2564 = vld [vmem:[#allocation8 + $0x198] sm:$0xff]
    %v2565 = vld [vmem:[#allocation8 + $0x1a0] sm:$0xff]
    %v2566 = vld [vmem:[#allocation8 + $0x1a8] sm:$0xff]
    %v2567 = vld [vmem:[#allocation8 + $0x1b0] sm:$0xff]
    %v2568 = vld [vmem:[#allocation8 + $0x1b8] sm:$0xff]
    %v2569 = vld [vmem:[#allocation8 + $0x1c0] sm:$0xff]
    %v2570 = vld [vmem:[#allocation8 + $0x1c8] sm:$0xff]
    %v2571 = vld [vmem:[#allocation8 + $0x1d0] sm:$0xff]
    %v2572 = vld [vmem:[#allocation8 + $0x1d8] sm:$0xff]
    %v2573 = vld [vmem:[#allocation8 + $0x1e0] sm:$0xff]
    %v2574 = vld [vmem:[#allocation8 + $0x1e8] sm:$0xff]
    %v2575 = vld [vmem:[#allocation8 + $0x1f0] sm:$0xff]
    %v2576 = vld [vmem:[#allocation8 + $0x1f8] sm:$0xff]
    %2577 = vmatprep.subr.mxu0 0.0
    %2578 = vmatpush1.msra.mxu0 %v2497
    %2579 = vmatprep.subr.mxu0 0.0
    %2580 = vmatpush1.msra.mxu0 %v2498
    %2581 = vmatprep.subr.mxu0 0.0
    %2582 = vmatpush1.msra.mxu0 %v2499
    %2583 = vmatprep.subr.mxu0 0.0
    %2584 = vmatpush1.msra.mxu0 %v2500
    %2585 = vmatprep.subr.mxu0 0.0
    %2586 = vmatpush1.msra.mxu0 %v2501
    %2587 = vmatprep.subr.mxu0 0.0
    %2588 = vmatpush1.msra.mxu0 %v2502
    %2589 = vmatprep.subr.mxu0 0.0
    %2590 = vmatpush1.msra.mxu0 %v2503
    %2591 = vmatprep.subr.mxu0 0.0
    %2592 = vmatpush1.msra.mxu0 %v2504
    %2593 = vmatprep.subr.mxu0 0.0
    %2594 = vmatpush1.msra.mxu0 %v2505
    %2595 = vmatprep.subr.mxu0 0.0
    %2596 = vmatpush1.msra.mxu0 %v2506
    %2597 = vmatprep.subr.mxu0 0.0
    %2598 = vmatpush1.msra.mxu0 %v2507
    %2599 = vmatprep.subr.mxu0 0.0
    %2600 = vmatpush1.msra.mxu0 %v2508
    %2601 = vmatprep.subr.mxu0 0.0
    %2602 = vmatpush1.msra.mxu0 %v2509
    %2603 = vmatprep.subr.mxu0 0.0
    %2604 = vmatpush1.msra.mxu0 %v2510
    %2605 = vmatprep.subr.mxu0 0.0
    %2606 = vmatpush1.msra.mxu0 %v2511
    %2607 = vmatprep.subr.mxu0 0.0
    %2608 = vmatpush1.msra.mxu0 %v2512
    %2609 = vmatprep.subr.mxu0 0.0
    %2610 = vmatpush1.msra.mxu0 0.0
    %2611 = vmatprep.subr.mxu0 0.0
    %2612 = vmatpush1.msra.mxu0 0.0
    %2613 = vmatprep.subr.mxu0 0.0
    %2614 = vmatpush1.msra.mxu0 0.0
    %2615 = vmatprep.subr.mxu0 0.0
    %2616 = vmatpush1.msra.mxu0 0.0
    %2617 = vmatprep.subr.mxu0 0.0
    %2618 = vmatpush1.msra.mxu0 0.0
    %2619 = vmatprep.subr.mxu0 0.0
    %2620 = vmatpush1.msra.mxu0 0.0
    %2621 = vmatprep.subr.mxu0 0.0
    %2622 = vmatpush1.msra.mxu0 0.0
    %2623 = vmatprep.subr.mxu0 0.0
    %2624 = vmatpush1.msra.mxu0 0.0
    %2625 = vmatprep.subr.mxu0 0.0
    %2626 = vmatpush1.msra.mxu0 0.0
    %2627 = vmatprep.subr.mxu0 0.0
    %2628 = vmatpush1.msra.mxu0 0.0
    %2629 = vmatprep.subr.mxu0 0.0
    %2630 = vmatpush1.msra.mxu0 0.0
    %2631 = vmatprep.subr.mxu0 0.0
    %2632 = vmatpush1.msra.mxu0 0.0
    %2633 = vmatprep.subr.mxu0 0.0
    %2634 = vmatpush1.msra.mxu0 0.0
    %2635 = vmatprep.subr.mxu0 0.0
    %2636 = vmatpush1.msra.mxu0 0.0
    %2637 = vmatprep.subr.mxu0 0.0
    %2638 = vmatpush1.msra.mxu0 0.0
    %2639 = vmatprep.subr.mxu0 0.0
    %2640 = vmatpush1.msra.mxu0 0.0
    %2641 = vmatprep.mubr.f32.mxu0 0.0
    %2642 = vmatmul.mubr.f32.gmra.mrb[0].mxu0 %v2513
    %v2643 = vpop.f32.mrb[0].mxu0
    %v2644 = vadd.f32 0.0, %v2643
    %v2645 = vpop.f32.mrb[0].mxu0
    %2646 = vmatprep.mubr.f32.mxu0 0.0
    %2647 = vmatmul.mubr.f32.gmra.mrb[0].mxu0 %v2514
    %v2648 = vpop.f32.mrb[0].mxu0
    %v2649 = vadd.f32 0.0, %v2648
    %v2650 = vpop.f32.mrb[0].mxu0
    %2651 = vmatprep.mubr.f32.mxu0 0.0
    %2652 = vmatmul.mubr.f32.gmra.mrb[0].mxu0 %v2515
    %v2653 = vpop.f32.mrb[0].mxu0
    %v2654 = vadd.f32 0.0, %v2653
    %v2655 = vpop.f32.mrb[0].mxu0
    %2656 = vmatprep.mubr.f32.mxu0 0.0
    %2657 = vmatmul.mubr.f32.gmra.mrb[0].mxu0 %v2516
    %v2658 = vpop.f32.mrb[0].mxu0
    %v2659 = vadd.f32 0.0, %v2658
    %v2660 = vpop.f32.mrb[0].mxu0
    %2661 = vmatprep.mubr.f32.mxu0 0.0
    %2662 = vmatmul.mubr.f32.gmra.mrb[0].mxu0 %v2517
    %v2663 = vpop.f32.mrb[0].mxu0
    %v2664 = vadd.f32 0.0, %v2663
    %v2665 = vpop.f32.mrb[0].mxu0
    %2666 = vmatprep.mubr.f32.mxu0 0.0
    %2667 = vmatmul.mubr.f32.gmra.mrb[0].mxu0 %v2518
    %v2668 = vpop.f32.mrb[0].mxu0
    %v2669 = vadd.f32 0.0, %v2668
    %v2670 = vpop.f32.mrb[0].mxu0
    %2671 = vmatprep.mubr.f32.mxu0 0.0
    %2672 = vmatmul.mubr.f32.gmra.mrb[0].mxu0 %v2519
    %v2673 = vpop.f32.mrb[0].mxu0
    %v2674 = vadd.f32 0.0, %v2673
    %v2675 = vpop.f32.mrb[0].mxu0
    %2676 = vmatprep.mubr.f32.mxu0 0.0
    %2677 = vmatmul.mubr.f32.gmra.mrb[0].mxu0 %v2520
    %v2678 = vpop.f32.mrb[0].mxu0
    %v2679 = vadd.f32 0.0, %v2678
    %v2680 = vpop.f32.mrb[0].mxu0
    %2681 = vmatprep.mubr.f32.mxu0 0.0
    %2682 = vmatmul.mubr.f32.gmra.mrb[0].mxu0 %v2521
    %v2683 = vpop.f32.mrb[0].mxu0
    %v2684 = vadd.f32 0.0, %v2683
    %v2685 = vpop.f32.mrb[0].mxu0
    %2686 = vmatprep.mubr.f32.mxu0 0.0
    %2687 = vmatmul.mubr.f32.gmra.mrb[0].mxu0 %v2522
    %v2688 = vpop.f32.mrb[0].mxu0
    %v2689 = vadd.f32 0.0, %v2688
    %v2690 = vpop.f32.mrb[0].mxu0
    %2691 = vmatprep.mubr.f32.mxu0 0.0
    %2692 = vmatmul.mubr.f32.gmra.mrb[0].mxu0 %v2523
    %v2693 = vpop.f32.mrb[0].mxu0
    %v2694 = vadd.f32 0.0, %v2693
    %v2695 = vpop.f32.mrb[0].mxu0
    %2696 = vmatprep.mubr.f32.mxu0 0.0
    %2697 = vmatmul.mubr.f32.gmra.mrb[0].mxu0 %v2524
    %v2698 = vpop.f32.mrb[0].mxu0
    %v2699 = vadd.f32 0.0, %v2698
    %v2700 = vpop.f32.mrb[0].mxu0
    %2701 = vmatprep.mubr.f32.mxu0 0.0
    %2702 = vmatmul.mubr.f32.gmra.mrb[0].mxu0 %v2525
    %v2703 = vpop.f32.mrb[0].mxu0
    %v2704 = vadd.f32 0.0, %v2703
    %v2705 = vpop.f32.mrb[0].mxu0
    %2706 = vmatprep.mubr.f32.mxu0 0.0
    %2707 = vmatmul.mubr.f32.gmra.mrb[0].mxu0 %v2526
    %v2708 = vpop.f32.mrb[0].mxu0
    %v2709 = vadd.f32 0.0, %v2708
    %v2710 = vpop.f32.mrb[0].mxu0
    %2711 = vmatprep.mubr.f32.mxu0 0.0
    %2712 = vmatmul.mubr.f32.gmra.mrb[0].mxu0 %v2527
    %v2713 = vpop.f32.mrb[0].mxu0
    %v2714 = vadd.f32 0.0, %v2713
    %v2715 = vpop.f32.mrb[0].mxu0
    %2716 = vmatprep.mubr.f32.mxu0 0.0
    %2717 = vmatmul.mubr.f32.gmra.mrb[0].mxu0 %v2528
    %v2718 = vpop.f32.mrb[0].mxu0
    %v2719 = vadd.f32 0.0, %v2718
    %v2720 = vpop.f32.mrb[0].mxu0
    %2721 = vmatprep.mubr.f32.mxu0 0.0
    %2722 = vmatmul.mubr.f32.gmra.mrb[0].mxu0 %v2529
    %v2723 = vpop.f32.mrb[0].mxu0
    %v2724 = vadd.f32 0.0, %v2723
    %v2725 = vpop.f32.mrb[0].mxu0
    %2726 = vmatprep.mubr.f32.mxu0 0.0
    %2727 = vmatmul.mubr.f32.gmra.mrb[0].mxu0 %v2530
    %v2728 = vpop.f32.mrb[0].mxu0
    %v2729 = vadd.f32 0.0, %v2728
    %v2730 = vpop.f32.mrb[0].mxu0
    %2731 = vmatprep.mubr.f32.mxu0 0.0
    %2732 = vmatmul.mubr.f32.gmra.mrb[0].mxu0 %v2531
    %v2733 = vpop.f32.mrb[0].mxu0
    %v2734 = vadd.f32 0.0, %v2733
    %v2735 = vpop.f32.mrb[0].mxu0
    %2736 = vmatprep.mubr.f32.mxu0 0.0
    %2737 = vmatmul.mubr.f32.gmra.mrb[0].mxu0 %v2532
    %v2738 = vpop.f32.mrb[0].mxu0
    %v2739 = vadd.f32 0.0, %v2738
    %v2740 = vpop.f32.mrb[0].mxu0
    %2741 = vmatprep.mubr.f32.mxu0 0.0
    %2742 = vmatmul.mubr.f32.gmra.mrb[0].mxu0 %v2533
    %v2743 = vpop.f32.mrb[0].mxu0
    %v2744 = vadd.f32 0.0, %v2743
    %v2745 = vpop.f32.mrb[0].mxu0
    %2746 = vmatprep.mubr.f32.mxu0 0.0
    %2747 = vmatmul.mubr.f32.gmra.mrb[0].mxu0 %v2534
    %v2748 = vpop.f32.mrb[0].mxu0
    %v2749 = vadd.f32 0.0, %v2748
    %v2750 = vpop.f32.mrb[0].mxu0
    %2751 = vmatprep.mubr.f32.mxu0 0.0
    %2752 = vmatmul.mubr.f32.gmra.mrb[0].mxu0 %v2535
    %v2753 = vpop.f32.mrb[0].mxu0
    %v2754 = vadd.f32 0.0, %v2753
    %v2755 = vpop.f32.mrb[0].mxu0
    %2756 = vmatprep.mubr.f32.mxu0 0.0
    %2757 = vmatmul.mubr.f32.gmra.mrb[0].mxu0 %v2536
    %v2758 = vpop.f32.mrb[0].mxu0
    %v2759 = vadd.f32 0.0, %v2758
    %v2760 = vpop.f32.mrb[0].mxu0
    %2761 = vmatprep.mubr.f32.mxu0 0.0
    %2762 = vmatmul.mubr.f32.gmra.mrb[0].mxu0 %v2537
    %v2763 = vpop.f32.mrb[0].mxu0
    %v2764 = vadd.f32 0.0, %v2763
    %v2765 = vpop.f32.mrb[0].mxu0
    %2766 = vmatprep.mubr.f32.mxu0 0.0
    %2767 = vmatmul.mubr.f32.gmra.mrb[0].mxu0 %v2538
    %v2768 = vpop.f32.mrb[0].mxu0
    %v2769 = vadd.f32 0.0, %v2768
    %v2770 = vpop.f32.mrb[0].mxu0
    %2771 = vmatprep.mubr.f32.mxu0 0.0
    %2772 = vmatmul.mubr.f32.gmra.mrb[0].mxu0 %v2539
    %v2773 = vpop.f32.mrb[0].mxu0
    %v2774 = vadd.f32 0.0, %v2773
    %v2775 = vpop.f32.mrb[0].mxu0
    %2776 = vmatprep.mubr.f32.mxu0 0.0
    %2777 = vmatmul.mubr.f32.gmra.mrb[0].mxu0 %v2540
    %v2778 = vpop.f32.mrb[0].mxu0
    %v2779 = vadd.f32 0.0, %v2778
    %v2780 = vpop.f32.mrb[0].mxu0
    %2781 = vmatprep.mubr.f32.mxu0 0.0
    %2782 = vmatmul.mubr.f32.gmra.mrb[0].mxu0 %v2541
    %v2783 = vpop.f32.mrb[0].mxu0
    %v2784 = vadd.f32 0.0, %v2783
    %v2785 = vpop.f32.mrb[0].mxu0
    %2786 = vmatprep.mubr.f32.mxu0 0.0
    %2787 = vmatmul.mubr.f32.gmra.mrb[0].mxu0 %v2542
    %v2788 = vpop.f32.mrb[0].mxu0
    %v2789 = vadd.f32 0.0, %v2788
    %v2790 = vpop.f32.mrb[0].mxu0
    %2791 = vmatprep.mubr.f32.mxu0 0.0
    %2792 = vmatmul.mubr.f32.gmra.mrb[0].mxu0 %v2543
    %v2793 = vpop.f32.mrb[0].mxu0
    %v2794 = vadd.f32 0.0, %v2793
    %v2795 = vpop.f32.mrb[0].mxu0
    %2796 = vmatprep.mubr.f32.mxu0 0.0
    %2797 = vmatmul.mubr.f32.gmra.mrb[0].mxu0 %v2544
    %v2798 = vpop.f32.mrb[0].mxu0
    %v2799 = vadd.f32 0.0, %v2798
    %v2800 = vpop.f32.mrb[0].mxu0
    %2801 = vmatprep.mubr.f32.mxu0 0.0
    %2802 = vmatmul.mubr.f32.gmra.mrb[0].mxu0 %v2545
    %v2803 = vpop.f32.mrb[0].mxu0
    %v2804 = vadd.f32 0.0, %v2803
    %v2805 = vpop.f32.mrb[0].mxu0
    %2806 = vmatprep.mubr.f32.mxu0 0.0
    %2807 = vmatmul.mubr.f32.gmra.mrb[0].mxu0 %v2546
    %v2808 = vpop.f32.mrb[0].mxu0
    %v2809 = vadd.f32 0.0, %v2808
    %v2810 = vpop.f32.mrb[0].mxu0
    %2811 = vmatprep.mubr.f32.mxu0 0.0
    %2812 = vmatmul.mubr.f32.gmra.mrb[0].mxu0 %v2547
    %v2813 = vpop.f32.mrb[0].mxu0
    %v2814 = vadd.f32 0.0, %v2813
    %v2815 = vpop.f32.mrb[0].mxu0
    %2816 = vmatprep.mubr.f32.mxu0 0.0
    %2817 = vmatmul.mubr.f32.gmra.mrb[0].mxu0 %v2548
    %v2818 = vpop.f32.mrb[0].mxu0
    %v2819 = vadd.f32 0.0, %v2818
    %v2820 = vpop.f32.mrb[0].mxu0
    %2821 = vmatprep.mubr.f32.mxu0 0.0
    %2822 = vmatmul.mubr.f32.gmra.mrb[0].mxu0 %v2549
    %v2823 = vpop.f32.mrb[0].mxu0
    %v2824 = vadd.f32 0.0, %v2823
    %v2825 = vpop.f32.mrb[0].mxu0
    %2826 = vmatprep.mubr.f32.mxu0 0.0
    %2827 = vmatmul.mubr.f32.gmra.mrb[0].mxu0 %v2550
    %v2828 = vpop.f32.mrb[0].mxu0
    %v2829 = vadd.f32 0.0, %v2828
    %v2830 = vpop.f32.mrb[0].mxu0
    %2831 = vmatprep.mubr.f32.mxu0 0.0
    %2832 = vmatmul.mubr.f32.gmra.mrb[0].mxu0 %v2551
    %v2833 = vpop.f32.mrb[0].mxu0
    %v2834 = vadd.f32 0.0, %v2833
    %v2835 = vpop.f32.mrb[0].mxu0
    %2836 = vmatprep.mubr.f32.mxu0 0.0
    %2837 = vmatmul.mubr.f32.gmra.mrb[0].mxu0 %v2552
    %v2838 = vpop.f32.mrb[0].mxu0
    %v2839 = vadd.f32 0.0, %v2838
    %v2840 = vpop.f32.mrb[0].mxu0
    %2841 = vmatprep.mubr.f32.mxu0 0.0
    %2842 = vmatmul.mubr.f32.gmra.mrb[0].mxu0 %v2553
    %v2843 = vpop.f32.mrb[0].mxu0
    %v2844 = vadd.f32 0.0, %v2843
    %v2845 = vpop.f32.mrb[0].mxu0
    %2846 = vmatprep.mubr.f32.mxu0 0.0
    %2847 = vmatmul.mubr.f32.gmra.mrb[0].mxu0 %v2554
    %v2848 = vpop.f32.mrb[0].mxu0
    %v2849 = vadd.f32 0.0, %v2848
    %v2850 = vpop.f32.mrb[0].mxu0
    %2851 = vmatprep.mubr.f32.mxu0 0.0
    %2852 = vmatmul.mubr.f32.gmra.mrb[0].mxu0 %v2555
    %v2853 = vpop.f32.mrb[0].mxu0
    %v2854 = vadd.f32 0.0, %v2853
    %v2855 = vpop.f32.mrb[0].mxu0
    %2856 = vmatprep.mubr.f32.mxu0 0.0
    %2857 = vmatmul.mubr.f32.gmra.mrb[0].mxu0 %v2556
    %v2858 = vpop.f32.mrb[0].mxu0
    %v2859 = vadd.f32 0.0, %v2858
    %v2860 = vpop.f32.mrb[0].mxu0
    %2861 = vmatprep.mubr.f32.mxu0 0.0
    %2862 = vmatmul.mubr.f32.gmra.mrb[0].mxu0 %v2557
    %v2863 = vpop.f32.mrb[0].mxu0
    %v2864 = vadd.f32 0.0, %v2863
    %v2865 = vpop.f32.mrb[0].mxu0
    %2866 = vmatprep.mubr.f32.mxu0 0.0
    %2867 = vmatmul.mubr.f32.gmra.mrb[0].mxu0 %v2558
    %v2868 = vpop.f32.mrb[0].mxu0
    %v2869 = vadd.f32 0.0, %v2868
    %v2870 = vpop.f32.mrb[0].mxu0
    %2871 = vmatprep.mubr.f32.mxu0 0.0
    %2872 = vmatmul.mubr.f32.gmra.mrb[0].mxu0 %v2559
    %v2873 = vpop.f32.mrb[0].mxu0
    %v2874 = vadd.f32 0.0, %v2873
    %v2875 = vpop.f32.mrb[0].mxu0
    %2876 = vmatprep.mubr.f32.mxu0 0.0
    %2877 = vmatmul.mubr.f32.gmra.mrb[0].mxu0 %v2560
    %v2878 = vpop.f32.mrb[0].mxu0
    %v2879 = vadd.f32 0.0, %v2878
    %v2880 = vpop.f32.mrb[0].mxu0
    %2881 = vmatprep.mubr.f32.mxu0 0.0
    %2882 = vmatmul.mubr.f32.gmra.mrb[0].mxu0 %v2561
    %v2883 = vpop.f32.mrb[0].mxu0
    %v2884 = vadd.f32 0.0, %v2883
    %v2885 = vpop.f32.mrb[0].mxu0
    %2886 = vmatprep.mubr.f32.mxu0 0.0
    %2887 = vmatmul.mubr.f32.gmra.mrb[0].mxu0 %v2562
    %v2888 = vpop.f32.mrb[0].mxu0
    %v2889 = vadd.f32 0.0, %v2888
    %v2890 = vpop.f32.mrb[0].mxu0
    %2891 = vmatprep.mubr.f32.mxu0 0.0
    %2892 = vmatmul.mubr.f32.gmra.mrb[0].mxu0 %v2563
    %v2893 = vpop.f32.mrb[0].mxu0
    %v2894 = vadd.f32 0.0, %v2893
    %v2895 = vpop.f32.mrb[0].mxu0
    %2896 = vmatprep.mubr.f32.mxu0 0.0
    %2897 = vmatmul.mubr.f32.gmra.mrb[0].mxu0 %v2564
    %v2898 = vpop.f32.mrb[0].mxu0
    %v2899 = vadd.f32 0.0, %v2898
    %v2900 = vpop.f32.mrb[0].mxu0
    %2901 = vmatprep.mubr.f32.mxu0 0.0
    %2902 = vmatmul.mubr.f32.gmra.mrb[0].mxu0 %v2565
    %v2903 = vpop.f32.mrb[0].mxu0
    %v2904 = vadd.f32 0.0, %v2903
    %v2905 = vpop.f32.mrb[0].mxu0
    %2906 = vmatprep.mubr.f32.mxu0 0.0
    %2907 = vmatmul.mubr.f32.gmra.mrb[0].mxu0 %v2566
    %v2908 = vpop.f32.mrb[0].mxu0
    %v2909 = vadd.f32 0.0, %v2908
    %v2910 = vpop.f32.mrb[0].mxu0
    %2911 = vmatprep.mubr.f32.mxu0 0.0
    %2912 = vmatmul.mubr.f32.gmra.mrb[0].mxu0 %v2567
    %v2913 = vpop.f32.mrb[0].mxu0
    %v2914 = vadd.f32 0.0, %v2913
    %v2915 = vpop.f32.mrb[0].mxu0
    %2916 = vmatprep.mubr.f32.mxu0 0.0
    %2917 = vmatmul.mubr.f32.gmra.mrb[0].mxu0 %v2568
    %v2918 = vpop.f32.mrb[0].mxu0
    %v2919 = vadd.f32 0.0, %v2918
    %v2920 = vpop.f32.mrb[0].mxu0
    %2921 = vmatprep.mubr.f32.mxu0 0.0
    %2922 = vmatmul.mubr.f32.gmra.mrb[0].mxu0 %v2569
    %v2923 = vpop.f32.mrb[0].mxu0
    %v2924 = vadd.f32 0.0, %v2923
    %v2925 = vpop.f32.mrb[0].mxu0
    %2926 = vmatprep.mubr.f32.mxu0 0.0
    %2927 = vmatmul.mubr.f32.gmra.mrb[0].mxu0 %v2570
    %v2928 = vpop.f32.mrb[0].mxu0
    %v2929 = vadd.f32 0.0, %v2928
    %v2930 = vpop.f32.mrb[0].mxu0
    %2931 = vmatprep.mubr.f32.mxu0 0.0
    %2932 = vmatmul.mubr.f32.gmra.mrb[0].mxu0 %v2571
    %v2933 = vpop.f32.mrb[0].mxu0
    %v2934 = vadd.f32 0.0, %v2933
    %v2935 = vpop.f32.mrb[0].mxu0
    %2936 = vmatprep.mubr.f32.mxu0 0.0
    %2937 = vmatmul.mubr.f32.gmra.mrb[0].mxu0 %v2572
    %v2938 = vpop.f32.mrb[0].mxu0
    %v2939 = vadd.f32 0.0, %v2938
    %v2940 = vpop.f32.mrb[0].mxu0
    %2941 = vmatprep.mubr.f32.mxu0 0.0
    %2942 = vmatmul.mubr.f32.gmra.mrb[0].mxu0 %v2573
    %v2943 = vpop.f32.mrb[0].mxu0
    %v2944 = vadd.f32 0.0, %v2943
    %v2945 = vpop.f32.mrb[0].mxu0
    %2946 = vmatprep.mubr.f32.mxu0 0.0
    %2947 = vmatmul.mubr.f32.gmra.mrb[0].mxu0 %v2574
    %v2948 = vpop.f32.mrb[0].mxu0
    %v2949 = vadd.f32 0.0, %v2948
    %v2950 = vpop.f32.mrb[0].mxu0
    %2951 = vmatprep.mubr.f32.mxu0 0.0
    %2952 = vmatmul.mubr.f32.gmra.mrb[0].mxu0 %v2575
    %v2953 = vpop.f32.mrb[0].mxu0
    %v2954 = vadd.f32 0.0, %v2953
    %v2955 = vpop.f32.mrb[0].mxu0
    %2956 = vmatprep.mubr.f32.mxu0 0.0
    %2957 = vmatmul.mubr.f32.gmra.mrb[0].mxu0 %v2576
    %v2958 = vpop.f32.mrb[0].mxu0
    %v2959 = vadd.f32 0.0, %v2958
    %v2960 = vpop.f32.mrb[0].mxu0
    %2961 = vdwg.mxu0
    %2962 = vst [vmem:[%s1285 + $0x1] sm:$0xff] %v2644
    %2963 = vst [vmem:[%s1285 + $0x9] sm:$0xff] %v2649
    %2964 = vst [vmem:[%s1285 + $0x19] sm:$0xff] %v2654
    %2965 = vst [vmem:[%s1285 + $0x21] sm:$0xff] %v2659
    %2966 = vst [vmem:[%s1285 + $0x31] sm:$0xff] %v2664
    %2967 = vst [vmem:[%s1285 + $0x39] sm:$0xff] %v2669
    %2968 = vst [vmem:[%s1285 + $0x49] sm:$0xff] %v2674
    %2969 = vst [vmem:[%s1285 + $0x51] sm:$0xff] %v2679
    %2970 = vst [vmem:[%s1285 + $0x61] sm:$0xff] %v2684
    %2971 = vst [vmem:[%s1285 + $0x69] sm:$0xff] %v2689
    %2972 = vst [vmem:[%s1285 + $0x79] sm:$0xff] %v2694
    %2973 = vst [vmem:[%s1285 + $0x81] sm:$0xff] %v2699
    %2974 = vst [vmem:[%s1285 + $0x91] sm:$0xff] %v2704
    %2975 = vst [vmem:[%s1285 + $0x99] sm:$0xff] %v2709
    %2976 = vst [vmem:[%s1285 + $0xa9] sm:$0xff] %v2714
    %2977 = vst [vmem:[%s1285 + $0xb1] sm:$0xff] %v2719
    %2978 = vst [vmem:[%s1285 + $0xc1] sm:$0xff] %v2724
    %2979 = vst [vmem:[%s1285 + $0xc9] sm:$0xff] %v2729
    %2980 = vst [vmem:[%s1285 + $0xd9] sm:$0xff] %v2734
    %2981 = vst [vmem:[%s1285 + $0xe1] sm:$0xff] %v2739
    %2982 = vst [vmem:[%s1285 + $0xf1] sm:$0xff] %v2744
    %2983 = vst [vmem:[%s1285 + $0xf9] sm:$0xff] %v2749
    %2984 = vst [vmem:[%s1285 + $0x109] sm:$0xff] %v2754
    %2985 = vst [vmem:[%s1285 + $0x111] sm:$0xff] %v2759
    %2986 = vst [vmem:[%s1285 + $0x121] sm:$0xff] %v2764
    %2987 = vst [vmem:[%s1285 + $0x129] sm:$0xff] %v2769
    %2988 = vst [vmem:[%s1285 + $0x139] sm:$0xff] %v2774
    %2989 = vst [vmem:[%s1285 + $0x141] sm:$0xff] %v2779
    %2990 = vst [vmem:[%s1285 + $0x151] sm:$0xff] %v2784
    %2991 = vst [vmem:[%s1285 + $0x159] sm:$0xff] %v2789
    %2992 = vst [vmem:[%s1285 + $0x169] sm:$0xff] %v2794
    %2993 = vst [vmem:[%s1285 + $0x171] sm:$0xff] %v2799
    %2994 = vst [vmem:[%s1285 + $0x1b1] sm:$0xff] %v2804
    %2995 = vst [vmem:[%s1285 + $0x1b9] sm:$0xff] %v2809
    %2996 = vst [vmem:[%s1285 + $0x1c9] sm:$0xff] %v2814
    %2997 = vst [vmem:[%s1285 + $0x1d1] sm:$0xff] %v2819
    %2998 = vst [vmem:[%s1285 + $0x1e1] sm:$0xff] %v2824
    %2999 = vst [vmem:[%s1285 + $0x1e9] sm:$0xff] %v2829
    %3000 = vst [vmem:[%s1285 + $0x1f9] sm:$0xff] %v2834
    %3001 = vst [vmem:[%s1285 + $0x201] sm:$0xff] %v2839
    %3002 = vst [vmem:[%s1285 + $0x211] sm:$0xff] %v2844
    %3003 = vst [vmem:[%s1285 + $0x219] sm:$0xff] %v2849
    %3004 = vst [vmem:[%s1285 + $0x229] sm:$0xff] %v2854
    %3005 = vst [vmem:[%s1285 + $0x231] sm:$0xff] %v2859
    %3006 = vst [vmem:[%s1285 + $0x241] sm:$0xff] %v2864
    %3007 = vst [vmem:[%s1285 + $0x249] sm:$0xff] %v2869
    %3008 = vst [vmem:[%s1285 + $0x259] sm:$0xff] %v2874
    %3009 = vst [vmem:[%s1285 + $0x261] sm:$0xff] %v2879
    %3010 = vst [vmem:[%s1285 + $0x271] sm:$0xff] %v2884
    %3011 = vst [vmem:[%s1285 + $0x279] sm:$0xff] %v2889
    %3012 = vst [vmem:[%s1285 + $0x289] sm:$0xff] %v2894
    %3013 = vst [vmem:[%s1285 + $0x291] sm:$0xff] %v2899
    %3014 = vst [vmem:[%s1285 + $0x2a1] sm:$0xff] %v2904
    %3015 = vst [vmem:[%s1285 + $0x2a9] sm:$0xff] %v2909
    %3016 = vst [vmem:[%s1285 + $0x2b9] sm:$0xff] %v2914
    %3017 = vst [vmem:[%s1285 + $0x2c1] sm:$0xff] %v2919
    %3018 = vst [vmem:[%s1285 + $0x2d1] sm:$0xff] %v2924
    %3019 = vst [vmem:[%s1285 + $0x2d9] sm:$0xff] %v2929
    %3020 = vst [vmem:[%s1285 + $0x2e9] sm:$0xff] %v2934
    %3021 = vst [vmem:[%s1285 + $0x2f1] sm:$0xff] %v2939
    %3022 = vst [vmem:[%s1285 + $0x301] sm:$0xff] %v2944
    %3023 = vst [vmem:[%s1285 + $0x309] sm:$0xff] %v2949
    %3024 = vst [vmem:[%s1285 + $0x319] sm:$0xff] %v2954
    %3025 = vst [vmem:[%s1285 + $0x321] sm:$0xff] %v2959
    %v3026 = vld [vmem:[#allocation2] sm:$0xff]
    %v3027 = vld [vmem:[#allocation2 + $0x8] sm:$0xff]
    %v3028 = vld [vmem:[#allocation2 + $0x18] sm:$0xff]
    %v3029 = vld [vmem:[#allocation2 + $0x20] sm:$0xff]
    %v3030 = vld [vmem:[#allocation2 + $0x30] sm:$0xff]
    %v3031 = vld [vmem:[#allocation2 + $0x38] sm:$0xff]
    %v3032 = vld [vmem:[#allocation2 + $0x48] sm:$0xff]
    %v3033 = vld [vmem:[#allocation2 + $0x50] sm:$0xff]
    %v3034 = vld [vmem:[#allocation2 + $0x60] sm:$0xff]
    %v3035 = vld [vmem:[#allocation2 + $0x68] sm:$0xff]
    %v3036 = vld [vmem:[#allocation2 + $0x78] sm:$0xff]
    %v3037 = vld [vmem:[#allocation2 + $0x80] sm:$0xff]
    %v3038 = vld [vmem:[#allocation2 + $0x90] sm:$0xff]
    %v3039 = vld [vmem:[#allocation2 + $0x98] sm:$0xff]
    %v3040 = vld [vmem:[#allocation2 + $0xa8] sm:$0xff]
    %v3041 = vld [vmem:[#allocation2 + $0xb0] sm:$0xff]
    %v3042 = vld [vmem:[#allocation2 + $0xc0] sm:$0xff]
    %v3043 = vld [vmem:[#allocation2 + $0xc8] sm:$0xff]
    %v3044 = vld [vmem:[#allocation2 + $0xd8] sm:$0xff]
    %v3045 = vld [vmem:[#allocation2 + $0xe0] sm:$0xff]
    %v3046 = vld [vmem:[#allocation2 + $0xf0] sm:$0xff]
    %v3047 = vld [vmem:[#allocation2 + $0xf8] sm:$0xff]
    %v3048 = vld [vmem:[#allocation2 + $0x108] sm:$0xff]
    %v3049 = vld [vmem:[#allocation2 + $0x110] sm:$0xff]
    %v3050 = vld [vmem:[#allocation2 + $0x120] sm:$0xff]
    %v3051 = vld [vmem:[#allocation2 + $0x128] sm:$0xff]
    %v3052 = vld [vmem:[#allocation2 + $0x138] sm:$0xff]
    %v3053 = vld [vmem:[#allocation2 + $0x140] sm:$0xff]
    %v3054 = vld [vmem:[#allocation2 + $0x150] sm:$0xff]
    %v3055 = vld [vmem:[#allocation2 + $0x158] sm:$0xff]
    %v3056 = vld [vmem:[#allocation2 + $0x168] sm:$0xff]
    %v3057 = vld [vmem:[#allocation2 + $0x170] sm:$0xff]
    %v3058 = vld [vmem:[#allocation2 + $0x1b0] sm:$0xff]
    %v3059 = vld [vmem:[#allocation2 + $0x1b8] sm:$0xff]
    %v3060 = vld [vmem:[#allocation2 + $0x1c8] sm:$0xff]
    %v3061 = vld [vmem:[#allocation2 + $0x1d0] sm:$0xff]
    %v3062 = vld [vmem:[#allocation2 + $0x1e0] sm:$0xff]
    %v3063 = vld [vmem:[#allocation2 + $0x1e8] sm:$0xff]
    %v3064 = vld [vmem:[#allocation2 + $0x1f8] sm:$0xff]
    %v3065 = vld [vmem:[#allocation2 + $0x200] sm:$0xff]
    %v3066 = vld [vmem:[#allocation2 + $0x210] sm:$0xff]
    %v3067 = vld [vmem:[#allocation2 + $0x218] sm:$0xff]
    %v3068 = vld [vmem:[#allocation2 + $0x228] sm:$0xff]
    %v3069 = vld [vmem:[#allocation2 + $0x230] sm:$0xff]
    %v3070 = vld [vmem:[#allocation2 + $0x240] sm:$0xff]
    %v3071 = vld [vmem:[#allocation2 + $0x248] sm:$0xff]
    %v3072 = vld [vmem:[#allocation2 + $0x258] sm:$0xff]
    %v3073 = vld [vmem:[#allocation2 + $0x260] sm:$0xff]
    %v3074 = vld [vmem:[#allocation2 + $0x270] sm:$0xff]
    %v3075 = vld [vmem:[#allocation2 + $0x278] sm:$0xff]
    %v3076 = vld [vmem:[#allocation2 + $0x288] sm:$0xff]
    %v3077 = vld [vmem:[#allocation2 + $0x290] sm:$0xff]
    %v3078 = vld [vmem:[#allocation2 + $0x2a0] sm:$0xff]
    %v3079 = vld [vmem:[#allocation2 + $0x2a8] sm:$0xff]
    %v3080 = vld [vmem:[#allocation2 + $0x2b8] sm:$0xff]
    %v3081 = vld [vmem:[#allocation2 + $0x2c0] sm:$0xff]
    %v3082 = vld [vmem:[#allocation2 + $0x2d0] sm:$0xff]
    %v3083 = vld [vmem:[#allocation2 + $0x2d8] sm:$0xff]
    %v3084 = vld [vmem:[#allocation2 + $0x2e8] sm:$0xff]
    %v3085 = vld [vmem:[#allocation2 + $0x2f0] sm:$0xff]
    %v3086 = vld [vmem:[#allocation2 + $0x300] sm:$0xff]
    %v3087 = vld [vmem:[#allocation2 + $0x308] sm:$0xff]
    %v3088 = vld [vmem:[#allocation2 + $0x318] sm:$0xff]
    %v3089 = vld [vmem:[#allocation2 + $0x320] sm:$0xff]
    %v3090 = vld [vmem:[#allocation2 + $0x1] sm:$0xff]
    %v3091 = vld [vmem:[#allocation2 + $0x9] sm:$0xff]
    %v3092 = vld [vmem:[#allocation2 + $0x19] sm:$0xff]
    %v3093 = vld [vmem:[#allocation2 + $0x21] sm:$0xff]
    %v3094 = vld [vmem:[#allocation2 + $0x31] sm:$0xff]
    %v3095 = vld [vmem:[#allocation2 + $0x39] sm:$0xff]
    %v3096 = vld [vmem:[#allocation2 + $0x49] sm:$0xff]
    %v3097 = vld [vmem:[#allocation2 + $0x51] sm:$0xff]
    %v3098 = vld [vmem:[#allocation2 + $0x61] sm:$0xff]
    %v3099 = vld [vmem:[#allocation2 + $0x69] sm:$0xff]
    %v3100 = vld [vmem:[#allocation2 + $0x79] sm:$0xff]
    %v3101 = vld [vmem:[#allocation2 + $0x81] sm:$0xff]
    %v3102 = vld [vmem:[#allocation2 + $0x91] sm:$0xff]
    %v3103 = vld [vmem:[#allocation2 + $0x99] sm:$0xff]
    %v3104 = vld [vmem:[#allocation2 + $0xa9] sm:$0xff]
    %v3105 = vld [vmem:[#allocation2 + $0xb1] sm:$0xff]
    %v3106 = vld [vmem:[#allocation2 + $0xc1] sm:$0xff]
    %v3107 = vld [vmem:[#allocation2 + $0xc9] sm:$0xff]
    %v3108 = vld [vmem:[#allocation2 + $0xd9] sm:$0xff]
    %v3109 = vld [vmem:[#allocation2 + $0xe1] sm:$0xff]
    %v3110 = vld [vmem:[#allocation2 + $0xf1] sm:$0xff]
    %v3111 = vld [vmem:[#allocation2 + $0xf9] sm:$0xff]
    %v3112 = vld [vmem:[#allocation2 + $0x109] sm:$0xff]
    %v3113 = vld [vmem:[#allocation2 + $0x111] sm:$0xff]
    %v3114 = vld [vmem:[#allocation2 + $0x121] sm:$0xff]
    %v3115 = vld [vmem:[#allocation2 + $0x129] sm:$0xff]
    %v3116 = vld [vmem:[#allocation2 + $0x139] sm:$0xff]
    %v3117 = vld [vmem:[#allocation2 + $0x141] sm:$0xff]
    %v3118 = vld [vmem:[#allocation2 + $0x151] sm:$0xff]
    %v3119 = vld [vmem:[#allocation2 + $0x159] sm:$0xff]
    %v3120 = vld [vmem:[#allocation2 + $0x169] sm:$0xff]
    %v3121 = vld [vmem:[#allocation2 + $0x171] sm:$0xff]
    %v3122 = vld [vmem:[#allocation2 + $0x1b1] sm:$0xff]
    %v3123 = vld [vmem:[#allocation2 + $0x1b9] sm:$0xff]
    %v3124 = vld [vmem:[#allocation2 + $0x1c9] sm:$0xff]
    %v3125 = vld [vmem:[#allocation2 + $0x1d1] sm:$0xff]
    %v3126 = vld [vmem:[#allocation2 + $0x1e1] sm:$0xff]
    %v3127 = vld [vmem:[#allocation2 + $0x1e9] sm:$0xff]
    %v3128 = vld [vmem:[#allocation2 + $0x1f9] sm:$0xff]
    %v3129 = vld [vmem:[#allocation2 + $0x201] sm:$0xff]
    %v3130 = vld [vmem:[#allocation2 + $0x211] sm:$0xff]
    %v3131 = vld [vmem:[#allocation2 + $0x219] sm:$0xff]
    %v3132 = vld [vmem:[#allocation2 + $0x229] sm:$0xff]
    %v3133 = vld [vmem:[#allocation2 + $0x231] sm:$0xff]
    %v3134 = vld [vmem:[#allocation2 + $0x241] sm:$0xff]
    %v3135 = vld [vmem:[#allocation2 + $0x249] sm:$0xff]
    %v3136 = vld [vmem:[#allocation2 + $0x259] sm:$0xff]
    %v3137 = vld [vmem:[#allocation2 + $0x261] sm:$0xff]
    %v3138 = vld [vmem:[#allocation2 + $0x271] sm:$0xff]
    %v3139 = vld [vmem:[#allocation2 + $0x279] sm:$0xff]
    %v3140 = vld [vmem:[#allocation2 + $0x289] sm:$0xff]
    %v3141 = vld [vmem:[#allocation2 + $0x291] sm:$0xff]
    %v3142 = vld [vmem:[#allocation2 + $0x2a1] sm:$0xff]
    %v3143 = vld [vmem:[#allocation2 + $0x2a9] sm:$0xff]
    %v3144 = vld [vmem:[#allocation2 + $0x2b9] sm:$0xff]
    %v3145 = vld [vmem:[#allocation2 + $0x2c1] sm:$0xff]
    %v3146 = vld [vmem:[#allocation2 + $0x2d1] sm:$0xff]
    %v3147 = vld [vmem:[#allocation2 + $0x2d9] sm:$0xff]
    %v3148 = vld [vmem:[#allocation2 + $0x2e9] sm:$0xff]
    %v3149 = vld [vmem:[#allocation2 + $0x2f1] sm:$0xff]
    %v3150 = vld [vmem:[#allocation2 + $0x301] sm:$0xff]
    %v3151 = vld [vmem:[#allocation2 + $0x309] sm:$0xff]
    %v3152 = vld [vmem:[#allocation2 + $0x319] sm:$0xff]
    %v3153 = vld [vmem:[#allocation2 + $0x321] sm:$0xff]
    %v3154 = vld [vmem:[#allocation2 + $0x2] sm:$0xff]
    %v3155 = vld [vmem:[#allocation2 + $0xa] sm:$0xff]
    %v3156 = vld [vmem:[#allocation2 + $0x1a] sm:$0xff]
    %v3157 = vld [vmem:[#allocation2 + $0x22] sm:$0xff]
    %v3158 = vld [vmem:[#allocation2 + $0x32] sm:$0xff]
    %v3159 = vld [vmem:[#allocation2 + $0x3a] sm:$0xff]
    %v3160 = vld [vmem:[#allocation2 + $0x4a] sm:$0xff]
    %v3161 = vld [vmem:[#allocation2 + $0x52] sm:$0xff]
    %v3162 = vld [vmem:[#allocation2 + $0x62] sm:$0xff]
    %v3163 = vld [vmem:[#allocation2 + $0x6a] sm:$0xff]
    %v3164 = vld [vmem:[#allocation2 + $0x7a] sm:$0xff]
    %v3165 = vld [vmem:[#allocation2 + $0x82] sm:$0xff]
    %v3166 = vld [vmem:[#allocation2 + $0x92] sm:$0xff]
    %v3167 = vld [vmem:[#allocation2 + $0x9a] sm:$0xff]
    %v3168 = vld [vmem:[#allocation2 + $0xaa] sm:$0xff]
    %v3169 = vld [vmem:[#allocation2 + $0xb2] sm:$0xff]
    %v3170 = vld [vmem:[#allocation2 + $0xc2] sm:$0xff]
    %v3171 = vld [vmem:[#allocation2 + $0xca] sm:$0xff]
    %v3172 = vld [vmem:[#allocation2 + $0xda] sm:$0xff]
    %v3173 = vld [vmem:[#allocation2 + $0xe2] sm:$0xff]
    %v3174 = vld [vmem:[#allocation2 + $0xf2] sm:$0xff]
    %v3175 = vld [vmem:[#allocation2 + $0xfa] sm:$0xff]
    %v3176 = vld [vmem:[#allocation2 + $0x10a] sm:$0xff]
    %v3177 = vld [vmem:[#allocation2 + $0x112] sm:$0xff]
    %v3178 = vld [vmem:[#allocation2 + $0x122] sm:$0xff]
    %v3179 = vld [vmem:[#allocation2 + $0x12a] sm:$0xff]
    %v3180 = vld [vmem:[#allocation2 + $0x13a] sm:$0xff]
    %v3181 = vld [vmem:[#allocation2 + $0x142] sm:$0xff]
    %v3182 = vld [vmem:[#allocation2 + $0x152] sm:$0xff]
    %v3183 = vld [vmem:[#allocation2 + $0x15a] sm:$0xff]
    %v3184 = vld [vmem:[#allocation2 + $0x16a] sm:$0xff]
    %v3185 = vld [vmem:[#allocation2 + $0x172] sm:$0xff]
    %v3186 = vld [vmem:[#allocation2 + $0x1b2] sm:$0xff]
    %v3187 = vld [vmem:[#allocation2 + $0x1ba] sm:$0xff]
    %v3188 = vld [vmem:[#allocation2 + $0x1ca] sm:$0xff]
    %v3189 = vld [vmem:[#allocation2 + $0x1d2] sm:$0xff]
    %v3190 = vld [vmem:[#allocation2 + $0x1e2] sm:$0xff]
    %v3191 = vld [vmem:[#allocation2 + $0x1ea] sm:$0xff]
    %v3192 = vld [vmem:[#allocation2 + $0x1fa] sm:$0xff]
    %v3193 = vld [vmem:[#allocation2 + $0x202] sm:$0xff]
    %v3194 = vld [vmem:[#allocation2 + $0x212] sm:$0xff]
    %v3195 = vld [vmem:[#allocation2 + $0x21a] sm:$0xff]
    %v3196 = vld [vmem:[#allocation2 + $0x22a] sm:$0xff]
    %v3197 = vld [vmem:[#allocation2 + $0x232] sm:$0xff]
    %v3198 = vld [vmem:[#allocation2 + $0x242] sm:$0xff]
    %v3199 = vld [vmem:[#allocation2 + $0x24a] sm:$0xff]
    %v3200 = vld [vmem:[#allocation2 + $0x25a] sm:$0xff]
    %v3201 = vld [vmem:[#allocation2 + $0x262] sm:$0xff]
    %v3202 = vld [vmem:[#allocation2 + $0x272] sm:$0xff]
    %v3203 = vld [vmem:[#allocation2 + $0x27a] sm:$0xff]
    %v3204 = vld [vmem:[#allocation2 + $0x28a] sm:$0xff]
    %v3205 = vld [vmem:[#allocation2 + $0x292] sm:$0xff]
    %v3206 = vld [vmem:[#allocation2 + $0x2a2] sm:$0xff]
    %v3207 = vld [vmem:[#allocation2 + $0x2aa] sm:$0xff]
    %v3208 = vld [vmem:[#allocation2 + $0x2ba] sm:$0xff]
    %v3209 = vld [vmem:[#allocation2 + $0x2c2] sm:$0xff]
    %v3210 = vld [vmem:[#allocation2 + $0x2d2] sm:$0xff]
    %v3211 = vld [vmem:[#allocation2 + $0x2da] sm:$0xff]
    %v3212 = vld [vmem:[#allocation2 + $0x2ea] sm:$0xff]
    %v3213 = vld [vmem:[#allocation2 + $0x2f2] sm:$0xff]
    %v3214 = vld [vmem:[#allocation2 + $0x302] sm:$0xff]
    %v3215 = vld [vmem:[#allocation2 + $0x30a] sm:$0xff]
    %v3216 = vld [vmem:[#allocation2 + $0x31a] sm:$0xff]
    %v3217 = vld [vmem:[#allocation2 + $0x322] sm:$0xff]
    %v3218 = vld [vmem:[%s1285] sm:$0xff]
    %v3219 = vld [vmem:[%s1285 + $0x8] sm:$0xff]
    %v3220 = vld [vmem:[%s1285 + $0x18] sm:$0xff]
    %v3221 = vld [vmem:[%s1285 + $0x20] sm:$0xff]
    %v3222 = vld [vmem:[%s1285 + $0x30] sm:$0xff]
    %v3223 = vld [vmem:[%s1285 + $0x38] sm:$0xff]
    %v3224 = vld [vmem:[%s1285 + $0x48] sm:$0xff]
    %v3225 = vld [vmem:[%s1285 + $0x50] sm:$0xff]
    %v3226 = vld [vmem:[%s1285 + $0x60] sm:$0xff]
    %v3227 = vld [vmem:[%s1285 + $0x68] sm:$0xff]
    %v3228 = vld [vmem:[%s1285 + $0x78] sm:$0xff]
    %v3229 = vld [vmem:[%s1285 + $0x80] sm:$0xff]
    %v3230 = vld [vmem:[%s1285 + $0x90] sm:$0xff]
    %v3231 = vld [vmem:[%s1285 + $0x98] sm:$0xff]
    %v3232 = vld [vmem:[%s1285 + $0xa8] sm:$0xff]
    %v3233 = vld [vmem:[%s1285 + $0xb0] sm:$0xff]
    %v3234 = vld [vmem:[%s1285 + $0xc0] sm:$0xff]
    %v3235 = vld [vmem:[%s1285 + $0xc8] sm:$0xff]
    %v3236 = vld [vmem:[%s1285 + $0xd8] sm:$0xff]
    %v3237 = vld [vmem:[%s1285 + $0xe0] sm:$0xff]
    %v3238 = vld [vmem:[%s1285 + $0xf0] sm:$0xff]
    %v3239 = vld [vmem:[%s1285 + $0xf8] sm:$0xff]
    %v3240 = vld [vmem:[%s1285 + $0x108] sm:$0xff]
    %v3241 = vld [vmem:[%s1285 + $0x110] sm:$0xff]
    %v3242 = vld [vmem:[%s1285 + $0x120] sm:$0xff]
    %v3243 = vld [vmem:[%s1285 + $0x128] sm:$0xff]
    %v3244 = vld [vmem:[%s1285 + $0x138] sm:$0xff]
    %v3245 = vld [vmem:[%s1285 + $0x140] sm:$0xff]
    %v3246 = vld [vmem:[%s1285 + $0x150] sm:$0xff]
    %v3247 = vld [vmem:[%s1285 + $0x158] sm:$0xff]
    %v3248 = vld [vmem:[%s1285 + $0x168] sm:$0xff]
    %v3249 = vld [vmem:[%s1285 + $0x170] sm:$0xff]
    %v3250 = vld [vmem:[%s1285 + $0x1b0] sm:$0xff]
    %v3251 = vld [vmem:[%s1285 + $0x1b8] sm:$0xff]
    %v3252 = vld [vmem:[%s1285 + $0x1c8] sm:$0xff]
    %v3253 = vld [vmem:[%s1285 + $0x1d0] sm:$0xff]
    %v3254 = vld [vmem:[%s1285 + $0x1e0] sm:$0xff]
    %v3255 = vld [vmem:[%s1285 + $0x1e8] sm:$0xff]
    %v3256 = vld [vmem:[%s1285 + $0x1f8] sm:$0xff]
    %v3257 = vld [vmem:[%s1285 + $0x200] sm:$0xff]
    %v3258 = vld [vmem:[%s1285 + $0x210] sm:$0xff]
    %v3259 = vld [vmem:[%s1285 + $0x218] sm:$0xff]
    %v3260 = vld [vmem:[%s1285 + $0x228] sm:$0xff]
    %v3261 = vld [vmem:[%s1285 + $0x230] sm:$0xff]
    %v3262 = vld [vmem:[%s1285 + $0x240] sm:$0xff]
    %v3263 = vld [vmem:[%s1285 + $0x248] sm:$0xff]
    %v3264 = vld [vmem:[%s1285 + $0x258] sm:$0xff]
    %v3265 = vld [vmem:[%s1285 + $0x260] sm:$0xff]
    %v3266 = vld [vmem:[%s1285 + $0x270] sm:$0xff]
    %v3267 = vld [vmem:[%s1285 + $0x278] sm:$0xff]
    %v3268 = vld [vmem:[%s1285 + $0x288] sm:$0xff]
    %v3269 = vld [vmem:[%s1285 + $0x290] sm:$0xff]
    %v3270 = vld [vmem:[%s1285 + $0x2a0] sm:$0xff]
    %v3271 = vld [vmem:[%s1285 + $0x2a8] sm:$0xff]
    %v3272 = vld [vmem:[%s1285 + $0x2b8] sm:$0xff]
    %v3273 = vld [vmem:[%s1285 + $0x2c0] sm:$0xff]
    %v3274 = vld [vmem:[%s1285 + $0x2d0] sm:$0xff]
    %v3275 = vld [vmem:[%s1285 + $0x2d8] sm:$0xff]
    %v3276 = vld [vmem:[%s1285 + $0x2e8] sm:$0xff]
    %v3277 = vld [vmem:[%s1285 + $0x2f0] sm:$0xff]
    %v3278 = vld [vmem:[%s1285 + $0x300] sm:$0xff]
    %v3279 = vld [vmem:[%s1285 + $0x308] sm:$0xff]
    %v3280 = vld [vmem:[%s1285 + $0x318] sm:$0xff]
    %v3281 = vld [vmem:[%s1285 + $0x320] sm:$0xff]
    %v3282 = vld [vmem:[%s1285 + $0x1] sm:$0xff]
    %v3283 = vld [vmem:[%s1285 + $0x9] sm:$0xff]
    %v3284 = vld [vmem:[%s1285 + $0x19] sm:$0xff]
    %v3285 = vld [vmem:[%s1285 + $0x21] sm:$0xff]
    %v3286 = vld [vmem:[%s1285 + $0x31] sm:$0xff]
    %v3287 = vld [vmem:[%s1285 + $0x39] sm:$0xff]
    %v3288 = vld [vmem:[%s1285 + $0x49] sm:$0xff]
    %v3289 = vld [vmem:[%s1285 + $0x51] sm:$0xff]
    %v3290 = vld [vmem:[%s1285 + $0x61] sm:$0xff]
    %v3291 = vld [vmem:[%s1285 + $0x69] sm:$0xff]
    %v3292 = vld [vmem:[%s1285 + $0x79] sm:$0xff]
    %v3293 = vld [vmem:[%s1285 + $0x81] sm:$0xff]
    %v3294 = vld [vmem:[%s1285 + $0x91] sm:$0xff]
    %v3295 = vld [vmem:[%s1285 + $0x99] sm:$0xff]
    %v3296 = vld [vmem:[%s1285 + $0xa9] sm:$0xff]
    %v3297 = vld [vmem:[%s1285 + $0xb1] sm:$0xff]
    %v3298 = vld [vmem:[%s1285 + $0xc1] sm:$0xff]
    %v3299 = vld [vmem:[%s1285 + $0xc9] sm:$0xff]
    %v3300 = vld [vmem:[%s1285 + $0xd9] sm:$0xff]
    %v3301 = vld [vmem:[%s1285 + $0xe1] sm:$0xff]
    %v3302 = vld [vmem:[%s1285 + $0xf1] sm:$0xff]
    %v3303 = vld [vmem:[%s1285 + $0xf9] sm:$0xff]
    %v3304 = vld [vmem:[%s1285 + $0x109] sm:$0xff]
    %v3305 = vld [vmem:[%s1285 + $0x111] sm:$0xff]
    %v3306 = vld [vmem:[%s1285 + $0x121] sm:$0xff]
    %v3307 = vld [vmem:[%s1285 + $0x129] sm:$0xff]
    %v3308 = vld [vmem:[%s1285 + $0x139] sm:$0xff]
    %v3309 = vld [vmem:[%s1285 + $0x141] sm:$0xff]
    %v3310 = vld [vmem:[%s1285 + $0x151] sm:$0xff]
    %v3311 = vld [vmem:[%s1285 + $0x159] sm:$0xff]
    %v3312 = vld [vmem:[%s1285 + $0x169] sm:$0xff]
    %v3313 = vld [vmem:[%s1285 + $0x171] sm:$0xff]
    %v3314 = vld [vmem:[%s1285 + $0x1b1] sm:$0xff]
    %v3315 = vld [vmem:[%s1285 + $0x1b9] sm:$0xff]
    %v3316 = vld [vmem:[%s1285 + $0x1c9] sm:$0xff]
    %v3317 = vld [vmem:[%s1285 + $0x1d1] sm:$0xff]
    %v3318 = vld [vmem:[%s1285 + $0x1e1] sm:$0xff]
    %v3319 = vld [vmem:[%s1285 + $0x1e9] sm:$0xff]
    %v3320 = vld [vmem:[%s1285 + $0x1f9] sm:$0xff]
    %v3321 = vld [vmem:[%s1285 + $0x201] sm:$0xff]
    %v3322 = vld [vmem:[%s1285 + $0x211] sm:$0xff]
    %v3323 = vld [vmem:[%s1285 + $0x219] sm:$0xff]
    %v3324 = vld [vmem:[%s1285 + $0x229] sm:$0xff]
    %v3325 = vld [vmem:[%s1285 + $0x231] sm:$0xff]
    %v3326 = vld [vmem:[%s1285 + $0x241] sm:$0xff]
    %v3327 = vld [vmem:[%s1285 + $0x249] sm:$0xff]
    %v3328 = vld [vmem:[%s1285 + $0x259] sm:$0xff]
    %v3329 = vld [vmem:[%s1285 + $0x261] sm:$0xff]
    %v3330 = vld [vmem:[%s1285 + $0x271] sm:$0xff]
    %v3331 = vld [vmem:[%s1285 + $0x279] sm:$0xff]
    %v3332 = vld [vmem:[%s1285 + $0x289] sm:$0xff]
    %v3333 = vld [vmem:[%s1285 + $0x291] sm:$0xff]
    %v3334 = vld [vmem:[%s1285 + $0x2a1] sm:$0xff]
    %v3335 = vld [vmem:[%s1285 + $0x2a9] sm:$0xff]
    %v3336 = vld [vmem:[%s1285 + $0x2b9] sm:$0xff]
    %v3337 = vld [vmem:[%s1285 + $0x2c1] sm:$0xff]
    %v3338 = vld [vmem:[%s1285 + $0x2d1] sm:$0xff]
    %v3339 = vld [vmem:[%s1285 + $0x2d9] sm:$0xff]
    %v3340 = vld [vmem:[%s1285 + $0x2e9] sm:$0xff]
    %v3341 = vld [vmem:[%s1285 + $0x2f1] sm:$0xff]
    %v3342 = vld [vmem:[%s1285 + $0x301] sm:$0xff]
    %v3343 = vld [vmem:[%s1285 + $0x309] sm:$0xff]
    %v3344 = vld [vmem:[%s1285 + $0x319] sm:$0xff]
    %v3345 = vld [vmem:[%s1285 + $0x321] sm:$0xff]
    %v3346 = vld [vmem:[%s1285 + $0x2] sm:$0xff]
    %v3347 = vld [vmem:[%s1285 + $0xa] sm:$0xff]
    %v3348 = vld [vmem:[%s1285 + $0x1a] sm:$0xff]
    %v3349 = vld [vmem:[%s1285 + $0x22] sm:$0xff]
    %v3350 = vld [vmem:[%s1285 + $0x32] sm:$0xff]
    %v3351 = vld [vmem:[%s1285 + $0x3a] sm:$0xff]
    %v3352 = vld [vmem:[%s1285 + $0x4a] sm:$0xff]
    %v3353 = vld [vmem:[%s1285 + $0x52] sm:$0xff]
    %v3354 = vld [vmem:[%s1285 + $0x62] sm:$0xff]
    %v3355 = vld [vmem:[%s1285 + $0x6a] sm:$0xff]
    %v3356 = vld [vmem:[%s1285 + $0x7a] sm:$0xff]
    %v3357 = vld [vmem:[%s1285 + $0x82] sm:$0xff]
    %v3358 = vld [vmem:[%s1285 + $0x92] sm:$0xff]
    %v3359 = vld [vmem:[%s1285 + $0x9a] sm:$0xff]
    %v3360 = vld [vmem:[%s1285 + $0xaa] sm:$0xff]
    %v3361 = vld [vmem:[%s1285 + $0xb2] sm:$0xff]
    %v3362 = vld [vmem:[%s1285 + $0xc2] sm:$0xff]
    %v3363 = vld [vmem:[%s1285 + $0xca] sm:$0xff]
    %v3364 = vld [vmem:[%s1285 + $0xda] sm:$0xff]
    %v3365 = vld [vmem:[%s1285 + $0xe2] sm:$0xff]
    %v3366 = vld [vmem:[%s1285 + $0xf2] sm:$0xff]
    %v3367 = vld [vmem:[%s1285 + $0xfa] sm:$0xff]
    %v3368 = vld [vmem:[%s1285 + $0x10a] sm:$0xff]
    %v3369 = vld [vmem:[%s1285 + $0x112] sm:$0xff]
    %v3370 = vld [vmem:[%s1285 + $0x122] sm:$0xff]
    %v3371 = vld [vmem:[%s1285 + $0x12a] sm:$0xff]
    %v3372 = vld [vmem:[%s1285 + $0x13a] sm:$0xff]
    %v3373 = vld [vmem:[%s1285 + $0x142] sm:$0xff]
    %v3374 = vld [vmem:[%s1285 + $0x152] sm:$0xff]
    %v3375 = vld [vmem:[%s1285 + $0x15a] sm:$0xff]
    %v3376 = vld [vmem:[%s1285 + $0x16a] sm:$0xff]
    %v3377 = vld [vmem:[%s1285 + $0x172] sm:$0xff]
    %v3378 = vld [vmem:[%s1285 + $0x1b2] sm:$0xff]
    %v3379 = vld [vmem:[%s1285 + $0x1ba] sm:$0xff]
    %v3380 = vld [vmem:[%s1285 + $0x1ca] sm:$0xff]
    %v3381 = vld [vmem:[%s1285 + $0x1d2] sm:$0xff]
    %v3382 = vld [vmem:[%s1285 + $0x1e2] sm:$0xff]
    %v3383 = vld [vmem:[%s1285 + $0x1ea] sm:$0xff]
    %v3384 = vld [vmem:[%s1285 + $0x1fa] sm:$0xff]
    %v3385 = vld [vmem:[%s1285 + $0x202] sm:$0xff]
    %v3386 = vld [vmem:[%s1285 + $0x212] sm:$0xff]
    %v3387 = vld [vmem:[%s1285 + $0x21a] sm:$0xff]
    %v3388 = vld [vmem:[%s1285 + $0x22a] sm:$0xff]
    %v3389 = vld [vmem:[%s1285 + $0x232] sm:$0xff]
    %v3390 = vld [vmem:[%s1285 + $0x242] sm:$0xff]
    %v3391 = vld [vmem:[%s1285 + $0x24a] sm:$0xff]
    %v3392 = vld [vmem:[%s1285 + $0x25a] sm:$0xff]
    %v3393 = vld [vmem:[%s1285 + $0x262] sm:$0xff]
    %v3394 = vld [vmem:[%s1285 + $0x272] sm:$0xff]
    %v3395 = vld [vmem:[%s1285 + $0x27a] sm:$0xff]
    %v3396 = vld [vmem:[%s1285 + $0x28a] sm:$0xff]
    %v3397 = vld [vmem:[%s1285 + $0x292] sm:$0xff]
    %v3398 = vld [vmem:[%s1285 + $0x2a2] sm:$0xff]
    %v3399 = vld [vmem:[%s1285 + $0x2aa] sm:$0xff]
    %v3400 = vld [vmem:[%s1285 + $0x2ba] sm:$0xff]
    %v3401 = vld [vmem:[%s1285 + $0x2c2] sm:$0xff]
    %v3402 = vld [vmem:[%s1285 + $0x2d2] sm:$0xff]
    %v3403 = vld [vmem:[%s1285 + $0x2da] sm:$0xff]
    %v3404 = vld [vmem:[%s1285 + $0x2ea] sm:$0xff]
    %v3405 = vld [vmem:[%s1285 + $0x2f2] sm:$0xff]
    %v3406 = vld [vmem:[%s1285 + $0x302] sm:$0xff]
    %v3407 = vld [vmem:[%s1285 + $0x30a] sm:$0xff]
    %v3408 = vld [vmem:[%s1285 + $0x31a] sm:$0xff]
    %v3409 = vld [vmem:[%s1285 + $0x322] sm:$0xff]
    %v3410 = vld [vmem:[%s1398] sm:$0xff]
    %v3411 = vld [vmem:[%s1398 + $0x8] sm:$0xff]
    %v3412 = vld [vmem:[%s1398 + $0x18] sm:$0xff]
    %v3413 = vld [vmem:[%s1398 + $0x20] sm:$0xff]
    %v3414 = vld [vmem:[%s1398 + $0x30] sm:$0xff]
    %v3415 = vld [vmem:[%s1398 + $0x38] sm:$0xff]
    %v3416 = vld [vmem:[%s1398 + $0x48] sm:$0xff]
    %v3417 = vld [vmem:[%s1398 + $0x50] sm:$0xff]
    %v3418 = vld [vmem:[%s1398 + $0x60] sm:$0xff]
    %v3419 = vld [vmem:[%s1398 + $0x68] sm:$0xff]
    %v3420 = vld [vmem:[%s1398 + $0x78] sm:$0xff]
    %v3421 = vld [vmem:[%s1398 + $0x80] sm:$0xff]
    %v3422 = vld [vmem:[%s1398 + $0x90] sm:$0xff]
    %v3423 = vld [vmem:[%s1398 + $0x98] sm:$0xff]
    %v3424 = vld [vmem:[%s1398 + $0xa8] sm:$0xff]
    %v3425 = vld [vmem:[%s1398 + $0xb0] sm:$0xff]
    %v3426 = vld [vmem:[%s1398 + $0xc0] sm:$0xff]
    %v3427 = vld [vmem:[%s1398 + $0xc8] sm:$0xff]
    %v3428 = vld [vmem:[%s1398 + $0xd8] sm:$0xff]
    %v3429 = vld [vmem:[%s1398 + $0xe0] sm:$0xff]
    %v3430 = vld [vmem:[%s1398 + $0xf0] sm:$0xff]
    %v3431 = vld [vmem:[%s1398 + $0xf8] sm:$0xff]
    %v3432 = vld [vmem:[%s1398 + $0x108] sm:$0xff]
    %v3433 = vld [vmem:[%s1398 + $0x110] sm:$0xff]
    %v3434 = vld [vmem:[%s1398 + $0x120] sm:$0xff]
    %v3435 = vld [vmem:[%s1398 + $0x128] sm:$0xff]
    %v3436 = vld [vmem:[%s1398 + $0x138] sm:$0xff]
    %v3437 = vld [vmem:[%s1398 + $0x140] sm:$0xff]
    %v3438 = vld [vmem:[%s1398 + $0x150] sm:$0xff]
    %v3439 = vld [vmem:[%s1398 + $0x158] sm:$0xff]
    %v3440 = vld [vmem:[%s1398 + $0x168] sm:$0xff]
    %v3441 = vld [vmem:[%s1398 + $0x170] sm:$0xff]
    %v3442 = vld [vmem:[%s1398 + $0x1b0] sm:$0xff]
    %v3443 = vld [vmem:[%s1398 + $0x1b8] sm:$0xff]
    %v3444 = vld [vmem:[%s1398 + $0x1c8] sm:$0xff]
    %v3445 = vld [vmem:[%s1398 + $0x1d0] sm:$0xff]
    %v3446 = vld [vmem:[%s1398 + $0x1e0] sm:$0xff]
    %v3447 = vld [vmem:[%s1398 + $0x1e8] sm:$0xff]
    %v3448 = vld [vmem:[%s1398 + $0x1f8] sm:$0xff]
    %v3449 = vld [vmem:[%s1398 + $0x200] sm:$0xff]
    %v3450 = vld [vmem:[%s1398 + $0x210] sm:$0xff]
    %v3451 = vld [vmem:[%s1398 + $0x218] sm:$0xff]
    %v3452 = vld [vmem:[%s1398 + $0x228] sm:$0xff]
    %v3453 = vld [vmem:[%s1398 + $0x230] sm:$0xff]
    %v3454 = vld [vmem:[%s1398 + $0x240] sm:$0xff]
    %v3455 = vld [vmem:[%s1398 + $0x248] sm:$0xff]
    %v3456 = vld [vmem:[%s1398 + $0x258] sm:$0xff]
    %v3457 = vld [vmem:[%s1398 + $0x260] sm:$0xff]
    %v3458 = vld [vmem:[%s1398 + $0x270] sm:$0xff]
    %v3459 = vld [vmem:[%s1398 + $0x278] sm:$0xff]
    %v3460 = vld [vmem:[%s1398 + $0x288] sm:$0xff]
    %v3461 = vld [vmem:[%s1398 + $0x290] sm:$0xff]
    %v3462 = vld [vmem:[%s1398 + $0x2a0] sm:$0xff]
    %v3463 = vld [vmem:[%s1398 + $0x2a8] sm:$0xff]
    %v3464 = vld [vmem:[%s1398 + $0x2b8] sm:$0xff]
    %v3465 = vld [vmem:[%s1398 + $0x2c0] sm:$0xff]
    %v3466 = vld [vmem:[%s1398 + $0x2d0] sm:$0xff]
    %v3467 = vld [vmem:[%s1398 + $0x2d8] sm:$0xff]
    %v3468 = vld [vmem:[%s1398 + $0x2e8] sm:$0xff]
    %v3469 = vld [vmem:[%s1398 + $0x2f0] sm:$0xff]
    %v3470 = vld [vmem:[%s1398 + $0x300] sm:$0xff]
    %v3471 = vld [vmem:[%s1398 + $0x308] sm:$0xff]
    %v3472 = vld [vmem:[%s1398 + $0x318] sm:$0xff]
    %v3473 = vld [vmem:[%s1398 + $0x320] sm:$0xff]
    %v3474 = vld [vmem:[%s1398 + $0x1] sm:$0xff]
    %v3475 = vld [vmem:[%s1398 + $0x9] sm:$0xff]
    %v3476 = vld [vmem:[%s1398 + $0x19] sm:$0xff]
    %v3477 = vld [vmem:[%s1398 + $0x21] sm:$0xff]
    %v3478 = vld [vmem:[%s1398 + $0x31] sm:$0xff]
    %v3479 = vld [vmem:[%s1398 + $0x39] sm:$0xff]
    %v3480 = vld [vmem:[%s1398 + $0x49] sm:$0xff]
    %v3481 = vld [vmem:[%s1398 + $0x51] sm:$0xff]
    %v3482 = vld [vmem:[%s1398 + $0x61] sm:$0xff]
    %v3483 = vld [vmem:[%s1398 + $0x69] sm:$0xff]
    %v3484 = vld [vmem:[%s1398 + $0x79] sm:$0xff]
    %v3485 = vld [vmem:[%s1398 + $0x81] sm:$0xff]
    %v3486 = vld [vmem:[%s1398 + $0x91] sm:$0xff]
    %v3487 = vld [vmem:[%s1398 + $0x99] sm:$0xff]
    %v3488 = vld [vmem:[%s1398 + $0xa9] sm:$0xff]
    %v3489 = vld [vmem:[%s1398 + $0xb1] sm:$0xff]
    %v3490 = vld [vmem:[%s1398 + $0xc1] sm:$0xff]
    %v3491 = vld [vmem:[%s1398 + $0xc9] sm:$0xff]
    %v3492 = vld [vmem:[%s1398 + $0xd9] sm:$0xff]
    %v3493 = vld [vmem:[%s1398 + $0xe1] sm:$0xff]
    %v3494 = vld [vmem:[%s1398 + $0xf1] sm:$0xff]
    %v3495 = vld [vmem:[%s1398 + $0xf9] sm:$0xff]
    %v3496 = vld [vmem:[%s1398 + $0x109] sm:$0xff]
    %v3497 = vld [vmem:[%s1398 + $0x111] sm:$0xff]
    %v3498 = vld [vmem:[%s1398 + $0x121] sm:$0xff]
    %v3499 = vld [vmem:[%s1398 + $0x129] sm:$0xff]
    %v3500 = vld [vmem:[%s1398 + $0x139] sm:$0xff]
    %v3501 = vld [vmem:[%s1398 + $0x141] sm:$0xff]
    %v3502 = vld [vmem:[%s1398 + $0x151] sm:$0xff]
    %v3503 = vld [vmem:[%s1398 + $0x159] sm:$0xff]
    %v3504 = vld [vmem:[%s1398 + $0x169] sm:$0xff]
    %v3505 = vld [vmem:[%s1398 + $0x171] sm:$0xff]
    %v3506 = vld [vmem:[%s1398 + $0x1b1] sm:$0xff]
    %v3507 = vld [vmem:[%s1398 + $0x1b9] sm:$0xff]
    %v3508 = vld [vmem:[%s1398 + $0x1c9] sm:$0xff]
    %v3509 = vld [vmem:[%s1398 + $0x1d1] sm:$0xff]
    %v3510 = vld [vmem:[%s1398 + $0x1e1] sm:$0xff]
    %v3511 = vld [vmem:[%s1398 + $0x1e9] sm:$0xff]
    %v3512 = vld [vmem:[%s1398 + $0x1f9] sm:$0xff]
    %v3513 = vld [vmem:[%s1398 + $0x201] sm:$0xff]
    %v3514 = vld [vmem:[%s1398 + $0x211] sm:$0xff]
    %v3515 = vld [vmem:[%s1398 + $0x219] sm:$0xff]
    %v3516 = vld [vmem:[%s1398 + $0x229] sm:$0xff]
    %v3517 = vld [vmem:[%s1398 + $0x231] sm:$0xff]
    %v3518 = vld [vmem:[%s1398 + $0x241] sm:$0xff]
    %v3519 = vld [vmem:[%s1398 + $0x249] sm:$0xff]
    %v3520 = vld [vmem:[%s1398 + $0x259] sm:$0xff]
    %v3521 = vld [vmem:[%s1398 + $0x261] sm:$0xff]
    %v3522 = vld [vmem:[%s1398 + $0x271] sm:$0xff]
    %v3523 = vld [vmem:[%s1398 + $0x279] sm:$0xff]
    %v3524 = vld [vmem:[%s1398 + $0x289] sm:$0xff]
    %v3525 = vld [vmem:[%s1398 + $0x291] sm:$0xff]
    %v3526 = vld [vmem:[%s1398 + $0x2a1] sm:$0xff]
    %v3527 = vld [vmem:[%s1398 + $0x2a9] sm:$0xff]
    %v3528 = vld [vmem:[%s1398 + $0x2b9] sm:$0xff]
    %v3529 = vld [vmem:[%s1398 + $0x2c1] sm:$0xff]
    %v3530 = vld [vmem:[%s1398 + $0x2d1] sm:$0xff]
    %v3531 = vld [vmem:[%s1398 + $0x2d9] sm:$0xff]
    %v3532 = vld [vmem:[%s1398 + $0x2e9] sm:$0xff]
    %v3533 = vld [vmem:[%s1398 + $0x2f1] sm:$0xff]
    %v3534 = vld [vmem:[%s1398 + $0x301] sm:$0xff]
    %v3535 = vld [vmem:[%s1398 + $0x309] sm:$0xff]
    %v3536 = vld [vmem:[%s1398 + $0x319] sm:$0xff]
    %v3537 = vld [vmem:[%s1398 + $0x321] sm:$0xff]
    %v3538 = vld [vmem:[%s1398 + $0x2] sm:$0xff]
    %v3539 = vld [vmem:[%s1398 + $0xa] sm:$0xff]
    %v3540 = vld [vmem:[%s1398 + $0x1a] sm:$0xff]
    %v3541 = vld [vmem:[%s1398 + $0x22] sm:$0xff]
    %v3542 = vld [vmem:[%s1398 + $0x32] sm:$0xff]
    %v3543 = vld [vmem:[%s1398 + $0x3a] sm:$0xff]
    %v3544 = vld [vmem:[%s1398 + $0x4a] sm:$0xff]
    %v3545 = vld [vmem:[%s1398 + $0x52] sm:$0xff]
    %v3546 = vld [vmem:[%s1398 + $0x62] sm:$0xff]
    %v3547 = vld [vmem:[%s1398 + $0x6a] sm:$0xff]
    %v3548 = vld [vmem:[%s1398 + $0x7a] sm:$0xff]
    %v3549 = vld [vmem:[%s1398 + $0x82] sm:$0xff]
    %v3550 = vld [vmem:[%s1398 + $0x92] sm:$0xff]
    %v3551 = vld [vmem:[%s1398 + $0x9a] sm:$0xff]
    %v3552 = vld [vmem:[%s1398 + $0xaa] sm:$0xff]
    %v3553 = vld [vmem:[%s1398 + $0xb2] sm:$0xff]
    %v3554 = vld [vmem:[%s1398 + $0xc2] sm:$0xff]
    %v3555 = vld [vmem:[%s1398 + $0xca] sm:$0xff]
    %v3556 = vld [vmem:[%s1398 + $0xda] sm:$0xff]
    %v3557 = vld [vmem:[%s1398 + $0xe2] sm:$0xff]
    %v3558 = vld [vmem:[%s1398 + $0xf2] sm:$0xff]
    %v3559 = vld [vmem:[%s1398 + $0xfa] sm:$0xff]
    %v3560 = vld [vmem:[%s1398 + $0x10a] sm:$0xff]
    %v3561 = vld [vmem:[%s1398 + $0x112] sm:$0xff]
    %v3562 = vld [vmem:[%s1398 + $0x122] sm:$0xff]
    %v3563 = vld [vmem:[%s1398 + $0x12a] sm:$0xff]
    %v3564 = vld [vmem:[%s1398 + $0x13a] sm:$0xff]
    %v3565 = vld [vmem:[%s1398 + $0x142] sm:$0xff]
    %v3566 = vld [vmem:[%s1398 + $0x152] sm:$0xff]
    %v3567 = vld [vmem:[%s1398 + $0x15a] sm:$0xff]
    %v3568 = vld [vmem:[%s1398 + $0x16a] sm:$0xff]
    %v3569 = vld [vmem:[%s1398 + $0x172] sm:$0xff]
    %v3570 = vld [vmem:[%s1398 + $0x1b2] sm:$0xff]
    %v3571 = vld [vmem:[%s1398 + $0x1ba] sm:$0xff]
    %v3572 = vld [vmem:[%s1398 + $0x1ca] sm:$0xff]
    %v3573 = vld [vmem:[%s1398 + $0x1d2] sm:$0xff]
    %v3574 = vld [vmem:[%s1398 + $0x1e2] sm:$0xff]
    %v3575 = vld [vmem:[%s1398 + $0x1ea] sm:$0xff]
    %v3576 = vld [vmem:[%s1398 + $0x1fa] sm:$0xff]
    %v3577 = vld [vmem:[%s1398 + $0x202] sm:$0xff]
    %v3578 = vld [vmem:[%s1398 + $0x212] sm:$0xff]
    %v3579 = vld [vmem:[%s1398 + $0x21a] sm:$0xff]
    %v3580 = vld [vmem:[%s1398 + $0x22a] sm:$0xff]
    %v3581 = vld [vmem:[%s1398 + $0x232] sm:$0xff]
    %v3582 = vld [vmem:[%s1398 + $0x242] sm:$0xff]
    %v3583 = vld [vmem:[%s1398 + $0x24a] sm:$0xff]
    %v3584 = vld [vmem:[%s1398 + $0x25a] sm:$0xff]
    %v3585 = vld [vmem:[%s1398 + $0x262] sm:$0xff]
    %v3586 = vld [vmem:[%s1398 + $0x272] sm:$0xff]
    %v3587 = vld [vmem:[%s1398 + $0x27a] sm:$0xff]
    %v3588 = vld [vmem:[%s1398 + $0x28a] sm:$0xff]
    %v3589 = vld [vmem:[%s1398 + $0x292] sm:$0xff]
    %v3590 = vld [vmem:[%s1398 + $0x2a2] sm:$0xff]
    %v3591 = vld [vmem:[%s1398 + $0x2aa] sm:$0xff]
    %v3592 = vld [vmem:[%s1398 + $0x2ba] sm:$0xff]
    %v3593 = vld [vmem:[%s1398 + $0x2c2] sm:$0xff]
    %v3594 = vld [vmem:[%s1398 + $0x2d2] sm:$0xff]
    %v3595 = vld [vmem:[%s1398 + $0x2da] sm:$0xff]
    %v3596 = vld [vmem:[%s1398 + $0x2ea] sm:$0xff]
    %v3597 = vld [vmem:[%s1398 + $0x2f2] sm:$0xff]
    %v3598 = vld [vmem:[%s1398 + $0x302] sm:$0xff]
    %v3599 = vld [vmem:[%s1398 + $0x30a] sm:$0xff]
    %v3600 = vld [vmem:[%s1398 + $0x31a] sm:$0xff]
    %v3601 = vld [vmem:[%s1398 + $0x322] sm:$0xff]
    %v3602 = vld [vmem:[#allocation10] sm:$0xff]
    %v3603 = vld [vmem:[#allocation10 + $0x8] sm:$0xff]
    %v3604 = vld [vmem:[#allocation10 + $0x10] sm:$0xff]
    %v3605 = vld [vmem:[#allocation10 + $0x18] sm:$0xff]
    %v3606 = vld [vmem:[#allocation10 + $0x20] sm:$0xff]
    %v3607 = vld [vmem:[#allocation10 + $0x28] sm:$0xff]
    %v3608 = vld [vmem:[#allocation10 + $0x30] sm:$0xff]
    %v3609 = vld [vmem:[#allocation10 + $0x38] sm:$0xff]
    %v3610 = vld [vmem:[#allocation10 + $0x40] sm:$0xff]
    %v3611 = vld [vmem:[#allocation10 + $0x48] sm:$0xff]
    %v3612 = vld [vmem:[#allocation10 + $0x50] sm:$0xff]
    %v3613 = vld [vmem:[#allocation10 + $0x58] sm:$0xff]
    %v3614 = vld [vmem:[#allocation10 + $0x60] sm:$0xff]
    %v3615 = vld [vmem:[#allocation10 + $0x68] sm:$0xff]
    %v3616 = vld [vmem:[#allocation10 + $0x70] sm:$0xff]
    %v3617 = vld [vmem:[#allocation10 + $0x78] sm:$0xff]
    %v3618 = vld [vmem:[#allocation10 + $0x80] sm:$0xff]
    %v3619 = vld [vmem:[#allocation10 + $0x88] sm:$0xff]
    %v3620 = vld [vmem:[#allocation10 + $0x90] sm:$0xff]
    %v3621 = vld [vmem:[#allocation10 + $0x98] sm:$0xff]
    %v3622 = vld [vmem:[#allocation10 + $0xa0] sm:$0xff]
    %v3623 = vld [vmem:[#allocation10 + $0xa8] sm:$0xff]
    %v3624 = vld [vmem:[#allocation10 + $0xb0] sm:$0xff]
    %v3625 = vld [vmem:[#allocation10 + $0xb8] sm:$0xff]
    %v3626 = vld [vmem:[#allocation10 + $0xc0] sm:$0xff]
    %v3627 = vld [vmem:[#allocation10 + $0xc8] sm:$0xff]
    %v3628 = vld [vmem:[#allocation10 + $0xd0] sm:$0xff]
    %v3629 = vld [vmem:[#allocation10 + $0xd8] sm:$0xff]
    %v3630 = vld [vmem:[#allocation10 + $0xe0] sm:$0xff]
    %v3631 = vld [vmem:[#allocation10 + $0xe8] sm:$0xff]
    %v3632 = vld [vmem:[#allocation10 + $0xf0] sm:$0xff]
    %v3633 = vld [vmem:[#allocation10 + $0xf8] sm:$0xff]
    %v3634 = vld [vmem:[#allocation10 + $0x100] sm:$0xff]
    %v3635 = vld [vmem:[#allocation10 + $0x108] sm:$0xff]
    %v3636 = vld [vmem:[#allocation10 + $0x110] sm:$0xff]
    %v3637 = vld [vmem:[#allocation10 + $0x118] sm:$0xff]
    %v3638 = vld [vmem:[#allocation10 + $0x120] sm:$0xff]
    %v3639 = vld [vmem:[#allocation10 + $0x128] sm:$0xff]
    %v3640 = vld [vmem:[#allocation10 + $0x130] sm:$0xff]
    %v3641 = vld [vmem:[#allocation10 + $0x138] sm:$0xff]
    %v3642 = vld [vmem:[#allocation10 + $0x140] sm:$0xff]
    %v3643 = vld [vmem:[#allocation10 + $0x148] sm:$0xff]
    %v3644 = vld [vmem:[#allocation10 + $0x150] sm:$0xff]
    %v3645 = vld [vmem:[#allocation10 + $0x158] sm:$0xff]
    %v3646 = vld [vmem:[#allocation10 + $0x160] sm:$0xff]
    %v3647 = vld [vmem:[#allocation10 + $0x168] sm:$0xff]
    %v3648 = vld [vmem:[#allocation10 + $0x170] sm:$0xff]
    %v3649 = vld [vmem:[#allocation10 + $0x178] sm:$0xff]
    %v3650 = vld [vmem:[#allocation10 + $0x180] sm:$0xff]
    %v3651 = vld [vmem:[#allocation10 + $0x188] sm:$0xff]
    %v3652 = vld [vmem:[#allocation10 + $0x190] sm:$0xff]
    %v3653 = vld [vmem:[#allocation10 + $0x198] sm:$0xff]
    %v3654 = vld [vmem:[#allocation10 + $0x1a0] sm:$0xff]
    %v3655 = vld [vmem:[#allocation10 + $0x1a8] sm:$0xff]
    %v3656 = vld [vmem:[#allocation10 + $0x1b0] sm:$0xff]
    %v3657 = vld [vmem:[#allocation10 + $0x1b8] sm:$0xff]
    %v3658 = vld [vmem:[#allocation10 + $0x1c0] sm:$0xff]
    %v3659 = vld [vmem:[#allocation10 + $0x1c8] sm:$0xff]
    %v3660 = vld [vmem:[#allocation10 + $0x1d0] sm:$0xff]
    %v3661 = vld [vmem:[#allocation10 + $0x1d8] sm:$0xff]
    %v3662 = vld [vmem:[#allocation10 + $0x1e0] sm:$0xff]
    %v3663 = vld [vmem:[#allocation10 + $0x1e8] sm:$0xff]
    %v3664 = vld [vmem:[#allocation10 + $0x1f0] sm:$0xff]
    %v3665 = vld [vmem:[#allocation10 + $0x1f8] sm:$0xff]
    %v3666 = vld [vmem:[#allocation10 + $0x200] sm:$0xff]
    %v3667 = vld [vmem:[#allocation10 + $0x208] sm:$0xff]
    %v3668 = vld [vmem:[#allocation10 + $0x210] sm:$0xff]
    %v3669 = vld [vmem:[#allocation10 + $0x218] sm:$0xff]
    %v3670 = vld [vmem:[#allocation10 + $0x220] sm:$0xff]
    %v3671 = vld [vmem:[#allocation10 + $0x228] sm:$0xff]
    %v3672 = vld [vmem:[#allocation10 + $0x230] sm:$0xff]
    %v3673 = vld [vmem:[#allocation10 + $0x238] sm:$0xff]
    %v3674 = vld [vmem:[#allocation10 + $0x240] sm:$0xff]
    %v3675 = vld [vmem:[#allocation10 + $0x248] sm:$0xff]
    %v3676 = vld [vmem:[#allocation10 + $0x250] sm:$0xff]
    %v3677 = vld [vmem:[#allocation10 + $0x258] sm:$0xff]
    %v3678 = vld [vmem:[#allocation10 + $0x260] sm:$0xff]
    %v3679 = vld [vmem:[#allocation10 + $0x268] sm:$0xff]
    %v3680 = vld [vmem:[#allocation10 + $0x270] sm:$0xff]
    %v3681 = vld [vmem:[#allocation10 + $0x278] sm:$0xff]
    %v3682 = vld [vmem:[#allocation10 + $0x280] sm:$0xff]
    %v3683 = vld [vmem:[#allocation10 + $0x288] sm:$0xff]
    %v3684 = vld [vmem:[#allocation10 + $0x290] sm:$0xff]
    %v3685 = vld [vmem:[#allocation10 + $0x298] sm:$0xff]
    %v3686 = vld [vmem:[#allocation10 + $0x2a0] sm:$0xff]
    %v3687 = vld [vmem:[#allocation10 + $0x2a8] sm:$0xff]
    %v3688 = vld [vmem:[#allocation10 + $0x2b0] sm:$0xff]
    %v3689 = vld [vmem:[#allocation10 + $0x2b8] sm:$0xff]
    %v3690 = vld [vmem:[#allocation10 + $0x2c0] sm:$0xff]
    %v3691 = vld [vmem:[#allocation10 + $0x2c8] sm:$0xff]
    %v3692 = vld [vmem:[#allocation10 + $0x2d0] sm:$0xff]
    %v3693 = vld [vmem:[#allocation10 + $0x2d8] sm:$0xff]
    %v3694 = vld [vmem:[#allocation10 + $0x2e0] sm:$0xff]
    %v3695 = vld [vmem:[#allocation10 + $0x2e8] sm:$0xff]
    %v3696 = vld [vmem:[#allocation10 + $0x2f0] sm:$0xff]
    %v3697 = vld [vmem:[#allocation10 + $0x2f8] sm:$0xff]
    %v3698 = vld [vmem:[#allocation10 + $0x300] sm:$0xff]
    %v3699 = vld [vmem:[#allocation10 + $0x308] sm:$0xff]
    %v3700 = vld [vmem:[#allocation10 + $0x310] sm:$0xff]
    %v3701 = vld [vmem:[#allocation10 + $0x318] sm:$0xff]
    %v3702 = vld [vmem:[#allocation10 + $0x320] sm:$0xff]
    %v3703 = vld [vmem:[#allocation10 + $0x328] sm:$0xff]
    %v3704 = vld [vmem:[#allocation10 + $0x330] sm:$0xff]
    %v3705 = vld [vmem:[#allocation10 + $0x338] sm:$0xff]
    %v3706 = vld [vmem:[#allocation10 + $0x340] sm:$0xff]
    %v3707 = vld [vmem:[#allocation10 + $0x348] sm:$0xff]
    %v3708 = vld [vmem:[#allocation10 + $0x350] sm:$0xff]
    %v3709 = vld [vmem:[#allocation10 + $0x358] sm:$0xff]
    %v3710 = vld [vmem:[#allocation10 + $0x360] sm:$0xff]
    %v3711 = vld [vmem:[#allocation10 + $0x368] sm:$0xff]
    %v3712 = vld [vmem:[#allocation10 + $0x370] sm:$0xff]
    %v3713 = vld [vmem:[#allocation10 + $0x378] sm:$0xff]
    %v3714 = vld [vmem:[#allocation10 + $0x380] sm:$0xff]
    %v3715 = vld [vmem:[#allocation10 + $0x388] sm:$0xff]
    %v3716 = vld [vmem:[#allocation10 + $0x390] sm:$0xff]
    %v3717 = vld [vmem:[#allocation10 + $0x398] sm:$0xff]
    %v3718 = vld [vmem:[#allocation10 + $0x3a0] sm:$0xff]
    %v3719 = vld [vmem:[#allocation10 + $0x3a8] sm:$0xff]
    %v3720 = vld [vmem:[#allocation10 + $0x3b0] sm:$0xff]
    %v3721 = vld [vmem:[#allocation10 + $0x3b8] sm:$0xff]
    %v3722 = vld [vmem:[#allocation10 + $0x3c0] sm:$0xff]
    %v3723 = vld [vmem:[#allocation10 + $0x3c8] sm:$0xff]
    %v3724 = vld [vmem:[#allocation10 + $0x3d0] sm:$0xff]
    %v3725 = vld [vmem:[#allocation10 + $0x3d8] sm:$0xff]
    %v3726 = vld [vmem:[#allocation10 + $0x3e0] sm:$0xff]
    %v3727 = vld [vmem:[#allocation10 + $0x3e8] sm:$0xff]
    %v3728 = vld [vmem:[#allocation10 + $0x3f0] sm:$0xff]
    %v3729 = vld [vmem:[#allocation10 + $0x3f8] sm:$0xff]
    %v3730 = vld [vmem:[#allocation10 + $0x400] sm:$0xff]
    %v3731 = vld [vmem:[#allocation10 + $0x408] sm:$0xff]
    %v3732 = vld [vmem:[#allocation10 + $0x410] sm:$0xff]
    %v3733 = vld [vmem:[#allocation10 + $0x418] sm:$0xff]
    %v3734 = vld [vmem:[#allocation10 + $0x420] sm:$0xff]
    %v3735 = vld [vmem:[#allocation10 + $0x428] sm:$0xff]
    %v3736 = vld [vmem:[#allocation10 + $0x430] sm:$0xff]
    %v3737 = vld [vmem:[#allocation10 + $0x438] sm:$0xff]
    %v3738 = vld [vmem:[#allocation10 + $0x440] sm:$0xff]
    %v3739 = vld [vmem:[#allocation10 + $0x448] sm:$0xff]
    %v3740 = vld [vmem:[#allocation10 + $0x450] sm:$0xff]
    %v3741 = vld [vmem:[#allocation10 + $0x458] sm:$0xff]
    %v3742 = vld [vmem:[#allocation10 + $0x460] sm:$0xff]
    %v3743 = vld [vmem:[#allocation10 + $0x468] sm:$0xff]
    %v3744 = vld [vmem:[#allocation10 + $0x470] sm:$0xff]
    %v3745 = vld [vmem:[#allocation10 + $0x478] sm:$0xff]
    %v3746 = vld [vmem:[%s12] sm:$0x1]
    %v3748 = vlaneseq
    %v3749 = vshrl.u32 %v3748, 7
    %v3750 = vsub.s32 0, %v3749
    %v3751 = vrot.slane %v3746, %v3750
    %3753 = vmatprep.subr.mxu0 0.0
    %3754 = vmatpush1.msra.mxu0 %v3602
    %3755 = vmatprep.subr.mxu0 0.0
    %3756 = vmatpush1.msra.mxu0 %v3603
    %3757 = vmatprep.subr.mxu0 0.0
    %3758 = vmatpush1.msra.mxu0 %v3604
    %3759 = vmatprep.subr.mxu0 0.0
    %3760 = vmatpush1.msra.mxu0 %v3605
    %3761 = vmatprep.subr.mxu0 0.0
    %3762 = vmatpush1.msra.mxu0 %v3606
    %3763 = vmatprep.subr.mxu0 0.0
    %3764 = vmatpush1.msra.mxu0 %v3607
    %3765 = vmatprep.subr.mxu0 0.0
    %3766 = vmatpush1.msra.mxu0 %v3608
    %3767 = vmatprep.subr.mxu0 0.0
    %3768 = vmatpush1.msra.mxu0 %v3609
    %3769 = vmatprep.subr.mxu0 0.0
    %3770 = vmatpush1.msra.mxu0 %v3610
    %3771 = vmatprep.subr.mxu0 0.0
    %3772 = vmatpush1.msra.mxu0 %v3611
    %3773 = vmatprep.subr.mxu0 0.0
    %3774 = vmatpush1.msra.mxu0 %v3612
    %3775 = vmatprep.subr.mxu0 0.0
    %3776 = vmatpush1.msra.mxu0 %v3613
    %3777 = vmatprep.subr.mxu0 0.0
    %3778 = vmatpush1.msra.mxu0 %v3614
    %3779 = vmatprep.subr.mxu0 0.0
    %3780 = vmatpush1.msra.mxu0 %v3615
    %3781 = vmatprep.subr.mxu0 0.0
    %3782 = vmatpush1.msra.mxu0 %v3616
    %3783 = vmatprep.subr.mxu0 0.0
    %3784 = vmatpush1.msra.mxu0 %v3617
    %3785 = vmatprep.subr.mxu0 0.0
    %3786 = vmatpush1.msra.mxu0 %v3618
    %3787 = vmatprep.subr.mxu0 0.0
    %3788 = vmatpush1.msra.mxu0 %v3619
    %3789 = vmatprep.subr.mxu0 0.0
    %3790 = vmatpush1.msra.mxu0 %v3620
    %3791 = vmatprep.subr.mxu0 0.0
    %3792 = vmatpush1.msra.mxu0 %v3621
    %3793 = vmatprep.subr.mxu0 0.0
    %3794 = vmatpush1.msra.mxu0 %v3622
    %3795 = vmatprep.subr.mxu0 0.0
    %3796 = vmatpush1.msra.mxu0 %v3623
    %3797 = vmatprep.subr.mxu0 0.0
    %3798 = vmatpush1.msra.mxu0 %v3624
    %3799 = vmatprep.subr.mxu0 0.0
    %3800 = vmatpush1.msra.mxu0 %v3625
    %3801 = vmatprep.subr.mxu0 0.0
    %3802 = vmatpush1.msra.mxu0 %v3626
    %3803 = vmatprep.subr.mxu0 0.0
    %3804 = vmatpush1.msra.mxu0 %v3627
    %3805 = vmatprep.subr.mxu0 0.0
    %3806 = vmatpush1.msra.mxu0 %v3628
    %3807 = vmatprep.subr.mxu0 0.0
    %3808 = vmatpush1.msra.mxu0 %v3629
    %3809 = vmatprep.subr.mxu0 0.0
    %3810 = vmatpush1.msra.mxu0 %v3630
    %3811 = vmatprep.subr.mxu0 0.0
    %3812 = vmatpush1.msra.mxu0 %v3631
    %3813 = vmatprep.subr.mxu0 0.0
    %3814 = vmatpush1.msra.mxu0 %v3632
    %3815 = vmatprep.subr.mxu0 0.0
    %3816 = vmatpush1.msra.mxu0 %v3633
    %3817 = vmatprep.mubr.f32.mxu0 %v3090
    %3818 = vmatmul.mubr.f32.gmra.mrb[0].mxu0 %v3026
    %v3819 = vpop.f32.mrb[0].mxu0
    %v3820 = vadd.f32 %v3751, %v3819
    %v3821 = vpop.f32.mrb[0].mxu0
    %3822 = vmatprep.mubr.f32.mxu0 %v3091
    %3823 = vmatmul.mubr.f32.gmra.mrb[0].mxu0 %v3027
    %v3824 = vpop.f32.mrb[0].mxu0
    %v3825 = vadd.f32 %v3751, %v3824
    %v3826 = vpop.f32.mrb[0].mxu0
    %3827 = vmatprep.mubr.f32.mxu0 %v3092
    %3828 = vmatmul.mubr.f32.gmra.mrb[0].mxu0 %v3028
    %v3829 = vpop.f32.mrb[0].mxu0
    %v3830 = vadd.f32 %v3751, %v3829
    %v3831 = vpop.f32.mrb[0].mxu0
    %3832 = vmatprep.mubr.f32.mxu0 %v3093
    %3833 = vmatmul.mubr.f32.gmra.mrb[0].mxu0 %v3029
    %v3834 = vpop.f32.mrb[0].mxu0
    %v3835 = vadd.f32 %v3751, %v3834
    %v3836 = vpop.f32.mrb[0].mxu0
    %3837 = vmatprep.mubr.f32.mxu0 %v3094
    %3838 = vmatmul.mubr.f32.gmra.mrb[0].mxu0 %v3030
    %v3839 = vpop.f32.mrb[0].mxu0
    %v3840 = vadd.f32 %v3751, %v3839
    %v3841 = vpop.f32.mrb[0].mxu0
    %3842 = vmatprep.mubr.f32.mxu0 %v3095
    %3843 = vmatmul.mubr.f32.gmra.mrb[0].mxu0 %v3031
    %v3844 = vpop.f32.mrb[0].mxu0
    %v3845 = vadd.f32 %v3751, %v3844
    %v3846 = vpop.f32.mrb[0].mxu0
    %3847 = vmatprep.mubr.f32.mxu0 %v3096
    %3848 = vmatmul.mubr.f32.gmra.mrb[0].mxu0 %v3032
    %v3849 = vpop.f32.mrb[0].mxu0
    %v3850 = vadd.f32 %v3751, %v3849
    %v3851 = vpop.f32.mrb[0].mxu0
    %3852 = vmatprep.mubr.f32.mxu0 %v3097
    %3853 = vmatmul.mubr.f32.gmra.mrb[0].mxu0 %v3033
    %v3854 = vpop.f32.mrb[0].mxu0
    %v3855 = vadd.f32 %v3751, %v3854
    %v3856 = vpop.f32.mrb[0].mxu0
    %3857 = vmatprep.mubr.f32.mxu0 %v3098
    %3858 = vmatmul.mubr.f32.gmra.mrb[0].mxu0 %v3034
    %v3859 = vpop.f32.mrb[0].mxu0
    %v3860 = vadd.f32 %v3751, %v3859
    %v3861 = vpop.f32.mrb[0].mxu0
    %3862 = vmatprep.mubr.f32.mxu0 %v3099
    %3863 = vmatmul.mubr.f32.gmra.mrb[0].mxu0 %v3035
    %v3864 = vpop.f32.mrb[0].mxu0
    %v3865 = vadd.f32 %v3751, %v3864
    %v3866 = vpop.f32.mrb[0].mxu0
    %3867 = vmatprep.mubr.f32.mxu0 %v3100
    %3868 = vmatmul.mubr.f32.gmra.mrb[0].mxu0 %v3036
    %v3869 = vpop.f32.mrb[0].mxu0
    %v3870 = vadd.f32 %v3751, %v3869
    %v3871 = vpop.f32.mrb[0].mxu0
    %3872 = vmatprep.mubr.f32.mxu0 %v3101
    %3873 = vmatmul.mubr.f32.gmra.mrb[0].mxu0 %v3037
    %v3874 = vpop.f32.mrb[0].mxu0
    %v3875 = vadd.f32 %v3751, %v3874
    %v3876 = vpop.f32.mrb[0].mxu0
    %3877 = vmatprep.mubr.f32.mxu0 %v3102
    %3878 = vmatmul.mubr.f32.gmra.mrb[0].mxu0 %v3038
    %v3879 = vpop.f32.mrb[0].mxu0
    %v3880 = vadd.f32 %v3751, %v3879
    %v3881 = vpop.f32.mrb[0].mxu0
    %3882 = vmatprep.mubr.f32.mxu0 %v3103
    %3883 = vmatmul.mubr.f32.gmra.mrb[0].mxu0 %v3039
    %v3884 = vpop.f32.mrb[0].mxu0
    %v3885 = vadd.f32 %v3751, %v3884
    %v3886 = vpop.f32.mrb[0].mxu0
    %3887 = vmatprep.mubr.f32.mxu0 %v3104
    %3888 = vmatmul.mubr.f32.gmra.mrb[0].mxu0 %v3040
    %v3889 = vpop.f32.mrb[0].mxu0
    %v3890 = vadd.f32 %v3751, %v3889
    %v3891 = vpop.f32.mrb[0].mxu0
    %3892 = vmatprep.mubr.f32.mxu0 %v3105
    %3893 = vmatmul.mubr.f32.gmra.mrb[0].mxu0 %v3041
    %v3894 = vpop.f32.mrb[0].mxu0
    %v3895 = vadd.f32 %v3751, %v3894
    %v3896 = vpop.f32.mrb[0].mxu0
    %3897 = vmatprep.mubr.f32.mxu0 %v3106
    %3898 = vmatmul.mubr.f32.gmra.mrb[0].mxu0 %v3042
    %v3899 = vpop.f32.mrb[0].mxu0
    %v3900 = vadd.f32 %v3751, %v3899
    %v3901 = vpop.f32.mrb[0].mxu0
    %3902 = vmatprep.mubr.f32.mxu0 %v3107
    %3903 = vmatmul.mubr.f32.gmra.mrb[0].mxu0 %v3043
    %v3904 = vpop.f32.mrb[0].mxu0
    %v3905 = vadd.f32 %v3751, %v3904
    %v3906 = vpop.f32.mrb[0].mxu0
    %3907 = vmatprep.mubr.f32.mxu0 %v3108
    %3908 = vmatmul.mubr.f32.gmra.mrb[0].mxu0 %v3044
    %v3909 = vpop.f32.mrb[0].mxu0
    %v3910 = vadd.f32 %v3751, %v3909
    %v3911 = vpop.f32.mrb[0].mxu0
    %3912 = vmatprep.mubr.f32.mxu0 %v3109
    %3913 = vmatmul.mubr.f32.gmra.mrb[0].mxu0 %v3045
    %v3914 = vpop.f32.mrb[0].mxu0
    %v3915 = vadd.f32 %v3751, %v3914
    %v3916 = vpop.f32.mrb[0].mxu0
    %3917 = vmatprep.mubr.f32.mxu0 %v3110
    %3918 = vmatmul.mubr.f32.gmra.mrb[0].mxu0 %v3046
    %v3919 = vpop.f32.mrb[0].mxu0
    %v3920 = vadd.f32 %v3751, %v3919
    %v3921 = vpop.f32.mrb[0].mxu0
    %3922 = vmatprep.mubr.f32.mxu0 %v3111
    %3923 = vmatmul.mubr.f32.gmra.mrb[0].mxu0 %v3047
    %v3924 = vpop.f32.mrb[0].mxu0
    %v3925 = vadd.f32 %v3751, %v3924
    %v3926 = vpop.f32.mrb[0].mxu0
    %3927 = vmatprep.mubr.f32.mxu0 %v3112
    %3928 = vmatmul.mubr.f32.gmra.mrb[0].mxu0 %v3048
    %v3929 = vpop.f32.mrb[0].mxu0
    %v3930 = vadd.f32 %v3751, %v3929
    %v3931 = vpop.f32.mrb[0].mxu0
    %3932 = vmatprep.mubr.f32.mxu0 %v3113
    %3933 = vmatmul.mubr.f32.gmra.mrb[0].mxu0 %v3049
    %v3934 = vpop.f32.mrb[0].mxu0
    %v3935 = vadd.f32 %v3751, %v3934
    %v3936 = vpop.f32.mrb[0].mxu0
    %3937 = vmatprep.mubr.f32.mxu0 %v3114
    %3938 = vmatmul.mubr.f32.gmra.mrb[0].mxu0 %v3050
    %v3939 = vpop.f32.mrb[0].mxu0
    %v3940 = vadd.f32 %v3751, %v3939
    %v3941 = vpop.f32.mrb[0].mxu0
    %3942 = vmatprep.mubr.f32.mxu0 %v3115
    %3943 = vmatmul.mubr.f32.gmra.mrb[0].mxu0 %v3051
    %v3944 = vpop.f32.mrb[0].mxu0
    %v3945 = vadd.f32 %v3751, %v3944
    %v3946 = vpop.f32.mrb[0].mxu0
    %3947 = vmatprep.mubr.f32.mxu0 %v3116
    %3948 = vmatmul.mubr.f32.gmra.mrb[0].mxu0 %v3052
    %v3949 = vpop.f32.mrb[0].mxu0
    %v3950 = vadd.f32 %v3751, %v3949
    %v3951 = vpop.f32.mrb[0].mxu0
    %3952 = vmatprep.mubr.f32.mxu0 %v3117
    %3953 = vmatmul.mubr.f32.gmra.mrb[0].mxu0 %v3053
    %v3954 = vpop.f32.mrb[0].mxu0
    %v3955 = vadd.f32 %v3751, %v3954
    %v3956 = vpop.f32.mrb[0].mxu0
    %3957 = vmatprep.mubr.f32.mxu0 %v3118
    %3958 = vmatmul.mubr.f32.gmra.mrb[0].mxu0 %v3054
    %v3959 = vpop.f32.mrb[0].mxu0
    %v3960 = vadd.f32 %v3751, %v3959
    %v3961 = vpop.f32.mrb[0].mxu0
    %3962 = vmatprep.mubr.f32.mxu0 %v3119
    %3963 = vmatmul.mubr.f32.gmra.mrb[0].mxu0 %v3055
    %v3964 = vpop.f32.mrb[0].mxu0
    %v3965 = vadd.f32 %v3751, %v3964
    %v3966 = vpop.f32.mrb[0].mxu0
    %3967 = vmatprep.mubr.f32.mxu0 %v3120
    %3968 = vmatmul.mubr.f32.gmra.mrb[0].mxu0 %v3056
    %v3969 = vpop.f32.mrb[0].mxu0
    %v3970 = vadd.f32 %v3751, %v3969
    %v3971 = vpop.f32.mrb[0].mxu0
    %3972 = vmatprep.mubr.f32.mxu0 %v3121
    %3973 = vmatmul.mubr.f32.gmra.mrb[0].mxu0 %v3057
    %v3974 = vpop.f32.mrb[0].mxu0
    %v3975 = vadd.f32 %v3751, %v3974
    %v3976 = vpop.f32.mrb[0].mxu0
    %3977 = vmatprep.mubr.f32.mxu0 %v3122
    %3978 = vmatmul.mubr.f32.gmra.mrb[0].mxu0 %v3058
    %v3979 = vpop.f32.mrb[0].mxu0
    %v3980 = vadd.f32 %v3751, %v3979
    %v3981 = vpop.f32.mrb[0].mxu0
    %3982 = vmatprep.mubr.f32.mxu0 %v3123
    %3983 = vmatmul.mubr.f32.gmra.mrb[0].mxu0 %v3059
    %v3984 = vpop.f32.mrb[0].mxu0
    %v3985 = vadd.f32 %v3751, %v3984
    %v3986 = vpop.f32.mrb[0].mxu0
    %3987 = vmatprep.mubr.f32.mxu0 %v3124
    %3988 = vmatmul.mubr.f32.gmra.mrb[0].mxu0 %v3060
    %v3989 = vpop.f32.mrb[0].mxu0
    %v3990 = vadd.f32 %v3751, %v3989
    %v3991 = vpop.f32.mrb[0].mxu0
    %3992 = vmatprep.mubr.f32.mxu0 %v3125
    %3993 = vmatmul.mubr.f32.gmra.mrb[0].mxu0 %v3061
    %v3994 = vpop.f32.mrb[0].mxu0
    %v3995 = vadd.f32 %v3751, %v3994
    %v3996 = vpop.f32.mrb[0].mxu0
    %3997 = vmatprep.mubr.f32.mxu0 %v3126
    %3998 = vmatmul.mubr.f32.gmra.mrb[0].mxu0 %v3062
    %v3999 = vpop.f32.mrb[0].mxu0
    %v4000 = vadd.f32 %v3751, %v3999
    %v4001 = vpop.f32.mrb[0].mxu0
    %4002 = vmatprep.mubr.f32.mxu0 %v3127
    %4003 = vmatmul.mubr.f32.gmra.mrb[0].mxu0 %v3063
    %v4004 = vpop.f32.mrb[0].mxu0
    %v4005 = vadd.f32 %v3751, %v4004
    %v4006 = vpop.f32.mrb[0].mxu0
    %4007 = vmatprep.mubr.f32.mxu0 %v3128
    %4008 = vmatmul.mubr.f32.gmra.mrb[0].mxu0 %v3064
    %v4009 = vpop.f32.mrb[0].mxu0
    %v4010 = vadd.f32 %v3751, %v4009
    %v4011 = vpop.f32.mrb[0].mxu0
    %4012 = vmatprep.mubr.f32.mxu0 %v3129
    %4013 = vmatmul.mubr.f32.gmra.mrb[0].mxu0 %v3065
    %v4014 = vpop.f32.mrb[0].mxu0
    %v4015 = vadd.f32 %v3751, %v4014
    %v4016 = vpop.f32.mrb[0].mxu0
    %4017 = vmatprep.mubr.f32.mxu0 %v3130
    %4018 = vmatmul.mubr.f32.gmra.mrb[0].mxu0 %v3066
    %v4019 = vpop.f32.mrb[0].mxu0
    %v4020 = vadd.f32 %v3751, %v4019
    %v4021 = vpop.f32.mrb[0].mxu0
    %4022 = vmatprep.mubr.f32.mxu0 %v3131
    %4023 = vmatmul.mubr.f32.gmra.mrb[0].mxu0 %v3067
    %v4024 = vpop.f32.mrb[0].mxu0
    %v4025 = vadd.f32 %v3751, %v4024
    %v4026 = vpop.f32.mrb[0].mxu0
    %4027 = vmatprep.mubr.f32.mxu0 %v3132
    %4028 = vmatmul.mubr.f32.gmra.mrb[0].mxu0 %v3068
    %v4029 = vpop.f32.mrb[0].mxu0
    %v4030 = vadd.f32 %v3751, %v4029
    %v4031 = vpop.f32.mrb[0].mxu0
    %4032 = vmatprep.mubr.f32.mxu0 %v3133
    %4033 = vmatmul.mubr.f32.gmra.mrb[0].mxu0 %v3069
    %v4034 = vpop.f32.mrb[0].mxu0
    %v4035 = vadd.f32 %v3751, %v4034
    %v4036 = vpop.f32.mrb[0].mxu0
    %4037 = vmatprep.mubr.f32.mxu0 %v3134
    %4038 = vmatmul.mubr.f32.gmra.mrb[0].mxu0 %v3070
    %v4039 = vpop.f32.mrb[0].mxu0
    %v4040 = vadd.f32 %v3751, %v4039
    %v4041 = vpop.f32.mrb[0].mxu0
    %4042 = vmatprep.mubr.f32.mxu0 %v3135
    %4043 = vmatmul.mubr.f32.gmra.mrb[0].mxu0 %v3071
    %v4044 = vpop.f32.mrb[0].mxu0
    %v4045 = vadd.f32 %v3751, %v4044
    %v4046 = vpop.f32.mrb[0].mxu0
    %4047 = vmatprep.mubr.f32.mxu0 %v3136
    %4048 = vmatmul.mubr.f32.gmra.mrb[0].mxu0 %v3072
    %v4049 = vpop.f32.mrb[0].mxu0
    %v4050 = vadd.f32 %v3751, %v4049
    %v4051 = vpop.f32.mrb[0].mxu0
    %4052 = vmatprep.mubr.f32.mxu0 %v3137
    %4053 = vmatmul.mubr.f32.gmra.mrb[0].mxu0 %v3073
    %v4054 = vpop.f32.mrb[0].mxu0
    %v4055 = vadd.f32 %v3751, %v4054
    %v4056 = vpop.f32.mrb[0].mxu0
    %4057 = vmatprep.mubr.f32.mxu0 %v3138
    %4058 = vmatmul.mubr.f32.gmra.mrb[0].mxu0 %v3074
    %v4059 = vpop.f32.mrb[0].mxu0
    %v4060 = vadd.f32 %v3751, %v4059
    %v4061 = vpop.f32.mrb[0].mxu0
    %4062 = vmatprep.mubr.f32.mxu0 %v3139
    %4063 = vmatmul.mubr.f32.gmra.mrb[0].mxu0 %v3075
    %v4064 = vpop.f32.mrb[0].mxu0
    %v4065 = vadd.f32 %v3751, %v4064
    %v4066 = vpop.f32.mrb[0].mxu0
    %4067 = vmatprep.mubr.f32.mxu0 %v3140
    %4068 = vmatmul.mubr.f32.gmra.mrb[0].mxu0 %v3076
    %v4069 = vpop.f32.mrb[0].mxu0
    %v4070 = vadd.f32 %v3751, %v4069
    %v4071 = vpop.f32.mrb[0].mxu0
    %4072 = vmatprep.mubr.f32.mxu0 %v3141
    %4073 = vmatmul.mubr.f32.gmra.mrb[0].mxu0 %v3077
    %v4074 = vpop.f32.mrb[0].mxu0
    %v4075 = vadd.f32 %v3751, %v4074
    %v4076 = vpop.f32.mrb[0].mxu0
    %4077 = vmatprep.mubr.f32.mxu0 %v3142
    %4078 = vmatmul.mubr.f32.gmra.mrb[0].mxu0 %v3078
    %v4079 = vpop.f32.mrb[0].mxu0
    %v4080 = vadd.f32 %v3751, %v4079
    %v4081 = vpop.f32.mrb[0].mxu0
    %4082 = vmatprep.mubr.f32.mxu0 %v3143
    %4083 = vmatmul.mubr.f32.gmra.mrb[0].mxu0 %v3079
    %v4084 = vpop.f32.mrb[0].mxu0
    %v4085 = vadd.f32 %v3751, %v4084
    %v4086 = vpop.f32.mrb[0].mxu0
    %4087 = vmatprep.mubr.f32.mxu0 %v3144
    %4088 = vmatmul.mubr.f32.gmra.mrb[0].mxu0 %v3080
    %v4089 = vpop.f32.mrb[0].mxu0
    %v4090 = vadd.f32 %v3751, %v4089
    %v4091 = vpop.f32.mrb[0].mxu0
    %4092 = vmatprep.mubr.f32.mxu0 %v3145
    %4093 = vmatmul.mubr.f32.gmra.mrb[0].mxu0 %v3081
    %v4094 = vpop.f32.mrb[0].mxu0
    %v4095 = vadd.f32 %v3751, %v4094
    %v4096 = vpop.f32.mrb[0].mxu0
    %4097 = vmatprep.mubr.f32.mxu0 %v3146
    %4098 = vmatmul.mubr.f32.gmra.mrb[0].mxu0 %v3082
    %v4099 = vpop.f32.mrb[0].mxu0
    %v4100 = vadd.f32 %v3751, %v4099
    %v4101 = vpop.f32.mrb[0].mxu0
    %4102 = vmatprep.mubr.f32.mxu0 %v3147
    %4103 = vmatmul.mubr.f32.gmra.mrb[0].mxu0 %v3083
    %v4104 = vpop.f32.mrb[0].mxu0
    %v4105 = vadd.f32 %v3751, %v4104
    %v4106 = vpop.f32.mrb[0].mxu0
    %4107 = vmatprep.mubr.f32.mxu0 %v3148
    %4108 = vmatmul.mubr.f32.gmra.mrb[0].mxu0 %v3084
    %v4109 = vpop.f32.mrb[0].mxu0
    %v4110 = vadd.f32 %v3751, %v4109
    %v4111 = vpop.f32.mrb[0].mxu0
    %4112 = vmatprep.mubr.f32.mxu0 %v3149
    %4113 = vmatmul.mubr.f32.gmra.mrb[0].mxu0 %v3085
    %v4114 = vpop.f32.mrb[0].mxu0
    %v4115 = vadd.f32 %v3751, %v4114
    %v4116 = vpop.f32.mrb[0].mxu0
    %4117 = vmatprep.mubr.f32.mxu0 %v3150
    %4118 = vmatmul.mubr.f32.gmra.mrb[0].mxu0 %v3086
    %v4119 = vpop.f32.mrb[0].mxu0
    %v4120 = vadd.f32 %v3751, %v4119
    %v4121 = vpop.f32.mrb[0].mxu0
    %4122 = vmatprep.mubr.f32.mxu0 %v3151
    %4123 = vmatmul.mubr.f32.gmra.mrb[0].mxu0 %v3087
    %v4124 = vpop.f32.mrb[0].mxu0
    %v4125 = vadd.f32 %v3751, %v4124
    %v4126 = vpop.f32.mrb[0].mxu0
    %4127 = vmatprep.mubr.f32.mxu0 %v3152
    %4128 = vmatmul.mubr.f32.gmra.mrb[0].mxu0 %v3088
    %v4129 = vpop.f32.mrb[0].mxu0
    %v4130 = vadd.f32 %v3751, %v4129
    %v4131 = vpop.f32.mrb[0].mxu0
    %4132 = vmatprep.mubr.f32.mxu0 %v3153
    %4133 = vmatmul.mubr.f32.gmra.mrb[0].mxu0 %v3089
    %v4134 = vpop.f32.mrb[0].mxu0
    %v4135 = vadd.f32 %v3751, %v4134
    %v4136 = vpop.f32.mrb[0].mxu0
    %4137 = vdwg.mxu0
    %4138 = vmatprep.subr.mxu0 0.0
    %4139 = vmatpush1.msra.mxu0 %v3634
    %4140 = vmatprep.subr.mxu0 0.0
    %4141 = vmatpush1.msra.mxu0 %v3635
    %4142 = vmatprep.subr.mxu0 0.0
    %4143 = vmatpush1.msra.mxu0 %v3636
    %4144 = vmatprep.subr.mxu0 0.0
    %4145 = vmatpush1.msra.mxu0 %v3637
    %4146 = vmatprep.subr.mxu0 0.0
    %4147 = vmatpush1.msra.mxu0 %v3638
    %4148 = vmatprep.subr.mxu0 0.0
    %4149 = vmatpush1.msra.mxu0 %v3639
    %4150 = vmatprep.subr.mxu0 0.0
    %4151 = vmatpush1.msra.mxu0 %v3640
    %4152 = vmatprep.subr.mxu0 0.0
    %4153 = vmatpush1.msra.mxu0 %v3641
    %4154 = vmatprep.subr.mxu0 0.0
    %4155 = vmatpush1.msra.mxu0 %v3642
    %4156 = vmatprep.subr.mxu0 0.0
    %4157 = vmatpush1.msra.mxu0 %v3643
    %4158 = vmatprep.subr.mxu0 0.0
    %4159 = vmatpush1.msra.mxu0 %v3644
    %4160 = vmatprep.subr.mxu0 0.0
    %4161 = vmatpush1.msra.mxu0 %v3645
    %4162 = vmatprep.subr.mxu0 0.0
    %4163 = vmatpush1.msra.mxu0 %v3646
    %4164 = vmatprep.subr.mxu0 0.0
    %4165 = vmatpush1.msra.mxu0 %v3647
    %4166 = vmatprep.subr.mxu0 0.0
    %4167 = vmatpush1.msra.mxu0 %v3648
    %4168 = vmatprep.subr.mxu0 0.0
    %4169 = vmatpush1.msra.mxu0 %v3649
    %4170 = vmatprep.subr.mxu0 0.0
    %4171 = vmatpush1.msra.mxu0 %v3650
    %4172 = vmatprep.subr.mxu0 0.0
    %4173 = vmatpush1.msra.mxu0 %v3651
    %4174 = vmatprep.subr.mxu0 0.0
    %4175 = vmatpush1.msra.mxu0 %v3652
    %4176 = vmatprep.subr.mxu0 0.0
    %4177 = vmatpush1.msra.mxu0 %v3653
    %4178 = vmatprep.subr.mxu0 0.0
    %4179 = vmatpush1.msra.mxu0 %v3654
    %4180 = vmatprep.subr.mxu0 0.0
    %4181 = vmatpush1.msra.mxu0 %v3655
    %4182 = vmatprep.subr.mxu0 0.0
    %4183 = vmatpush1.msra.mxu0 %v3656
    %4184 = vmatprep.subr.mxu0 0.0
    %4185 = vmatpush1.msra.mxu0 %v3657
    %4186 = vmatprep.subr.mxu0 0.0
    %4187 = vmatpush1.msra.mxu0 %v3658
    %4188 = vmatprep.subr.mxu0 0.0
    %4189 = vmatpush1.msra.mxu0 %v3659
    %4190 = vmatprep.subr.mxu0 0.0
    %4191 = vmatpush1.msra.mxu0 %v3660
    %4192 = vmatprep.subr.mxu0 0.0
    %4193 = vmatpush1.msra.mxu0 %v3661
    %4194 = vmatprep.subr.mxu0 0.0
    %4195 = vmatpush1.msra.mxu0 %v3662
    %4196 = vmatprep.subr.mxu0 0.0
    %4197 = vmatpush1.msra.mxu0 %v3663
    %4198 = vmatprep.subr.mxu0 0.0
    %4199 = vmatpush1.msra.mxu0 %v3664
    %4200 = vmatprep.subr.mxu0 0.0
    %4201 = vmatpush1.msra.mxu0 %v3665
    %4202 = vmatprep.mubr.f32.mxu0 %v3218
    %4203 = vmatmul.mubr.f32.gmra.mrb[0].mxu0 %v3154
    %v4204 = vpop.f32.mrb[0].mxu0
    %v4205 = vadd.f32 %v3820, %v4204
    %v4206 = vpop.f32.mrb[0].mxu0
    %4207 = vmatprep.mubr.f32.mxu0 %v3219
    %4208 = vmatmul.mubr.f32.gmra.mrb[0].mxu0 %v3155
    %v4209 = vpop.f32.mrb[0].mxu0
    %v4210 = vadd.f32 %v3825, %v4209
    %v4211 = vpop.f32.mrb[0].mxu0
    %4212 = vmatprep.mubr.f32.mxu0 %v3220
    %4213 = vmatmul.mubr.f32.gmra.mrb[0].mxu0 %v3156
    %v4214 = vpop.f32.mrb[0].mxu0
    %v4215 = vadd.f32 %v3830, %v4214
    %v4216 = vpop.f32.mrb[0].mxu0
    %4217 = vmatprep.mubr.f32.mxu0 %v3221
    %4218 = vmatmul.mubr.f32.gmra.mrb[0].mxu0 %v3157
    %v4219 = vpop.f32.mrb[0].mxu0
    %v4220 = vadd.f32 %v3835, %v4219
    %v4221 = vpop.f32.mrb[0].mxu0
    %4222 = vmatprep.mubr.f32.mxu0 %v3222
    %4223 = vmatmul.mubr.f32.gmra.mrb[0].mxu0 %v3158
    %v4224 = vpop.f32.mrb[0].mxu0
    %v4225 = vadd.f32 %v3840, %v4224
    %v4226 = vpop.f32.mrb[0].mxu0
    %4227 = vmatprep.mubr.f32.mxu0 %v3223
    %4228 = vmatmul.mubr.f32.gmra.mrb[0].mxu0 %v3159
    %v4229 = vpop.f32.mrb[0].mxu0
    %v4230 = vadd.f32 %v3845, %v4229
    %v4231 = vpop.f32.mrb[0].mxu0
    %4232 = vmatprep.mubr.f32.mxu0 %v3224
    %4233 = vmatmul.mubr.f32.gmra.mrb[0].mxu0 %v3160
    %v4234 = vpop.f32.mrb[0].mxu0
    %v4235 = vadd.f32 %v3850, %v4234
    %v4236 = vpop.f32.mrb[0].mxu0
    %4237 = vmatprep.mubr.f32.mxu0 %v3225
    %4238 = vmatmul.mubr.f32.gmra.mrb[0].mxu0 %v3161
    %v4239 = vpop.f32.mrb[0].mxu0
    %v4240 = vadd.f32 %v3855, %v4239
    %v4241 = vpop.f32.mrb[0].mxu0
    %4242 = vmatprep.mubr.f32.mxu0 %v3226
    %4243 = vmatmul.mubr.f32.gmra.mrb[0].mxu0 %v3162
    %v4244 = vpop.f32.mrb[0].mxu0
    %v4245 = vadd.f32 %v3860, %v4244
    %v4246 = vpop.f32.mrb[0].mxu0
    %4247 = vmatprep.mubr.f32.mxu0 %v3227
    %4248 = vmatmul.mubr.f32.gmra.mrb[0].mxu0 %v3163
    %v4249 = vpop.f32.mrb[0].mxu0
    %v4250 = vadd.f32 %v3865, %v4249
    %v4251 = vpop.f32.mrb[0].mxu0
    %4252 = vmatprep.mubr.f32.mxu0 %v3228
    %4253 = vmatmul.mubr.f32.gmra.mrb[0].mxu0 %v3164
    %v4254 = vpop.f32.mrb[0].mxu0
    %v4255 = vadd.f32 %v3870, %v4254
    %v4256 = vpop.f32.mrb[0].mxu0
    %4257 = vmatprep.mubr.f32.mxu0 %v3229
    %4258 = vmatmul.mubr.f32.gmra.mrb[0].mxu0 %v3165
    %v4259 = vpop.f32.mrb[0].mxu0
    %v4260 = vadd.f32 %v3875, %v4259
    %v4261 = vpop.f32.mrb[0].mxu0
    %4262 = vmatprep.mubr.f32.mxu0 %v3230
    %4263 = vmatmul.mubr.f32.gmra.mrb[0].mxu0 %v3166
    %v4264 = vpop.f32.mrb[0].mxu0
    %v4265 = vadd.f32 %v3880, %v4264
    %v4266 = vpop.f32.mrb[0].mxu0
    %4267 = vmatprep.mubr.f32.mxu0 %v3231
    %4268 = vmatmul.mubr.f32.gmra.mrb[0].mxu0 %v3167
    %v4269 = vpop.f32.mrb[0].mxu0
    %v4270 = vadd.f32 %v3885, %v4269
    %v4271 = vpop.f32.mrb[0].mxu0
    %4272 = vmatprep.mubr.f32.mxu0 %v3232
    %4273 = vmatmul.mubr.f32.gmra.mrb[0].mxu0 %v3168
    %v4274 = vpop.f32.mrb[0].mxu0
    %v4275 = vadd.f32 %v3890, %v4274
    %v4276 = vpop.f32.mrb[0].mxu0
    %4277 = vmatprep.mubr.f32.mxu0 %v3233
    %4278 = vmatmul.mubr.f32.gmra.mrb[0].mxu0 %v3169
    %v4279 = vpop.f32.mrb[0].mxu0
    %v4280 = vadd.f32 %v3895, %v4279
    %v4281 = vpop.f32.mrb[0].mxu0
    %4282 = vmatprep.mubr.f32.mxu0 %v3234
    %4283 = vmatmul.mubr.f32.gmra.mrb[0].mxu0 %v3170
    %v4284 = vpop.f32.mrb[0].mxu0
    %v4285 = vadd.f32 %v3900, %v4284
    %v4286 = vpop.f32.mrb[0].mxu0
    %4287 = vmatprep.mubr.f32.mxu0 %v3235
    %4288 = vmatmul.mubr.f32.gmra.mrb[0].mxu0 %v3171
    %v4289 = vpop.f32.mrb[0].mxu0
    %v4290 = vadd.f32 %v3905, %v4289
    %v4291 = vpop.f32.mrb[0].mxu0
    %4292 = vmatprep.mubr.f32.mxu0 %v3236
    %4293 = vmatmul.mubr.f32.gmra.mrb[0].mxu0 %v3172
    %v4294 = vpop.f32.mrb[0].mxu0
    %v4295 = vadd.f32 %v3910, %v4294
    %v4296 = vpop.f32.mrb[0].mxu0
    %4297 = vmatprep.mubr.f32.mxu0 %v3237
    %4298 = vmatmul.mubr.f32.gmra.mrb[0].mxu0 %v3173
    %v4299 = vpop.f32.mrb[0].mxu0
    %v4300 = vadd.f32 %v3915, %v4299
    %v4301 = vpop.f32.mrb[0].mxu0
    %4302 = vmatprep.mubr.f32.mxu0 %v3238
    %4303 = vmatmul.mubr.f32.gmra.mrb[0].mxu0 %v3174
    %v4304 = vpop.f32.mrb[0].mxu0
    %v4305 = vadd.f32 %v3920, %v4304
    %v4306 = vpop.f32.mrb[0].mxu0
    %4307 = vmatprep.mubr.f32.mxu0 %v3239
    %4308 = vmatmul.mubr.f32.gmra.mrb[0].mxu0 %v3175
    %v4309 = vpop.f32.mrb[0].mxu0
    %v4310 = vadd.f32 %v3925, %v4309
    %v4311 = vpop.f32.mrb[0].mxu0
    %4312 = vmatprep.mubr.f32.mxu0 %v3240
    %4313 = vmatmul.mubr.f32.gmra.mrb[0].mxu0 %v3176
    %v4314 = vpop.f32.mrb[0].mxu0
    %v4315 = vadd.f32 %v3930, %v4314
    %v4316 = vpop.f32.mrb[0].mxu0
    %4317 = vmatprep.mubr.f32.mxu0 %v3241
    %4318 = vmatmul.mubr.f32.gmra.mrb[0].mxu0 %v3177
    %v4319 = vpop.f32.mrb[0].mxu0
    %v4320 = vadd.f32 %v3935, %v4319
    %v4321 = vpop.f32.mrb[0].mxu0
    %4322 = vmatprep.mubr.f32.mxu0 %v3242
    %4323 = vmatmul.mubr.f32.gmra.mrb[0].mxu0 %v3178
    %v4324 = vpop.f32.mrb[0].mxu0
    %v4325 = vadd.f32 %v3940, %v4324
    %v4326 = vpop.f32.mrb[0].mxu0
    %4327 = vmatprep.mubr.f32.mxu0 %v3243
    %4328 = vmatmul.mubr.f32.gmra.mrb[0].mxu0 %v3179
    %v4329 = vpop.f32.mrb[0].mxu0
    %v4330 = vadd.f32 %v3945, %v4329
    %v4331 = vpop.f32.mrb[0].mxu0
    %4332 = vmatprep.mubr.f32.mxu0 %v3244
    %4333 = vmatmul.mubr.f32.gmra.mrb[0].mxu0 %v3180
    %v4334 = vpop.f32.mrb[0].mxu0
    %v4335 = vadd.f32 %v3950, %v4334
    %v4336 = vpop.f32.mrb[0].mxu0
    %4337 = vmatprep.mubr.f32.mxu0 %v3245
    %4338 = vmatmul.mubr.f32.gmra.mrb[0].mxu0 %v3181
    %v4339 = vpop.f32.mrb[0].mxu0
    %v4340 = vadd.f32 %v3955, %v4339
    %v4341 = vpop.f32.mrb[0].mxu0
    %4342 = vmatprep.mubr.f32.mxu0 %v3246
    %4343 = vmatmul.mubr.f32.gmra.mrb[0].mxu0 %v3182
    %v4344 = vpop.f32.mrb[0].mxu0
    %v4345 = vadd.f32 %v3960, %v4344
    %v4346 = vpop.f32.mrb[0].mxu0
    %4347 = vmatprep.mubr.f32.mxu0 %v3247
    %4348 = vmatmul.mubr.f32.gmra.mrb[0].mxu0 %v3183
    %v4349 = vpop.f32.mrb[0].mxu0
    %v4350 = vadd.f32 %v3965, %v4349
    %v4351 = vpop.f32.mrb[0].mxu0
    %4352 = vmatprep.mubr.f32.mxu0 %v3248
    %4353 = vmatmul.mubr.f32.gmra.mrb[0].mxu0 %v3184
    %v4354 = vpop.f32.mrb[0].mxu0
    %v4355 = vadd.f32 %v3970, %v4354
    %v4356 = vpop.f32.mrb[0].mxu0
    %4357 = vmatprep.mubr.f32.mxu0 %v3249
    %4358 = vmatmul.mubr.f32.gmra.mrb[0].mxu0 %v3185
    %v4359 = vpop.f32.mrb[0].mxu0
    %v4360 = vadd.f32 %v3975, %v4359
    %v4361 = vpop.f32.mrb[0].mxu0
    %4362 = vmatprep.mubr.f32.mxu0 %v3250
    %4363 = vmatmul.mubr.f32.gmra.mrb[0].mxu0 %v3186
    %v4364 = vpop.f32.mrb[0].mxu0
    %v4365 = vadd.f32 %v3980, %v4364
    %v4366 = vpop.f32.mrb[0].mxu0
    %4367 = vmatprep.mubr.f32.mxu0 %v3251
    %4368 = vmatmul.mubr.f32.gmra.mrb[0].mxu0 %v3187
    %v4369 = vpop.f32.mrb[0].mxu0
    %v4370 = vadd.f32 %v3985, %v4369
    %v4371 = vpop.f32.mrb[0].mxu0
    %4372 = vmatprep.mubr.f32.mxu0 %v3252
    %4373 = vmatmul.mubr.f32.gmra.mrb[0].mxu0 %v3188
    %v4374 = vpop.f32.mrb[0].mxu0
    %v4375 = vadd.f32 %v3990, %v4374
    %v4376 = vpop.f32.mrb[0].mxu0
    %4377 = vmatprep.mubr.f32.mxu0 %v3253
    %4378 = vmatmul.mubr.f32.gmra.mrb[0].mxu0 %v3189
    %v4379 = vpop.f32.mrb[0].mxu0
    %v4380 = vadd.f32 %v3995, %v4379
    %v4381 = vpop.f32.mrb[0].mxu0
    %4382 = vmatprep.mubr.f32.mxu0 %v3254
    %4383 = vmatmul.mubr.f32.gmra.mrb[0].mxu0 %v3190
    %v4384 = vpop.f32.mrb[0].mxu0
    %v4385 = vadd.f32 %v4000, %v4384
    %v4386 = vpop.f32.mrb[0].mxu0
    %4387 = vmatprep.mubr.f32.mxu0 %v3255
    %4388 = vmatmul.mubr.f32.gmra.mrb[0].mxu0 %v3191
    %v4389 = vpop.f32.mrb[0].mxu0
    %v4390 = vadd.f32 %v4005, %v4389
    %v4391 = vpop.f32.mrb[0].mxu0
    %4392 = vmatprep.mubr.f32.mxu0 %v3256
    %4393 = vmatmul.mubr.f32.gmra.mrb[0].mxu0 %v3192
    %v4394 = vpop.f32.mrb[0].mxu0
    %v4395 = vadd.f32 %v4010, %v4394
    %v4396 = vpop.f32.mrb[0].mxu0
    %4397 = vmatprep.mubr.f32.mxu0 %v3257
    %4398 = vmatmul.mubr.f32.gmra.mrb[0].mxu0 %v3193
    %v4399 = vpop.f32.mrb[0].mxu0
    %v4400 = vadd.f32 %v4015, %v4399
    %v4401 = vpop.f32.mrb[0].mxu0
    %4402 = vmatprep.mubr.f32.mxu0 %v3258
    %4403 = vmatmul.mubr.f32.gmra.mrb[0].mxu0 %v3194
    %v4404 = vpop.f32.mrb[0].mxu0
    %v4405 = vadd.f32 %v4020, %v4404
    %v4406 = vpop.f32.mrb[0].mxu0
    %4407 = vmatprep.mubr.f32.mxu0 %v3259
    %4408 = vmatmul.mubr.f32.gmra.mrb[0].mxu0 %v3195
    %v4409 = vpop.f32.mrb[0].mxu0
    %v4410 = vadd.f32 %v4025, %v4409
    %v4411 = vpop.f32.mrb[0].mxu0
    %4412 = vmatprep.mubr.f32.mxu0 %v3260
    %4413 = vmatmul.mubr.f32.gmra.mrb[0].mxu0 %v3196
    %v4414 = vpop.f32.mrb[0].mxu0
    %v4415 = vadd.f32 %v4030, %v4414
    %v4416 = vpop.f32.mrb[0].mxu0
    %4417 = vmatprep.mubr.f32.mxu0 %v3261
    %4418 = vmatmul.mubr.f32.gmra.mrb[0].mxu0 %v3197
    %v4419 = vpop.f32.mrb[0].mxu0
    %v4420 = vadd.f32 %v4035, %v4419
    %v4421 = vpop.f32.mrb[0].mxu0
    %4422 = vmatprep.mubr.f32.mxu0 %v3262
    %4423 = vmatmul.mubr.f32.gmra.mrb[0].mxu0 %v3198
    %v4424 = vpop.f32.mrb[0].mxu0
    %v4425 = vadd.f32 %v4040, %v4424
    %v4426 = vpop.f32.mrb[0].mxu0
    %4427 = vmatprep.mubr.f32.mxu0 %v3263
    %4428 = vmatmul.mubr.f32.gmra.mrb[0].mxu0 %v3199
    %v4429 = vpop.f32.mrb[0].mxu0
    %v4430 = vadd.f32 %v4045, %v4429
    %v4431 = vpop.f32.mrb[0].mxu0
    %4432 = vmatprep.mubr.f32.mxu0 %v3264
    %4433 = vmatmul.mubr.f32.gmra.mrb[0].mxu0 %v3200
    %v4434 = vpop.f32.mrb[0].mxu0
    %v4435 = vadd.f32 %v4050, %v4434
    %v4436 = vpop.f32.mrb[0].mxu0
    %4437 = vmatprep.mubr.f32.mxu0 %v3265
    %4438 = vmatmul.mubr.f32.gmra.mrb[0].mxu0 %v3201
    %v4439 = vpop.f32.mrb[0].mxu0
    %v4440 = vadd.f32 %v4055, %v4439
    %v4441 = vpop.f32.mrb[0].mxu0
    %4442 = vmatprep.mubr.f32.mxu0 %v3266
    %4443 = vmatmul.mubr.f32.gmra.mrb[0].mxu0 %v3202
    %v4444 = vpop.f32.mrb[0].mxu0
    %v4445 = vadd.f32 %v4060, %v4444
    %v4446 = vpop.f32.mrb[0].mxu0
    %4447 = vmatprep.mubr.f32.mxu0 %v3267
    %4448 = vmatmul.mubr.f32.gmra.mrb[0].mxu0 %v3203
    %v4449 = vpop.f32.mrb[0].mxu0
    %v4450 = vadd.f32 %v4065, %v4449
    %v4451 = vpop.f32.mrb[0].mxu0
    %4452 = vmatprep.mubr.f32.mxu0 %v3268
    %4453 = vmatmul.mubr.f32.gmra.mrb[0].mxu0 %v3204
    %v4454 = vpop.f32.mrb[0].mxu0
    %v4455 = vadd.f32 %v4070, %v4454
    %v4456 = vpop.f32.mrb[0].mxu0
    %4457 = vmatprep.mubr.f32.mxu0 %v3269
    %4458 = vmatmul.mubr.f32.gmra.mrb[0].mxu0 %v3205
    %v4459 = vpop.f32.mrb[0].mxu0
    %v4460 = vadd.f32 %v4075, %v4459
    %v4461 = vpop.f32.mrb[0].mxu0
    %4462 = vmatprep.mubr.f32.mxu0 %v3270
    %4463 = vmatmul.mubr.f32.gmra.mrb[0].mxu0 %v3206
    %v4464 = vpop.f32.mrb[0].mxu0
    %v4465 = vadd.f32 %v4080, %v4464
    %v4466 = vpop.f32.mrb[0].mxu0
    %4467 = vmatprep.mubr.f32.mxu0 %v3271
    %4468 = vmatmul.mubr.f32.gmra.mrb[0].mxu0 %v3207
    %v4469 = vpop.f32.mrb[0].mxu0
    %v4470 = vadd.f32 %v4085, %v4469
    %v4471 = vpop.f32.mrb[0].mxu0
    %4472 = vmatprep.mubr.f32.mxu0 %v3272
    %4473 = vmatmul.mubr.f32.gmra.mrb[0].mxu0 %v3208
    %v4474 = vpop.f32.mrb[0].mxu0
    %v4475 = vadd.f32 %v4090, %v4474
    %v4476 = vpop.f32.mrb[0].mxu0
    %4477 = vmatprep.mubr.f32.mxu0 %v3273
    %4478 = vmatmul.mubr.f32.gmra.mrb[0].mxu0 %v3209
    %v4479 = vpop.f32.mrb[0].mxu0
    %v4480 = vadd.f32 %v4095, %v4479
    %v4481 = vpop.f32.mrb[0].mxu0
    %4482 = vmatprep.mubr.f32.mxu0 %v3274
    %4483 = vmatmul.mubr.f32.gmra.mrb[0].mxu0 %v3210
    %v4484 = vpop.f32.mrb[0].mxu0
    %v4485 = vadd.f32 %v4100, %v4484
    %v4486 = vpop.f32.mrb[0].mxu0
    %4487 = vmatprep.mubr.f32.mxu0 %v3275
    %4488 = vmatmul.mubr.f32.gmra.mrb[0].mxu0 %v3211
    %v4489 = vpop.f32.mrb[0].mxu0
    %v4490 = vadd.f32 %v4105, %v4489
    %v4491 = vpop.f32.mrb[0].mxu0
    %4492 = vmatprep.mubr.f32.mxu0 %v3276
    %4493 = vmatmul.mubr.f32.gmra.mrb[0].mxu0 %v3212
    %v4494 = vpop.f32.mrb[0].mxu0
    %v4495 = vadd.f32 %v4110, %v4494
    %v4496 = vpop.f32.mrb[0].mxu0
    %4497 = vmatprep.mubr.f32.mxu0 %v3277
    %4498 = vmatmul.mubr.f32.gmra.mrb[0].mxu0 %v3213
    %v4499 = vpop.f32.mrb[0].mxu0
    %v4500 = vadd.f32 %v4115, %v4499
    %v4501 = vpop.f32.mrb[0].mxu0
    %4502 = vmatprep.mubr.f32.mxu0 %v3278
    %4503 = vmatmul.mubr.f32.gmra.mrb[0].mxu0 %v3214
    %v4504 = vpop.f32.mrb[0].mxu0
    %v4505 = vadd.f32 %v4120, %v4504
    %v4506 = vpop.f32.mrb[0].mxu0
    %4507 = vmatprep.mubr.f32.mxu0 %v3279
    %4508 = vmatmul.mubr.f32.gmra.mrb[0].mxu0 %v3215
    %v4509 = vpop.f32.mrb[0].mxu0
    %v4510 = vadd.f32 %v4125, %v4509
    %v4511 = vpop.f32.mrb[0].mxu0
    %4512 = vmatprep.mubr.f32.mxu0 %v3280
    %4513 = vmatmul.mubr.f32.gmra.mrb[0].mxu0 %v3216
    %v4514 = vpop.f32.mrb[0].mxu0
    %v4515 = vadd.f32 %v4130, %v4514
    %v4516 = vpop.f32.mrb[0].mxu0
    %4517 = vmatprep.mubr.f32.mxu0 %v3281
    %4518 = vmatmul.mubr.f32.gmra.mrb[0].mxu0 %v3217
    %v4519 = vpop.f32.mrb[0].mxu0
    %v4520 = vadd.f32 %v4135, %v4519
    %v4521 = vpop.f32.mrb[0].mxu0
    %4522 = vdwg.mxu0
    %4523 = vmatprep.subr.mxu0 0.0
    %4524 = vmatpush1.msra.mxu0 %v3666
    %4525 = vmatprep.subr.mxu0 0.0
    %4526 = vmatpush1.msra.mxu0 %v3667
    %4527 = vmatprep.subr.mxu0 0.0
    %4528 = vmatpush1.msra.mxu0 %v3668
    %4529 = vmatprep.subr.mxu0 0.0
    %4530 = vmatpush1.msra.mxu0 %v3669
    %4531 = vmatprep.subr.mxu0 0.0
    %4532 = vmatpush1.msra.mxu0 %v3670
    %4533 = vmatprep.subr.mxu0 0.0
    %4534 = vmatpush1.msra.mxu0 %v3671
    %4535 = vmatprep.subr.mxu0 0.0
    %4536 = vmatpush1.msra.mxu0 %v3672
    %4537 = vmatprep.subr.mxu0 0.0
    %4538 = vmatpush1.msra.mxu0 %v3673
    %4539 = vmatprep.subr.mxu0 0.0
    %4540 = vmatpush1.msra.mxu0 %v3674
    %4541 = vmatprep.subr.mxu0 0.0
    %4542 = vmatpush1.msra.mxu0 %v3675
    %4543 = vmatprep.subr.mxu0 0.0
    %4544 = vmatpush1.msra.mxu0 %v3676
    %4545 = vmatprep.subr.mxu0 0.0
    %4546 = vmatpush1.msra.mxu0 %v3677
    %4547 = vmatprep.subr.mxu0 0.0
    %4548 = vmatpush1.msra.mxu0 %v3678
    %4549 = vmatprep.subr.mxu0 0.0
    %4550 = vmatpush1.msra.mxu0 %v3679
    %4551 = vmatprep.subr.mxu0 0.0
    %4552 = vmatpush1.msra.mxu0 %v3680
    %4553 = vmatprep.subr.mxu0 0.0
    %4554 = vmatpush1.msra.mxu0 %v3681
    %4555 = vmatprep.subr.mxu0 0.0
    %4556 = vmatpush1.msra.mxu0 %v3682
    %4557 = vmatprep.subr.mxu0 0.0
    %4558 = vmatpush1.msra.mxu0 %v3683
    %4559 = vmatprep.subr.mxu0 0.0
    %4560 = vmatpush1.msra.mxu0 %v3684
    %4561 = vmatprep.subr.mxu0 0.0
    %4562 = vmatpush1.msra.mxu0 %v3685
    %4563 = vmatprep.subr.mxu0 0.0
    %4564 = vmatpush1.msra.mxu0 %v3686
    %4565 = vmatprep.subr.mxu0 0.0
    %4566 = vmatpush1.msra.mxu0 %v3687
    %4567 = vmatprep.subr.mxu0 0.0
    %4568 = vmatpush1.msra.mxu0 %v3688
    %4569 = vmatprep.subr.mxu0 0.0
    %4570 = vmatpush1.msra.mxu0 %v3689
    %4571 = vmatprep.subr.mxu0 0.0
    %4572 = vmatpush1.msra.mxu0 %v3690
    %4573 = vmatprep.subr.mxu0 0.0
    %4574 = vmatpush1.msra.mxu0 %v3691
    %4575 = vmatprep.subr.mxu0 0.0
    %4576 = vmatpush1.msra.mxu0 %v3692
    %4577 = vmatprep.subr.mxu0 0.0
    %4578 = vmatpush1.msra.mxu0 %v3693
    %4579 = vmatprep.subr.mxu0 0.0
    %4580 = vmatpush1.msra.mxu0 %v3694
    %4581 = vmatprep.subr.mxu0 0.0
    %4582 = vmatpush1.msra.mxu0 %v3695
    %4583 = vmatprep.subr.mxu0 0.0
    %4584 = vmatpush1.msra.mxu0 %v3696
    %4585 = vmatprep.subr.mxu0 0.0
    %4586 = vmatpush1.msra.mxu0 %v3697
    %4587 = vmatprep.mubr.f32.mxu0 %v3346
    %4588 = vmatmul.mubr.f32.gmra.mrb[0].mxu0 %v3282
    %v4589 = vpop.f32.mrb[0].mxu0
    %v4590 = vadd.f32 %v4205, %v4589
    %v4591 = vpop.f32.mrb[0].mxu0
    %4592 = vmatprep.mubr.f32.mxu0 %v3347
    %4593 = vmatmul.mubr.f32.gmra.mrb[0].mxu0 %v3283
    %v4594 = vpop.f32.mrb[0].mxu0
    %v4595 = vadd.f32 %v4210, %v4594
    %v4596 = vpop.f32.mrb[0].mxu0
    %4597 = vmatprep.mubr.f32.mxu0 %v3348
    %4598 = vmatmul.mubr.f32.gmra.mrb[0].mxu0 %v3284
    %v4599 = vpop.f32.mrb[0].mxu0
    %v4600 = vadd.f32 %v4215, %v4599
    %v4601 = vpop.f32.mrb[0].mxu0
    %4602 = vmatprep.mubr.f32.mxu0 %v3349
    %4603 = vmatmul.mubr.f32.gmra.mrb[0].mxu0 %v3285
    %v4604 = vpop.f32.mrb[0].mxu0
    %v4605 = vadd.f32 %v4220, %v4604
    %v4606 = vpop.f32.mrb[0].mxu0
    %4607 = vmatprep.mubr.f32.mxu0 %v3350
    %4608 = vmatmul.mubr.f32.gmra.mrb[0].mxu0 %v3286
    %v4609 = vpop.f32.mrb[0].mxu0
    %v4610 = vadd.f32 %v4225, %v4609
    %v4611 = vpop.f32.mrb[0].mxu0
    %4612 = vmatprep.mubr.f32.mxu0 %v3351
    %4613 = vmatmul.mubr.f32.gmra.mrb[0].mxu0 %v3287
    %v4614 = vpop.f32.mrb[0].mxu0
    %v4615 = vadd.f32 %v4230, %v4614
    %v4616 = vpop.f32.mrb[0].mxu0
    %4617 = vmatprep.mubr.f32.mxu0 %v3352
    %4618 = vmatmul.mubr.f32.gmra.mrb[0].mxu0 %v3288
    %v4619 = vpop.f32.mrb[0].mxu0
    %v4620 = vadd.f32 %v4235, %v4619
    %v4621 = vpop.f32.mrb[0].mxu0
    %4622 = vmatprep.mubr.f32.mxu0 %v3353
    %4623 = vmatmul.mubr.f32.gmra.mrb[0].mxu0 %v3289
    %v4624 = vpop.f32.mrb[0].mxu0
    %v4625 = vadd.f32 %v4240, %v4624
    %v4626 = vpop.f32.mrb[0].mxu0
    %4627 = vmatprep.mubr.f32.mxu0 %v3354
    %4628 = vmatmul.mubr.f32.gmra.mrb[0].mxu0 %v3290
    %v4629 = vpop.f32.mrb[0].mxu0
    %v4630 = vadd.f32 %v4245, %v4629
    %v4631 = vpop.f32.mrb[0].mxu0
    %4632 = vmatprep.mubr.f32.mxu0 %v3355
    %4633 = vmatmul.mubr.f32.gmra.mrb[0].mxu0 %v3291
    %v4634 = vpop.f32.mrb[0].mxu0
    %v4635 = vadd.f32 %v4250, %v4634
    %v4636 = vpop.f32.mrb[0].mxu0
    %4637 = vmatprep.mubr.f32.mxu0 %v3356
    %4638 = vmatmul.mubr.f32.gmra.mrb[0].mxu0 %v3292
    %v4639 = vpop.f32.mrb[0].mxu0
    %v4640 = vadd.f32 %v4255, %v4639
    %v4641 = vpop.f32.mrb[0].mxu0
    %4642 = vmatprep.mubr.f32.mxu0 %v3357
    %4643 = vmatmul.mubr.f32.gmra.mrb[0].mxu0 %v3293
    %v4644 = vpop.f32.mrb[0].mxu0
    %v4645 = vadd.f32 %v4260, %v4644
    %v4646 = vpop.f32.mrb[0].mxu0
    %4647 = vmatprep.mubr.f32.mxu0 %v3358
    %4648 = vmatmul.mubr.f32.gmra.mrb[0].mxu0 %v3294
    %v4649 = vpop.f32.mrb[0].mxu0
    %v4650 = vadd.f32 %v4265, %v4649
    %v4651 = vpop.f32.mrb[0].mxu0
    %4652 = vmatprep.mubr.f32.mxu0 %v3359
    %4653 = vmatmul.mubr.f32.gmra.mrb[0].mxu0 %v3295
    %v4654 = vpop.f32.mrb[0].mxu0
    %v4655 = vadd.f32 %v4270, %v4654
    %v4656 = vpop.f32.mrb[0].mxu0
    %4657 = vmatprep.mubr.f32.mxu0 %v3360
    %4658 = vmatmul.mubr.f32.gmra.mrb[0].mxu0 %v3296
    %v4659 = vpop.f32.mrb[0].mxu0
    %v4660 = vadd.f32 %v4275, %v4659
    %v4661 = vpop.f32.mrb[0].mxu0
    %4662 = vmatprep.mubr.f32.mxu0 %v3361
    %4663 = vmatmul.mubr.f32.gmra.mrb[0].mxu0 %v3297
    %v4664 = vpop.f32.mrb[0].mxu0
    %v4665 = vadd.f32 %v4280, %v4664
    %v4666 = vpop.f32.mrb[0].mxu0
    %4667 = vmatprep.mubr.f32.mxu0 %v3362
    %4668 = vmatmul.mubr.f32.gmra.mrb[0].mxu0 %v3298
    %v4669 = vpop.f32.mrb[0].mxu0
    %v4670 = vadd.f32 %v4285, %v4669
    %v4671 = vpop.f32.mrb[0].mxu0
    %4672 = vmatprep.mubr.f32.mxu0 %v3363
    %4673 = vmatmul.mubr.f32.gmra.mrb[0].mxu0 %v3299
    %v4674 = vpop.f32.mrb[0].mxu0
    %v4675 = vadd.f32 %v4290, %v4674
    %v4676 = vpop.f32.mrb[0].mxu0
    %4677 = vmatprep.mubr.f32.mxu0 %v3364
    %4678 = vmatmul.mubr.f32.gmra.mrb[0].mxu0 %v3300
    %v4679 = vpop.f32.mrb[0].mxu0
    %v4680 = vadd.f32 %v4295, %v4679
    %v4681 = vpop.f32.mrb[0].mxu0
    %4682 = vmatprep.mubr.f32.mxu0 %v3365
    %4683 = vmatmul.mubr.f32.gmra.mrb[0].mxu0 %v3301
    %v4684 = vpop.f32.mrb[0].mxu0
    %v4685 = vadd.f32 %v4300, %v4684
    %v4686 = vpop.f32.mrb[0].mxu0
    %4687 = vmatprep.mubr.f32.mxu0 %v3366
    %4688 = vmatmul.mubr.f32.gmra.mrb[0].mxu0 %v3302
    %v4689 = vpop.f32.mrb[0].mxu0
    %v4690 = vadd.f32 %v4305, %v4689
    %v4691 = vpop.f32.mrb[0].mxu0
    %4692 = vmatprep.mubr.f32.mxu0 %v3367
    %4693 = vmatmul.mubr.f32.gmra.mrb[0].mxu0 %v3303
    %v4694 = vpop.f32.mrb[0].mxu0
    %v4695 = vadd.f32 %v4310, %v4694
    %v4696 = vpop.f32.mrb[0].mxu0
    %4697 = vmatprep.mubr.f32.mxu0 %v3368
    %4698 = vmatmul.mubr.f32.gmra.mrb[0].mxu0 %v3304
    %v4699 = vpop.f32.mrb[0].mxu0
    %v4700 = vadd.f32 %v4315, %v4699
    %v4701 = vpop.f32.mrb[0].mxu0
    %4702 = vmatprep.mubr.f32.mxu0 %v3369
    %4703 = vmatmul.mubr.f32.gmra.mrb[0].mxu0 %v3305
    %v4704 = vpop.f32.mrb[0].mxu0
    %v4705 = vadd.f32 %v4320, %v4704
    %v4706 = vpop.f32.mrb[0].mxu0
    %4707 = vmatprep.mubr.f32.mxu0 %v3370
    %4708 = vmatmul.mubr.f32.gmra.mrb[0].mxu0 %v3306
    %v4709 = vpop.f32.mrb[0].mxu0
    %v4710 = vadd.f32 %v4325, %v4709
    %v4711 = vpop.f32.mrb[0].mxu0
    %4712 = vmatprep.mubr.f32.mxu0 %v3371
    %4713 = vmatmul.mubr.f32.gmra.mrb[0].mxu0 %v3307
    %v4714 = vpop.f32.mrb[0].mxu0
    %v4715 = vadd.f32 %v4330, %v4714
    %v4716 = vpop.f32.mrb[0].mxu0
    %4717 = vmatprep.mubr.f32.mxu0 %v3372
    %4718 = vmatmul.mubr.f32.gmra.mrb[0].mxu0 %v3308
    %v4719 = vpop.f32.mrb[0].mxu0
    %v4720 = vadd.f32 %v4335, %v4719
    %v4721 = vpop.f32.mrb[0].mxu0
    %4722 = vmatprep.mubr.f32.mxu0 %v3373
    %4723 = vmatmul.mubr.f32.gmra.mrb[0].mxu0 %v3309
    %v4724 = vpop.f32.mrb[0].mxu0
    %v4725 = vadd.f32 %v4340, %v4724
    %v4726 = vpop.f32.mrb[0].mxu0
    %4727 = vmatprep.mubr.f32.mxu0 %v3374
    %4728 = vmatmul.mubr.f32.gmra.mrb[0].mxu0 %v3310
    %v4729 = vpop.f32.mrb[0].mxu0
    %v4730 = vadd.f32 %v4345, %v4729
    %v4731 = vpop.f32.mrb[0].mxu0
    %4732 = vmatprep.mubr.f32.mxu0 %v3375
    %4733 = vmatmul.mubr.f32.gmra.mrb[0].mxu0 %v3311
    %v4734 = vpop.f32.mrb[0].mxu0
    %v4735 = vadd.f32 %v4350, %v4734
    %v4736 = vpop.f32.mrb[0].mxu0
    %4737 = vmatprep.mubr.f32.mxu0 %v3376
    %4738 = vmatmul.mubr.f32.gmra.mrb[0].mxu0 %v3312
    %v4739 = vpop.f32.mrb[0].mxu0
    %v4740 = vadd.f32 %v4355, %v4739
    %v4741 = vpop.f32.mrb[0].mxu0
    %4742 = vmatprep.mubr.f32.mxu0 %v3377
    %4743 = vmatmul.mubr.f32.gmra.mrb[0].mxu0 %v3313
    %v4744 = vpop.f32.mrb[0].mxu0
    %v4745 = vadd.f32 %v4360, %v4744
    %v4746 = vpop.f32.mrb[0].mxu0
    %4747 = vmatprep.mubr.f32.mxu0 %v3378
    %4748 = vmatmul.mubr.f32.gmra.mrb[0].mxu0 %v3314
    %v4749 = vpop.f32.mrb[0].mxu0
    %v4750 = vadd.f32 %v4365, %v4749
    %v4751 = vpop.f32.mrb[0].mxu0
    %4752 = vmatprep.mubr.f32.mxu0 %v3379
    %4753 = vmatmul.mubr.f32.gmra.mrb[0].mxu0 %v3315
    %v4754 = vpop.f32.mrb[0].mxu0
    %v4755 = vadd.f32 %v4370, %v4754
    %v4756 = vpop.f32.mrb[0].mxu0
    %4757 = vmatprep.mubr.f32.mxu0 %v3380
    %4758 = vmatmul.mubr.f32.gmra.mrb[0].mxu0 %v3316
    %v4759 = vpop.f32.mrb[0].mxu0
    %v4760 = vadd.f32 %v4375, %v4759
    %v4761 = vpop.f32.mrb[0].mxu0
    %4762 = vmatprep.mubr.f32.mxu0 %v3381
    %4763 = vmatmul.mubr.f32.gmra.mrb[0].mxu0 %v3317
    %v4764 = vpop.f32.mrb[0].mxu0
    %v4765 = vadd.f32 %v4380, %v4764
    %v4766 = vpop.f32.mrb[0].mxu0
    %4767 = vmatprep.mubr.f32.mxu0 %v3382
    %4768 = vmatmul.mubr.f32.gmra.mrb[0].mxu0 %v3318
    %v4769 = vpop.f32.mrb[0].mxu0
    %v4770 = vadd.f32 %v4385, %v4769
    %v4771 = vpop.f32.mrb[0].mxu0
    %4772 = vmatprep.mubr.f32.mxu0 %v3383
    %4773 = vmatmul.mubr.f32.gmra.mrb[0].mxu0 %v3319
    %v4774 = vpop.f32.mrb[0].mxu0
    %v4775 = vadd.f32 %v4390, %v4774
    %v4776 = vpop.f32.mrb[0].mxu0
    %4777 = vmatprep.mubr.f32.mxu0 %v3384
    %4778 = vmatmul.mubr.f32.gmra.mrb[0].mxu0 %v3320
    %v4779 = vpop.f32.mrb[0].mxu0
    %v4780 = vadd.f32 %v4395, %v4779
    %v4781 = vpop.f32.mrb[0].mxu0
    %4782 = vmatprep.mubr.f32.mxu0 %v3385
    %4783 = vmatmul.mubr.f32.gmra.mrb[0].mxu0 %v3321
    %v4784 = vpop.f32.mrb[0].mxu0
    %v4785 = vadd.f32 %v4400, %v4784
    %v4786 = vpop.f32.mrb[0].mxu0
    %4787 = vmatprep.mubr.f32.mxu0 %v3386
    %4788 = vmatmul.mubr.f32.gmra.mrb[0].mxu0 %v3322
    %v4789 = vpop.f32.mrb[0].mxu0
    %v4790 = vadd.f32 %v4405, %v4789
    %v4791 = vpop.f32.mrb[0].mxu0
    %4792 = vmatprep.mubr.f32.mxu0 %v3387
    %4793 = vmatmul.mubr.f32.gmra.mrb[0].mxu0 %v3323
    %v4794 = vpop.f32.mrb[0].mxu0
    %v4795 = vadd.f32 %v4410, %v4794
    %v4796 = vpop.f32.mrb[0].mxu0
    %4797 = vmatprep.mubr.f32.mxu0 %v3388
    %4798 = vmatmul.mubr.f32.gmra.mrb[0].mxu0 %v3324
    %v4799 = vpop.f32.mrb[0].mxu0
    %v4800 = vadd.f32 %v4415, %v4799
    %v4801 = vpop.f32.mrb[0].mxu0
    %4802 = vmatprep.mubr.f32.mxu0 %v3389
    %4803 = vmatmul.mubr.f32.gmra.mrb[0].mxu0 %v3325
    %v4804 = vpop.f32.mrb[0].mxu0
    %v4805 = vadd.f32 %v4420, %v4804
    %v4806 = vpop.f32.mrb[0].mxu0
    %4807 = vmatprep.mubr.f32.mxu0 %v3390
    %4808 = vmatmul.mubr.f32.gmra.mrb[0].mxu0 %v3326
    %v4809 = vpop.f32.mrb[0].mxu0
    %v4810 = vadd.f32 %v4425, %v4809
    %v4811 = vpop.f32.mrb[0].mxu0
    %4812 = vmatprep.mubr.f32.mxu0 %v3391
    %4813 = vmatmul.mubr.f32.gmra.mrb[0].mxu0 %v3327
    %v4814 = vpop.f32.mrb[0].mxu0
    %v4815 = vadd.f32 %v4430, %v4814
    %v4816 = vpop.f32.mrb[0].mxu0
    %4817 = vmatprep.mubr.f32.mxu0 %v3392
    %4818 = vmatmul.mubr.f32.gmra.mrb[0].mxu0 %v3328
    %v4819 = vpop.f32.mrb[0].mxu0
    %v4820 = vadd.f32 %v4435, %v4819
    %v4821 = vpop.f32.mrb[0].mxu0
    %4822 = vmatprep.mubr.f32.mxu0 %v3393
    %4823 = vmatmul.mubr.f32.gmra.mrb[0].mxu0 %v3329
    %v4824 = vpop.f32.mrb[0].mxu0
    %v4825 = vadd.f32 %v4440, %v4824
    %v4826 = vpop.f32.mrb[0].mxu0
    %4827 = vmatprep.mubr.f32.mxu0 %v3394
    %4828 = vmatmul.mubr.f32.gmra.mrb[0].mxu0 %v3330
    %v4829 = vpop.f32.mrb[0].mxu0
    %v4830 = vadd.f32 %v4445, %v4829
    %v4831 = vpop.f32.mrb[0].mxu0
    %4832 = vmatprep.mubr.f32.mxu0 %v3395
    %4833 = vmatmul.mubr.f32.gmra.mrb[0].mxu0 %v3331
    %v4834 = vpop.f32.mrb[0].mxu0
    %v4835 = vadd.f32 %v4450, %v4834
    %v4836 = vpop.f32.mrb[0].mxu0
    %4837 = vmatprep.mubr.f32.mxu0 %v3396
    %4838 = vmatmul.mubr.f32.gmra.mrb[0].mxu0 %v3332
    %v4839 = vpop.f32.mrb[0].mxu0
    %v4840 = vadd.f32 %v4455, %v4839
    %v4841 = vpop.f32.mrb[0].mxu0
    %4842 = vmatprep.mubr.f32.mxu0 %v3397
    %4843 = vmatmul.mubr.f32.gmra.mrb[0].mxu0 %v3333
    %v4844 = vpop.f32.mrb[0].mxu0
    %v4845 = vadd.f32 %v4460, %v4844
    %v4846 = vpop.f32.mrb[0].mxu0
    %4847 = vmatprep.mubr.f32.mxu0 %v3398
    %4848 = vmatmul.mubr.f32.gmra.mrb[0].mxu0 %v3334
    %v4849 = vpop.f32.mrb[0].mxu0
    %v4850 = vadd.f32 %v4465, %v4849
    %v4851 = vpop.f32.mrb[0].mxu0
    %4852 = vmatprep.mubr.f32.mxu0 %v3399
    %4853 = vmatmul.mubr.f32.gmra.mrb[0].mxu0 %v3335
    %v4854 = vpop.f32.mrb[0].mxu0
    %v4855 = vadd.f32 %v4470, %v4854
    %v4856 = vpop.f32.mrb[0].mxu0
    %4857 = vmatprep.mubr.f32.mxu0 %v3400
    %4858 = vmatmul.mubr.f32.gmra.mrb[0].mxu0 %v3336
    %v4859 = vpop.f32.mrb[0].mxu0
    %v4860 = vadd.f32 %v4475, %v4859
    %v4861 = vpop.f32.mrb[0].mxu0
    %4862 = vmatprep.mubr.f32.mxu0 %v3401
    %4863 = vmatmul.mubr.f32.gmra.mrb[0].mxu0 %v3337
    %v4864 = vpop.f32.mrb[0].mxu0
    %v4865 = vadd.f32 %v4480, %v4864
    %v4866 = vpop.f32.mrb[0].mxu0
    %4867 = vmatprep.mubr.f32.mxu0 %v3402
    %4868 = vmatmul.mubr.f32.gmra.mrb[0].mxu0 %v3338
    %v4869 = vpop.f32.mrb[0].mxu0
    %v4870 = vadd.f32 %v4485, %v4869
    %v4871 = vpop.f32.mrb[0].mxu0
    %4872 = vmatprep.mubr.f32.mxu0 %v3403
    %4873 = vmatmul.mubr.f32.gmra.mrb[0].mxu0 %v3339
    %v4874 = vpop.f32.mrb[0].mxu0
    %v4875 = vadd.f32 %v4490, %v4874
    %v4876 = vpop.f32.mrb[0].mxu0
    %4877 = vmatprep.mubr.f32.mxu0 %v3404
    %4878 = vmatmul.mubr.f32.gmra.mrb[0].mxu0 %v3340
    %v4879 = vpop.f32.mrb[0].mxu0
    %v4880 = vadd.f32 %v4495, %v4879
    %v4881 = vpop.f32.mrb[0].mxu0
    %4882 = vmatprep.mubr.f32.mxu0 %v3405
    %4883 = vmatmul.mubr.f32.gmra.mrb[0].mxu0 %v3341
    %v4884 = vpop.f32.mrb[0].mxu0
    %v4885 = vadd.f32 %v4500, %v4884
    %v4886 = vpop.f32.mrb[0].mxu0
    %4887 = vmatprep.mubr.f32.mxu0 %v3406
    %4888 = vmatmul.mubr.f32.gmra.mrb[0].mxu0 %v3342
    %v4889 = vpop.f32.mrb[0].mxu0
    %v4890 = vadd.f32 %v4505, %v4889
    %v4891 = vpop.f32.mrb[0].mxu0
    %4892 = vmatprep.mubr.f32.mxu0 %v3407
    %4893 = vmatmul.mubr.f32.gmra.mrb[0].mxu0 %v3343
    %v4894 = vpop.f32.mrb[0].mxu0
    %v4895 = vadd.f32 %v4510, %v4894
    %v4896 = vpop.f32.mrb[0].mxu0
    %4897 = vmatprep.mubr.f32.mxu0 %v3408
    %4898 = vmatmul.mubr.f32.gmra.mrb[0].mxu0 %v3344
    %v4899 = vpop.f32.mrb[0].mxu0
    %v4900 = vadd.f32 %v4515, %v4899
    %v4901 = vpop.f32.mrb[0].mxu0
    %4902 = vmatprep.mubr.f32.mxu0 %v3409
    %4903 = vmatmul.mubr.f32.gmra.mrb[0].mxu0 %v3345
    %v4904 = vpop.f32.mrb[0].mxu0
    %v4905 = vadd.f32 %v4520, %v4904
    %v4906 = vpop.f32.mrb[0].mxu0
    %4907 = vdwg.mxu0
    %4908 = vmatprep.subr.mxu0 0.0
    %4909 = vmatpush1.msra.mxu0 %v3698
    %4910 = vmatprep.subr.mxu0 0.0
    %4911 = vmatpush1.msra.mxu0 %v3699
    %4912 = vmatprep.subr.mxu0 0.0
    %4913 = vmatpush1.msra.mxu0 %v3700
    %4914 = vmatprep.subr.mxu0 0.0
    %4915 = vmatpush1.msra.mxu0 %v3701
    %4916 = vmatprep.subr.mxu0 0.0
    %4917 = vmatpush1.msra.mxu0 %v3702
    %4918 = vmatprep.subr.mxu0 0.0
    %4919 = vmatpush1.msra.mxu0 %v3703
    %4920 = vmatprep.subr.mxu0 0.0
    %4921 = vmatpush1.msra.mxu0 %v3704
    %4922 = vmatprep.subr.mxu0 0.0
    %4923 = vmatpush1.msra.mxu0 %v3705
    %4924 = vmatprep.subr.mxu0 0.0
    %4925 = vmatpush1.msra.mxu0 %v3706
    %4926 = vmatprep.subr.mxu0 0.0
    %4927 = vmatpush1.msra.mxu0 %v3707
    %4928 = vmatprep.subr.mxu0 0.0
    %4929 = vmatpush1.msra.mxu0 %v3708
    %4930 = vmatprep.subr.mxu0 0.0
    %4931 = vmatpush1.msra.mxu0 %v3709
    %4932 = vmatprep.subr.mxu0 0.0
    %4933 = vmatpush1.msra.mxu0 %v3710
    %4934 = vmatprep.subr.mxu0 0.0
    %4935 = vmatpush1.msra.mxu0 %v3711
    %4936 = vmatprep.subr.mxu0 0.0
    %4937 = vmatpush1.msra.mxu0 %v3712
    %4938 = vmatprep.subr.mxu0 0.0
    %4939 = vmatpush1.msra.mxu0 %v3713
    %4940 = vmatprep.subr.mxu0 0.0
    %4941 = vmatpush1.msra.mxu0 %v3714
    %4942 = vmatprep.subr.mxu0 0.0
    %4943 = vmatpush1.msra.mxu0 %v3715
    %4944 = vmatprep.subr.mxu0 0.0
    %4945 = vmatpush1.msra.mxu0 %v3716
    %4946 = vmatprep.subr.mxu0 0.0
    %4947 = vmatpush1.msra.mxu0 %v3717
    %4948 = vmatprep.subr.mxu0 0.0
    %4949 = vmatpush1.msra.mxu0 %v3718
    %4950 = vmatprep.subr.mxu0 0.0
    %4951 = vmatpush1.msra.mxu0 %v3719
    %4952 = vmatprep.subr.mxu0 0.0
    %4953 = vmatpush1.msra.mxu0 %v3720
    %4954 = vmatprep.subr.mxu0 0.0
    %4955 = vmatpush1.msra.mxu0 %v3721
    %4956 = vmatprep.subr.mxu0 0.0
    %4957 = vmatpush1.msra.mxu0 %v3722
    %4958 = vmatprep.subr.mxu0 0.0
    %4959 = vmatpush1.msra.mxu0 %v3723
    %4960 = vmatprep.subr.mxu0 0.0
    %4961 = vmatpush1.msra.mxu0 %v3724
    %4962 = vmatprep.subr.mxu0 0.0
    %4963 = vmatpush1.msra.mxu0 %v3725
    %4964 = vmatprep.subr.mxu0 0.0
    %4965 = vmatpush1.msra.mxu0 %v3726
    %4966 = vmatprep.subr.mxu0 0.0
    %4967 = vmatpush1.msra.mxu0 %v3727
    %4968 = vmatprep.subr.mxu0 0.0
    %4969 = vmatpush1.msra.mxu0 %v3728
    %4970 = vmatprep.subr.mxu0 0.0
    %4971 = vmatpush1.msra.mxu0 %v3729
    %4972 = vmatprep.mubr.f32.mxu0 %v3474
    %4973 = vmatmul.mubr.f32.gmra.mrb[0].mxu0 %v3410
    %v4974 = vpop.f32.mrb[0].mxu0
    %v4975 = vadd.f32 %v4590, %v4974
    %v4976 = vpop.f32.mrb[0].mxu0
    %4977 = vmatprep.mubr.f32.mxu0 %v3475
    %4978 = vmatmul.mubr.f32.gmra.mrb[0].mxu0 %v3411
    %v4979 = vpop.f32.mrb[0].mxu0
    %v4980 = vadd.f32 %v4595, %v4979
    %v4981 = vpop.f32.mrb[0].mxu0
    %4982 = vmatprep.mubr.f32.mxu0 %v3476
    %4983 = vmatmul.mubr.f32.gmra.mrb[0].mxu0 %v3412
    %v4984 = vpop.f32.mrb[0].mxu0
    %v4985 = vadd.f32 %v4600, %v4984
    %v4986 = vpop.f32.mrb[0].mxu0
    %4987 = vmatprep.mubr.f32.mxu0 %v3477
    %4988 = vmatmul.mubr.f32.gmra.mrb[0].mxu0 %v3413
    %v4989 = vpop.f32.mrb[0].mxu0
    %v4990 = vadd.f32 %v4605, %v4989
    %v4991 = vpop.f32.mrb[0].mxu0
    %4992 = vmatprep.mubr.f32.mxu0 %v3478
    %4993 = vmatmul.mubr.f32.gmra.mrb[0].mxu0 %v3414
    %v4994 = vpop.f32.mrb[0].mxu0
    %v4995 = vadd.f32 %v4610, %v4994
    %v4996 = vpop.f32.mrb[0].mxu0
    %4997 = vmatprep.mubr.f32.mxu0 %v3479
    %4998 = vmatmul.mubr.f32.gmra.mrb[0].mxu0 %v3415
    %v4999 = vpop.f32.mrb[0].mxu0
    %v5000 = vadd.f32 %v4615, %v4999
    %v5001 = vpop.f32.mrb[0].mxu0
    %5002 = vmatprep.mubr.f32.mxu0 %v3480
    %5003 = vmatmul.mubr.f32.gmra.mrb[0].mxu0 %v3416
    %v5004 = vpop.f32.mrb[0].mxu0
    %v5005 = vadd.f32 %v4620, %v5004
    %v5006 = vpop.f32.mrb[0].mxu0
    %5007 = vmatprep.mubr.f32.mxu0 %v3481
    %5008 = vmatmul.mubr.f32.gmra.mrb[0].mxu0 %v3417
    %v5009 = vpop.f32.mrb[0].mxu0
    %v5010 = vadd.f32 %v4625, %v5009
    %v5011 = vpop.f32.mrb[0].mxu0
    %5012 = vmatprep.mubr.f32.mxu0 %v3482
    %5013 = vmatmul.mubr.f32.gmra.mrb[0].mxu0 %v3418
    %v5014 = vpop.f32.mrb[0].mxu0
    %v5015 = vadd.f32 %v4630, %v5014
    %v5016 = vpop.f32.mrb[0].mxu0
    %5017 = vmatprep.mubr.f32.mxu0 %v3483
    %5018 = vmatmul.mubr.f32.gmra.mrb[0].mxu0 %v3419
    %v5019 = vpop.f32.mrb[0].mxu0
    %v5020 = vadd.f32 %v4635, %v5019
    %v5021 = vpop.f32.mrb[0].mxu0
    %5022 = vmatprep.mubr.f32.mxu0 %v3484
    %5023 = vmatmul.mubr.f32.gmra.mrb[0].mxu0 %v3420
    %v5024 = vpop.f32.mrb[0].mxu0
    %v5025 = vadd.f32 %v4640, %v5024
    %v5026 = vpop.f32.mrb[0].mxu0
    %5027 = vmatprep.mubr.f32.mxu0 %v3485
    %5028 = vmatmul.mubr.f32.gmra.mrb[0].mxu0 %v3421
    %v5029 = vpop.f32.mrb[0].mxu0
    %v5030 = vadd.f32 %v4645, %v5029
    %v5031 = vpop.f32.mrb[0].mxu0
    %5032 = vmatprep.mubr.f32.mxu0 %v3486
    %5033 = vmatmul.mubr.f32.gmra.mrb[0].mxu0 %v3422
    %v5034 = vpop.f32.mrb[0].mxu0
    %v5035 = vadd.f32 %v4650, %v5034
    %v5036 = vpop.f32.mrb[0].mxu0
    %5037 = vmatprep.mubr.f32.mxu0 %v3487
    %5038 = vmatmul.mubr.f32.gmra.mrb[0].mxu0 %v3423
    %v5039 = vpop.f32.mrb[0].mxu0
    %v5040 = vadd.f32 %v4655, %v5039
    %v5041 = vpop.f32.mrb[0].mxu0
    %5042 = vmatprep.mubr.f32.mxu0 %v3488
    %5043 = vmatmul.mubr.f32.gmra.mrb[0].mxu0 %v3424
    %v5044 = vpop.f32.mrb[0].mxu0
    %v5045 = vadd.f32 %v4660, %v5044
    %v5046 = vpop.f32.mrb[0].mxu0
    %5047 = vmatprep.mubr.f32.mxu0 %v3489
    %5048 = vmatmul.mubr.f32.gmra.mrb[0].mxu0 %v3425
    %v5049 = vpop.f32.mrb[0].mxu0
    %v5050 = vadd.f32 %v4665, %v5049
    %v5051 = vpop.f32.mrb[0].mxu0
    %5052 = vmatprep.mubr.f32.mxu0 %v3490
    %5053 = vmatmul.mubr.f32.gmra.mrb[0].mxu0 %v3426
    %v5054 = vpop.f32.mrb[0].mxu0
    %v5055 = vadd.f32 %v4670, %v5054
    %v5056 = vpop.f32.mrb[0].mxu0
    %5057 = vmatprep.mubr.f32.mxu0 %v3491
    %5058 = vmatmul.mubr.f32.gmra.mrb[0].mxu0 %v3427
    %v5059 = vpop.f32.mrb[0].mxu0
    %v5060 = vadd.f32 %v4675, %v5059
    %v5061 = vpop.f32.mrb[0].mxu0
    %5062 = vmatprep.mubr.f32.mxu0 %v3492
    %5063 = vmatmul.mubr.f32.gmra.mrb[0].mxu0 %v3428
    %v5064 = vpop.f32.mrb[0].mxu0
    %v5065 = vadd.f32 %v4680, %v5064
    %v5066 = vpop.f32.mrb[0].mxu0
    %5067 = vmatprep.mubr.f32.mxu0 %v3493
    %5068 = vmatmul.mubr.f32.gmra.mrb[0].mxu0 %v3429
    %v5069 = vpop.f32.mrb[0].mxu0
    %v5070 = vadd.f32 %v4685, %v5069
    %v5071 = vpop.f32.mrb[0].mxu0
    %5072 = vmatprep.mubr.f32.mxu0 %v3494
    %5073 = vmatmul.mubr.f32.gmra.mrb[0].mxu0 %v3430
    %v5074 = vpop.f32.mrb[0].mxu0
    %v5075 = vadd.f32 %v4690, %v5074
    %v5076 = vpop.f32.mrb[0].mxu0
    %5077 = vmatprep.mubr.f32.mxu0 %v3495
    %5078 = vmatmul.mubr.f32.gmra.mrb[0].mxu0 %v3431
    %v5079 = vpop.f32.mrb[0].mxu0
    %v5080 = vadd.f32 %v4695, %v5079
    %v5081 = vpop.f32.mrb[0].mxu0
    %5082 = vmatprep.mubr.f32.mxu0 %v3496
    %5083 = vmatmul.mubr.f32.gmra.mrb[0].mxu0 %v3432
    %v5084 = vpop.f32.mrb[0].mxu0
    %v5085 = vadd.f32 %v4700, %v5084
    %v5086 = vpop.f32.mrb[0].mxu0
    %5087 = vmatprep.mubr.f32.mxu0 %v3497
    %5088 = vmatmul.mubr.f32.gmra.mrb[0].mxu0 %v3433
    %v5089 = vpop.f32.mrb[0].mxu0
    %v5090 = vadd.f32 %v4705, %v5089
    %v5091 = vpop.f32.mrb[0].mxu0
    %5092 = vmatprep.mubr.f32.mxu0 %v3498
    %5093 = vmatmul.mubr.f32.gmra.mrb[0].mxu0 %v3434
    %v5094 = vpop.f32.mrb[0].mxu0
    %v5095 = vadd.f32 %v4710, %v5094
    %v5096 = vpop.f32.mrb[0].mxu0
    %5097 = vmatprep.mubr.f32.mxu0 %v3499
    %5098 = vmatmul.mubr.f32.gmra.mrb[0].mxu0 %v3435
    %v5099 = vpop.f32.mrb[0].mxu0
    %v5100 = vadd.f32 %v4715, %v5099
    %v5101 = vpop.f32.mrb[0].mxu0
    %5102 = vmatprep.mubr.f32.mxu0 %v3500
    %5103 = vmatmul.mubr.f32.gmra.mrb[0].mxu0 %v3436
    %v5104 = vpop.f32.mrb[0].mxu0
    %v5105 = vadd.f32 %v4720, %v5104
    %v5106 = vpop.f32.mrb[0].mxu0
    %5107 = vmatprep.mubr.f32.mxu0 %v3501
    %5108 = vmatmul.mubr.f32.gmra.mrb[0].mxu0 %v3437
    %v5109 = vpop.f32.mrb[0].mxu0
    %v5110 = vadd.f32 %v4725, %v5109
    %v5111 = vpop.f32.mrb[0].mxu0
    %5112 = vmatprep.mubr.f32.mxu0 %v3502
    %5113 = vmatmul.mubr.f32.gmra.mrb[0].mxu0 %v3438
    %v5114 = vpop.f32.mrb[0].mxu0
    %v5115 = vadd.f32 %v4730, %v5114
    %v5116 = vpop.f32.mrb[0].mxu0
    %5117 = vmatprep.mubr.f32.mxu0 %v3503
    %5118 = vmatmul.mubr.f32.gmra.mrb[0].mxu0 %v3439
    %v5119 = vpop.f32.mrb[0].mxu0
    %v5120 = vadd.f32 %v4735, %v5119
    %v5121 = vpop.f32.mrb[0].mxu0
    %5122 = vmatprep.mubr.f32.mxu0 %v3504
    %5123 = vmatmul.mubr.f32.gmra.mrb[0].mxu0 %v3440
    %v5124 = vpop.f32.mrb[0].mxu0
    %v5125 = vadd.f32 %v4740, %v5124
    %v5126 = vpop.f32.mrb[0].mxu0
    %5127 = vmatprep.mubr.f32.mxu0 %v3505
    %5128 = vmatmul.mubr.f32.gmra.mrb[0].mxu0 %v3441
    %v5129 = vpop.f32.mrb[0].mxu0
    %v5130 = vadd.f32 %v4745, %v5129
    %v5131 = vpop.f32.mrb[0].mxu0
    %5132 = vmatprep.mubr.f32.mxu0 %v3506
    %5133 = vmatmul.mubr.f32.gmra.mrb[0].mxu0 %v3442
    %v5134 = vpop.f32.mrb[0].mxu0
    %v5135 = vadd.f32 %v4750, %v5134
    %v5136 = vpop.f32.mrb[0].mxu0
    %5137 = vmatprep.mubr.f32.mxu0 %v3507
    %5138 = vmatmul.mubr.f32.gmra.mrb[0].mxu0 %v3443
    %v5139 = vpop.f32.mrb[0].mxu0
    %v5140 = vadd.f32 %v4755, %v5139
    %v5141 = vpop.f32.mrb[0].mxu0
    %5142 = vmatprep.mubr.f32.mxu0 %v3508
    %5143 = vmatmul.mubr.f32.gmra.mrb[0].mxu0 %v3444
    %v5144 = vpop.f32.mrb[0].mxu0
    %v5145 = vadd.f32 %v4760, %v5144
    %v5146 = vpop.f32.mrb[0].mxu0
    %5147 = vmatprep.mubr.f32.mxu0 %v3509
    %5148 = vmatmul.mubr.f32.gmra.mrb[0].mxu0 %v3445
    %v5149 = vpop.f32.mrb[0].mxu0
    %v5150 = vadd.f32 %v4765, %v5149
    %v5151 = vpop.f32.mrb[0].mxu0
    %5152 = vmatprep.mubr.f32.mxu0 %v3510
    %5153 = vmatmul.mubr.f32.gmra.mrb[0].mxu0 %v3446
    %v5154 = vpop.f32.mrb[0].mxu0
    %v5155 = vadd.f32 %v4770, %v5154
    %v5156 = vpop.f32.mrb[0].mxu0
    %5157 = vmatprep.mubr.f32.mxu0 %v3511
    %5158 = vmatmul.mubr.f32.gmra.mrb[0].mxu0 %v3447
    %v5159 = vpop.f32.mrb[0].mxu0
    %v5160 = vadd.f32 %v4775, %v5159
    %v5161 = vpop.f32.mrb[0].mxu0
    %5162 = vmatprep.mubr.f32.mxu0 %v3512
    %5163 = vmatmul.mubr.f32.gmra.mrb[0].mxu0 %v3448
    %v5164 = vpop.f32.mrb[0].mxu0
    %v5165 = vadd.f32 %v4780, %v5164
    %v5166 = vpop.f32.mrb[0].mxu0
    %5167 = vmatprep.mubr.f32.mxu0 %v3513
    %5168 = vmatmul.mubr.f32.gmra.mrb[0].mxu0 %v3449
    %v5169 = vpop.f32.mrb[0].mxu0
    %v5170 = vadd.f32 %v4785, %v5169
    %v5171 = vpop.f32.mrb[0].mxu0
    %5172 = vmatprep.mubr.f32.mxu0 %v3514
    %5173 = vmatmul.mubr.f32.gmra.mrb[0].mxu0 %v3450
    %v5174 = vpop.f32.mrb[0].mxu0
    %v5175 = vadd.f32 %v4790, %v5174
    %v5176 = vpop.f32.mrb[0].mxu0
    %5177 = vmatprep.mubr.f32.mxu0 %v3515
    %5178 = vmatmul.mubr.f32.gmra.mrb[0].mxu0 %v3451
    %v5179 = vpop.f32.mrb[0].mxu0
    %v5180 = vadd.f32 %v4795, %v5179
    %v5181 = vpop.f32.mrb[0].mxu0
    %5182 = vmatprep.mubr.f32.mxu0 %v3516
    %5183 = vmatmul.mubr.f32.gmra.mrb[0].mxu0 %v3452
    %v5184 = vpop.f32.mrb[0].mxu0
    %v5185 = vadd.f32 %v4800, %v5184
    %v5186 = vpop.f32.mrb[0].mxu0
    %5187 = vmatprep.mubr.f32.mxu0 %v3517
    %5188 = vmatmul.mubr.f32.gmra.mrb[0].mxu0 %v3453
    %v5189 = vpop.f32.mrb[0].mxu0
    %v5190 = vadd.f32 %v4805, %v5189
    %v5191 = vpop.f32.mrb[0].mxu0
    %5192 = vmatprep.mubr.f32.mxu0 %v3518
    %5193 = vmatmul.mubr.f32.gmra.mrb[0].mxu0 %v3454
    %v5194 = vpop.f32.mrb[0].mxu0
    %v5195 = vadd.f32 %v4810, %v5194
    %v5196 = vpop.f32.mrb[0].mxu0
    %5197 = vmatprep.mubr.f32.mxu0 %v3519
    %5198 = vmatmul.mubr.f32.gmra.mrb[0].mxu0 %v3455
    %v5199 = vpop.f32.mrb[0].mxu0
    %v5200 = vadd.f32 %v4815, %v5199
    %v5201 = vpop.f32.mrb[0].mxu0
    %5202 = vmatprep.mubr.f32.mxu0 %v3520
    %5203 = vmatmul.mubr.f32.gmra.mrb[0].mxu0 %v3456
    %v5204 = vpop.f32.mrb[0].mxu0
    %v5205 = vadd.f32 %v4820, %v5204
    %v5206 = vpop.f32.mrb[0].mxu0
    %5207 = vmatprep.mubr.f32.mxu0 %v3521
    %5208 = vmatmul.mubr.f32.gmra.mrb[0].mxu0 %v3457
    %v5209 = vpop.f32.mrb[0].mxu0
    %v5210 = vadd.f32 %v4825, %v5209
    %v5211 = vpop.f32.mrb[0].mxu0
    %5212 = vmatprep.mubr.f32.mxu0 %v3522
    %5213 = vmatmul.mubr.f32.gmra.mrb[0].mxu0 %v3458
    %v5214 = vpop.f32.mrb[0].mxu0
    %v5215 = vadd.f32 %v4830, %v5214
    %v5216 = vpop.f32.mrb[0].mxu0
    %5217 = vmatprep.mubr.f32.mxu0 %v3523
    %5218 = vmatmul.mubr.f32.gmra.mrb[0].mxu0 %v3459
    %v5219 = vpop.f32.mrb[0].mxu0
    %v5220 = vadd.f32 %v4835, %v5219
    %v5221 = vpop.f32.mrb[0].mxu0
    %5222 = vmatprep.mubr.f32.mxu0 %v3524
    %5223 = vmatmul.mubr.f32.gmra.mrb[0].mxu0 %v3460
    %v5224 = vpop.f32.mrb[0].mxu0
    %v5225 = vadd.f32 %v4840, %v5224
    %v5226 = vpop.f32.mrb[0].mxu0
    %5227 = vmatprep.mubr.f32.mxu0 %v3525
    %5228 = vmatmul.mubr.f32.gmra.mrb[0].mxu0 %v3461
    %v5229 = vpop.f32.mrb[0].mxu0
    %v5230 = vadd.f32 %v4845, %v5229
    %v5231 = vpop.f32.mrb[0].mxu0
    %5232 = vmatprep.mubr.f32.mxu0 %v3526
    %5233 = vmatmul.mubr.f32.gmra.mrb[0].mxu0 %v3462
    %v5234 = vpop.f32.mrb[0].mxu0
    %v5235 = vadd.f32 %v4850, %v5234
    %v5236 = vpop.f32.mrb[0].mxu0
    %5237 = vmatprep.mubr.f32.mxu0 %v3527
    %5238 = vmatmul.mubr.f32.gmra.mrb[0].mxu0 %v3463
    %v5239 = vpop.f32.mrb[0].mxu0
    %v5240 = vadd.f32 %v4855, %v5239
    %v5241 = vpop.f32.mrb[0].mxu0
    %5242 = vmatprep.mubr.f32.mxu0 %v3528
    %5243 = vmatmul.mubr.f32.gmra.mrb[0].mxu0 %v3464
    %v5244 = vpop.f32.mrb[0].mxu0
    %v5245 = vadd.f32 %v4860, %v5244
    %v5246 = vpop.f32.mrb[0].mxu0
    %5247 = vmatprep.mubr.f32.mxu0 %v3529
    %5248 = vmatmul.mubr.f32.gmra.mrb[0].mxu0 %v3465
    %v5249 = vpop.f32.mrb[0].mxu0
    %v5250 = vadd.f32 %v4865, %v5249
    %v5251 = vpop.f32.mrb[0].mxu0
    %5252 = vmatprep.mubr.f32.mxu0 %v3530
    %5253 = vmatmul.mubr.f32.gmra.mrb[0].mxu0 %v3466
    %v5254 = vpop.f32.mrb[0].mxu0
    %v5255 = vadd.f32 %v4870, %v5254
    %v5256 = vpop.f32.mrb[0].mxu0
    %5257 = vmatprep.mubr.f32.mxu0 %v3531
    %5258 = vmatmul.mubr.f32.gmra.mrb[0].mxu0 %v3467
    %v5259 = vpop.f32.mrb[0].mxu0
    %v5260 = vadd.f32 %v4875, %v5259
    %v5261 = vpop.f32.mrb[0].mxu0
    %5262 = vmatprep.mubr.f32.mxu0 %v3532
    %5263 = vmatmul.mubr.f32.gmra.mrb[0].mxu0 %v3468
    %v5264 = vpop.f32.mrb[0].mxu0
    %v5265 = vadd.f32 %v4880, %v5264
    %v5266 = vpop.f32.mrb[0].mxu0
    %5267 = vmatprep.mubr.f32.mxu0 %v3533
    %5268 = vmatmul.mubr.f32.gmra.mrb[0].mxu0 %v3469
    %v5269 = vpop.f32.mrb[0].mxu0
    %v5270 = vadd.f32 %v4885, %v5269
    %v5271 = vpop.f32.mrb[0].mxu0
    %5272 = vmatprep.mubr.f32.mxu0 %v3534
    %5273 = vmatmul.mubr.f32.gmra.mrb[0].mxu0 %v3470
    %v5274 = vpop.f32.mrb[0].mxu0
    %v5275 = vadd.f32 %v4890, %v5274
    %v5276 = vpop.f32.mrb[0].mxu0
    %5277 = vmatprep.mubr.f32.mxu0 %v3535
    %5278 = vmatmul.mubr.f32.gmra.mrb[0].mxu0 %v3471
    %v5279 = vpop.f32.mrb[0].mxu0
    %v5280 = vadd.f32 %v4895, %v5279
    %v5281 = vpop.f32.mrb[0].mxu0
    %5282 = vmatprep.mubr.f32.mxu0 %v3536
    %5283 = vmatmul.mubr.f32.gmra.mrb[0].mxu0 %v3472
    %v5284 = vpop.f32.mrb[0].mxu0
    %v5285 = vadd.f32 %v4900, %v5284
    %v5286 = vpop.f32.mrb[0].mxu0
    %5287 = vmatprep.mubr.f32.mxu0 %v3537
    %5288 = vmatmul.mubr.f32.gmra.mrb[0].mxu0 %v3473
    %v5289 = vpop.f32.mrb[0].mxu0
    %v5290 = vadd.f32 %v4905, %v5289
    %v5291 = vpop.f32.mrb[0].mxu0
    %5292 = vdwg.mxu0
    %5293 = vmatprep.subr.mxu0 0.0
    %5294 = vmatpush1.msra.mxu0 %v3730
    %5295 = vmatprep.subr.mxu0 0.0
    %5296 = vmatpush1.msra.mxu0 %v3731
    %5297 = vmatprep.subr.mxu0 0.0
    %5298 = vmatpush1.msra.mxu0 %v3732
    %5299 = vmatprep.subr.mxu0 0.0
    %5300 = vmatpush1.msra.mxu0 %v3733
    %5301 = vmatprep.subr.mxu0 0.0
    %5302 = vmatpush1.msra.mxu0 %v3734
    %5303 = vmatprep.subr.mxu0 0.0
    %5304 = vmatpush1.msra.mxu0 %v3735
    %5305 = vmatprep.subr.mxu0 0.0
    %5306 = vmatpush1.msra.mxu0 %v3736
    %5307 = vmatprep.subr.mxu0 0.0
    %5308 = vmatpush1.msra.mxu0 %v3737
    %5309 = vmatprep.subr.mxu0 0.0
    %5310 = vmatpush1.msra.mxu0 %v3738
    %5311 = vmatprep.subr.mxu0 0.0
    %5312 = vmatpush1.msra.mxu0 %v3739
    %5313 = vmatprep.subr.mxu0 0.0
    %5314 = vmatpush1.msra.mxu0 %v3740
    %5315 = vmatprep.subr.mxu0 0.0
    %5316 = vmatpush1.msra.mxu0 %v3741
    %5317 = vmatprep.subr.mxu0 0.0
    %5318 = vmatpush1.msra.mxu0 %v3742
    %5319 = vmatprep.subr.mxu0 0.0
    %5320 = vmatpush1.msra.mxu0 %v3743
    %5321 = vmatprep.subr.mxu0 0.0
    %5322 = vmatpush1.msra.mxu0 %v3744
    %5323 = vmatprep.subr.mxu0 0.0
    %5324 = vmatpush1.msra.mxu0 %v3745
    %5325 = vmatprep.subr.mxu0 0.0
    %5326 = vmatpush1.msra.mxu0 0.0
    %5327 = vmatprep.subr.mxu0 0.0
    %5328 = vmatpush1.msra.mxu0 0.0
    %5329 = vmatprep.subr.mxu0 0.0
    %5330 = vmatpush1.msra.mxu0 0.0
    %5331 = vmatprep.subr.mxu0 0.0
    %5332 = vmatpush1.msra.mxu0 0.0
    %5333 = vmatprep.subr.mxu0 0.0
    %5334 = vmatpush1.msra.mxu0 0.0
    %5335 = vmatprep.subr.mxu0 0.0
    %5336 = vmatpush1.msra.mxu0 0.0
    %5337 = vmatprep.subr.mxu0 0.0
    %5338 = vmatpush1.msra.mxu0 0.0
    %5339 = vmatprep.subr.mxu0 0.0
    %5340 = vmatpush1.msra.mxu0 0.0
    %5341 = vmatprep.subr.mxu0 0.0
    %5342 = vmatpush1.msra.mxu0 0.0
    %5343 = vmatprep.subr.mxu0 0.0
    %5344 = vmatpush1.msra.mxu0 0.0
    %5345 = vmatprep.subr.mxu0 0.0
    %5346 = vmatpush1.msra.mxu0 0.0
    %5347 = vmatprep.subr.mxu0 0.0
    %5348 = vmatpush1.msra.mxu0 0.0
    %5349 = vmatprep.subr.mxu0 0.0
    %5350 = vmatpush1.msra.mxu0 0.0
    %5351 = vmatprep.subr.mxu0 0.0
    %5352 = vmatpush1.msra.mxu0 0.0
    %5353 = vmatprep.subr.mxu0 0.0
    %5354 = vmatpush1.msra.mxu0 0.0
    %5355 = vmatprep.subr.mxu0 0.0
    %5356 = vmatpush1.msra.mxu0 0.0
    %5357 = vmatprep.mubr.f32.mxu0 0.0
    %5358 = vmatmul.mubr.f32.gmra.mrb[0].mxu0 %v3538
    %v5359 = vpop.f32.mrb[0].mxu0
    %v5360 = vadd.f32 %v4975, %v5359
    %v5361 = vpop.f32.mrb[0].mxu0
    %5362 = vmatprep.mubr.f32.mxu0 0.0
    %5363 = vmatmul.mubr.f32.gmra.mrb[0].mxu0 %v3539
    %v5364 = vpop.f32.mrb[0].mxu0
    %v5365 = vadd.f32 %v4980, %v5364
    %v5366 = vpop.f32.mrb[0].mxu0
    %5367 = vmatprep.mubr.f32.mxu0 0.0
    %5368 = vmatmul.mubr.f32.gmra.mrb[0].mxu0 %v3540
    %v5369 = vpop.f32.mrb[0].mxu0
    %v5370 = vadd.f32 %v4985, %v5369
    %v5371 = vpop.f32.mrb[0].mxu0
    %5372 = vmatprep.mubr.f32.mxu0 0.0
    %5373 = vmatmul.mubr.f32.gmra.mrb[0].mxu0 %v3541
    %v5374 = vpop.f32.mrb[0].mxu0
    %v5375 = vadd.f32 %v4990, %v5374
    %v5376 = vpop.f32.mrb[0].mxu0
    %5377 = vmatprep.mubr.f32.mxu0 0.0
    %5378 = vmatmul.mubr.f32.gmra.mrb[0].mxu0 %v3542
    %v5379 = vpop.f32.mrb[0].mxu0
    %v5380 = vadd.f32 %v4995, %v5379
    %v5381 = vpop.f32.mrb[0].mxu0
    %5382 = vmatprep.mubr.f32.mxu0 0.0
    %5383 = vmatmul.mubr.f32.gmra.mrb[0].mxu0 %v3543
    %v5384 = vpop.f32.mrb[0].mxu0
    %v5385 = vadd.f32 %v5000, %v5384
    %v5386 = vpop.f32.mrb[0].mxu0
    %5387 = vmatprep.mubr.f32.mxu0 0.0
    %5388 = vmatmul.mubr.f32.gmra.mrb[0].mxu0 %v3544
    %v5389 = vpop.f32.mrb[0].mxu0
    %v5390 = vadd.f32 %v5005, %v5389
    %v5391 = vpop.f32.mrb[0].mxu0
    %5392 = vmatprep.mubr.f32.mxu0 0.0
    %5393 = vmatmul.mubr.f32.gmra.mrb[0].mxu0 %v3545
    %v5394 = vpop.f32.mrb[0].mxu0
    %v5395 = vadd.f32 %v5010, %v5394
    %v5396 = vpop.f32.mrb[0].mxu0
    %5397 = vmatprep.mubr.f32.mxu0 0.0
    %5398 = vmatmul.mubr.f32.gmra.mrb[0].mxu0 %v3546
    %v5399 = vpop.f32.mrb[0].mxu0
    %v5400 = vadd.f32 %v5015, %v5399
    %v5401 = vpop.f32.mrb[0].mxu0
    %5402 = vmatprep.mubr.f32.mxu0 0.0
    %5403 = vmatmul.mubr.f32.gmra.mrb[0].mxu0 %v3547
    %v5404 = vpop.f32.mrb[0].mxu0
    %v5405 = vadd.f32 %v5020, %v5404
    %v5406 = vpop.f32.mrb[0].mxu0
    %5407 = vmatprep.mubr.f32.mxu0 0.0
    %5408 = vmatmul.mubr.f32.gmra.mrb[0].mxu0 %v3548
    %v5409 = vpop.f32.mrb[0].mxu0
    %v5410 = vadd.f32 %v5025, %v5409
    %v5411 = vpop.f32.mrb[0].mxu0
    %5412 = vmatprep.mubr.f32.mxu0 0.0
    %5413 = vmatmul.mubr.f32.gmra.mrb[0].mxu0 %v3549
    %v5414 = vpop.f32.mrb[0].mxu0
    %v5415 = vadd.f32 %v5030, %v5414
    %v5416 = vpop.f32.mrb[0].mxu0
    %5417 = vmatprep.mubr.f32.mxu0 0.0
    %5418 = vmatmul.mubr.f32.gmra.mrb[0].mxu0 %v3550
    %v5419 = vpop.f32.mrb[0].mxu0
    %v5420 = vadd.f32 %v5035, %v5419
    %v5421 = vpop.f32.mrb[0].mxu0
    %5422 = vmatprep.mubr.f32.mxu0 0.0
    %5423 = vmatmul.mubr.f32.gmra.mrb[0].mxu0 %v3551
    %v5424 = vpop.f32.mrb[0].mxu0
    %v5425 = vadd.f32 %v5040, %v5424
    %v5426 = vpop.f32.mrb[0].mxu0
    %5427 = vmatprep.mubr.f32.mxu0 0.0
    %5428 = vmatmul.mubr.f32.gmra.mrb[0].mxu0 %v3552
    %v5429 = vpop.f32.mrb[0].mxu0
    %v5430 = vadd.f32 %v5045, %v5429
    %v5431 = vpop.f32.mrb[0].mxu0
    %5432 = vmatprep.mubr.f32.mxu0 0.0
    %5433 = vmatmul.mubr.f32.gmra.mrb[0].mxu0 %v3553
    %v5434 = vpop.f32.mrb[0].mxu0
    %v5435 = vadd.f32 %v5050, %v5434
    %v5436 = vpop.f32.mrb[0].mxu0
    %5437 = vmatprep.mubr.f32.mxu0 0.0
    %5438 = vmatmul.mubr.f32.gmra.mrb[0].mxu0 %v3554
    %v5439 = vpop.f32.mrb[0].mxu0
    %v5440 = vadd.f32 %v5055, %v5439
    %v5441 = vpop.f32.mrb[0].mxu0
    %5442 = vmatprep.mubr.f32.mxu0 0.0
    %5443 = vmatmul.mubr.f32.gmra.mrb[0].mxu0 %v3555
    %v5444 = vpop.f32.mrb[0].mxu0
    %v5445 = vadd.f32 %v5060, %v5444
    %v5446 = vpop.f32.mrb[0].mxu0
    %5447 = vmatprep.mubr.f32.mxu0 0.0
    %5448 = vmatmul.mubr.f32.gmra.mrb[0].mxu0 %v3556
    %v5449 = vpop.f32.mrb[0].mxu0
    %v5450 = vadd.f32 %v5065, %v5449
    %v5451 = vpop.f32.mrb[0].mxu0
    %5452 = vmatprep.mubr.f32.mxu0 0.0
    %5453 = vmatmul.mubr.f32.gmra.mrb[0].mxu0 %v3557
    %v5454 = vpop.f32.mrb[0].mxu0
    %v5455 = vadd.f32 %v5070, %v5454
    %v5456 = vpop.f32.mrb[0].mxu0
    %5457 = vmatprep.mubr.f32.mxu0 0.0
    %5458 = vmatmul.mubr.f32.gmra.mrb[0].mxu0 %v3558
    %v5459 = vpop.f32.mrb[0].mxu0
    %v5460 = vadd.f32 %v5075, %v5459
    %v5461 = vpop.f32.mrb[0].mxu0
    %5462 = vmatprep.mubr.f32.mxu0 0.0
    %5463 = vmatmul.mubr.f32.gmra.mrb[0].mxu0 %v3559
    %v5464 = vpop.f32.mrb[0].mxu0
    %v5465 = vadd.f32 %v5080, %v5464
    %v5466 = vpop.f32.mrb[0].mxu0
    %5467 = vmatprep.mubr.f32.mxu0 0.0
    %5468 = vmatmul.mubr.f32.gmra.mrb[0].mxu0 %v3560
    %v5469 = vpop.f32.mrb[0].mxu0
    %v5470 = vadd.f32 %v5085, %v5469
    %v5471 = vpop.f32.mrb[0].mxu0
    %5472 = vmatprep.mubr.f32.mxu0 0.0
    %5473 = vmatmul.mubr.f32.gmra.mrb[0].mxu0 %v3561
    %v5474 = vpop.f32.mrb[0].mxu0
    %v5475 = vadd.f32 %v5090, %v5474
    %v5476 = vpop.f32.mrb[0].mxu0
    %5477 = vmatprep.mubr.f32.mxu0 0.0
    %5478 = vmatmul.mubr.f32.gmra.mrb[0].mxu0 %v3562
    %v5479 = vpop.f32.mrb[0].mxu0
    %v5480 = vadd.f32 %v5095, %v5479
    %v5481 = vpop.f32.mrb[0].mxu0
    %5482 = vmatprep.mubr.f32.mxu0 0.0
    %5483 = vmatmul.mubr.f32.gmra.mrb[0].mxu0 %v3563
    %v5484 = vpop.f32.mrb[0].mxu0
    %v5485 = vadd.f32 %v5100, %v5484
    %v5486 = vpop.f32.mrb[0].mxu0
    %5487 = vmatprep.mubr.f32.mxu0 0.0
    %5488 = vmatmul.mubr.f32.gmra.mrb[0].mxu0 %v3564
    %v5489 = vpop.f32.mrb[0].mxu0
    %v5490 = vadd.f32 %v5105, %v5489
    %v5491 = vpop.f32.mrb[0].mxu0
    %5492 = vmatprep.mubr.f32.mxu0 0.0
    %5493 = vmatmul.mubr.f32.gmra.mrb[0].mxu0 %v3565
    %v5494 = vpop.f32.mrb[0].mxu0
    %v5495 = vadd.f32 %v5110, %v5494
    %v5496 = vpop.f32.mrb[0].mxu0
    %5497 = vmatprep.mubr.f32.mxu0 0.0
    %5498 = vmatmul.mubr.f32.gmra.mrb[0].mxu0 %v3566
    %v5499 = vpop.f32.mrb[0].mxu0
    %v5500 = vadd.f32 %v5115, %v5499
    %v5501 = vpop.f32.mrb[0].mxu0
    %5502 = vmatprep.mubr.f32.mxu0 0.0
    %5503 = vmatmul.mubr.f32.gmra.mrb[0].mxu0 %v3567
    %v5504 = vpop.f32.mrb[0].mxu0
    %v5505 = vadd.f32 %v5120, %v5504
    %v5506 = vpop.f32.mrb[0].mxu0
    %5507 = vmatprep.mubr.f32.mxu0 0.0
    %5508 = vmatmul.mubr.f32.gmra.mrb[0].mxu0 %v3568
    %v5509 = vpop.f32.mrb[0].mxu0
    %v5510 = vadd.f32 %v5125, %v5509
    %v5511 = vpop.f32.mrb[0].mxu0
    %5512 = vmatprep.mubr.f32.mxu0 0.0
    %5513 = vmatmul.mubr.f32.gmra.mrb[0].mxu0 %v3569
    %v5514 = vpop.f32.mrb[0].mxu0
    %v5515 = vadd.f32 %v5130, %v5514
    %v5516 = vpop.f32.mrb[0].mxu0
    %5517 = vmatprep.mubr.f32.mxu0 0.0
    %5518 = vmatmul.mubr.f32.gmra.mrb[0].mxu0 %v3570
    %v5519 = vpop.f32.mrb[0].mxu0
    %v5520 = vadd.f32 %v5135, %v5519
    %v5521 = vpop.f32.mrb[0].mxu0
    %5522 = vmatprep.mubr.f32.mxu0 0.0
    %5523 = vmatmul.mubr.f32.gmra.mrb[0].mxu0 %v3571
    %v5524 = vpop.f32.mrb[0].mxu0
    %v5525 = vadd.f32 %v5140, %v5524
    %v5526 = vpop.f32.mrb[0].mxu0
    %5527 = vmatprep.mubr.f32.mxu0 0.0
    %5528 = vmatmul.mubr.f32.gmra.mrb[0].mxu0 %v3572
    %v5529 = vpop.f32.mrb[0].mxu0
    %v5530 = vadd.f32 %v5145, %v5529
    %v5531 = vpop.f32.mrb[0].mxu0
    %5532 = vmatprep.mubr.f32.mxu0 0.0
    %5533 = vmatmul.mubr.f32.gmra.mrb[0].mxu0 %v3573
    %v5534 = vpop.f32.mrb[0].mxu0
    %v5535 = vadd.f32 %v5150, %v5534
    %v5536 = vpop.f32.mrb[0].mxu0
    %5537 = vmatprep.mubr.f32.mxu0 0.0
    %5538 = vmatmul.mubr.f32.gmra.mrb[0].mxu0 %v3574
    %v5539 = vpop.f32.mrb[0].mxu0
    %v5540 = vadd.f32 %v5155, %v5539
    %v5541 = vpop.f32.mrb[0].mxu0
    %5542 = vmatprep.mubr.f32.mxu0 0.0
    %5543 = vmatmul.mubr.f32.gmra.mrb[0].mxu0 %v3575
    %v5544 = vpop.f32.mrb[0].mxu0
    %v5545 = vadd.f32 %v5160, %v5544
    %v5546 = vpop.f32.mrb[0].mxu0
    %5547 = vmatprep.mubr.f32.mxu0 0.0
    %5548 = vmatmul.mubr.f32.gmra.mrb[0].mxu0 %v3576
    %v5549 = vpop.f32.mrb[0].mxu0
    %v5550 = vadd.f32 %v5165, %v5549
    %v5551 = vpop.f32.mrb[0].mxu0
    %5552 = vmatprep.mubr.f32.mxu0 0.0
    %5553 = vmatmul.mubr.f32.gmra.mrb[0].mxu0 %v3577
    %v5554 = vpop.f32.mrb[0].mxu0
    %v5555 = vadd.f32 %v5170, %v5554
    %v5556 = vpop.f32.mrb[0].mxu0
    %5557 = vmatprep.mubr.f32.mxu0 0.0
    %5558 = vmatmul.mubr.f32.gmra.mrb[0].mxu0 %v3578
    %v5559 = vpop.f32.mrb[0].mxu0
    %v5560 = vadd.f32 %v5175, %v5559
    %v5561 = vpop.f32.mrb[0].mxu0
    %5562 = vmatprep.mubr.f32.mxu0 0.0
    %5563 = vmatmul.mubr.f32.gmra.mrb[0].mxu0 %v3579
    %v5564 = vpop.f32.mrb[0].mxu0
    %v5565 = vadd.f32 %v5180, %v5564
    %v5566 = vpop.f32.mrb[0].mxu0
    %5567 = vmatprep.mubr.f32.mxu0 0.0
    %5568 = vmatmul.mubr.f32.gmra.mrb[0].mxu0 %v3580
    %v5569 = vpop.f32.mrb[0].mxu0
    %v5570 = vadd.f32 %v5185, %v5569
    %v5571 = vpop.f32.mrb[0].mxu0
    %5572 = vmatprep.mubr.f32.mxu0 0.0
    %5573 = vmatmul.mubr.f32.gmra.mrb[0].mxu0 %v3581
    %v5574 = vpop.f32.mrb[0].mxu0
    %v5575 = vadd.f32 %v5190, %v5574
    %v5576 = vpop.f32.mrb[0].mxu0
    %5577 = vmatprep.mubr.f32.mxu0 0.0
    %5578 = vmatmul.mubr.f32.gmra.mrb[0].mxu0 %v3582
    %v5579 = vpop.f32.mrb[0].mxu0
    %v5580 = vadd.f32 %v5195, %v5579
    %v5581 = vpop.f32.mrb[0].mxu0
    %5582 = vmatprep.mubr.f32.mxu0 0.0
    %5583 = vmatmul.mubr.f32.gmra.mrb[0].mxu0 %v3583
    %v5584 = vpop.f32.mrb[0].mxu0
    %v5585 = vadd.f32 %v5200, %v5584
    %v5586 = vpop.f32.mrb[0].mxu0
    %5587 = vmatprep.mubr.f32.mxu0 0.0
    %5588 = vmatmul.mubr.f32.gmra.mrb[0].mxu0 %v3584
    %v5589 = vpop.f32.mrb[0].mxu0
    %v5590 = vadd.f32 %v5205, %v5589
    %v5591 = vpop.f32.mrb[0].mxu0
    %5592 = vmatprep.mubr.f32.mxu0 0.0
    %5593 = vmatmul.mubr.f32.gmra.mrb[0].mxu0 %v3585
    %v5594 = vpop.f32.mrb[0].mxu0
    %v5595 = vadd.f32 %v5210, %v5594
    %v5596 = vpop.f32.mrb[0].mxu0
    %5597 = vmatprep.mubr.f32.mxu0 0.0
    %5598 = vmatmul.mubr.f32.gmra.mrb[0].mxu0 %v3586
    %v5599 = vpop.f32.mrb[0].mxu0
    %v5600 = vadd.f32 %v5215, %v5599
    %v5601 = vpop.f32.mrb[0].mxu0
    %5602 = vmatprep.mubr.f32.mxu0 0.0
    %5603 = vmatmul.mubr.f32.gmra.mrb[0].mxu0 %v3587
    %v5604 = vpop.f32.mrb[0].mxu0
    %v5605 = vadd.f32 %v5220, %v5604
    %v5606 = vpop.f32.mrb[0].mxu0
    %5607 = vmatprep.mubr.f32.mxu0 0.0
    %5608 = vmatmul.mubr.f32.gmra.mrb[0].mxu0 %v3588
    %v5609 = vpop.f32.mrb[0].mxu0
    %v5610 = vadd.f32 %v5225, %v5609
    %v5611 = vpop.f32.mrb[0].mxu0
    %5612 = vmatprep.mubr.f32.mxu0 0.0
    %5613 = vmatmul.mubr.f32.gmra.mrb[0].mxu0 %v3589
    %v5614 = vpop.f32.mrb[0].mxu0
    %v5615 = vadd.f32 %v5230, %v5614
    %v5616 = vpop.f32.mrb[0].mxu0
    %5617 = vmatprep.mubr.f32.mxu0 0.0
    %5618 = vmatmul.mubr.f32.gmra.mrb[0].mxu0 %v3590
    %v5619 = vpop.f32.mrb[0].mxu0
    %v5620 = vadd.f32 %v5235, %v5619
    %v5621 = vpop.f32.mrb[0].mxu0
    %5622 = vmatprep.mubr.f32.mxu0 0.0
    %5623 = vmatmul.mubr.f32.gmra.mrb[0].mxu0 %v3591
    %v5624 = vpop.f32.mrb[0].mxu0
    %v5625 = vadd.f32 %v5240, %v5624
    %v5626 = vpop.f32.mrb[0].mxu0
    %5627 = vmatprep.mubr.f32.mxu0 0.0
    %5628 = vmatmul.mubr.f32.gmra.mrb[0].mxu0 %v3592
    %v5629 = vpop.f32.mrb[0].mxu0
    %v5630 = vadd.f32 %v5245, %v5629
    %v5631 = vpop.f32.mrb[0].mxu0
    %5632 = vmatprep.mubr.f32.mxu0 0.0
    %5633 = vmatmul.mubr.f32.gmra.mrb[0].mxu0 %v3593
    %v5634 = vpop.f32.mrb[0].mxu0
    %v5635 = vadd.f32 %v5250, %v5634
    %v5636 = vpop.f32.mrb[0].mxu0
    %5637 = vmatprep.mubr.f32.mxu0 0.0
    %5638 = vmatmul.mubr.f32.gmra.mrb[0].mxu0 %v3594
    %v5639 = vpop.f32.mrb[0].mxu0
    %v5640 = vadd.f32 %v5255, %v5639
    %v5641 = vpop.f32.mrb[0].mxu0
    %5642 = vmatprep.mubr.f32.mxu0 0.0
    %5643 = vmatmul.mubr.f32.gmra.mrb[0].mxu0 %v3595
    %v5644 = vpop.f32.mrb[0].mxu0
    %v5645 = vadd.f32 %v5260, %v5644
    %v5646 = vpop.f32.mrb[0].mxu0
    %5647 = vmatprep.mubr.f32.mxu0 0.0
    %5648 = vmatmul.mubr.f32.gmra.mrb[0].mxu0 %v3596
    %v5649 = vpop.f32.mrb[0].mxu0
    %v5650 = vadd.f32 %v5265, %v5649
    %v5651 = vpop.f32.mrb[0].mxu0
    %5652 = vmatprep.mubr.f32.mxu0 0.0
    %5653 = vmatmul.mubr.f32.gmra.mrb[0].mxu0 %v3597
    %v5654 = vpop.f32.mrb[0].mxu0
    %v5655 = vadd.f32 %v5270, %v5654
    %v5656 = vpop.f32.mrb[0].mxu0
    %5657 = vmatprep.mubr.f32.mxu0 0.0
    %5658 = vmatmul.mubr.f32.gmra.mrb[0].mxu0 %v3598
    %v5659 = vpop.f32.mrb[0].mxu0
    %v5660 = vadd.f32 %v5275, %v5659
    %v5661 = vpop.f32.mrb[0].mxu0
    %5662 = vmatprep.mubr.f32.mxu0 0.0
    %5663 = vmatmul.mubr.f32.gmra.mrb[0].mxu0 %v3599
    %v5664 = vpop.f32.mrb[0].mxu0
    %v5665 = vadd.f32 %v5280, %v5664
    %v5666 = vpop.f32.mrb[0].mxu0
    %5667 = vmatprep.mubr.f32.mxu0 0.0
    %5668 = vmatmul.mubr.f32.gmra.mrb[0].mxu0 %v3600
    %v5669 = vpop.f32.mrb[0].mxu0
    %v5670 = vadd.f32 %v5285, %v5669
    %v5671 = vpop.f32.mrb[0].mxu0
    %5672 = vmatprep.mubr.f32.mxu0 0.0
    %5673 = vmatmul.mubr.f32.gmra.mrb[0].mxu0 %v3601
    %v5674 = vpop.f32.mrb[0].mxu0
    %v5675 = vadd.f32 %v5290, %v5674
    %v5676 = vpop.f32.mrb[0].mxu0
    %5677 = vdwg.mxu0
    %v5678 = vld [vmem:[%s13] sm:$0x1]
    %v5679 = vld [vmem:[%s14] sm:$0x1]
    %v5680 = vadd.f32 %v5360, %v5365
    %v5681 = vadd.f32 %v5680, %v5370
    %v5682 = vadd.f32 %v5681, %v5375
    %v5683 = vadd.f32 %v5682, %v5380
    %v5684 = vadd.f32 %v5683, %v5385
    %v5685 = vadd.f32 %v5684, %v5390
    %v5686 = vadd.f32 %v5685, %v5395
    %v5687 = vadd.f32 %v5686, %v5400
    %v5688 = vadd.f32 %v5687, %v5405
    %v5689 = vadd.f32 %v5688, %v5410
    %v5690 = vadd.f32 %v5689, %v5415
    %v5691 = vadd.f32 %v5690, %v5420
    %v5692 = vadd.f32 %v5691, %v5425
    %v5693 = vadd.f32 %v5692, %v5430
    %v5694 = vadd.f32 %v5693, %v5435
    %v5695 = vadd.f32 %v5694, %v5440
    %v5696 = vadd.f32 %v5695, %v5445
    %v5697 = vadd.f32 %v5696, %v5450
    %v5698 = vadd.f32 %v5697, %v5455
    %v5699 = vadd.f32 %v5698, %v5460
    %v5700 = vadd.f32 %v5699, %v5465
    %v5701 = vadd.f32 %v5700, %v5470
    %v5702 = vadd.f32 %v5701, %v5475
    %v5703 = vadd.f32 %v5702, %v5480
    %v5704 = vadd.f32 %v5703, %v5485
    %v5705 = vadd.f32 %v5704, %v5490
    %v5706 = vadd.f32 %v5705, %v5495
    %v5707 = vadd.f32 %v5706, %v5500
    %v5708 = vadd.f32 %v5707, %v5505
    %v5709 = vadd.f32 %v5708, %v5510
    %v5710 = vadd.f32 %v5709, %v5515
    %v5711 = vadd.f32 %v5710, %v5520
    %v5712 = vadd.f32 %v5711, %v5525
    %v5713 = vadd.f32 %v5712, %v5530
    %v5714 = vadd.f32 %v5713, %v5535
    %v5715 = vadd.f32 %v5714, %v5540
    %v5716 = vadd.f32 %v5715, %v5545
    %v5717 = vadd.f32 %v5716, %v5550
    %v5718 = vadd.f32 %v5717, %v5555
    %v5719 = vadd.f32 %v5718, %v5560
    %v5720 = vadd.f32 %v5719, %v5565
    %v5721 = vadd.f32 %v5720, %v5570
    %v5722 = vadd.f32 %v5721, %v5575
    %v5723 = vadd.f32 %v5722, %v5580
    %v5724 = vadd.f32 %v5723, %v5585
    %v5725 = vadd.f32 %v5724, %v5590
    %v5726 = vadd.f32 %v5725, %v5595
    %v5727 = vadd.f32 %v5726, %v5600
    %v5728 = vadd.f32 %v5727, %v5605
    %v5729 = vadd.f32 %v5728, %v5610
    %v5730 = vadd.f32 %v5729, %v5615
    %v5731 = vadd.f32 %v5730, %v5620
    %v5732 = vadd.f32 %v5731, %v5625
    %v5733 = vadd.f32 %v5732, %v5630
    %v5734 = vadd.f32 %v5733, %v5635
    %v5735 = vadd.f32 %v5734, %v5640
    %v5736 = vadd.f32 %v5735, %v5645
    %v5737 = vadd.f32 %v5736, %v5650
    %v5738 = vadd.f32 %v5737, %v5655
    %v5739 = vadd.f32 %v5738, %v5660
    %v5740 = vadd.f32 %v5739, %v5665
    %v5741 = vadd.f32 %v5740, %v5670
    %v5742 = vadd.f32 %v5741, %v5675
    %v5743 = vrot.slane %v5742, 4
    %v5744 = vadd.f32 %v5742, %v5743
    %v5745 = vrot.slane %v5744, 2
    %v5746 = vadd.f32 %v5744, %v5745
    %v5747 = vrot.slane %v5746, 1
    %v5748 = vadd.f32 %v5746, %v5747
    %v5749 = vmul.f32 %v5748, 0.001953125
    %v5750 = vmul.f32 %v5360, %v5360
    %v5751 = vmul.f32 %v5365, %v5365
    %v5752 = vmul.f32 %v5370, %v5370
    %v5753 = vmul.f32 %v5375, %v5375
    %v5754 = vmul.f32 %v5380, %v5380
    %v5755 = vmul.f32 %v5385, %v5385
    %v5756 = vmul.f32 %v5390, %v5390
    %v5757 = vmul.f32 %v5395, %v5395
    %v5758 = vmul.f32 %v5400, %v5400
    %v5759 = vmul.f32 %v5405, %v5405
    %v5760 = vmul.f32 %v5410, %v5410
    %v5761 = vmul.f32 %v5415, %v5415
    %v5762 = vmul.f32 %v5420, %v5420
    %v5763 = vmul.f32 %v5425, %v5425
    %v5764 = vmul.f32 %v5430, %v5430
    %v5765 = vmul.f32 %v5435, %v5435
    %v5766 = vmul.f32 %v5440, %v5440
    %v5767 = vmul.f32 %v5445, %v5445
    %v5768 = vmul.f32 %v5450, %v5450
    %v5769 = vmul.f32 %v5455, %v5455
    %v5770 = vmul.f32 %v5460, %v5460
    %v5771 = vmul.f32 %v5465, %v5465
    %v5772 = vmul.f32 %v5470, %v5470
    %v5773 = vmul.f32 %v5475, %v5475
    %v5774 = vmul.f32 %v5480, %v5480
    %v5775 = vmul.f32 %v5485, %v5485
    %v5776 = vmul.f32 %v5490, %v5490
    %v5777 = vmul.f32 %v5495, %v5495
    %v5778 = vmul.f32 %v5500, %v5500
    %v5779 = vmul.f32 %v5505, %v5505
    %v5780 = vmul.f32 %v5510, %v5510
    %v5781 = vmul.f32 %v5515, %v5515
    %v5782 = vmul.f32 %v5520, %v5520
    %v5783 = vmul.f32 %v5525, %v5525
    %v5784 = vmul.f32 %v5530, %v5530
    %v5785 = vmul.f32 %v5535, %v5535
    %v5786 = vmul.f32 %v5540, %v5540
    %v5787 = vmul.f32 %v5545, %v5545
    %v5788 = vmul.f32 %v5550, %v5550
    %v5789 = vmul.f32 %v5555, %v5555
    %v5790 = vmul.f32 %v5560, %v5560
    %v5791 = vmul.f32 %v5565, %v5565
    %v5792 = vmul.f32 %v5570, %v5570
    %v5793 = vmul.f32 %v5575, %v5575
    %v5794 = vmul.f32 %v5580, %v5580
    %v5795 = vmul.f32 %v5585, %v5585
    %v5796 = vmul.f32 %v5590, %v5590
    %v5797 = vmul.f32 %v5595, %v5595
    %v5798 = vmul.f32 %v5600, %v5600
    %v5799 = vmul.f32 %v5605, %v5605
    %v5800 = vmul.f32 %v5610, %v5610
    %v5801 = vmul.f32 %v5615, %v5615
    %v5802 = vmul.f32 %v5620, %v5620
    %v5803 = vmul.f32 %v5625, %v5625
    %v5804 = vmul.f32 %v5630, %v5630
    %v5805 = vmul.f32 %v5635, %v5635
    %v5806 = vmul.f32 %v5640, %v5640
    %v5807 = vmul.f32 %v5645, %v5645
    %v5808 = vmul.f32 %v5650, %v5650
    %v5809 = vmul.f32 %v5655, %v5655
    %v5810 = vmul.f32 %v5660, %v5660
    %v5811 = vmul.f32 %v5665, %v5665
    %v5812 = vmul.f32 %v5670, %v5670
    %v5813 = vmul.f32 %v5675, %v5675
    %v5814 = vadd.f32 %v5750, %v5751
    %v5815 = vadd.f32 %v5814, %v5752
    %v5816 = vadd.f32 %v5815, %v5753
    %v5817 = vadd.f32 %v5816, %v5754
    %v5818 = vadd.f32 %v5817, %v5755
    %v5819 = vadd.f32 %v5818, %v5756
    %v5820 = vadd.f32 %v5819, %v5757
    %v5821 = vadd.f32 %v5820, %v5758
    %v5822 = vadd.f32 %v5821, %v5759
    %v5823 = vadd.f32 %v5822, %v5760
    %v5824 = vadd.f32 %v5823, %v5761
    %v5825 = vadd.f32 %v5824, %v5762
    %v5826 = vadd.f32 %v5825, %v5763
    %v5827 = vadd.f32 %v5826, %v5764
    %v5828 = vadd.f32 %v5827, %v5765
    %v5829 = vadd.f32 %v5828, %v5766
    %v5830 = vadd.f32 %v5829, %v5767
    %v5831 = vadd.f32 %v5830, %v5768
    %v5832 = vadd.f32 %v5831, %v5769
    %v5833 = vadd.f32 %v5832, %v5770
    %v5834 = vadd.f32 %v5833, %v5771
    %v5835 = vadd.f32 %v5834, %v5772
    %v5836 = vadd.f32 %v5835, %v5773
    %v5837 = vadd.f32 %v5836, %v5774
    %v5838 = vadd.f32 %v5837, %v5775
    %v5839 = vadd.f32 %v5838, %v5776
    %v5840 = vadd.f32 %v5839, %v5777
    %v5841 = vadd.f32 %v5840, %v5778
    %v5842 = vadd.f32 %v5841, %v5779
    %v5843 = vadd.f32 %v5842, %v5780
    %v5844 = vadd.f32 %v5843, %v5781
    %v5845 = vadd.f32 %v5844, %v5782
    %v5846 = vadd.f32 %v5845, %v5783
    %v5847 = vadd.f32 %v5846, %v5784
    %v5848 = vadd.f32 %v5847, %v5785
    %v5849 = vadd.f32 %v5848, %v5786
    %v5850 = vadd.f32 %v5849, %v5787
    %v5851 = vadd.f32 %v5850, %v5788
    %v5852 = vadd.f32 %v5851, %v5789
    %v5853 = vadd.f32 %v5852, %v5790
    %v5854 = vadd.f32 %v5853, %v5791
    %v5855 = vadd.f32 %v5854, %v5792
    %v5856 = vadd.f32 %v5855, %v5793
    %v5857 = vadd.f32 %v5856, %v5794
    %v5858 = vadd.f32 %v5857, %v5795
    %v5859 = vadd.f32 %v5858, %v5796
    %v5860 = vadd.f32 %v5859, %v5797
    %v5861 = vadd.f32 %v5860, %v5798
    %v5862 = vadd.f32 %v5861, %v5799
    %v5863 = vadd.f32 %v5862, %v5800
    %v5864 = vadd.f32 %v5863, %v5801
    %v5865 = vadd.f32 %v5864, %v5802
    %v5866 = vadd.f32 %v5865, %v5803
    %v5867 = vadd.f32 %v5866, %v5804
    %v5868 = vadd.f32 %v5867, %v5805
    %v5869 = vadd.f32 %v5868, %v5806
    %v5870 = vadd.f32 %v5869, %v5807
    %v5871 = vadd.f32 %v5870, %v5808
    %v5872 = vadd.f32 %v5871, %v5809
    %v5873 = vadd.f32 %v5872, %v5810
    %v5874 = vadd.f32 %v5873, %v5811
    %v5875 = vadd.f32 %v5874, %v5812
    %v5876 = vadd.f32 %v5875, %v5813
    %v5877 = vrot.slane %v5876, 4
    %v5878 = vadd.f32 %v5876, %v5877
    %v5879 = vrot.slane %v5878, 2
    %v5880 = vadd.f32 %v5878, %v5879
    %v5881 = vrot.slane %v5880, 1
    %v5882 = vadd.f32 %v5880, %v5881
    %v5883 = vmul.f32 %v5882, 0.001953125
    %v5884 = vmul.f32 %v5749, %v5749
    %v5885 = vsub.f32 %v5883, %v5884
    %v5886 = vsub.f32 %v5360, %v5749
    %v5887 = vsub.f32 %v5365, %v5749
    %v5888 = vsub.f32 %v5370, %v5749
    %v5889 = vsub.f32 %v5375, %v5749
    %v5890 = vsub.f32 %v5380, %v5749
    %v5891 = vsub.f32 %v5385, %v5749
    %v5892 = vsub.f32 %v5390, %v5749
    %v5893 = vsub.f32 %v5395, %v5749
    %v5894 = vsub.f32 %v5400, %v5749
    %v5895 = vsub.f32 %v5405, %v5749
    %v5896 = vsub.f32 %v5410, %v5749
    %v5897 = vsub.f32 %v5415, %v5749
    %v5898 = vsub.f32 %v5420, %v5749
    %v5899 = vsub.f32 %v5425, %v5749
    %v5900 = vsub.f32 %v5430, %v5749
    %v5901 = vsub.f32 %v5435, %v5749
    %v5902 = vsub.f32 %v5440, %v5749
    %v5903 = vsub.f32 %v5445, %v5749
    %v5904 = vsub.f32 %v5450, %v5749
    %v5905 = vsub.f32 %v5455, %v5749
    %v5906 = vsub.f32 %v5460, %v5749
    %v5907 = vsub.f32 %v5465, %v5749
    %v5908 = vsub.f32 %v5470, %v5749
    %v5909 = vsub.f32 %v5475, %v5749
    %v5910 = vsub.f32 %v5480, %v5749
    %v5911 = vsub.f32 %v5485, %v5749
    %v5912 = vsub.f32 %v5490, %v5749
    %v5913 = vsub.f32 %v5495, %v5749
    %v5914 = vsub.f32 %v5500, %v5749
    %v5915 = vsub.f32 %v5505, %v5749
    %v5916 = vsub.f32 %v5510, %v5749
    %v5917 = vsub.f32 %v5515, %v5749
    %v5918 = vsub.f32 %v5520, %v5749
    %v5919 = vsub.f32 %v5525, %v5749
    %v5920 = vsub.f32 %v5530, %v5749
    %v5921 = vsub.f32 %v5535, %v5749
    %v5922 = vsub.f32 %v5540, %v5749
    %v5923 = vsub.f32 %v5545, %v5749
    %v5924 = vsub.f32 %v5550, %v5749
    %v5925 = vsub.f32 %v5555, %v5749
    %v5926 = vsub.f32 %v5560, %v5749
    %v5927 = vsub.f32 %v5565, %v5749
    %v5928 = vsub.f32 %v5570, %v5749
    %v5929 = vsub.f32 %v5575, %v5749
    %v5930 = vsub.f32 %v5580, %v5749
    %v5931 = vsub.f32 %v5585, %v5749
    %v5932 = vsub.f32 %v5590, %v5749
    %v5933 = vsub.f32 %v5595, %v5749
    %v5934 = vsub.f32 %v5600, %v5749
    %v5935 = vsub.f32 %v5605, %v5749
    %v5936 = vsub.f32 %v5610, %v5749
    %v5937 = vsub.f32 %v5615, %v5749
    %v5938 = vsub.f32 %v5620, %v5749
    %v5939 = vsub.f32 %v5625, %v5749
    %v5940 = vsub.f32 %v5630, %v5749
    %v5941 = vsub.f32 %v5635, %v5749
    %v5942 = vsub.f32 %v5640, %v5749
    %v5943 = vsub.f32 %v5645, %v5749
    %v5944 = vsub.f32 %v5650, %v5749
    %v5945 = vsub.f32 %v5655, %v5749
    %v5946 = vsub.f32 %v5660, %v5749
    %v5947 = vsub.f32 %v5665, %v5749
    %v5948 = vsub.f32 %v5670, %v5749
    %v5949 = vsub.f32 %v5675, %v5749
    %v5950 = vadd.f32 %v5885, 0.8
    %v5951 = vrsqrt.pop %v5950
    %v5952 = vmul.f32 %v5886, %v5951
    %v5953 = vmul.f32 %v5887, %v5951
    %v5954 = vmul.f32 %v5888, %v5951
    %v5955 = vmul.f32 %v5889, %v5951
    %v5956 = vmul.f32 %v5890, %v5951
    %v5957 = vmul.f32 %v5891, %v5951
    %v5958 = vmul.f32 %v5892, %v5951
    %v5959 = vmul.f32 %v5893, %v5951
    %v5960 = vmul.f32 %v5894, %v5951
    %v5961 = vmul.f32 %v5895, %v5951
    %v5962 = vmul.f32 %v5896, %v5951
    %v5963 = vmul.f32 %v5897, %v5951
    %v5964 = vmul.f32 %v5898, %v5951
    %v5965 = vmul.f32 %v5899, %v5951
    %v5966 = vmul.f32 %v5900, %v5951
    %v5967 = vmul.f32 %v5901, %v5951
    %v5968 = vmul.f32 %v5902, %v5951
    %v5969 = vmul.f32 %v5903, %v5951
    %v5970 = vmul.f32 %v5904, %v5951
    %v5971 = vmul.f32 %v5905, %v5951
    %v5972 = vmul.f32 %v5906, %v5951
    %v5973 = vmul.f32 %v5907, %v5951
    %v5974 = vmul.f32 %v5908, %v5951
    %v5975 = vmul.f32 %v5909, %v5951
    %v5976 = vmul.f32 %v5910, %v5951
    %v5977 = vmul.f32 %v5911, %v5951
    %v5978 = vmul.f32 %v5912, %v5951
    %v5979 = vmul.f32 %v5913, %v5951
    %v5980 = vmul.f32 %v5914, %v5951
    %v5981 = vmul.f32 %v5915, %v5951
    %v5982 = vmul.f32 %v5916, %v5951
    %v5983 = vmul.f32 %v5917, %v5951
    %v5984 = vmul.f32 %v5918, %v5951
    %v5985 = vmul.f32 %v5919, %v5951
    %v5986 = vmul.f32 %v5920, %v5951
    %v5987 = vmul.f32 %v5921, %v5951
    %v5988 = vmul.f32 %v5922, %v5951
    %v5989 = vmul.f32 %v5923, %v5951
    %v5990 = vmul.f32 %v5924, %v5951
    %v5991 = vmul.f32 %v5925, %v5951
    %v5992 = vmul.f32 %v5926, %v5951
    %v5993 = vmul.f32 %v5927, %v5951
    %v5994 = vmul.f32 %v5928, %v5951
    %v5995 = vmul.f32 %v5929, %v5951
    %v5996 = vmul.f32 %v5930, %v5951
    %v5997 = vmul.f32 %v5931, %v5951
    %v5998 = vmul.f32 %v5932, %v5951
    %v5999 = vmul.f32 %v5933, %v5951
    %v6000 = vmul.f32 %v5934, %v5951
    %v6001 = vmul.f32 %v5935, %v5951
    %v6002 = vmul.f32 %v5936, %v5951
    %v6003 = vmul.f32 %v5937, %v5951
    %v6004 = vmul.f32 %v5938, %v5951
    %v6005 = vmul.f32 %v5939, %v5951
    %v6006 = vmul.f32 %v5940, %v5951
    %v6007 = vmul.f32 %v5941, %v5951
    %v6008 = vmul.f32 %v5942, %v5951
    %v6009 = vmul.f32 %v5943, %v5951
    %v6010 = vmul.f32 %v5944, %v5951
    %v6011 = vmul.f32 %v5945, %v5951
    %v6012 = vmul.f32 %v5946, %v5951
    %v6013 = vmul.f32 %v5947, %v5951
    %v6014 = vmul.f32 %v5948, %v5951
    %v6015 = vmul.f32 %v5949, %v5951
    %v6017 = vlaneseq
    %v6018 = vshrl.u32 %v6017, 7
    %v6019 = vsub.s32 0, %v6018
    %v6020 = vrot.slane %v5678, %v6019
    %v6022 = vmul.f32 %v5952, %v6020
    %v6023 = vmul.f32 %v5953, %v6020
    %v6024 = vmul.f32 %v5954, %v6020
    %v6025 = vmul.f32 %v5955, %v6020
    %v6026 = vmul.f32 %v5956, %v6020
    %v6027 = vmul.f32 %v5957, %v6020
    %v6028 = vmul.f32 %v5958, %v6020
    %v6029 = vmul.f32 %v5959, %v6020
    %v6030 = vmul.f32 %v5960, %v6020
    %v6031 = vmul.f32 %v5961, %v6020
    %v6032 = vmul.f32 %v5962, %v6020
    %v6033 = vmul.f32 %v5963, %v6020
    %v6034 = vmul.f32 %v5964, %v6020
    %v6035 = vmul.f32 %v5965, %v6020
    %v6036 = vmul.f32 %v5966, %v6020
    %v6037 = vmul.f32 %v5967, %v6020
    %v6038 = vmul.f32 %v5968, %v6020
    %v6039 = vmul.f32 %v5969, %v6020
    %v6040 = vmul.f32 %v5970, %v6020
    %v6041 = vmul.f32 %v5971, %v6020
    %v6042 = vmul.f32 %v5972, %v6020
    %v6043 = vmul.f32 %v5973, %v6020
    %v6044 = vmul.f32 %v5974, %v6020
    %v6045 = vmul.f32 %v5975, %v6020
    %v6046 = vmul.f32 %v5976, %v6020
    %v6047 = vmul.f32 %v5977, %v6020
    %v6048 = vmul.f32 %v5978, %v6020
    %v6049 = vmul.f32 %v5979, %v6020
    %v6050 = vmul.f32 %v5980, %v6020
    %v6051 = vmul.f32 %v5981, %v6020
    %v6052 = vmul.f32 %v5982, %v6020
    %v6053 = vmul.f32 %v5983, %v6020
    %v6054 = vmul.f32 %v5984, %v6020
    %v6055 = vmul.f32 %v5985, %v6020
    %v6056 = vmul.f32 %v5986, %v6020
    %v6057 = vmul.f32 %v5987, %v6020
    %v6058 = vmul.f32 %v5988, %v6020
    %v6059 = vmul.f32 %v5989, %v6020
    %v6060 = vmul.f32 %v5990, %v6020
    %v6061 = vmul.f32 %v5991, %v6020
    %v6062 = vmul.f32 %v5992, %v6020
    %v6063 = vmul.f32 %v5993, %v6020
    %v6064 = vmul.f32 %v5994, %v6020
    %v6065 = vmul.f32 %v5995, %v6020
    %v6066 = vmul.f32 %v5996, %v6020
    %v6067 = vmul.f32 %v5997, %v6020
    %v6068 = vmul.f32 %v5998, %v6020
    %v6069 = vmul.f32 %v5999, %v6020
    %v6070 = vmul.f32 %v6000, %v6020
    %v6071 = vmul.f32 %v6001, %v6020
    %v6072 = vmul.f32 %v6002, %v6020
    %v6073 = vmul.f32 %v6003, %v6020
    %v6074 = vmul.f32 %v6004, %v6020
    %v6075 = vmul.f32 %v6005, %v6020
    %v6076 = vmul.f32 %v6006, %v6020
    %v6077 = vmul.f32 %v6007, %v6020
    %v6078 = vmul.f32 %v6008, %v6020
    %v6079 = vmul.f32 %v6009, %v6020
    %v6080 = vmul.f32 %v6010, %v6020
    %v6081 = vmul.f32 %v6011, %v6020
    %v6082 = vmul.f32 %v6012, %v6020
    %v6083 = vmul.f32 %v6013, %v6020
    %v6084 = vmul.f32 %v6014, %v6020
    %v6085 = vmul.f32 %v6015, %v6020
    %v6087 = vlaneseq
    %v6088 = vshrl.u32 %v6087, 7
    %v6089 = vsub.s32 0, %v6088
    %v6090 = vrot.slane %v5679, %v6089
    %v6092 = vadd.f32 %v6022, %v6090
    %v6093 = vadd.f32 %v6023, %v6090
    %v6094 = vadd.f32 %v6024, %v6090
    %v6095 = vadd.f32 %v6025, %v6090
    %v6096 = vadd.f32 %v6026, %v6090
    %v6097 = vadd.f32 %v6027, %v6090
    %v6098 = vadd.f32 %v6028, %v6090
    %v6099 = vadd.f32 %v6029, %v6090
    %v6100 = vadd.f32 %v6030, %v6090
    %v6101 = vadd.f32 %v6031, %v6090
    %v6102 = vadd.f32 %v6032, %v6090
    %v6103 = vadd.f32 %v6033, %v6090
    %v6104 = vadd.f32 %v6034, %v6090
    %v6105 = vadd.f32 %v6035, %v6090
    %v6106 = vadd.f32 %v6036, %v6090
    %v6107 = vadd.f32 %v6037, %v6090
    %v6108 = vadd.f32 %v6038, %v6090
    %v6109 = vadd.f32 %v6039, %v6090
    %v6110 = vadd.f32 %v6040, %v6090
    %v6111 = vadd.f32 %v6041, %v6090
    %v6112 = vadd.f32 %v6042, %v6090
    %v6113 = vadd.f32 %v6043, %v6090
    %v6114 = vadd.f32 %v6044, %v6090
    %v6115 = vadd.f32 %v6045, %v6090
    %v6116 = vadd.f32 %v6046, %v6090
    %v6117 = vadd.f32 %v6047, %v6090
    %v6118 = vadd.f32 %v6048, %v6090
    %v6119 = vadd.f32 %v6049, %v6090
    %v6120 = vadd.f32 %v6050, %v6090
    %v6121 = vadd.f32 %v6051, %v6090
    %v6122 = vadd.f32 %v6052, %v6090
    %v6123 = vadd.f32 %v6053, %v6090
    %v6124 = vadd.f32 %v6054, %v6090
    %v6125 = vadd.f32 %v6055, %v6090
    %v6126 = vadd.f32 %v6056, %v6090
    %v6127 = vadd.f32 %v6057, %v6090
    %v6128 = vadd.f32 %v6058, %v6090
    %v6129 = vadd.f32 %v6059, %v6090
    %v6130 = vadd.f32 %v6060, %v6090
    %v6131 = vadd.f32 %v6061, %v6090
    %v6132 = vadd.f32 %v6062, %v6090
    %v6133 = vadd.f32 %v6063, %v6090
    %v6134 = vadd.f32 %v6064, %v6090
    %v6135 = vadd.f32 %v6065, %v6090
    %v6136 = vadd.f32 %v6066, %v6090
    %v6137 = vadd.f32 %v6067, %v6090
    %v6138 = vadd.f32 %v6068, %v6090
    %v6139 = vadd.f32 %v6069, %v6090
    %v6140 = vadd.f32 %v6070, %v6090
    %v6141 = vadd.f32 %v6071, %v6090
    %v6142 = vadd.f32 %v6072, %v6090
    %v6143 = vadd.f32 %v6073, %v6090
    %v6144 = vadd.f32 %v6074, %v6090
    %v6145 = vadd.f32 %v6075, %v6090
    %v6146 = vadd.f32 %v6076, %v6090
    %v6147 = vadd.f32 %v6077, %v6090
    %v6148 = vadd.f32 %v6078, %v6090
    %v6149 = vadd.f32 %v6079, %v6090
    %v6150 = vadd.f32 %v6080, %v6090
    %v6151 = vadd.f32 %v6081, %v6090
    %v6152 = vadd.f32 %v6082, %v6090
    %v6153 = vadd.f32 %v6083, %v6090
    %v6154 = vadd.f32 %v6084, %v6090
    %v6155 = vadd.f32 %v6085, %v6090
    %vm6156 = vcmp.ge.f32.partialorder %v6092, 0.0
    %vm6157 = vcmp.ge.f32.partialorder %v6093, 0.0
    %vm6158 = vcmp.ge.f32.partialorder %v6094, 0.0
    %vm6159 = vcmp.ge.f32.partialorder %v6095, 0.0
    %vm6160 = vcmp.ge.f32.partialorder %v6096, 0.0
    %vm6161 = vcmp.ge.f32.partialorder %v6097, 0.0
    %vm6162 = vcmp.ge.f32.partialorder %v6098, 0.0
    %vm6163 = vcmp.ge.f32.partialorder %v6099, 0.0
    %vm6164 = vcmp.ge.f32.partialorder %v6100, 0.0
    %vm6165 = vcmp.ge.f32.partialorder %v6101, 0.0
    %vm6166 = vcmp.ge.f32.partialorder %v6102, 0.0
    %vm6167 = vcmp.ge.f32.partialorder %v6103, 0.0
    %vm6168 = vcmp.ge.f32.partialorder %v6104, 0.0
    %vm6169 = vcmp.ge.f32.partialorder %v6105, 0.0
    %vm6170 = vcmp.ge.f32.partialorder %v6106, 0.0
    %vm6171 = vcmp.ge.f32.partialorder %v6107, 0.0
    %vm6172 = vcmp.ge.f32.partialorder %v6108, 0.0
    %vm6173 = vcmp.ge.f32.partialorder %v6109, 0.0
    %vm6174 = vcmp.ge.f32.partialorder %v6110, 0.0
    %vm6175 = vcmp.ge.f32.partialorder %v6111, 0.0
    %vm6176 = vcmp.ge.f32.partialorder %v6112, 0.0
    %vm6177 = vcmp.ge.f32.partialorder %v6113, 0.0
    %vm6178 = vcmp.ge.f32.partialorder %v6114, 0.0
    %vm6179 = vcmp.ge.f32.partialorder %v6115, 0.0
    %vm6180 = vcmp.ge.f32.partialorder %v6116, 0.0
    %vm6181 = vcmp.ge.f32.partialorder %v6117, 0.0
    %vm6182 = vcmp.ge.f32.partialorder %v6118, 0.0
    %vm6183 = vcmp.ge.f32.partialorder %v6119, 0.0
    %vm6184 = vcmp.ge.f32.partialorder %v6120, 0.0
    %vm6185 = vcmp.ge.f32.partialorder %v6121, 0.0
    %vm6186 = vcmp.ge.f32.partialorder %v6122, 0.0
    %vm6187 = vcmp.ge.f32.partialorder %v6123, 0.0
    %vm6188 = vcmp.ge.f32.partialorder %v6124, 0.0
    %vm6189 = vcmp.ge.f32.partialorder %v6125, 0.0
    %vm6190 = vcmp.ge.f32.partialorder %v6126, 0.0
    %vm6191 = vcmp.ge.f32.partialorder %v6127, 0.0
    %vm6192 = vcmp.ge.f32.partialorder %v6128, 0.0
    %vm6193 = vcmp.ge.f32.partialorder %v6129, 0.0
    %vm6194 = vcmp.ge.f32.partialorder %v6130, 0.0
    %vm6195 = vcmp.ge.f32.partialorder %v6131, 0.0
    %vm6196 = vcmp.ge.f32.partialorder %v6132, 0.0
    %vm6197 = vcmp.ge.f32.partialorder %v6133, 0.0
    %vm6198 = vcmp.ge.f32.partialorder %v6134, 0.0
    %vm6199 = vcmp.ge.f32.partialorder %v6135, 0.0
    %vm6200 = vcmp.ge.f32.partialorder %v6136, 0.0
    %vm6201 = vcmp.ge.f32.partialorder %v6137, 0.0
    %vm6202 = vcmp.ge.f32.partialorder %v6138, 0.0
    %vm6203 = vcmp.ge.f32.partialorder %v6139, 0.0
    %vm6204 = vcmp.ge.f32.partialorder %v6140, 0.0
    %vm6205 = vcmp.ge.f32.partialorder %v6141, 0.0
    %vm6206 = vcmp.ge.f32.partialorder %v6142, 0.0
    %vm6207 = vcmp.ge.f32.partialorder %v6143, 0.0
    %vm6208 = vcmp.ge.f32.partialorder %v6144, 0.0
    %vm6209 = vcmp.ge.f32.partialorder %v6145, 0.0
    %vm6210 = vcmp.ge.f32.partialorder %v6146, 0.0
    %vm6211 = vcmp.ge.f32.partialorder %v6147, 0.0
    %vm6212 = vcmp.ge.f32.partialorder %v6148, 0.0
    %vm6213 = vcmp.ge.f32.partialorder %v6149, 0.0
    %vm6214 = vcmp.ge.f32.partialorder %v6150, 0.0
    %vm6215 = vcmp.ge.f32.partialorder %v6151, 0.0
    %vm6216 = vcmp.ge.f32.partialorder %v6152, 0.0
    %vm6217 = vcmp.ge.f32.partialorder %v6153, 0.0
    %vm6218 = vcmp.ge.f32.partialorder %v6154, 0.0
    %vm6219 = vcmp.ge.f32.partialorder %v6155, 0.0
    %v6220 = vmul.f32 %v6092, 0.2
    %v6221 = vmul.f32 %v6093, 0.2
    %v6222 = vmul.f32 %v6094, 0.2
    %v6223 = vmul.f32 %v6095, 0.2
    %v6224 = vmul.f32 %v6096, 0.2
    %v6225 = vmul.f32 %v6097, 0.2
    %v6226 = vmul.f32 %v6098, 0.2
    %v6227 = vmul.f32 %v6099, 0.2
    %v6228 = vmul.f32 %v6100, 0.2
    %v6229 = vmul.f32 %v6101, 0.2
    %v6230 = vmul.f32 %v6102, 0.2
    %v6231 = vmul.f32 %v6103, 0.2
    %v6232 = vmul.f32 %v6104, 0.2
    %v6233 = vmul.f32 %v6105, 0.2
    %v6234 = vmul.f32 %v6106, 0.2
    %v6235 = vmul.f32 %v6107, 0.2
    %v6236 = vmul.f32 %v6108, 0.2
    %v6237 = vmul.f32 %v6109, 0.2
    %v6238 = vmul.f32 %v6110, 0.2
    %v6239 = vmul.f32 %v6111, 0.2
    %v6240 = vmul.f32 %v6112, 0.2
    %v6241 = vmul.f32 %v6113, 0.2
    %v6242 = vmul.f32 %v6114, 0.2
    %v6243 = vmul.f32 %v6115, 0.2
    %v6244 = vmul.f32 %v6116, 0.2
    %v6245 = vmul.f32 %v6117, 0.2
    %v6246 = vmul.f32 %v6118, 0.2
    %v6247 = vmul.f32 %v6119, 0.2
    %v6248 = vmul.f32 %v6120, 0.2
    %v6249 = vmul.f32 %v6121, 0.2
    %v6250 = vmul.f32 %v6122, 0.2
    %v6251 = vmul.f32 %v6123, 0.2
    %v6252 = vmul.f32 %v6124, 0.2
    %v6253 = vmul.f32 %v6125, 0.2
    %v6254 = vmul.f32 %v6126, 0.2
    %v6255 = vmul.f32 %v6127, 0.2
    %v6256 = vmul.f32 %v6128, 0.2
    %v6257 = vmul.f32 %v6129, 0.2
    %v6258 = vmul.f32 %v6130, 0.2
    %v6259 = vmul.f32 %v6131, 0.2
    %v6260 = vmul.f32 %v6132, 0.2
    %v6261 = vmul.f32 %v6133, 0.2
    %v6262 = vmul.f32 %v6134, 0.2
    %v6263 = vmul.f32 %v6135, 0.2
    %v6264 = vmul.f32 %v6136, 0.2
    %v6265 = vmul.f32 %v6137, 0.2
    %v6266 = vmul.f32 %v6138, 0.2
    %v6267 = vmul.f32 %v6139, 0.2
    %v6268 = vmul.f32 %v6140, 0.2
    %v6269 = vmul.f32 %v6141, 0.2
    %v6270 = vmul.f32 %v6142, 0.2
    %v6271 = vmul.f32 %v6143, 0.2
    %v6272 = vmul.f32 %v6144, 0.2
    %v6273 = vmul.f32 %v6145, 0.2
    %v6274 = vmul.f32 %v6146, 0.2
    %v6275 = vmul.f32 %v6147, 0.2
    %v6276 = vmul.f32 %v6148, 0.2
    %v6277 = vmul.f32 %v6149, 0.2
    %v6278 = vmul.f32 %v6150, 0.2
    %v6279 = vmul.f32 %v6151, 0.2
    %v6280 = vmul.f32 %v6152, 0.2
    %v6281 = vmul.f32 %v6153, 0.2
    %v6282 = vmul.f32 %v6154, 0.2
    %v6283 = vmul.f32 %v6155, 0.2
    %v6284 = vsel %vm6156, %v6092, %v6220
    %v6285 = vsel %vm6157, %v6093, %v6221
    %v6286 = vsel %vm6158, %v6094, %v6222
    %v6287 = vsel %vm6159, %v6095, %v6223
    %v6288 = vsel %vm6160, %v6096, %v6224
    %v6289 = vsel %vm6161, %v6097, %v6225
    %v6290 = vsel %vm6162, %v6098, %v6226
    %v6291 = vsel %vm6163, %v6099, %v6227
    %v6292 = vsel %vm6164, %v6100, %v6228
    %v6293 = vsel %vm6165, %v6101, %v6229
    %v6294 = vsel %vm6166, %v6102, %v6230
    %v6295 = vsel %vm6167, %v6103, %v6231
    %v6296 = vsel %vm6168, %v6104, %v6232
    %v6297 = vsel %vm6169, %v6105, %v6233
    %v6298 = vsel %vm6170, %v6106, %v6234
    %v6299 = vsel %vm6171, %v6107, %v6235
    %v6300 = vsel %vm6172, %v6108, %v6236
    %v6301 = vsel %vm6173, %v6109, %v6237
    %v6302 = vsel %vm6174, %v6110, %v6238
    %v6303 = vsel %vm6175, %v6111, %v6239
    %v6304 = vsel %vm6176, %v6112, %v6240
    %v6305 = vsel %vm6177, %v6113, %v6241
    %v6306 = vsel %vm6178, %v6114, %v6242
    %v6307 = vsel %vm6179, %v6115, %v6243
    %v6308 = vsel %vm6180, %v6116, %v6244
    %v6309 = vsel %vm6181, %v6117, %v6245
    %v6310 = vsel %vm6182, %v6118, %v6246
    %v6311 = vsel %vm6183, %v6119, %v6247
    %v6312 = vsel %vm6184, %v6120, %v6248
    %v6313 = vsel %vm6185, %v6121, %v6249
    %v6314 = vsel %vm6186, %v6122, %v6250
    %v6315 = vsel %vm6187, %v6123, %v6251
    %v6316 = vsel %vm6188, %v6124, %v6252
    %v6317 = vsel %vm6189, %v6125, %v6253
    %v6318 = vsel %vm6190, %v6126, %v6254
    %v6319 = vsel %vm6191, %v6127, %v6255
    %v6320 = vsel %vm6192, %v6128, %v6256
    %v6321 = vsel %vm6193, %v6129, %v6257
    %v6322 = vsel %vm6194, %v6130, %v6258
    %v6323 = vsel %vm6195, %v6131, %v6259
    %v6324 = vsel %vm6196, %v6132, %v6260
    %v6325 = vsel %vm6197, %v6133, %v6261
    %v6326 = vsel %vm6198, %v6134, %v6262
    %v6327 = vsel %vm6199, %v6135, %v6263
    %v6328 = vsel %vm6200, %v6136, %v6264
    %v6329 = vsel %vm6201, %v6137, %v6265
    %v6330 = vsel %vm6202, %v6138, %v6266
    %v6331 = vsel %vm6203, %v6139, %v6267
    %v6332 = vsel %vm6204, %v6140, %v6268
    %v6333 = vsel %vm6205, %v6141, %v6269
    %v6334 = vsel %vm6206, %v6142, %v6270
    %v6335 = vsel %vm6207, %v6143, %v6271
    %v6336 = vsel %vm6208, %v6144, %v6272
    %v6337 = vsel %vm6209, %v6145, %v6273
    %v6338 = vsel %vm6210, %v6146, %v6274
    %v6339 = vsel %vm6211, %v6147, %v6275
    %v6340 = vsel %vm6212, %v6148, %v6276
    %v6341 = vsel %vm6213, %v6149, %v6277
    %v6342 = vsel %vm6214, %v6150, %v6278
    %v6343 = vsel %vm6215, %v6151, %v6279
    %v6344 = vsel %vm6216, %v6152, %v6280
    %v6345 = vsel %vm6217, %v6153, %v6281
    %v6346 = vsel %vm6218, %v6154, %v6282
    %v6347 = vsel %vm6219, %v6155, %v6283
    %6348 = vst [vmem:[%s1285 + $0x1] sm:$0xff] %v6284
    %6349 = vst [vmem:[%s1285 + $0x9] sm:$0xff] %v6285
    %6350 = vst [vmem:[%s1285 + $0x19] sm:$0xff] %v6286
    %6351 = vst [vmem:[%s1285 + $0x21] sm:$0xff] %v6287
    %6352 = vst [vmem:[%s1285 + $0x31] sm:$0xff] %v6288
    %6353 = vst [vmem:[%s1285 + $0x39] sm:$0xff] %v6289
    %6354 = vst [vmem:[%s1285 + $0x49] sm:$0xff] %v6290
    %6355 = vst [vmem:[%s1285 + $0x51] sm:$0xff] %v6291
    %6356 = vst [vmem:[%s1285 + $0x61] sm:$0xff] %v6292
    %6357 = vst [vmem:[%s1285 + $0x69] sm:$0xff] %v6293
    %6358 = vst [vmem:[%s1285 + $0x79] sm:$0xff] %v6294
    %6359 = vst [vmem:[%s1285 + $0x81] sm:$0xff] %v6295
    %6360 = vst [vmem:[%s1285 + $0x91] sm:$0xff] %v6296
    %6361 = vst [vmem:[%s1285 + $0x99] sm:$0xff] %v6297
    %6362 = vst [vmem:[%s1285 + $0xa9] sm:$0xff] %v6298
    %6363 = vst [vmem:[%s1285 + $0xb1] sm:$0xff] %v6299
    %6364 = vst [vmem:[%s1285 + $0xc1] sm:$0xff] %v6300
    %6365 = vst [vmem:[%s1285 + $0xc9] sm:$0xff] %v6301
    %6366 = vst [vmem:[%s1285 + $0xd9] sm:$0xff] %v6302
    %6367 = vst [vmem:[%s1285 + $0xe1] sm:$0xff] %v6303
    %6368 = vst [vmem:[%s1285 + $0xf1] sm:$0xff] %v6304
    %6369 = vst [vmem:[%s1285 + $0xf9] sm:$0xff] %v6305
    %6370 = vst [vmem:[%s1285 + $0x109] sm:$0xff] %v6306
    %6371 = vst [vmem:[%s1285 + $0x111] sm:$0xff] %v6307
    %6372 = vst [vmem:[%s1285 + $0x121] sm:$0xff] %v6308
    %6373 = vst [vmem:[%s1285 + $0x129] sm:$0xff] %v6309
    %6374 = vst [vmem:[%s1285 + $0x139] sm:$0xff] %v6310
    %6375 = vst [vmem:[%s1285 + $0x141] sm:$0xff] %v6311
    %6376 = vst [vmem:[%s1285 + $0x151] sm:$0xff] %v6312
    %6377 = vst [vmem:[%s1285 + $0x159] sm:$0xff] %v6313
    %6378 = vst [vmem:[%s1285 + $0x169] sm:$0xff] %v6314
    %6379 = vst [vmem:[%s1285 + $0x171] sm:$0xff] %v6315
    %6380 = vst [vmem:[%s1285 + $0x1b1] sm:$0xff] %v6316
    %6381 = vst [vmem:[%s1285 + $0x1b9] sm:$0xff] %v6317
    %6382 = vst [vmem:[%s1285 + $0x1c9] sm:$0xff] %v6318
    %6383 = vst [vmem:[%s1285 + $0x1d1] sm:$0xff] %v6319
    %6384 = vst [vmem:[%s1285 + $0x1e1] sm:$0xff] %v6320
    %6385 = vst [vmem:[%s1285 + $0x1e9] sm:$0xff] %v6321
    %6386 = vst [vmem:[%s1285 + $0x1f9] sm:$0xff] %v6322
    %6387 = vst [vmem:[%s1285 + $0x201] sm:$0xff] %v6323
    %6388 = vst [vmem:[%s1285 + $0x211] sm:$0xff] %v6324
    %6389 = vst [vmem:[%s1285 + $0x219] sm:$0xff] %v6325
    %6390 = vst [vmem:[%s1285 + $0x229] sm:$0xff] %v6326
    %6391 = vst [vmem:[%s1285 + $0x231] sm:$0xff] %v6327
    %6392 = vst [vmem:[%s1285 + $0x241] sm:$0xff] %v6328
    %6393 = vst [vmem:[%s1285 + $0x249] sm:$0xff] %v6329
    %6394 = vst [vmem:[%s1285 + $0x259] sm:$0xff] %v6330
    %6395 = vst [vmem:[%s1285 + $0x261] sm:$0xff] %v6331
    %6396 = vst [vmem:[%s1285 + $0x271] sm:$0xff] %v6332
    %6397 = vst [vmem:[%s1285 + $0x279] sm:$0xff] %v6333
    %6398 = vst [vmem:[%s1285 + $0x289] sm:$0xff] %v6334
    %6399 = vst [vmem:[%s1285 + $0x291] sm:$0xff] %v6335
    %6400 = vst [vmem:[%s1285 + $0x2a1] sm:$0xff] %v6336
    %6401 = vst [vmem:[%s1285 + $0x2a9] sm:$0xff] %v6337
    %6402 = vst [vmem:[%s1285 + $0x2b9] sm:$0xff] %v6338
    %6403 = vst [vmem:[%s1285 + $0x2c1] sm:$0xff] %v6339
    %6404 = vst [vmem:[%s1285 + $0x2d1] sm:$0xff] %v6340
    %6405 = vst [vmem:[%s1285 + $0x2d9] sm:$0xff] %v6341
    %6406 = vst [vmem:[%s1285 + $0x2e9] sm:$0xff] %v6342
    %6407 = vst [vmem:[%s1285 + $0x2f1] sm:$0xff] %v6343
    %6408 = vst [vmem:[%s1285 + $0x301] sm:$0xff] %v6344
    %6409 = vst [vmem:[%s1285 + $0x309] sm:$0xff] %v6345
    %6410 = vst [vmem:[%s1285 + $0x319] sm:$0xff] %v6346
    %6411 = vst [vmem:[%s1285 + $0x321] sm:$0xff] %v6347
    %v6412 = vld [vmem:[#allocation2] sm:$0xff]
    %v6413 = vld [vmem:[#allocation2 + $0x8] sm:$0xff]
    %v6414 = vld [vmem:[#allocation2 + $0x18] sm:$0xff]
    %v6415 = vld [vmem:[#allocation2 + $0x20] sm:$0xff]
    %v6416 = vld [vmem:[#allocation2 + $0x30] sm:$0xff]
    %v6417 = vld [vmem:[#allocation2 + $0x38] sm:$0xff]
    %v6418 = vld [vmem:[#allocation2 + $0x48] sm:$0xff]
    %v6419 = vld [vmem:[#allocation2 + $0x50] sm:$0xff]
    %v6420 = vld [vmem:[#allocation2 + $0x60] sm:$0xff]
    %v6421 = vld [vmem:[#allocation2 + $0x68] sm:$0xff]
    %v6422 = vld [vmem:[#allocation2 + $0x78] sm:$0xff]
    %v6423 = vld [vmem:[#allocation2 + $0x80] sm:$0xff]
    %v6424 = vld [vmem:[#allocation2 + $0x90] sm:$0xff]
    %v6425 = vld [vmem:[#allocation2 + $0x98] sm:$0xff]
    %v6426 = vld [vmem:[#allocation2 + $0xa8] sm:$0xff]
    %v6427 = vld [vmem:[#allocation2 + $0xb0] sm:$0xff]
    %v6428 = vld [vmem:[#allocation2 + $0xc0] sm:$0xff]
    %v6429 = vld [vmem:[#allocation2 + $0xc8] sm:$0xff]
    %v6430 = vld [vmem:[#allocation2 + $0xd8] sm:$0xff]
    %v6431 = vld [vmem:[#allocation2 + $0xe0] sm:$0xff]
    %v6432 = vld [vmem:[#allocation2 + $0xf0] sm:$0xff]
    %v6433 = vld [vmem:[#allocation2 + $0xf8] sm:$0xff]
    %v6434 = vld [vmem:[#allocation2 + $0x108] sm:$0xff]
    %v6435 = vld [vmem:[#allocation2 + $0x110] sm:$0xff]
    %v6436 = vld [vmem:[#allocation2 + $0x120] sm:$0xff]
    %v6437 = vld [vmem:[#allocation2 + $0x128] sm:$0xff]
    %v6438 = vld [vmem:[#allocation2 + $0x138] sm:$0xff]
    %v6439 = vld [vmem:[#allocation2 + $0x140] sm:$0xff]
    %v6440 = vld [vmem:[#allocation2 + $0x150] sm:$0xff]
    %v6441 = vld [vmem:[#allocation2 + $0x158] sm:$0xff]
    %v6442 = vld [vmem:[#allocation2 + $0x168] sm:$0xff]
    %v6443 = vld [vmem:[#allocation2 + $0x170] sm:$0xff]
    %v6444 = vld [vmem:[#allocation2 + $0x1b0] sm:$0xff]
    %v6445 = vld [vmem:[#allocation2 + $0x1b8] sm:$0xff]
    %v6446 = vld [vmem:[#allocation2 + $0x1c8] sm:$0xff]
    %v6447 = vld [vmem:[#allocation2 + $0x1d0] sm:$0xff]
    %v6448 = vld [vmem:[#allocation2 + $0x1e0] sm:$0xff]
    %v6449 = vld [vmem:[#allocation2 + $0x1e8] sm:$0xff]
    %v6450 = vld [vmem:[#allocation2 + $0x1f8] sm:$0xff]
    %v6451 = vld [vmem:[#allocation2 + $0x200] sm:$0xff]
    %v6452 = vld [vmem:[#allocation2 + $0x210] sm:$0xff]
    %v6453 = vld [vmem:[#allocation2 + $0x218] sm:$0xff]
    %v6454 = vld [vmem:[#allocation2 + $0x228] sm:$0xff]
    %v6455 = vld [vmem:[#allocation2 + $0x230] sm:$0xff]
    %v6456 = vld [vmem:[#allocation2 + $0x240] sm:$0xff]
    %v6457 = vld [vmem:[#allocation2 + $0x248] sm:$0xff]
    %v6458 = vld [vmem:[#allocation2 + $0x258] sm:$0xff]
    %v6459 = vld [vmem:[#allocation2 + $0x260] sm:$0xff]
    %v6460 = vld [vmem:[#allocation2 + $0x270] sm:$0xff]
    %v6461 = vld [vmem:[#allocation2 + $0x278] sm:$0xff]
    %v6462 = vld [vmem:[#allocation2 + $0x288] sm:$0xff]
    %v6463 = vld [vmem:[#allocation2 + $0x290] sm:$0xff]
    %v6464 = vld [vmem:[#allocation2 + $0x2a0] sm:$0xff]
    %v6465 = vld [vmem:[#allocation2 + $0x2a8] sm:$0xff]
    %v6466 = vld [vmem:[#allocation2 + $0x2b8] sm:$0xff]
    %v6467 = vld [vmem:[#allocation2 + $0x2c0] sm:$0xff]
    %v6468 = vld [vmem:[#allocation2 + $0x2d0] sm:$0xff]
    %v6469 = vld [vmem:[#allocation2 + $0x2d8] sm:$0xff]
    %v6470 = vld [vmem:[#allocation2 + $0x2e8] sm:$0xff]
    %v6471 = vld [vmem:[#allocation2 + $0x2f0] sm:$0xff]
    %v6472 = vld [vmem:[#allocation2 + $0x300] sm:$0xff]
    %v6473 = vld [vmem:[#allocation2 + $0x308] sm:$0xff]
    %v6474 = vld [vmem:[#allocation2 + $0x318] sm:$0xff]
    %v6475 = vld [vmem:[#allocation2 + $0x320] sm:$0xff]
    %v6476 = vld [vmem:[#allocation2 + $0x1] sm:$0xff]
    %v6477 = vld [vmem:[#allocation2 + $0x9] sm:$0xff]
    %v6478 = vld [vmem:[#allocation2 + $0x19] sm:$0xff]
    %v6479 = vld [vmem:[#allocation2 + $0x21] sm:$0xff]
    %v6480 = vld [vmem:[#allocation2 + $0x31] sm:$0xff]
    %v6481 = vld [vmem:[#allocation2 + $0x39] sm:$0xff]
    %v6482 = vld [vmem:[#allocation2 + $0x49] sm:$0xff]
    %v6483 = vld [vmem:[#allocation2 + $0x51] sm:$0xff]
    %v6484 = vld [vmem:[#allocation2 + $0x61] sm:$0xff]
    %v6485 = vld [vmem:[#allocation2 + $0x69] sm:$0xff]
    %v6486 = vld [vmem:[#allocation2 + $0x79] sm:$0xff]
    %v6487 = vld [vmem:[#allocation2 + $0x81] sm:$0xff]
    %v6488 = vld [vmem:[#allocation2 + $0x91] sm:$0xff]
    %v6489 = vld [vmem:[#allocation2 + $0x99] sm:$0xff]
    %v6490 = vld [vmem:[#allocation2 + $0xa9] sm:$0xff]
    %v6491 = vld [vmem:[#allocation2 + $0xb1] sm:$0xff]
    %v6492 = vld [vmem:[#allocation2 + $0xc1] sm:$0xff]
    %v6493 = vld [vmem:[#allocation2 + $0xc9] sm:$0xff]
    %v6494 = vld [vmem:[#allocation2 + $0xd9] sm:$0xff]
    %v6495 = vld [vmem:[#allocation2 + $0xe1] sm:$0xff]
    %v6496 = vld [vmem:[#allocation2 + $0xf1] sm:$0xff]
    %v6497 = vld [vmem:[#allocation2 + $0xf9] sm:$0xff]
    %v6498 = vld [vmem:[#allocation2 + $0x109] sm:$0xff]
    %v6499 = vld [vmem:[#allocation2 + $0x111] sm:$0xff]
    %v6500 = vld [vmem:[#allocation2 + $0x121] sm:$0xff]
    %v6501 = vld [vmem:[#allocation2 + $0x129] sm:$0xff]
    %v6502 = vld [vmem:[#allocation2 + $0x139] sm:$0xff]
    %v6503 = vld [vmem:[#allocation2 + $0x141] sm:$0xff]
    %v6504 = vld [vmem:[#allocation2 + $0x151] sm:$0xff]
    %v6505 = vld [vmem:[#allocation2 + $0x159] sm:$0xff]
    %v6506 = vld [vmem:[#allocation2 + $0x169] sm:$0xff]
    %v6507 = vld [vmem:[#allocation2 + $0x171] sm:$0xff]
    %v6508 = vld [vmem:[#allocation2 + $0x1b1] sm:$0xff]
    %v6509 = vld [vmem:[#allocation2 + $0x1b9] sm:$0xff]
    %v6510 = vld [vmem:[#allocation2 + $0x1c9] sm:$0xff]
    %v6511 = vld [vmem:[#allocation2 + $0x1d1] sm:$0xff]
    %v6512 = vld [vmem:[#allocation2 + $0x1e1] sm:$0xff]
    %v6513 = vld [vmem:[#allocation2 + $0x1e9] sm:$0xff]
    %v6514 = vld [vmem:[#allocation2 + $0x1f9] sm:$0xff]
    %v6515 = vld [vmem:[#allocation2 + $0x201] sm:$0xff]
    %v6516 = vld [vmem:[#allocation2 + $0x211] sm:$0xff]
    %v6517 = vld [vmem:[#allocation2 + $0x219] sm:$0xff]
    %v6518 = vld [vmem:[#allocation2 + $0x229] sm:$0xff]
    %v6519 = vld [vmem:[#allocation2 + $0x231] sm:$0xff]
    %v6520 = vld [vmem:[#allocation2 + $0x241] sm:$0xff]
    %v6521 = vld [vmem:[#allocation2 + $0x249] sm:$0xff]
    %v6522 = vld [vmem:[#allocation2 + $0x259] sm:$0xff]
    %v6523 = vld [vmem:[#allocation2 + $0x261] sm:$0xff]
    %v6524 = vld [vmem:[#allocation2 + $0x271] sm:$0xff]
    %v6525 = vld [vmem:[#allocation2 + $0x279] sm:$0xff]
    %v6526 = vld [vmem:[#allocation2 + $0x289] sm:$0xff]
    %v6527 = vld [vmem:[#allocation2 + $0x291] sm:$0xff]
    %v6528 = vld [vmem:[#allocation2 + $0x2a1] sm:$0xff]
    %v6529 = vld [vmem:[#allocation2 + $0x2a9] sm:$0xff]
    %v6530 = vld [vmem:[#allocation2 + $0x2b9] sm:$0xff]
    %v6531 = vld [vmem:[#allocation2 + $0x2c1] sm:$0xff]
    %v6532 = vld [vmem:[#allocation2 + $0x2d1] sm:$0xff]
    %v6533 = vld [vmem:[#allocation2 + $0x2d9] sm:$0xff]
    %v6534 = vld [vmem:[#allocation2 + $0x2e9] sm:$0xff]
    %v6535 = vld [vmem:[#allocation2 + $0x2f1] sm:$0xff]
    %v6536 = vld [vmem:[#allocation2 + $0x301] sm:$0xff]
    %v6537 = vld [vmem:[#allocation2 + $0x309] sm:$0xff]
    %v6538 = vld [vmem:[#allocation2 + $0x319] sm:$0xff]
    %v6539 = vld [vmem:[#allocation2 + $0x321] sm:$0xff]
    %v6540 = vld [vmem:[#allocation2 + $0x2] sm:$0xff]
    %v6541 = vld [vmem:[#allocation2 + $0xa] sm:$0xff]
    %v6542 = vld [vmem:[#allocation2 + $0x1a] sm:$0xff]
    %v6543 = vld [vmem:[#allocation2 + $0x22] sm:$0xff]
    %v6544 = vld [vmem:[#allocation2 + $0x32] sm:$0xff]
    %v6545 = vld [vmem:[#allocation2 + $0x3a] sm:$0xff]
    %v6546 = vld [vmem:[#allocation2 + $0x4a] sm:$0xff]
    %v6547 = vld [vmem:[#allocation2 + $0x52] sm:$0xff]
    %v6548 = vld [vmem:[#allocation2 + $0x62] sm:$0xff]
    %v6549 = vld [vmem:[#allocation2 + $0x6a] sm:$0xff]
    %v6550 = vld [vmem:[#allocation2 + $0x7a] sm:$0xff]
    %v6551 = vld [vmem:[#allocation2 + $0x82] sm:$0xff]
    %v6552 = vld [vmem:[#allocation2 + $0x92] sm:$0xff]
    %v6553 = vld [vmem:[#allocation2 + $0x9a] sm:$0xff]
    %v6554 = vld [vmem:[#allocation2 + $0xaa] sm:$0xff]
    %v6555 = vld [vmem:[#allocation2 + $0xb2] sm:$0xff]
    %v6556 = vld [vmem:[#allocation2 + $0xc2] sm:$0xff]
    %v6557 = vld [vmem:[#allocation2 + $0xca] sm:$0xff]
    %v6558 = vld [vmem:[#allocation2 + $0xda] sm:$0xff]
    %v6559 = vld [vmem:[#allocation2 + $0xe2] sm:$0xff]
    %v6560 = vld [vmem:[#allocation2 + $0xf2] sm:$0xff]
    %v6561 = vld [vmem:[#allocation2 + $0xfa] sm:$0xff]
    %v6562 = vld [vmem:[#allocation2 + $0x10a] sm:$0xff]
    %v6563 = vld [vmem:[#allocation2 + $0x112] sm:$0xff]
    %v6564 = vld [vmem:[#allocation2 + $0x122] sm:$0xff]
    %v6565 = vld [vmem:[#allocation2 + $0x12a] sm:$0xff]
    %v6566 = vld [vmem:[#allocation2 + $0x13a] sm:$0xff]
    %v6567 = vld [vmem:[#allocation2 + $0x142] sm:$0xff]
    %v6568 = vld [vmem:[#allocation2 + $0x152] sm:$0xff]
    %v6569 = vld [vmem:[#allocation2 + $0x15a] sm:$0xff]
    %v6570 = vld [vmem:[#allocation2 + $0x16a] sm:$0xff]
    %v6571 = vld [vmem:[#allocation2 + $0x172] sm:$0xff]
    %v6572 = vld [vmem:[#allocation2 + $0x1b2] sm:$0xff]
    %v6573 = vld [vmem:[#allocation2 + $0x1ba] sm:$0xff]
    %v6574 = vld [vmem:[#allocation2 + $0x1ca] sm:$0xff]
    %v6575 = vld [vmem:[#allocation2 + $0x1d2] sm:$0xff]
    %v6576 = vld [vmem:[#allocation2 + $0x1e2] sm:$0xff]
    %v6577 = vld [vmem:[#allocation2 + $0x1ea] sm:$0xff]
    %v6578 = vld [vmem:[#allocation2 + $0x1fa] sm:$0xff]
    %v6579 = vld [vmem:[#allocation2 + $0x202] sm:$0xff]
    %v6580 = vld [vmem:[#allocation2 + $0x212] sm:$0xff]
    %v6581 = vld [vmem:[#allocation2 + $0x21a] sm:$0xff]
    %v6582 = vld [vmem:[#allocation2 + $0x22a] sm:$0xff]
    %v6583 = vld [vmem:[#allocation2 + $0x232] sm:$0xff]
    %v6584 = vld [vmem:[#allocation2 + $0x242] sm:$0xff]
    %v6585 = vld [vmem:[#allocation2 + $0x24a] sm:$0xff]
    %v6586 = vld [vmem:[#allocation2 + $0x25a] sm:$0xff]
    %v6587 = vld [vmem:[#allocation2 + $0x262] sm:$0xff]
    %v6588 = vld [vmem:[#allocation2 + $0x272] sm:$0xff]
    %v6589 = vld [vmem:[#allocation2 + $0x27a] sm:$0xff]
    %v6590 = vld [vmem:[#allocation2 + $0x28a] sm:$0xff]
    %v6591 = vld [vmem:[#allocation2 + $0x292] sm:$0xff]
    %v6592 = vld [vmem:[#allocation2 + $0x2a2] sm:$0xff]
    %v6593 = vld [vmem:[#allocation2 + $0x2aa] sm:$0xff]
    %v6594 = vld [vmem:[#allocation2 + $0x2ba] sm:$0xff]
    %v6595 = vld [vmem:[#allocation2 + $0x2c2] sm:$0xff]
    %v6596 = vld [vmem:[#allocation2 + $0x2d2] sm:$0xff]
    %v6597 = vld [vmem:[#allocation2 + $0x2da] sm:$0xff]
    %v6598 = vld [vmem:[#allocation2 + $0x2ea] sm:$0xff]
    %v6599 = vld [vmem:[#allocation2 + $0x2f2] sm:$0xff]
    %v6600 = vld [vmem:[#allocation2 + $0x302] sm:$0xff]
    %v6601 = vld [vmem:[#allocation2 + $0x30a] sm:$0xff]
    %v6602 = vld [vmem:[#allocation2 + $0x31a] sm:$0xff]
    %v6603 = vld [vmem:[#allocation2 + $0x322] sm:$0xff]
    %v6604 = vld [vmem:[%s1285] sm:$0xff]
    %v6605 = vld [vmem:[%s1285 + $0x8] sm:$0xff]
    %v6606 = vld [vmem:[%s1285 + $0x18] sm:$0xff]
    %v6607 = vld [vmem:[%s1285 + $0x20] sm:$0xff]
    %v6608 = vld [vmem:[%s1285 + $0x30] sm:$0xff]
    %v6609 = vld [vmem:[%s1285 + $0x38] sm:$0xff]
    %v6610 = vld [vmem:[%s1285 + $0x48] sm:$0xff]
    %v6611 = vld [vmem:[%s1285 + $0x50] sm:$0xff]
    %v6612 = vld [vmem:[%s1285 + $0x60] sm:$0xff]
    %v6613 = vld [vmem:[%s1285 + $0x68] sm:$0xff]
    %v6614 = vld [vmem:[%s1285 + $0x78] sm:$0xff]
    %v6615 = vld [vmem:[%s1285 + $0x80] sm:$0xff]
    %v6616 = vld [vmem:[%s1285 + $0x90] sm:$0xff]
    %v6617 = vld [vmem:[%s1285 + $0x98] sm:$0xff]
    %v6618 = vld [vmem:[%s1285 + $0xa8] sm:$0xff]
    %v6619 = vld [vmem:[%s1285 + $0xb0] sm:$0xff]
    %v6620 = vld [vmem:[%s1285 + $0xc0] sm:$0xff]
    %v6621 = vld [vmem:[%s1285 + $0xc8] sm:$0xff]
    %v6622 = vld [vmem:[%s1285 + $0xd8] sm:$0xff]
    %v6623 = vld [vmem:[%s1285 + $0xe0] sm:$0xff]
    %v6624 = vld [vmem:[%s1285 + $0xf0] sm:$0xff]
    %v6625 = vld [vmem:[%s1285 + $0xf8] sm:$0xff]
    %v6626 = vld [vmem:[%s1285 + $0x108] sm:$0xff]
    %v6627 = vld [vmem:[%s1285 + $0x110] sm:$0xff]
    %v6628 = vld [vmem:[%s1285 + $0x120] sm:$0xff]
    %v6629 = vld [vmem:[%s1285 + $0x128] sm:$0xff]
    %v6630 = vld [vmem:[%s1285 + $0x138] sm:$0xff]
    %v6631 = vld [vmem:[%s1285 + $0x140] sm:$0xff]
    %v6632 = vld [vmem:[%s1285 + $0x150] sm:$0xff]
    %v6633 = vld [vmem:[%s1285 + $0x158] sm:$0xff]
    %v6634 = vld [vmem:[%s1285 + $0x168] sm:$0xff]
    %v6635 = vld [vmem:[%s1285 + $0x170] sm:$0xff]
    %v6636 = vld [vmem:[%s1285 + $0x1b0] sm:$0xff]
    %v6637 = vld [vmem:[%s1285 + $0x1b8] sm:$0xff]
    %v6638 = vld [vmem:[%s1285 + $0x1c8] sm:$0xff]
    %v6639 = vld [vmem:[%s1285 + $0x1d0] sm:$0xff]
    %v6640 = vld [vmem:[%s1285 + $0x1e0] sm:$0xff]
    %v6641 = vld [vmem:[%s1285 + $0x1e8] sm:$0xff]
    %v6642 = vld [vmem:[%s1285 + $0x1f8] sm:$0xff]
    %v6643 = vld [vmem:[%s1285 + $0x200] sm:$0xff]
    %v6644 = vld [vmem:[%s1285 + $0x210] sm:$0xff]
    %v6645 = vld [vmem:[%s1285 + $0x218] sm:$0xff]
    %v6646 = vld [vmem:[%s1285 + $0x228] sm:$0xff]
    %v6647 = vld [vmem:[%s1285 + $0x230] sm:$0xff]
    %v6648 = vld [vmem:[%s1285 + $0x240] sm:$0xff]
    %v6649 = vld [vmem:[%s1285 + $0x248] sm:$0xff]
    %v6650 = vld [vmem:[%s1285 + $0x258] sm:$0xff]
    %v6651 = vld [vmem:[%s1285 + $0x260] sm:$0xff]
    %v6652 = vld [vmem:[%s1285 + $0x270] sm:$0xff]
    %v6653 = vld [vmem:[%s1285 + $0x278] sm:$0xff]
    %v6654 = vld [vmem:[%s1285 + $0x288] sm:$0xff]
    %v6655 = vld [vmem:[%s1285 + $0x290] sm:$0xff]
    %v6656 = vld [vmem:[%s1285 + $0x2a0] sm:$0xff]
    %v6657 = vld [vmem:[%s1285 + $0x2a8] sm:$0xff]
    %v6658 = vld [vmem:[%s1285 + $0x2b8] sm:$0xff]
    %v6659 = vld [vmem:[%s1285 + $0x2c0] sm:$0xff]
    %v6660 = vld [vmem:[%s1285 + $0x2d0] sm:$0xff]
    %v6661 = vld [vmem:[%s1285 + $0x2d8] sm:$0xff]
    %v6662 = vld [vmem:[%s1285 + $0x2e8] sm:$0xff]
    %v6663 = vld [vmem:[%s1285 + $0x2f0] sm:$0xff]
    %v6664 = vld [vmem:[%s1285 + $0x300] sm:$0xff]
    %v6665 = vld [vmem:[%s1285 + $0x308] sm:$0xff]
    %v6666 = vld [vmem:[%s1285 + $0x318] sm:$0xff]
    %v6667 = vld [vmem:[%s1285 + $0x320] sm:$0xff]
    %v6668 = vld [vmem:[%s1285 + $0x1] sm:$0xff]
    %v6669 = vld [vmem:[%s1285 + $0x9] sm:$0xff]
    %v6670 = vld [vmem:[%s1285 + $0x19] sm:$0xff]
    %v6671 = vld [vmem:[%s1285 + $0x21] sm:$0xff]
    %v6672 = vld [vmem:[%s1285 + $0x31] sm:$0xff]
    %v6673 = vld [vmem:[%s1285 + $0x39] sm:$0xff]
    %v6674 = vld [vmem:[%s1285 + $0x49] sm:$0xff]
    %v6675 = vld [vmem:[%s1285 + $0x51] sm:$0xff]
    %v6676 = vld [vmem:[%s1285 + $0x61] sm:$0xff]
    %v6677 = vld [vmem:[%s1285 + $0x69] sm:$0xff]
    %v6678 = vld [vmem:[%s1285 + $0x79] sm:$0xff]
    %v6679 = vld [vmem:[%s1285 + $0x81] sm:$0xff]
    %v6680 = vld [vmem:[%s1285 + $0x91] sm:$0xff]
    %v6681 = vld [vmem:[%s1285 + $0x99] sm:$0xff]
    %v6682 = vld [vmem:[%s1285 + $0xa9] sm:$0xff]
    %v6683 = vld [vmem:[%s1285 + $0xb1] sm:$0xff]
    %v6684 = vld [vmem:[%s1285 + $0xc1] sm:$0xff]
    %v6685 = vld [vmem:[%s1285 + $0xc9] sm:$0xff]
    %v6686 = vld [vmem:[%s1285 + $0xd9] sm:$0xff]
    %v6687 = vld [vmem:[%s1285 + $0xe1] sm:$0xff]
    %v6688 = vld [vmem:[%s1285 + $0xf1] sm:$0xff]
    %v6689 = vld [vmem:[%s1285 + $0xf9] sm:$0xff]
    %v6690 = vld [vmem:[%s1285 + $0x109] sm:$0xff]
    %v6691 = vld [vmem:[%s1285 + $0x111] sm:$0xff]
    %v6692 = vld [vmem:[%s1285 + $0x121] sm:$0xff]
    %v6693 = vld [vmem:[%s1285 + $0x129] sm:$0xff]
    %v6694 = vld [vmem:[%s1285 + $0x139] sm:$0xff]
    %v6695 = vld [vmem:[%s1285 + $0x141] sm:$0xff]
    %v6696 = vld [vmem:[%s1285 + $0x151] sm:$0xff]
    %v6697 = vld [vmem:[%s1285 + $0x159] sm:$0xff]
    %v6698 = vld [vmem:[%s1285 + $0x169] sm:$0xff]
    %v6699 = vld [vmem:[%s1285 + $0x171] sm:$0xff]
    %v6700 = vld [vmem:[%s1285 + $0x1b1] sm:$0xff]
    %v6701 = vld [vmem:[%s1285 + $0x1b9] sm:$0xff]
    %v6702 = vld [vmem:[%s1285 + $0x1c9] sm:$0xff]
    %v6703 = vld [vmem:[%s1285 + $0x1d1] sm:$0xff]
    %v6704 = vld [vmem:[%s1285 + $0x1e1] sm:$0xff]
    %v6705 = vld [vmem:[%s1285 + $0x1e9] sm:$0xff]
    %v6706 = vld [vmem:[%s1285 + $0x1f9] sm:$0xff]
    %v6707 = vld [vmem:[%s1285 + $0x201] sm:$0xff]
    %v6708 = vld [vmem:[%s1285 + $0x211] sm:$0xff]
    %v6709 = vld [vmem:[%s1285 + $0x219] sm:$0xff]
    %v6710 = vld [vmem:[%s1285 + $0x229] sm:$0xff]
    %v6711 = vld [vmem:[%s1285 + $0x231] sm:$0xff]
    %v6712 = vld [vmem:[%s1285 + $0x241] sm:$0xff]
    %v6713 = vld [vmem:[%s1285 + $0x249] sm:$0xff]
    %v6714 = vld [vmem:[%s1285 + $0x259] sm:$0xff]
    %v6715 = vld [vmem:[%s1285 + $0x261] sm:$0xff]
    %v6716 = vld [vmem:[%s1285 + $0x271] sm:$0xff]
    %v6717 = vld [vmem:[%s1285 + $0x279] sm:$0xff]
    %v6718 = vld [vmem:[%s1285 + $0x289] sm:$0xff]
    %v6719 = vld [vmem:[%s1285 + $0x291] sm:$0xff]
    %v6720 = vld [vmem:[%s1285 + $0x2a1] sm:$0xff]
    %v6721 = vld [vmem:[%s1285 + $0x2a9] sm:$0xff]
    %v6722 = vld [vmem:[%s1285 + $0x2b9] sm:$0xff]
    %v6723 = vld [vmem:[%s1285 + $0x2c1] sm:$0xff]
    %v6724 = vld [vmem:[%s1285 + $0x2d1] sm:$0xff]
    %v6725 = vld [vmem:[%s1285 + $0x2d9] sm:$0xff]
    %v6726 = vld [vmem:[%s1285 + $0x2e9] sm:$0xff]
    %v6727 = vld [vmem:[%s1285 + $0x2f1] sm:$0xff]
    %v6728 = vld [vmem:[%s1285 + $0x301] sm:$0xff]
    %v6729 = vld [vmem:[%s1285 + $0x309] sm:$0xff]
    %v6730 = vld [vmem:[%s1285 + $0x319] sm:$0xff]
    %v6731 = vld [vmem:[%s1285 + $0x321] sm:$0xff]
    %v6732 = vld [vmem:[%s1285 + $0x2] sm:$0xff]
    %v6733 = vld [vmem:[%s1285 + $0xa] sm:$0xff]
    %v6734 = vld [vmem:[%s1285 + $0x1a] sm:$0xff]
    %v6735 = vld [vmem:[%s1285 + $0x22] sm:$0xff]
    %v6736 = vld [vmem:[%s1285 + $0x32] sm:$0xff]
    %v6737 = vld [vmem:[%s1285 + $0x3a] sm:$0xff]
    %v6738 = vld [vmem:[%s1285 + $0x4a] sm:$0xff]
    %v6739 = vld [vmem:[%s1285 + $0x52] sm:$0xff]
    %v6740 = vld [vmem:[%s1285 + $0x62] sm:$0xff]
    %v6741 = vld [vmem:[%s1285 + $0x6a] sm:$0xff]
    %v6742 = vld [vmem:[%s1285 + $0x7a] sm:$0xff]
    %v6743 = vld [vmem:[%s1285 + $0x82] sm:$0xff]
    %v6744 = vld [vmem:[%s1285 + $0x92] sm:$0xff]
    %v6745 = vld [vmem:[%s1285 + $0x9a] sm:$0xff]
    %v6746 = vld [vmem:[%s1285 + $0xaa] sm:$0xff]
    %v6747 = vld [vmem:[%s1285 + $0xb2] sm:$0xff]
    %v6748 = vld [vmem:[%s1285 + $0xc2] sm:$0xff]
    %v6749 = vld [vmem:[%s1285 + $0xca] sm:$0xff]
    %v6750 = vld [vmem:[%s1285 + $0xda] sm:$0xff]
    %v6751 = vld [vmem:[%s1285 + $0xe2] sm:$0xff]
    %v6752 = vld [vmem:[%s1285 + $0xf2] sm:$0xff]
    %v6753 = vld [vmem:[%s1285 + $0xfa] sm:$0xff]
    %v6754 = vld [vmem:[%s1285 + $0x10a] sm:$0xff]
    %v6755 = vld [vmem:[%s1285 + $0x112] sm:$0xff]
    %v6756 = vld [vmem:[%s1285 + $0x122] sm:$0xff]
    %v6757 = vld [vmem:[%s1285 + $0x12a] sm:$0xff]
    %v6758 = vld [vmem:[%s1285 + $0x13a] sm:$0xff]
    %v6759 = vld [vmem:[%s1285 + $0x142] sm:$0xff]
    %v6760 = vld [vmem:[%s1285 + $0x152] sm:$0xff]
    %v6761 = vld [vmem:[%s1285 + $0x15a] sm:$0xff]
    %v6762 = vld [vmem:[%s1285 + $0x16a] sm:$0xff]
    %v6763 = vld [vmem:[%s1285 + $0x172] sm:$0xff]
    %v6764 = vld [vmem:[%s1285 + $0x1b2] sm:$0xff]
    %v6765 = vld [vmem:[%s1285 + $0x1ba] sm:$0xff]
    %v6766 = vld [vmem:[%s1285 + $0x1ca] sm:$0xff]
    %v6767 = vld [vmem:[%s1285 + $0x1d2] sm:$0xff]
    %v6768 = vld [vmem:[%s1285 + $0x1e2] sm:$0xff]
    %v6769 = vld [vmem:[%s1285 + $0x1ea] sm:$0xff]
    %v6770 = vld [vmem:[%s1285 + $0x1fa] sm:$0xff]
    %v6771 = vld [vmem:[%s1285 + $0x202] sm:$0xff]
    %v6772 = vld [vmem:[%s1285 + $0x212] sm:$0xff]
    %v6773 = vld [vmem:[%s1285 + $0x21a] sm:$0xff]
    %v6774 = vld [vmem:[%s1285 + $0x22a] sm:$0xff]
    %v6775 = vld [vmem:[%s1285 + $0x232] sm:$0xff]
    %v6776 = vld [vmem:[%s1285 + $0x242] sm:$0xff]
    %v6777 = vld [vmem:[%s1285 + $0x24a] sm:$0xff]
    %v6778 = vld [vmem:[%s1285 + $0x25a] sm:$0xff]
    %v6779 = vld [vmem:[%s1285 + $0x262] sm:$0xff]
    %v6780 = vld [vmem:[%s1285 + $0x272] sm:$0xff]
    %v6781 = vld [vmem:[%s1285 + $0x27a] sm:$0xff]
    %v6782 = vld [vmem:[%s1285 + $0x28a] sm:$0xff]
    %v6783 = vld [vmem:[%s1285 + $0x292] sm:$0xff]
    %v6784 = vld [vmem:[%s1285 + $0x2a2] sm:$0xff]
    %v6785 = vld [vmem:[%s1285 + $0x2aa] sm:$0xff]
    %v6786 = vld [vmem:[%s1285 + $0x2ba] sm:$0xff]
    %v6787 = vld [vmem:[%s1285 + $0x2c2] sm:$0xff]
    %v6788 = vld [vmem:[%s1285 + $0x2d2] sm:$0xff]
    %v6789 = vld [vmem:[%s1285 + $0x2da] sm:$0xff]
    %v6790 = vld [vmem:[%s1285 + $0x2ea] sm:$0xff]
    %v6791 = vld [vmem:[%s1285 + $0x2f2] sm:$0xff]
    %v6792 = vld [vmem:[%s1285 + $0x302] sm:$0xff]
    %v6793 = vld [vmem:[%s1285 + $0x30a] sm:$0xff]
    %v6794 = vld [vmem:[%s1285 + $0x31a] sm:$0xff]
    %v6795 = vld [vmem:[%s1285 + $0x322] sm:$0xff]
    %v6796 = vld [vmem:[%s1398] sm:$0xff]
    %v6797 = vld [vmem:[%s1398 + $0x8] sm:$0xff]
    %v6798 = vld [vmem:[%s1398 + $0x18] sm:$0xff]
    %v6799 = vld [vmem:[%s1398 + $0x20] sm:$0xff]
    %v6800 = vld [vmem:[%s1398 + $0x30] sm:$0xff]
    %v6801 = vld [vmem:[%s1398 + $0x38] sm:$0xff]
    %v6802 = vld [vmem:[%s1398 + $0x48] sm:$0xff]
    %v6803 = vld [vmem:[%s1398 + $0x50] sm:$0xff]
    %v6804 = vld [vmem:[%s1398 + $0x60] sm:$0xff]
    %v6805 = vld [vmem:[%s1398 + $0x68] sm:$0xff]
    %v6806 = vld [vmem:[%s1398 + $0x78] sm:$0xff]
    %v6807 = vld [vmem:[%s1398 + $0x80] sm:$0xff]
    %v6808 = vld [vmem:[%s1398 + $0x90] sm:$0xff]
    %v6809 = vld [vmem:[%s1398 + $0x98] sm:$0xff]
    %v6810 = vld [vmem:[%s1398 + $0xa8] sm:$0xff]
    %v6811 = vld [vmem:[%s1398 + $0xb0] sm:$0xff]
    %v6812 = vld [vmem:[%s1398 + $0xc0] sm:$0xff]
    %v6813 = vld [vmem:[%s1398 + $0xc8] sm:$0xff]
    %v6814 = vld [vmem:[%s1398 + $0xd8] sm:$0xff]
    %v6815 = vld [vmem:[%s1398 + $0xe0] sm:$0xff]
    %v6816 = vld [vmem:[%s1398 + $0xf0] sm:$0xff]
    %v6817 = vld [vmem:[%s1398 + $0xf8] sm:$0xff]
    %v6818 = vld [vmem:[%s1398 + $0x108] sm:$0xff]
    %v6819 = vld [vmem:[%s1398 + $0x110] sm:$0xff]
    %v6820 = vld [vmem:[%s1398 + $0x120] sm:$0xff]
    %v6821 = vld [vmem:[%s1398 + $0x128] sm:$0xff]
    %v6822 = vld [vmem:[%s1398 + $0x138] sm:$0xff]
    %v6823 = vld [vmem:[%s1398 + $0x140] sm:$0xff]
    %v6824 = vld [vmem:[%s1398 + $0x150] sm:$0xff]
    %v6825 = vld [vmem:[%s1398 + $0x158] sm:$0xff]
    %v6826 = vld [vmem:[%s1398 + $0x168] sm:$0xff]
    %v6827 = vld [vmem:[%s1398 + $0x170] sm:$0xff]
    %v6828 = vld [vmem:[%s1398 + $0x1b0] sm:$0xff]
    %v6829 = vld [vmem:[%s1398 + $0x1b8] sm:$0xff]
    %v6830 = vld [vmem:[%s1398 + $0x1c8] sm:$0xff]
    %v6831 = vld [vmem:[%s1398 + $0x1d0] sm:$0xff]
    %v6832 = vld [vmem:[%s1398 + $0x1e0] sm:$0xff]
    %v6833 = vld [vmem:[%s1398 + $0x1e8] sm:$0xff]
    %v6834 = vld [vmem:[%s1398 + $0x1f8] sm:$0xff]
    %v6835 = vld [vmem:[%s1398 + $0x200] sm:$0xff]
    %v6836 = vld [vmem:[%s1398 + $0x210] sm:$0xff]
    %v6837 = vld [vmem:[%s1398 + $0x218] sm:$0xff]
    %v6838 = vld [vmem:[%s1398 + $0x228] sm:$0xff]
    %v6839 = vld [vmem:[%s1398 + $0x230] sm:$0xff]
    %v6840 = vld [vmem:[%s1398 + $0x240] sm:$0xff]
    %v6841 = vld [vmem:[%s1398 + $0x248] sm:$0xff]
    %v6842 = vld [vmem:[%s1398 + $0x258] sm:$0xff]
    %v6843 = vld [vmem:[%s1398 + $0x260] sm:$0xff]
    %v6844 = vld [vmem:[%s1398 + $0x270] sm:$0xff]
    %v6845 = vld [vmem:[%s1398 + $0x278] sm:$0xff]
    %v6846 = vld [vmem:[%s1398 + $0x288] sm:$0xff]
    %v6847 = vld [vmem:[%s1398 + $0x290] sm:$0xff]
    %v6848 = vld [vmem:[%s1398 + $0x2a0] sm:$0xff]
    %v6849 = vld [vmem:[%s1398 + $0x2a8] sm:$0xff]
    %v6850 = vld [vmem:[%s1398 + $0x2b8] sm:$0xff]
    %v6851 = vld [vmem:[%s1398 + $0x2c0] sm:$0xff]
    %v6852 = vld [vmem:[%s1398 + $0x2d0] sm:$0xff]
    %v6853 = vld [vmem:[%s1398 + $0x2d8] sm:$0xff]
    %v6854 = vld [vmem:[%s1398 + $0x2e8] sm:$0xff]
    %v6855 = vld [vmem:[%s1398 + $0x2f0] sm:$0xff]
    %v6856 = vld [vmem:[%s1398 + $0x300] sm:$0xff]
    %v6857 = vld [vmem:[%s1398 + $0x308] sm:$0xff]
    %v6858 = vld [vmem:[%s1398 + $0x318] sm:$0xff]
    %v6859 = vld [vmem:[%s1398 + $0x320] sm:$0xff]
    %v6860 = vld [vmem:[%s1398 + $0x1] sm:$0xff]
    %v6861 = vld [vmem:[%s1398 + $0x9] sm:$0xff]
    %v6862 = vld [vmem:[%s1398 + $0x19] sm:$0xff]
    %v6863 = vld [vmem:[%s1398 + $0x21] sm:$0xff]
    %v6864 = vld [vmem:[%s1398 + $0x31] sm:$0xff]
    %v6865 = vld [vmem:[%s1398 + $0x39] sm:$0xff]
    %v6866 = vld [vmem:[%s1398 + $0x49] sm:$0xff]
    %v6867 = vld [vmem:[%s1398 + $0x51] sm:$0xff]
    %v6868 = vld [vmem:[%s1398 + $0x61] sm:$0xff]
    %v6869 = vld [vmem:[%s1398 + $0x69] sm:$0xff]
    %v6870 = vld [vmem:[%s1398 + $0x79] sm:$0xff]
    %v6871 = vld [vmem:[%s1398 + $0x81] sm:$0xff]
    %v6872 = vld [vmem:[%s1398 + $0x91] sm:$0xff]
    %v6873 = vld [vmem:[%s1398 + $0x99] sm:$0xff]
    %v6874 = vld [vmem:[%s1398 + $0xa9] sm:$0xff]
    %v6875 = vld [vmem:[%s1398 + $0xb1] sm:$0xff]
    %v6876 = vld [vmem:[%s1398 + $0xc1] sm:$0xff]
    %v6877 = vld [vmem:[%s1398 + $0xc9] sm:$0xff]
    %v6878 = vld [vmem:[%s1398 + $0xd9] sm:$0xff]
    %v6879 = vld [vmem:[%s1398 + $0xe1] sm:$0xff]
    %v6880 = vld [vmem:[%s1398 + $0xf1] sm:$0xff]
    %v6881 = vld [vmem:[%s1398 + $0xf9] sm:$0xff]
    %v6882 = vld [vmem:[%s1398 + $0x109] sm:$0xff]
    %v6883 = vld [vmem:[%s1398 + $0x111] sm:$0xff]
    %v6884 = vld [vmem:[%s1398 + $0x121] sm:$0xff]
    %v6885 = vld [vmem:[%s1398 + $0x129] sm:$0xff]
    %v6886 = vld [vmem:[%s1398 + $0x139] sm:$0xff]
    %v6887 = vld [vmem:[%s1398 + $0x141] sm:$0xff]
    %v6888 = vld [vmem:[%s1398 + $0x151] sm:$0xff]
    %v6889 = vld [vmem:[%s1398 + $0x159] sm:$0xff]
    %v6890 = vld [vmem:[%s1398 + $0x169] sm:$0xff]
    %v6891 = vld [vmem:[%s1398 + $0x171] sm:$0xff]
    %v6892 = vld [vmem:[%s1398 + $0x1b1] sm:$0xff]
    %v6893 = vld [vmem:[%s1398 + $0x1b9] sm:$0xff]
    %v6894 = vld [vmem:[%s1398 + $0x1c9] sm:$0xff]
    %v6895 = vld [vmem:[%s1398 + $0x1d1] sm:$0xff]
    %v6896 = vld [vmem:[%s1398 + $0x1e1] sm:$0xff]
    %v6897 = vld [vmem:[%s1398 + $0x1e9] sm:$0xff]
    %v6898 = vld [vmem:[%s1398 + $0x1f9] sm:$0xff]
    %v6899 = vld [vmem:[%s1398 + $0x201] sm:$0xff]
    %v6900 = vld [vmem:[%s1398 + $0x211] sm:$0xff]
    %v6901 = vld [vmem:[%s1398 + $0x219] sm:$0xff]
    %v6902 = vld [vmem:[%s1398 + $0x229] sm:$0xff]
    %v6903 = vld [vmem:[%s1398 + $0x231] sm:$0xff]
    %v6904 = vld [vmem:[%s1398 + $0x241] sm:$0xff]
    %v6905 = vld [vmem:[%s1398 + $0x249] sm:$0xff]
    %v6906 = vld [vmem:[%s1398 + $0x259] sm:$0xff]
    %v6907 = vld [vmem:[%s1398 + $0x261] sm:$0xff]
    %v6908 = vld [vmem:[%s1398 + $0x271] sm:$0xff]
    %v6909 = vld [vmem:[%s1398 + $0x279] sm:$0xff]
    %v6910 = vld [vmem:[%s1398 + $0x289] sm:$0xff]
    %v6911 = vld [vmem:[%s1398 + $0x291] sm:$0xff]
    %v6912 = vld [vmem:[%s1398 + $0x2a1] sm:$0xff]
    %v6913 = vld [vmem:[%s1398 + $0x2a9] sm:$0xff]
    %v6914 = vld [vmem:[%s1398 + $0x2b9] sm:$0xff]
    %v6915 = vld [vmem:[%s1398 + $0x2c1] sm:$0xff]
    %v6916 = vld [vmem:[%s1398 + $0x2d1] sm:$0xff]
    %v6917 = vld [vmem:[%s1398 + $0x2d9] sm:$0xff]
    %v6918 = vld [vmem:[%s1398 + $0x2e9] sm:$0xff]
    %v6919 = vld [vmem:[%s1398 + $0x2f1] sm:$0xff]
    %v6920 = vld [vmem:[%s1398 + $0x301] sm:$0xff]
    %v6921 = vld [vmem:[%s1398 + $0x309] sm:$0xff]
    %v6922 = vld [vmem:[%s1398 + $0x319] sm:$0xff]
    %v6923 = vld [vmem:[%s1398 + $0x321] sm:$0xff]
    %v6924 = vld [vmem:[%s1398 + $0x2] sm:$0xff]
    %v6925 = vld [vmem:[%s1398 + $0xa] sm:$0xff]
    %v6926 = vld [vmem:[%s1398 + $0x1a] sm:$0xff]
    %v6927 = vld [vmem:[%s1398 + $0x22] sm:$0xff]
    %v6928 = vld [vmem:[%s1398 + $0x32] sm:$0xff]
    %v6929 = vld [vmem:[%s1398 + $0x3a] sm:$0xff]
    %v6930 = vld [vmem:[%s1398 + $0x4a] sm:$0xff]
    %v6931 = vld [vmem:[%s1398 + $0x52] sm:$0xff]
    %v6932 = vld [vmem:[%s1398 + $0x62] sm:$0xff]
    %v6933 = vld [vmem:[%s1398 + $0x6a] sm:$0xff]
    %v6934 = vld [vmem:[%s1398 + $0x7a] sm:$0xff]
    %v6935 = vld [vmem:[%s1398 + $0x82] sm:$0xff]
    %v6936 = vld [vmem:[%s1398 + $0x92] sm:$0xff]
    %v6937 = vld [vmem:[%s1398 + $0x9a] sm:$0xff]
    %v6938 = vld [vmem:[%s1398 + $0xaa] sm:$0xff]
    %v6939 = vld [vmem:[%s1398 + $0xb2] sm:$0xff]
    %v6940 = vld [vmem:[%s1398 + $0xc2] sm:$0xff]
    %v6941 = vld [vmem:[%s1398 + $0xca] sm:$0xff]
    %v6942 = vld [vmem:[%s1398 + $0xda] sm:$0xff]
    %v6943 = vld [vmem:[%s1398 + $0xe2] sm:$0xff]
    %v6944 = vld [vmem:[%s1398 + $0xf2] sm:$0xff]
    %v6945 = vld [vmem:[%s1398 + $0xfa] sm:$0xff]
    %v6946 = vld [vmem:[%s1398 + $0x10a] sm:$0xff]
    %v6947 = vld [vmem:[%s1398 + $0x112] sm:$0xff]
    %v6948 = vld [vmem:[%s1398 + $0x122] sm:$0xff]
    %v6949 = vld [vmem:[%s1398 + $0x12a] sm:$0xff]
    %v6950 = vld [vmem:[%s1398 + $0x13a] sm:$0xff]
    %v6951 = vld [vmem:[%s1398 + $0x142] sm:$0xff]
    %v6952 = vld [vmem:[%s1398 + $0x152] sm:$0xff]
    %v6953 = vld [vmem:[%s1398 + $0x15a] sm:$0xff]
    %v6954 = vld [vmem:[%s1398 + $0x16a] sm:$0xff]
    %v6955 = vld [vmem:[%s1398 + $0x172] sm:$0xff]
    %v6956 = vld [vmem:[%s1398 + $0x1b2] sm:$0xff]
    %v6957 = vld [vmem:[%s1398 + $0x1ba] sm:$0xff]
    %v6958 = vld [vmem:[%s1398 + $0x1ca] sm:$0xff]
    %v6959 = vld [vmem:[%s1398 + $0x1d2] sm:$0xff]
    %v6960 = vld [vmem:[%s1398 + $0x1e2] sm:$0xff]
    %v6961 = vld [vmem:[%s1398 + $0x1ea] sm:$0xff]
    %v6962 = vld [vmem:[%s1398 + $0x1fa] sm:$0xff]
    %v6963 = vld [vmem:[%s1398 + $0x202] sm:$0xff]
    %v6964 = vld [vmem:[%s1398 + $0x212] sm:$0xff]
    %v6965 = vld [vmem:[%s1398 + $0x21a] sm:$0xff]
    %v6966 = vld [vmem:[%s1398 + $0x22a] sm:$0xff]
    %v6967 = vld [vmem:[%s1398 + $0x232] sm:$0xff]
    %v6968 = vld [vmem:[%s1398 + $0x242] sm:$0xff]
    %v6969 = vld [vmem:[%s1398 + $0x24a] sm:$0xff]
    %v6970 = vld [vmem:[%s1398 + $0x25a] sm:$0xff]
    %v6971 = vld [vmem:[%s1398 + $0x262] sm:$0xff]
    %v6972 = vld [vmem:[%s1398 + $0x272] sm:$0xff]
    %v6973 = vld [vmem:[%s1398 + $0x27a] sm:$0xff]
    %v6974 = vld [vmem:[%s1398 + $0x28a] sm:$0xff]
    %v6975 = vld [vmem:[%s1398 + $0x292] sm:$0xff]
    %v6976 = vld [vmem:[%s1398 + $0x2a2] sm:$0xff]
    %v6977 = vld [vmem:[%s1398 + $0x2aa] sm:$0xff]
    %v6978 = vld [vmem:[%s1398 + $0x2ba] sm:$0xff]
    %v6979 = vld [vmem:[%s1398 + $0x2c2] sm:$0xff]
    %v6980 = vld [vmem:[%s1398 + $0x2d2] sm:$0xff]
    %v6981 = vld [vmem:[%s1398 + $0x2da] sm:$0xff]
    %v6982 = vld [vmem:[%s1398 + $0x2ea] sm:$0xff]
    %v6983 = vld [vmem:[%s1398 + $0x2f2] sm:$0xff]
    %v6984 = vld [vmem:[%s1398 + $0x302] sm:$0xff]
    %v6985 = vld [vmem:[%s1398 + $0x30a] sm:$0xff]
    %v6986 = vld [vmem:[%s1398 + $0x31a] sm:$0xff]
    %v6987 = vld [vmem:[%s1398 + $0x322] sm:$0xff]
    %v6988 = vld [vmem:[#allocation11] sm:$0xff]
    %v6989 = vld [vmem:[#allocation11 + $0x8] sm:$0xff]
    %v6990 = vld [vmem:[#allocation11 + $0x10] sm:$0xff]
    %v6991 = vld [vmem:[#allocation11 + $0x18] sm:$0xff]
    %v6992 = vld [vmem:[#allocation11 + $0x20] sm:$0xff]
    %v6993 = vld [vmem:[#allocation11 + $0x28] sm:$0xff]
    %v6994 = vld [vmem:[#allocation11 + $0x30] sm:$0xff]
    %v6995 = vld [vmem:[#allocation11 + $0x38] sm:$0xff]
    %v6996 = vld [vmem:[#allocation11 + $0x40] sm:$0xff]
    %v6997 = vld [vmem:[#allocation11 + $0x48] sm:$0xff]
    %v6998 = vld [vmem:[#allocation11 + $0x50] sm:$0xff]
    %v6999 = vld [vmem:[#allocation11 + $0x58] sm:$0xff]
    %v7000 = vld [vmem:[#allocation11 + $0x60] sm:$0xff]
    %v7001 = vld [vmem:[#allocation11 + $0x68] sm:$0xff]
    %v7002 = vld [vmem:[#allocation11 + $0x70] sm:$0xff]
    %v7003 = vld [vmem:[#allocation11 + $0x78] sm:$0xff]
    %v7004 = vld [vmem:[#allocation11 + $0x80] sm:$0xff]
    %v7005 = vld [vmem:[#allocation11 + $0x88] sm:$0xff]
    %v7006 = vld [vmem:[#allocation11 + $0x90] sm:$0xff]
    %v7007 = vld [vmem:[#allocation11 + $0x98] sm:$0xff]
    %v7008 = vld [vmem:[#allocation11 + $0xa0] sm:$0xff]
    %v7009 = vld [vmem:[#allocation11 + $0xa8] sm:$0xff]
    %v7010 = vld [vmem:[#allocation11 + $0xb0] sm:$0xff]
    %v7011 = vld [vmem:[#allocation11 + $0xb8] sm:$0xff]
    %v7012 = vld [vmem:[#allocation11 + $0xc0] sm:$0xff]
    %v7013 = vld [vmem:[#allocation11 + $0xc8] sm:$0xff]
    %v7014 = vld [vmem:[#allocation11 + $0xd0] sm:$0xff]
    %v7015 = vld [vmem:[#allocation11 + $0xd8] sm:$0xff]
    %v7016 = vld [vmem:[#allocation11 + $0xe0] sm:$0xff]
    %v7017 = vld [vmem:[#allocation11 + $0xe8] sm:$0xff]
    %v7018 = vld [vmem:[#allocation11 + $0xf0] sm:$0xff]
    %v7019 = vld [vmem:[#allocation11 + $0xf8] sm:$0xff]
    %v7020 = vld [vmem:[#allocation11 + $0x100] sm:$0xff]
    %v7021 = vld [vmem:[#allocation11 + $0x108] sm:$0xff]
    %v7022 = vld [vmem:[#allocation11 + $0x110] sm:$0xff]
    %v7023 = vld [vmem:[#allocation11 + $0x118] sm:$0xff]
    %v7024 = vld [vmem:[#allocation11 + $0x120] sm:$0xff]
    %v7025 = vld [vmem:[#allocation11 + $0x128] sm:$0xff]
    %v7026 = vld [vmem:[#allocation11 + $0x130] sm:$0xff]
    %v7027 = vld [vmem:[#allocation11 + $0x138] sm:$0xff]
    %v7028 = vld [vmem:[#allocation11 + $0x140] sm:$0xff]
    %v7029 = vld [vmem:[#allocation11 + $0x148] sm:$0xff]
    %v7030 = vld [vmem:[#allocation11 + $0x150] sm:$0xff]
    %v7031 = vld [vmem:[#allocation11 + $0x158] sm:$0xff]
    %v7032 = vld [vmem:[#allocation11 + $0x160] sm:$0xff]
    %v7033 = vld [vmem:[#allocation11 + $0x168] sm:$0xff]
    %v7034 = vld [vmem:[#allocation11 + $0x170] sm:$0xff]
    %v7035 = vld [vmem:[#allocation11 + $0x178] sm:$0xff]
    %v7036 = vld [vmem:[#allocation11 + $0x180] sm:$0xff]
    %v7037 = vld [vmem:[#allocation11 + $0x188] sm:$0xff]
    %v7038 = vld [vmem:[#allocation11 + $0x190] sm:$0xff]
    %v7039 = vld [vmem:[#allocation11 + $0x198] sm:$0xff]
    %v7040 = vld [vmem:[#allocation11 + $0x1a0] sm:$0xff]
    %v7041 = vld [vmem:[#allocation11 + $0x1a8] sm:$0xff]
    %v7042 = vld [vmem:[#allocation11 + $0x1b0] sm:$0xff]
    %v7043 = vld [vmem:[#allocation11 + $0x1b8] sm:$0xff]
    %v7044 = vld [vmem:[#allocation11 + $0x1c0] sm:$0xff]
    %v7045 = vld [vmem:[#allocation11 + $0x1c8] sm:$0xff]
    %v7046 = vld [vmem:[#allocation11 + $0x1d0] sm:$0xff]
    %v7047 = vld [vmem:[#allocation11 + $0x1d8] sm:$0xff]
    %v7048 = vld [vmem:[#allocation11 + $0x1e0] sm:$0xff]
    %v7049 = vld [vmem:[#allocation11 + $0x1e8] sm:$0xff]
    %v7050 = vld [vmem:[#allocation11 + $0x1f0] sm:$0xff]
    %v7051 = vld [vmem:[#allocation11 + $0x1f8] sm:$0xff]
    %v7052 = vld [vmem:[#allocation11 + $0x200] sm:$0xff]
    %v7053 = vld [vmem:[#allocation11 + $0x208] sm:$0xff]
    %v7054 = vld [vmem:[#allocation11 + $0x210] sm:$0xff]
    %v7055 = vld [vmem:[#allocation11 + $0x218] sm:$0xff]
    %v7056 = vld [vmem:[#allocation11 + $0x220] sm:$0xff]
    %v7057 = vld [vmem:[#allocation11 + $0x228] sm:$0xff]
    %v7058 = vld [vmem:[#allocation11 + $0x230] sm:$0xff]
    %v7059 = vld [vmem:[#allocation11 + $0x238] sm:$0xff]
    %v7060 = vld [vmem:[#allocation11 + $0x240] sm:$0xff]
    %v7061 = vld [vmem:[#allocation11 + $0x248] sm:$0xff]
    %v7062 = vld [vmem:[#allocation11 + $0x250] sm:$0xff]
    %v7063 = vld [vmem:[#allocation11 + $0x258] sm:$0xff]
    %v7064 = vld [vmem:[#allocation11 + $0x260] sm:$0xff]
    %v7065 = vld [vmem:[#allocation11 + $0x268] sm:$0xff]
    %v7066 = vld [vmem:[#allocation11 + $0x270] sm:$0xff]
    %v7067 = vld [vmem:[#allocation11 + $0x278] sm:$0xff]
    %v7068 = vld [vmem:[#allocation11 + $0x280] sm:$0xff]
    %v7069 = vld [vmem:[#allocation11 + $0x288] sm:$0xff]
    %v7070 = vld [vmem:[#allocation11 + $0x290] sm:$0xff]
    %v7071 = vld [vmem:[#allocation11 + $0x298] sm:$0xff]
    %v7072 = vld [vmem:[#allocation11 + $0x2a0] sm:$0xff]
    %v7073 = vld [vmem:[#allocation11 + $0x2a8] sm:$0xff]
    %v7074 = vld [vmem:[#allocation11 + $0x2b0] sm:$0xff]
    %v7075 = vld [vmem:[#allocation11 + $0x2b8] sm:$0xff]
    %v7076 = vld [vmem:[#allocation11 + $0x2c0] sm:$0xff]
    %v7077 = vld [vmem:[#allocation11 + $0x2c8] sm:$0xff]
    %v7078 = vld [vmem:[#allocation11 + $0x2d0] sm:$0xff]
    %v7079 = vld [vmem:[#allocation11 + $0x2d8] sm:$0xff]
    %v7080 = vld [vmem:[#allocation11 + $0x2e0] sm:$0xff]
    %v7081 = vld [vmem:[#allocation11 + $0x2e8] sm:$0xff]
    %v7082 = vld [vmem:[#allocation11 + $0x2f0] sm:$0xff]
    %v7083 = vld [vmem:[#allocation11 + $0x2f8] sm:$0xff]
    %v7084 = vld [vmem:[#allocation11 + $0x300] sm:$0xff]
    %v7085 = vld [vmem:[#allocation11 + $0x308] sm:$0xff]
    %v7086 = vld [vmem:[#allocation11 + $0x310] sm:$0xff]
    %v7087 = vld [vmem:[#allocation11 + $0x318] sm:$0xff]
    %v7088 = vld [vmem:[#allocation11 + $0x320] sm:$0xff]
    %v7089 = vld [vmem:[#allocation11 + $0x328] sm:$0xff]
    %v7090 = vld [vmem:[#allocation11 + $0x330] sm:$0xff]
    %v7091 = vld [vmem:[#allocation11 + $0x338] sm:$0xff]
    %v7092 = vld [vmem:[#allocation11 + $0x340] sm:$0xff]
    %v7093 = vld [vmem:[#allocation11 + $0x348] sm:$0xff]
    %v7094 = vld [vmem:[#allocation11 + $0x350] sm:$0xff]
    %v7095 = vld [vmem:[#allocation11 + $0x358] sm:$0xff]
    %v7096 = vld [vmem:[#allocation11 + $0x360] sm:$0xff]
    %v7097 = vld [vmem:[#allocation11 + $0x368] sm:$0xff]
    %v7098 = vld [vmem:[#allocation11 + $0x370] sm:$0xff]
    %v7099 = vld [vmem:[#allocation11 + $0x378] sm:$0xff]
    %v7100 = vld [vmem:[#allocation11 + $0x380] sm:$0xff]
    %v7101 = vld [vmem:[#allocation11 + $0x388] sm:$0xff]
    %v7102 = vld [vmem:[#allocation11 + $0x390] sm:$0xff]
    %v7103 = vld [vmem:[#allocation11 + $0x398] sm:$0xff]
    %v7104 = vld [vmem:[#allocation11 + $0x3a0] sm:$0xff]
    %v7105 = vld [vmem:[#allocation11 + $0x3a8] sm:$0xff]
    %v7106 = vld [vmem:[#allocation11 + $0x3b0] sm:$0xff]
    %v7107 = vld [vmem:[#allocation11 + $0x3b8] sm:$0xff]
    %v7108 = vld [vmem:[#allocation11 + $0x3c0] sm:$0xff]
    %v7109 = vld [vmem:[#allocation11 + $0x3c8] sm:$0xff]
    %v7110 = vld [vmem:[#allocation11 + $0x3d0] sm:$0xff]
    %v7111 = vld [vmem:[#allocation11 + $0x3d8] sm:$0xff]
    %v7112 = vld [vmem:[#allocation11 + $0x3e0] sm:$0xff]
    %v7113 = vld [vmem:[#allocation11 + $0x3e8] sm:$0xff]
    %v7114 = vld [vmem:[#allocation11 + $0x3f0] sm:$0xff]
    %v7115 = vld [vmem:[#allocation11 + $0x3f8] sm:$0xff]
    %v7116 = vld [vmem:[#allocation11 + $0x400] sm:$0xff]
    %v7117 = vld [vmem:[#allocation11 + $0x408] sm:$0xff]
    %v7118 = vld [vmem:[#allocation11 + $0x410] sm:$0xff]
    %v7119 = vld [vmem:[#allocation11 + $0x418] sm:$0xff]
    %v7120 = vld [vmem:[#allocation11 + $0x420] sm:$0xff]
    %v7121 = vld [vmem:[#allocation11 + $0x428] sm:$0xff]
    %v7122 = vld [vmem:[#allocation11 + $0x430] sm:$0xff]
    %v7123 = vld [vmem:[#allocation11 + $0x438] sm:$0xff]
    %v7124 = vld [vmem:[#allocation11 + $0x440] sm:$0xff]
    %v7125 = vld [vmem:[#allocation11 + $0x448] sm:$0xff]
    %v7126 = vld [vmem:[#allocation11 + $0x450] sm:$0xff]
    %v7127 = vld [vmem:[#allocation11 + $0x458] sm:$0xff]
    %v7128 = vld [vmem:[#allocation11 + $0x460] sm:$0xff]
    %v7129 = vld [vmem:[#allocation11 + $0x468] sm:$0xff]
    %v7130 = vld [vmem:[#allocation11 + $0x470] sm:$0xff]
    %v7131 = vld [vmem:[#allocation11 + $0x478] sm:$0xff]
    %v7132 = vld [vmem:[%s16] sm:$0x1]
    %v7134 = vlaneseq
    %v7135 = vshrl.u32 %v7134, 7
    %v7136 = vsub.s32 0, %v7135
    %v7137 = vrot.slane %v7132, %v7136
    %7139 = vmatprep.subr.mxu0 0.0
    %7140 = vmatpush1.msra.mxu0 %v6988
    %7141 = vmatprep.subr.mxu0 0.0
    %7142 = vmatpush1.msra.mxu0 %v6989
    %7143 = vmatprep.subr.mxu0 0.0
    %7144 = vmatpush1.msra.mxu0 %v6990
    %7145 = vmatprep.subr.mxu0 0.0
    %7146 = vmatpush1.msra.mxu0 %v6991
    %7147 = vmatprep.subr.mxu0 0.0
    %7148 = vmatpush1.msra.mxu0 %v6992
    %7149 = vmatprep.subr.mxu0 0.0
    %7150 = vmatpush1.msra.mxu0 %v6993
    %7151 = vmatprep.subr.mxu0 0.0
    %7152 = vmatpush1.msra.mxu0 %v6994
    %7153 = vmatprep.subr.mxu0 0.0
    %7154 = vmatpush1.msra.mxu0 %v6995
    %7155 = vmatprep.subr.mxu0 0.0
    %7156 = vmatpush1.msra.mxu0 %v6996
    %7157 = vmatprep.subr.mxu0 0.0
    %7158 = vmatpush1.msra.mxu0 %v6997
    %7159 = vmatprep.subr.mxu0 0.0
    %7160 = vmatpush1.msra.mxu0 %v6998
    %7161 = vmatprep.subr.mxu0 0.0
    %7162 = vmatpush1.msra.mxu0 %v6999
    %7163 = vmatprep.subr.mxu0 0.0
    %7164 = vmatpush1.msra.mxu0 %v7000
    %7165 = vmatprep.subr.mxu0 0.0
    %7166 = vmatpush1.msra.mxu0 %v7001
    %7167 = vmatprep.subr.mxu0 0.0
    %7168 = vmatpush1.msra.mxu0 %v7002
    %7169 = vmatprep.subr.mxu0 0.0
    %7170 = vmatpush1.msra.mxu0 %v7003
    %7171 = vmatprep.subr.mxu0 0.0
    %7172 = vmatpush1.msra.mxu0 %v7004
    %7173 = vmatprep.subr.mxu0 0.0
    %7174 = vmatpush1.msra.mxu0 %v7005
    %7175 = vmatprep.subr.mxu0 0.0
    %7176 = vmatpush1.msra.mxu0 %v7006
    %7177 = vmatprep.subr.mxu0 0.0
    %7178 = vmatpush1.msra.mxu0 %v7007
    %7179 = vmatprep.subr.mxu0 0.0
    %7180 = vmatpush1.msra.mxu0 %v7008
    %7181 = vmatprep.subr.mxu0 0.0
    %7182 = vmatpush1.msra.mxu0 %v7009
    %7183 = vmatprep.subr.mxu0 0.0
    %7184 = vmatpush1.msra.mxu0 %v7010
    %7185 = vmatprep.subr.mxu0 0.0
    %7186 = vmatpush1.msra.mxu0 %v7011
    %7187 = vmatprep.subr.mxu0 0.0
    %7188 = vmatpush1.msra.mxu0 %v7012
    %7189 = vmatprep.subr.mxu0 0.0
    %7190 = vmatpush1.msra.mxu0 %v7013
    %7191 = vmatprep.subr.mxu0 0.0
    %7192 = vmatpush1.msra.mxu0 %v7014
    %7193 = vmatprep.subr.mxu0 0.0
    %7194 = vmatpush1.msra.mxu0 %v7015
    %7195 = vmatprep.subr.mxu0 0.0
    %7196 = vmatpush1.msra.mxu0 %v7016
    %7197 = vmatprep.subr.mxu0 0.0
    %7198 = vmatpush1.msra.mxu0 %v7017
    %7199 = vmatprep.subr.mxu0 0.0
    %7200 = vmatpush1.msra.mxu0 %v7018
    %7201 = vmatprep.subr.mxu0 0.0
    %7202 = vmatpush1.msra.mxu0 %v7019
    %7203 = vmatprep.mubr.f32.mxu0 %v6476
    %7204 = vmatmul.mubr.f32.gmra.mrb[0].mxu0 %v6412
    %v7205 = vpop.f32.mrb[0].mxu0
    %v7206 = vadd.f32 %v7137, %v7205
    %v7207 = vpop.f32.mrb[0].mxu0
    %7208 = vmatprep.mubr.f32.mxu0 %v6477
    %7209 = vmatmul.mubr.f32.gmra.mrb[0].mxu0 %v6413
    %v7210 = vpop.f32.mrb[0].mxu0
    %v7211 = vadd.f32 %v7137, %v7210
    %v7212 = vpop.f32.mrb[0].mxu0
    %7213 = vmatprep.mubr.f32.mxu0 %v6478
    %7214 = vmatmul.mubr.f32.gmra.mrb[0].mxu0 %v6414
    %v7215 = vpop.f32.mrb[0].mxu0
    %v7216 = vadd.f32 %v7137, %v7215
    %v7217 = vpop.f32.mrb[0].mxu0
    %7218 = vmatprep.mubr.f32.mxu0 %v6479
    %7219 = vmatmul.mubr.f32.gmra.mrb[0].mxu0 %v6415
    %v7220 = vpop.f32.mrb[0].mxu0
    %v7221 = vadd.f32 %v7137, %v7220
    %v7222 = vpop.f32.mrb[0].mxu0
    %7223 = vmatprep.mubr.f32.mxu0 %v6480
    %7224 = vmatmul.mubr.f32.gmra.mrb[0].mxu0 %v6416
    %v7225 = vpop.f32.mrb[0].mxu0
    %v7226 = vadd.f32 %v7137, %v7225
    %v7227 = vpop.f32.mrb[0].mxu0
    %7228 = vmatprep.mubr.f32.mxu0 %v6481
    %7229 = vmatmul.mubr.f32.gmra.mrb[0].mxu0 %v6417
    %v7230 = vpop.f32.mrb[0].mxu0
    %v7231 = vadd.f32 %v7137, %v7230
    %v7232 = vpop.f32.mrb[0].mxu0
    %7233 = vmatprep.mubr.f32.mxu0 %v6482
    %7234 = vmatmul.mubr.f32.gmra.mrb[0].mxu0 %v6418
    %v7235 = vpop.f32.mrb[0].mxu0
    %v7236 = vadd.f32 %v7137, %v7235
    %v7237 = vpop.f32.mrb[0].mxu0
    %7238 = vmatprep.mubr.f32.mxu0 %v6483
    %7239 = vmatmul.mubr.f32.gmra.mrb[0].mxu0 %v6419
    %v7240 = vpop.f32.mrb[0].mxu0
    %v7241 = vadd.f32 %v7137, %v7240
    %v7242 = vpop.f32.mrb[0].mxu0
    %7243 = vmatprep.mubr.f32.mxu0 %v6484
    %7244 = vmatmul.mubr.f32.gmra.mrb[0].mxu0 %v6420
    %v7245 = vpop.f32.mrb[0].mxu0
    %v7246 = vadd.f32 %v7137, %v7245
    %v7247 = vpop.f32.mrb[0].mxu0
    %7248 = vmatprep.mubr.f32.mxu0 %v6485
    %7249 = vmatmul.mubr.f32.gmra.mrb[0].mxu0 %v6421
    %v7250 = vpop.f32.mrb[0].mxu0
    %v7251 = vadd.f32 %v7137, %v7250
    %v7252 = vpop.f32.mrb[0].mxu0
    %7253 = vmatprep.mubr.f32.mxu0 %v6486
    %7254 = vmatmul.mubr.f32.gmra.mrb[0].mxu0 %v6422
    %v7255 = vpop.f32.mrb[0].mxu0
    %v7256 = vadd.f32 %v7137, %v7255
    %v7257 = vpop.f32.mrb[0].mxu0
    %7258 = vmatprep.mubr.f32.mxu0 %v6487
    %7259 = vmatmul.mubr.f32.gmra.mrb[0].mxu0 %v6423
    %v7260 = vpop.f32.mrb[0].mxu0
    %v7261 = vadd.f32 %v7137, %v7260
    %v7262 = vpop.f32.mrb[0].mxu0
    %7263 = vmatprep.mubr.f32.mxu0 %v6488
    %7264 = vmatmul.mubr.f32.gmra.mrb[0].mxu0 %v6424
    %v7265 = vpop.f32.mrb[0].mxu0
    %v7266 = vadd.f32 %v7137, %v7265
    %v7267 = vpop.f32.mrb[0].mxu0
    %7268 = vmatprep.mubr.f32.mxu0 %v6489
    %7269 = vmatmul.mubr.f32.gmra.mrb[0].mxu0 %v6425
    %v7270 = vpop.f32.mrb[0].mxu0
    %v7271 = vadd.f32 %v7137, %v7270
    %v7272 = vpop.f32.mrb[0].mxu0
    %7273 = vmatprep.mubr.f32.mxu0 %v6490
    %7274 = vmatmul.mubr.f32.gmra.mrb[0].mxu0 %v6426
    %v7275 = vpop.f32.mrb[0].mxu0
    %v7276 = vadd.f32 %v7137, %v7275
    %v7277 = vpop.f32.mrb[0].mxu0
    %7278 = vmatprep.mubr.f32.mxu0 %v6491
    %7279 = vmatmul.mubr.f32.gmra.mrb[0].mxu0 %v6427
    %v7280 = vpop.f32.mrb[0].mxu0
    %v7281 = vadd.f32 %v7137, %v7280
    %v7282 = vpop.f32.mrb[0].mxu0
    %7283 = vmatprep.mubr.f32.mxu0 %v6492
    %7284 = vmatmul.mubr.f32.gmra.mrb[0].mxu0 %v6428
    %v7285 = vpop.f32.mrb[0].mxu0
    %v7286 = vadd.f32 %v7137, %v7285
    %v7287 = vpop.f32.mrb[0].mxu0
    %7288 = vmatprep.mubr.f32.mxu0 %v6493
    %7289 = vmatmul.mubr.f32.gmra.mrb[0].mxu0 %v6429
    %v7290 = vpop.f32.mrb[0].mxu0
    %v7291 = vadd.f32 %v7137, %v7290
    %v7292 = vpop.f32.mrb[0].mxu0
    %7293 = vmatprep.mubr.f32.mxu0 %v6494
    %7294 = vmatmul.mubr.f32.gmra.mrb[0].mxu0 %v6430
    %v7295 = vpop.f32.mrb[0].mxu0
    %v7296 = vadd.f32 %v7137, %v7295
    %v7297 = vpop.f32.mrb[0].mxu0
    %7298 = vmatprep.mubr.f32.mxu0 %v6495
    %7299 = vmatmul.mubr.f32.gmra.mrb[0].mxu0 %v6431
    %v7300 = vpop.f32.mrb[0].mxu0
    %v7301 = vadd.f32 %v7137, %v7300
    %v7302 = vpop.f32.mrb[0].mxu0
    %7303 = vmatprep.mubr.f32.mxu0 %v6496
    %7304 = vmatmul.mubr.f32.gmra.mrb[0].mxu0 %v6432
    %v7305 = vpop.f32.mrb[0].mxu0
    %v7306 = vadd.f32 %v7137, %v7305
    %v7307 = vpop.f32.mrb[0].mxu0
    %7308 = vmatprep.mubr.f32.mxu0 %v6497
    %7309 = vmatmul.mubr.f32.gmra.mrb[0].mxu0 %v6433
    %v7310 = vpop.f32.mrb[0].mxu0
    %v7311 = vadd.f32 %v7137, %v7310
    %v7312 = vpop.f32.mrb[0].mxu0
    %7313 = vmatprep.mubr.f32.mxu0 %v6498
    %7314 = vmatmul.mubr.f32.gmra.mrb[0].mxu0 %v6434
    %v7315 = vpop.f32.mrb[0].mxu0
    %v7316 = vadd.f32 %v7137, %v7315
    %v7317 = vpop.f32.mrb[0].mxu0
    %7318 = vmatprep.mubr.f32.mxu0 %v6499
    %7319 = vmatmul.mubr.f32.gmra.mrb[0].mxu0 %v6435
    %v7320 = vpop.f32.mrb[0].mxu0
    %v7321 = vadd.f32 %v7137, %v7320
    %v7322 = vpop.f32.mrb[0].mxu0
    %7323 = vmatprep.mubr.f32.mxu0 %v6500
    %7324 = vmatmul.mubr.f32.gmra.mrb[0].mxu0 %v6436
    %v7325 = vpop.f32.mrb[0].mxu0
    %v7326 = vadd.f32 %v7137, %v7325
    %v7327 = vpop.f32.mrb[0].mxu0
    %7328 = vmatprep.mubr.f32.mxu0 %v6501
    %7329 = vmatmul.mubr.f32.gmra.mrb[0].mxu0 %v6437
    %v7330 = vpop.f32.mrb[0].mxu0
    %v7331 = vadd.f32 %v7137, %v7330
    %v7332 = vpop.f32.mrb[0].mxu0
    %7333 = vmatprep.mubr.f32.mxu0 %v6502
    %7334 = vmatmul.mubr.f32.gmra.mrb[0].mxu0 %v6438
    %v7335 = vpop.f32.mrb[0].mxu0
    %v7336 = vadd.f32 %v7137, %v7335
    %v7337 = vpop.f32.mrb[0].mxu0
    %7338 = vmatprep.mubr.f32.mxu0 %v6503
    %7339 = vmatmul.mubr.f32.gmra.mrb[0].mxu0 %v6439
    %v7340 = vpop.f32.mrb[0].mxu0
    %v7341 = vadd.f32 %v7137, %v7340
    %v7342 = vpop.f32.mrb[0].mxu0
    %7343 = vmatprep.mubr.f32.mxu0 %v6504
    %7344 = vmatmul.mubr.f32.gmra.mrb[0].mxu0 %v6440
    %v7345 = vpop.f32.mrb[0].mxu0
    %v7346 = vadd.f32 %v7137, %v7345
    %v7347 = vpop.f32.mrb[0].mxu0
    %7348 = vmatprep.mubr.f32.mxu0 %v6505
    %7349 = vmatmul.mubr.f32.gmra.mrb[0].mxu0 %v6441
    %v7350 = vpop.f32.mrb[0].mxu0
    %v7351 = vadd.f32 %v7137, %v7350
    %v7352 = vpop.f32.mrb[0].mxu0
    %7353 = vmatprep.mubr.f32.mxu0 %v6506
    %7354 = vmatmul.mubr.f32.gmra.mrb[0].mxu0 %v6442
    %v7355 = vpop.f32.mrb[0].mxu0
    %v7356 = vadd.f32 %v7137, %v7355
    %v7357 = vpop.f32.mrb[0].mxu0
    %7358 = vmatprep.mubr.f32.mxu0 %v6507
    %7359 = vmatmul.mubr.f32.gmra.mrb[0].mxu0 %v6443
    %v7360 = vpop.f32.mrb[0].mxu0
    %v7361 = vadd.f32 %v7137, %v7360
    %v7362 = vpop.f32.mrb[0].mxu0
    %7363 = vmatprep.mubr.f32.mxu0 %v6508
    %7364 = vmatmul.mubr.f32.gmra.mrb[0].mxu0 %v6444
    %v7365 = vpop.f32.mrb[0].mxu0
    %v7366 = vadd.f32 %v7137, %v7365
    %v7367 = vpop.f32.mrb[0].mxu0
    %7368 = vmatprep.mubr.f32.mxu0 %v6509
    %7369 = vmatmul.mubr.f32.gmra.mrb[0].mxu0 %v6445
    %v7370 = vpop.f32.mrb[0].mxu0
    %v7371 = vadd.f32 %v7137, %v7370
    %v7372 = vpop.f32.mrb[0].mxu0
    %7373 = vmatprep.mubr.f32.mxu0 %v6510
    %7374 = vmatmul.mubr.f32.gmra.mrb[0].mxu0 %v6446
    %v7375 = vpop.f32.mrb[0].mxu0
    %v7376 = vadd.f32 %v7137, %v7375
    %v7377 = vpop.f32.mrb[0].mxu0
    %7378 = vmatprep.mubr.f32.mxu0 %v6511
    %7379 = vmatmul.mubr.f32.gmra.mrb[0].mxu0 %v6447
    %v7380 = vpop.f32.mrb[0].mxu0
    %v7381 = vadd.f32 %v7137, %v7380
    %v7382 = vpop.f32.mrb[0].mxu0
    %7383 = vmatprep.mubr.f32.mxu0 %v6512
    %7384 = vmatmul.mubr.f32.gmra.mrb[0].mxu0 %v6448
    %v7385 = vpop.f32.mrb[0].mxu0
    %v7386 = vadd.f32 %v7137, %v7385
    %v7387 = vpop.f32.mrb[0].mxu0
    %7388 = vmatprep.mubr.f32.mxu0 %v6513
    %7389 = vmatmul.mubr.f32.gmra.mrb[0].mxu0 %v6449
    %v7390 = vpop.f32.mrb[0].mxu0
    %v7391 = vadd.f32 %v7137, %v7390
    %v7392 = vpop.f32.mrb[0].mxu0
    %7393 = vmatprep.mubr.f32.mxu0 %v6514
    %7394 = vmatmul.mubr.f32.gmra.mrb[0].mxu0 %v6450
    %v7395 = vpop.f32.mrb[0].mxu0
    %v7396 = vadd.f32 %v7137, %v7395
    %v7397 = vpop.f32.mrb[0].mxu0
    %7398 = vmatprep.mubr.f32.mxu0 %v6515
    %7399 = vmatmul.mubr.f32.gmra.mrb[0].mxu0 %v6451
    %v7400 = vpop.f32.mrb[0].mxu0
    %v7401 = vadd.f32 %v7137, %v7400
    %v7402 = vpop.f32.mrb[0].mxu0
    %7403 = vmatprep.mubr.f32.mxu0 %v6516
    %7404 = vmatmul.mubr.f32.gmra.mrb[0].mxu0 %v6452
    %v7405 = vpop.f32.mrb[0].mxu0
    %v7406 = vadd.f32 %v7137, %v7405
    %v7407 = vpop.f32.mrb[0].mxu0
    %7408 = vmatprep.mubr.f32.mxu0 %v6517
    %7409 = vmatmul.mubr.f32.gmra.mrb[0].mxu0 %v6453
    %v7410 = vpop.f32.mrb[0].mxu0
    %v7411 = vadd.f32 %v7137, %v7410
    %v7412 = vpop.f32.mrb[0].mxu0
    %7413 = vmatprep.mubr.f32.mxu0 %v6518
    %7414 = vmatmul.mubr.f32.gmra.mrb[0].mxu0 %v6454
    %v7415 = vpop.f32.mrb[0].mxu0
    %v7416 = vadd.f32 %v7137, %v7415
    %v7417 = vpop.f32.mrb[0].mxu0
    %7418 = vmatprep.mubr.f32.mxu0 %v6519
    %7419 = vmatmul.mubr.f32.gmra.mrb[0].mxu0 %v6455
    %v7420 = vpop.f32.mrb[0].mxu0
    %v7421 = vadd.f32 %v7137, %v7420
    %v7422 = vpop.f32.mrb[0].mxu0
    %7423 = vmatprep.mubr.f32.mxu0 %v6520
    %7424 = vmatmul.mubr.f32.gmra.mrb[0].mxu0 %v6456
    %v7425 = vpop.f32.mrb[0].mxu0
    %v7426 = vadd.f32 %v7137, %v7425
    %v7427 = vpop.f32.mrb[0].mxu0
    %7428 = vmatprep.mubr.f32.mxu0 %v6521
    %7429 = vmatmul.mubr.f32.gmra.mrb[0].mxu0 %v6457
    %v7430 = vpop.f32.mrb[0].mxu0
    %v7431 = vadd.f32 %v7137, %v7430
    %v7432 = vpop.f32.mrb[0].mxu0
    %7433 = vmatprep.mubr.f32.mxu0 %v6522
    %7434 = vmatmul.mubr.f32.gmra.mrb[0].mxu0 %v6458
    %v7435 = vpop.f32.mrb[0].mxu0
    %v7436 = vadd.f32 %v7137, %v7435
    %v7437 = vpop.f32.mrb[0].mxu0
    %7438 = vmatprep.mubr.f32.mxu0 %v6523
    %7439 = vmatmul.mubr.f32.gmra.mrb[0].mxu0 %v6459
    %v7440 = vpop.f32.mrb[0].mxu0
    %v7441 = vadd.f32 %v7137, %v7440
    %v7442 = vpop.f32.mrb[0].mxu0
    %7443 = vmatprep.mubr.f32.mxu0 %v6524
    %7444 = vmatmul.mubr.f32.gmra.mrb[0].mxu0 %v6460
    %v7445 = vpop.f32.mrb[0].mxu0
    %v7446 = vadd.f32 %v7137, %v7445
    %v7447 = vpop.f32.mrb[0].mxu0
    %7448 = vmatprep.mubr.f32.mxu0 %v6525
    %7449 = vmatmul.mubr.f32.gmra.mrb[0].mxu0 %v6461
    %v7450 = vpop.f32.mrb[0].mxu0
    %v7451 = vadd.f32 %v7137, %v7450
    %v7452 = vpop.f32.mrb[0].mxu0
    %7453 = vmatprep.mubr.f32.mxu0 %v6526
    %7454 = vmatmul.mubr.f32.gmra.mrb[0].mxu0 %v6462
    %v7455 = vpop.f32.mrb[0].mxu0
    %v7456 = vadd.f32 %v7137, %v7455
    %v7457 = vpop.f32.mrb[0].mxu0
    %7458 = vmatprep.mubr.f32.mxu0 %v6527
    %7459 = vmatmul.mubr.f32.gmra.mrb[0].mxu0 %v6463
    %v7460 = vpop.f32.mrb[0].mxu0
    %v7461 = vadd.f32 %v7137, %v7460
    %v7462 = vpop.f32.mrb[0].mxu0
    %7463 = vmatprep.mubr.f32.mxu0 %v6528
    %7464 = vmatmul.mubr.f32.gmra.mrb[0].mxu0 %v6464
    %v7465 = vpop.f32.mrb[0].mxu0
    %v7466 = vadd.f32 %v7137, %v7465
    %v7467 = vpop.f32.mrb[0].mxu0
    %7468 = vmatprep.mubr.f32.mxu0 %v6529
    %7469 = vmatmul.mubr.f32.gmra.mrb[0].mxu0 %v6465
    %v7470 = vpop.f32.mrb[0].mxu0
    %v7471 = vadd.f32 %v7137, %v7470
    %v7472 = vpop.f32.mrb[0].mxu0
    %7473 = vmatprep.mubr.f32.mxu0 %v6530
    %7474 = vmatmul.mubr.f32.gmra.mrb[0].mxu0 %v6466
    %v7475 = vpop.f32.mrb[0].mxu0
    %v7476 = vadd.f32 %v7137, %v7475
    %v7477 = vpop.f32.mrb[0].mxu0
    %7478 = vmatprep.mubr.f32.mxu0 %v6531
    %7479 = vmatmul.mubr.f32.gmra.mrb[0].mxu0 %v6467
    %v7480 = vpop.f32.mrb[0].mxu0
    %v7481 = vadd.f32 %v7137, %v7480
    %v7482 = vpop.f32.mrb[0].mxu0
    %7483 = vmatprep.mubr.f32.mxu0 %v6532
    %7484 = vmatmul.mubr.f32.gmra.mrb[0].mxu0 %v6468
    %v7485 = vpop.f32.mrb[0].mxu0
    %v7486 = vadd.f32 %v7137, %v7485
    %v7487 = vpop.f32.mrb[0].mxu0
    %7488 = vmatprep.mubr.f32.mxu0 %v6533
    %7489 = vmatmul.mubr.f32.gmra.mrb[0].mxu0 %v6469
    %v7490 = vpop.f32.mrb[0].mxu0
    %v7491 = vadd.f32 %v7137, %v7490
    %v7492 = vpop.f32.mrb[0].mxu0
    %7493 = vmatprep.mubr.f32.mxu0 %v6534
    %7494 = vmatmul.mubr.f32.gmra.mrb[0].mxu0 %v6470
    %v7495 = vpop.f32.mrb[0].mxu0
    %v7496 = vadd.f32 %v7137, %v7495
    %v7497 = vpop.f32.mrb[0].mxu0
    %7498 = vmatprep.mubr.f32.mxu0 %v6535
    %7499 = vmatmul.mubr.f32.gmra.mrb[0].mxu0 %v6471
    %v7500 = vpop.f32.mrb[0].mxu0
    %v7501 = vadd.f32 %v7137, %v7500
    %v7502 = vpop.f32.mrb[0].mxu0
    %7503 = vmatprep.mubr.f32.mxu0 %v6536
    %7504 = vmatmul.mubr.f32.gmra.mrb[0].mxu0 %v6472
    %v7505 = vpop.f32.mrb[0].mxu0
    %v7506 = vadd.f32 %v7137, %v7505
    %v7507 = vpop.f32.mrb[0].mxu0
    %7508 = vmatprep.mubr.f32.mxu0 %v6537
    %7509 = vmatmul.mubr.f32.gmra.mrb[0].mxu0 %v6473
    %v7510 = vpop.f32.mrb[0].mxu0
    %v7511 = vadd.f32 %v7137, %v7510
    %v7512 = vpop.f32.mrb[0].mxu0
    %7513 = vmatprep.mubr.f32.mxu0 %v6538
    %7514 = vmatmul.mubr.f32.gmra.mrb[0].mxu0 %v6474
    %v7515 = vpop.f32.mrb[0].mxu0
    %v7516 = vadd.f32 %v7137, %v7515
    %v7517 = vpop.f32.mrb[0].mxu0
    %7518 = vmatprep.mubr.f32.mxu0 %v6539
    %7519 = vmatmul.mubr.f32.gmra.mrb[0].mxu0 %v6475
    %v7520 = vpop.f32.mrb[0].mxu0
    %v7521 = vadd.f32 %v7137, %v7520
    %v7522 = vpop.f32.mrb[0].mxu0
    %7523 = vdwg.mxu0
    %7524 = vmatprep.subr.mxu0 0.0
    %7525 = vmatpush1.msra.mxu0 %v7020
    %7526 = vmatprep.subr.mxu0 0.0
    %7527 = vmatpush1.msra.mxu0 %v7021
    %7528 = vmatprep.subr.mxu0 0.0
    %7529 = vmatpush1.msra.mxu0 %v7022
    %7530 = vmatprep.subr.mxu0 0.0
    %7531 = vmatpush1.msra.mxu0 %v7023
    %7532 = vmatprep.subr.mxu0 0.0
    %7533 = vmatpush1.msra.mxu0 %v7024
    %7534 = vmatprep.subr.mxu0 0.0
    %7535 = vmatpush1.msra.mxu0 %v7025
    %7536 = vmatprep.subr.mxu0 0.0
    %7537 = vmatpush1.msra.mxu0 %v7026
    %7538 = vmatprep.subr.mxu0 0.0
    %7539 = vmatpush1.msra.mxu0 %v7027
    %7540 = vmatprep.subr.mxu0 0.0
    %7541 = vmatpush1.msra.mxu0 %v7028
    %7542 = vmatprep.subr.mxu0 0.0
    %7543 = vmatpush1.msra.mxu0 %v7029
    %7544 = vmatprep.subr.mxu0 0.0
    %7545 = vmatpush1.msra.mxu0 %v7030
    %7546 = vmatprep.subr.mxu0 0.0
    %7547 = vmatpush1.msra.mxu0 %v7031
    %7548 = vmatprep.subr.mxu0 0.0
    %7549 = vmatpush1.msra.mxu0 %v7032
    %7550 = vmatprep.subr.mxu0 0.0
    %7551 = vmatpush1.msra.mxu0 %v7033
    %7552 = vmatprep.subr.mxu0 0.0
    %7553 = vmatpush1.msra.mxu0 %v7034
    %7554 = vmatprep.subr.mxu0 0.0
    %7555 = vmatpush1.msra.mxu0 %v7035
    %7556 = vmatprep.subr.mxu0 0.0
    %7557 = vmatpush1.msra.mxu0 %v7036
    %7558 = vmatprep.subr.mxu0 0.0
    %7559 = vmatpush1.msra.mxu0 %v7037
    %7560 = vmatprep.subr.mxu0 0.0
    %7561 = vmatpush1.msra.mxu0 %v7038
    %7562 = vmatprep.subr.mxu0 0.0
    %7563 = vmatpush1.msra.mxu0 %v7039
    %7564 = vmatprep.subr.mxu0 0.0
    %7565 = vmatpush1.msra.mxu0 %v7040
    %7566 = vmatprep.subr.mxu0 0.0
    %7567 = vmatpush1.msra.mxu0 %v7041
    %7568 = vmatprep.subr.mxu0 0.0
    %7569 = vmatpush1.msra.mxu0 %v7042
    %7570 = vmatprep.subr.mxu0 0.0
    %7571 = vmatpush1.msra.mxu0 %v7043
    %7572 = vmatprep.subr.mxu0 0.0
    %7573 = vmatpush1.msra.mxu0 %v7044
    %7574 = vmatprep.subr.mxu0 0.0
    %7575 = vmatpush1.msra.mxu0 %v7045
    %7576 = vmatprep.subr.mxu0 0.0
    %7577 = vmatpush1.msra.mxu0 %v7046
    %7578 = vmatprep.subr.mxu0 0.0
    %7579 = vmatpush1.msra.mxu0 %v7047
    %7580 = vmatprep.subr.mxu0 0.0
    %7581 = vmatpush1.msra.mxu0 %v7048
    %7582 = vmatprep.subr.mxu0 0.0
    %7583 = vmatpush1.msra.mxu0 %v7049
    %7584 = vmatprep.subr.mxu0 0.0
    %7585 = vmatpush1.msra.mxu0 %v7050
    %7586 = vmatprep.subr.mxu0 0.0
    %7587 = vmatpush1.msra.mxu0 %v7051
    %7588 = vmatprep.mubr.f32.mxu0 %v6604
    %7589 = vmatmul.mubr.f32.gmra.mrb[0].mxu0 %v6540
    %v7590 = vpop.f32.mrb[0].mxu0
    %v7591 = vadd.f32 %v7206, %v7590
    %v7592 = vpop.f32.mrb[0].mxu0
    %7593 = vmatprep.mubr.f32.mxu0 %v6605
    %7594 = vmatmul.mubr.f32.gmra.mrb[0].mxu0 %v6541
    %v7595 = vpop.f32.mrb[0].mxu0
    %v7596 = vadd.f32 %v7211, %v7595
    %v7597 = vpop.f32.mrb[0].mxu0
    %7598 = vmatprep.mubr.f32.mxu0 %v6606
    %7599 = vmatmul.mubr.f32.gmra.mrb[0].mxu0 %v6542
    %v7600 = vpop.f32.mrb[0].mxu0
    %v7601 = vadd.f32 %v7216, %v7600
    %v7602 = vpop.f32.mrb[0].mxu0
    %7603 = vmatprep.mubr.f32.mxu0 %v6607
    %7604 = vmatmul.mubr.f32.gmra.mrb[0].mxu0 %v6543
    %v7605 = vpop.f32.mrb[0].mxu0
    %v7606 = vadd.f32 %v7221, %v7605
    %v7607 = vpop.f32.mrb[0].mxu0
    %7608 = vmatprep.mubr.f32.mxu0 %v6608
    %7609 = vmatmul.mubr.f32.gmra.mrb[0].mxu0 %v6544
    %v7610 = vpop.f32.mrb[0].mxu0
    %v7611 = vadd.f32 %v7226, %v7610
    %v7612 = vpop.f32.mrb[0].mxu0
    %7613 = vmatprep.mubr.f32.mxu0 %v6609
    %7614 = vmatmul.mubr.f32.gmra.mrb[0].mxu0 %v6545
    %v7615 = vpop.f32.mrb[0].mxu0
    %v7616 = vadd.f32 %v7231, %v7615
    %v7617 = vpop.f32.mrb[0].mxu0
    %7618 = vmatprep.mubr.f32.mxu0 %v6610
    %7619 = vmatmul.mubr.f32.gmra.mrb[0].mxu0 %v6546
    %v7620 = vpop.f32.mrb[0].mxu0
    %v7621 = vadd.f32 %v7236, %v7620
    %v7622 = vpop.f32.mrb[0].mxu0
    %7623 = vmatprep.mubr.f32.mxu0 %v6611
    %7624 = vmatmul.mubr.f32.gmra.mrb[0].mxu0 %v6547
    %v7625 = vpop.f32.mrb[0].mxu0
    %v7626 = vadd.f32 %v7241, %v7625
    %v7627 = vpop.f32.mrb[0].mxu0
    %7628 = vmatprep.mubr.f32.mxu0 %v6612
    %7629 = vmatmul.mubr.f32.gmra.mrb[0].mxu0 %v6548
    %v7630 = vpop.f32.mrb[0].mxu0
    %v7631 = vadd.f32 %v7246, %v7630
    %v7632 = vpop.f32.mrb[0].mxu0
    %7633 = vmatprep.mubr.f32.mxu0 %v6613
    %7634 = vmatmul.mubr.f32.gmra.mrb[0].mxu0 %v6549
    %v7635 = vpop.f32.mrb[0].mxu0
    %v7636 = vadd.f32 %v7251, %v7635
    %v7637 = vpop.f32.mrb[0].mxu0
    %7638 = vmatprep.mubr.f32.mxu0 %v6614
    %7639 = vmatmul.mubr.f32.gmra.mrb[0].mxu0 %v6550
    %v7640 = vpop.f32.mrb[0].mxu0
    %v7641 = vadd.f32 %v7256, %v7640
    %v7642 = vpop.f32.mrb[0].mxu0
    %7643 = vmatprep.mubr.f32.mxu0 %v6615
    %7644 = vmatmul.mubr.f32.gmra.mrb[0].mxu0 %v6551
    %v7645 = vpop.f32.mrb[0].mxu0
    %v7646 = vadd.f32 %v7261, %v7645
    %v7647 = vpop.f32.mrb[0].mxu0
    %7648 = vmatprep.mubr.f32.mxu0 %v6616
    %7649 = vmatmul.mubr.f32.gmra.mrb[0].mxu0 %v6552
    %v7650 = vpop.f32.mrb[0].mxu0
    %v7651 = vadd.f32 %v7266, %v7650
    %v7652 = vpop.f32.mrb[0].mxu0
    %7653 = vmatprep.mubr.f32.mxu0 %v6617
    %7654 = vmatmul.mubr.f32.gmra.mrb[0].mxu0 %v6553
    %v7655 = vpop.f32.mrb[0].mxu0
    %v7656 = vadd.f32 %v7271, %v7655
    %v7657 = vpop.f32.mrb[0].mxu0
    %7658 = vmatprep.mubr.f32.mxu0 %v6618
    %7659 = vmatmul.mubr.f32.gmra.mrb[0].mxu0 %v6554
    %v7660 = vpop.f32.mrb[0].mxu0
    %v7661 = vadd.f32 %v7276, %v7660
    %v7662 = vpop.f32.mrb[0].mxu0
    %7663 = vmatprep.mubr.f32.mxu0 %v6619
    %7664 = vmatmul.mubr.f32.gmra.mrb[0].mxu0 %v6555
    %v7665 = vpop.f32.mrb[0].mxu0
    %v7666 = vadd.f32 %v7281, %v7665
    %v7667 = vpop.f32.mrb[0].mxu0
    %7668 = vmatprep.mubr.f32.mxu0 %v6620
    %7669 = vmatmul.mubr.f32.gmra.mrb[0].mxu0 %v6556
    %v7670 = vpop.f32.mrb[0].mxu0
    %v7671 = vadd.f32 %v7286, %v7670
    %v7672 = vpop.f32.mrb[0].mxu0
    %7673 = vmatprep.mubr.f32.mxu0 %v6621
    %7674 = vmatmul.mubr.f32.gmra.mrb[0].mxu0 %v6557
    %v7675 = vpop.f32.mrb[0].mxu0
    %v7676 = vadd.f32 %v7291, %v7675
    %v7677 = vpop.f32.mrb[0].mxu0
    %7678 = vmatprep.mubr.f32.mxu0 %v6622
    %7679 = vmatmul.mubr.f32.gmra.mrb[0].mxu0 %v6558
    %v7680 = vpop.f32.mrb[0].mxu0
    %v7681 = vadd.f32 %v7296, %v7680
    %v7682 = vpop.f32.mrb[0].mxu0
    %7683 = vmatprep.mubr.f32.mxu0 %v6623
    %7684 = vmatmul.mubr.f32.gmra.mrb[0].mxu0 %v6559
    %v7685 = vpop.f32.mrb[0].mxu0
    %v7686 = vadd.f32 %v7301, %v7685
    %v7687 = vpop.f32.mrb[0].mxu0
    %7688 = vmatprep.mubr.f32.mxu0 %v6624
    %7689 = vmatmul.mubr.f32.gmra.mrb[0].mxu0 %v6560
    %v7690 = vpop.f32.mrb[0].mxu0
    %v7691 = vadd.f32 %v7306, %v7690
    %v7692 = vpop.f32.mrb[0].mxu0
    %7693 = vmatprep.mubr.f32.mxu0 %v6625
    %7694 = vmatmul.mubr.f32.gmra.mrb[0].mxu0 %v6561
    %v7695 = vpop.f32.mrb[0].mxu0
    %v7696 = vadd.f32 %v7311, %v7695
    %v7697 = vpop.f32.mrb[0].mxu0
    %7698 = vmatprep.mubr.f32.mxu0 %v6626
    %7699 = vmatmul.mubr.f32.gmra.mrb[0].mxu0 %v6562
    %v7700 = vpop.f32.mrb[0].mxu0
    %v7701 = vadd.f32 %v7316, %v7700
    %v7702 = vpop.f32.mrb[0].mxu0
    %7703 = vmatprep.mubr.f32.mxu0 %v6627
    %7704 = vmatmul.mubr.f32.gmra.mrb[0].mxu0 %v6563
    %v7705 = vpop.f32.mrb[0].mxu0
    %v7706 = vadd.f32 %v7321, %v7705
    %v7707 = vpop.f32.mrb[0].mxu0
    %7708 = vmatprep.mubr.f32.mxu0 %v6628
    %7709 = vmatmul.mubr.f32.gmra.mrb[0].mxu0 %v6564
    %v7710 = vpop.f32.mrb[0].mxu0
    %v7711 = vadd.f32 %v7326, %v7710
    %v7712 = vpop.f32.mrb[0].mxu0
    %7713 = vmatprep.mubr.f32.mxu0 %v6629
    %7714 = vmatmul.mubr.f32.gmra.mrb[0].mxu0 %v6565
    %v7715 = vpop.f32.mrb[0].mxu0
    %v7716 = vadd.f32 %v7331, %v7715
    %v7717 = vpop.f32.mrb[0].mxu0
    %7718 = vmatprep.mubr.f32.mxu0 %v6630
    %7719 = vmatmul.mubr.f32.gmra.mrb[0].mxu0 %v6566
    %v7720 = vpop.f32.mrb[0].mxu0
    %v7721 = vadd.f32 %v7336, %v7720
    %v7722 = vpop.f32.mrb[0].mxu0
    %7723 = vmatprep.mubr.f32.mxu0 %v6631
    %7724 = vmatmul.mubr.f32.gmra.mrb[0].mxu0 %v6567
    %v7725 = vpop.f32.mrb[0].mxu0
    %v7726 = vadd.f32 %v7341, %v7725
    %v7727 = vpop.f32.mrb[0].mxu0
    %7728 = vmatprep.mubr.f32.mxu0 %v6632
    %7729 = vmatmul.mubr.f32.gmra.mrb[0].mxu0 %v6568
    %v7730 = vpop.f32.mrb[0].mxu0
    %v7731 = vadd.f32 %v7346, %v7730
    %v7732 = vpop.f32.mrb[0].mxu0
    %7733 = vmatprep.mubr.f32.mxu0 %v6633
    %7734 = vmatmul.mubr.f32.gmra.mrb[0].mxu0 %v6569
    %v7735 = vpop.f32.mrb[0].mxu0
    %v7736 = vadd.f32 %v7351, %v7735
    %v7737 = vpop.f32.mrb[0].mxu0
    %7738 = vmatprep.mubr.f32.mxu0 %v6634
    %7739 = vmatmul.mubr.f32.gmra.mrb[0].mxu0 %v6570
    %v7740 = vpop.f32.mrb[0].mxu0
    %v7741 = vadd.f32 %v7356, %v7740
    %v7742 = vpop.f32.mrb[0].mxu0
    %7743 = vmatprep.mubr.f32.mxu0 %v6635
    %7744 = vmatmul.mubr.f32.gmra.mrb[0].mxu0 %v6571
    %v7745 = vpop.f32.mrb[0].mxu0
    %v7746 = vadd.f32 %v7361, %v7745
    %v7747 = vpop.f32.mrb[0].mxu0
    %7748 = vmatprep.mubr.f32.mxu0 %v6636
    %7749 = vmatmul.mubr.f32.gmra.mrb[0].mxu0 %v6572
    %v7750 = vpop.f32.mrb[0].mxu0
    %v7751 = vadd.f32 %v7366, %v7750
    %v7752 = vpop.f32.mrb[0].mxu0
    %7753 = vmatprep.mubr.f32.mxu0 %v6637
    %7754 = vmatmul.mubr.f32.gmra.mrb[0].mxu0 %v6573
    %v7755 = vpop.f32.mrb[0].mxu0
    %v7756 = vadd.f32 %v7371, %v7755
    %v7757 = vpop.f32.mrb[0].mxu0
    %7758 = vmatprep.mubr.f32.mxu0 %v6638
    %7759 = vmatmul.mubr.f32.gmra.mrb[0].mxu0 %v6574
    %v7760 = vpop.f32.mrb[0].mxu0
    %v7761 = vadd.f32 %v7376, %v7760
    %v7762 = vpop.f32.mrb[0].mxu0
    %7763 = vmatprep.mubr.f32.mxu0 %v6639
    %7764 = vmatmul.mubr.f32.gmra.mrb[0].mxu0 %v6575
    %v7765 = vpop.f32.mrb[0].mxu0
    %v7766 = vadd.f32 %v7381, %v7765
    %v7767 = vpop.f32.mrb[0].mxu0
    %7768 = vmatprep.mubr.f32.mxu0 %v6640
    %7769 = vmatmul.mubr.f32.gmra.mrb[0].mxu0 %v6576
    %v7770 = vpop.f32.mrb[0].mxu0
    %v7771 = vadd.f32 %v7386, %v7770
    %v7772 = vpop.f32.mrb[0].mxu0
    %7773 = vmatprep.mubr.f32.mxu0 %v6641
    %7774 = vmatmul.mubr.f32.gmra.mrb[0].mxu0 %v6577
    %v7775 = vpop.f32.mrb[0].mxu0
    %v7776 = vadd.f32 %v7391, %v7775
    %v7777 = vpop.f32.mrb[0].mxu0
    %7778 = vmatprep.mubr.f32.mxu0 %v6642
    %7779 = vmatmul.mubr.f32.gmra.mrb[0].mxu0 %v6578
    %v7780 = vpop.f32.mrb[0].mxu0
    %v7781 = vadd.f32 %v7396, %v7780
    %v7782 = vpop.f32.mrb[0].mxu0
    %7783 = vmatprep.mubr.f32.mxu0 %v6643
    %7784 = vmatmul.mubr.f32.gmra.mrb[0].mxu0 %v6579
    %v7785 = vpop.f32.mrb[0].mxu0
    %v7786 = vadd.f32 %v7401, %v7785
    %v7787 = vpop.f32.mrb[0].mxu0
    %7788 = vmatprep.mubr.f32.mxu0 %v6644
    %7789 = vmatmul.mubr.f32.gmra.mrb[0].mxu0 %v6580
    %v7790 = vpop.f32.mrb[0].mxu0
    %v7791 = vadd.f32 %v7406, %v7790
    %v7792 = vpop.f32.mrb[0].mxu0
    %7793 = vmatprep.mubr.f32.mxu0 %v6645
    %7794 = vmatmul.mubr.f32.gmra.mrb[0].mxu0 %v6581
    %v7795 = vpop.f32.mrb[0].mxu0
    %v7796 = vadd.f32 %v7411, %v7795
    %v7797 = vpop.f32.mrb[0].mxu0
    %7798 = vmatprep.mubr.f32.mxu0 %v6646
    %7799 = vmatmul.mubr.f32.gmra.mrb[0].mxu0 %v6582
    %v7800 = vpop.f32.mrb[0].mxu0
    %v7801 = vadd.f32 %v7416, %v7800
    %v7802 = vpop.f32.mrb[0].mxu0
    %7803 = vmatprep.mubr.f32.mxu0 %v6647
    %7804 = vmatmul.mubr.f32.gmra.mrb[0].mxu0 %v6583
    %v7805 = vpop.f32.mrb[0].mxu0
    %v7806 = vadd.f32 %v7421, %v7805
    %v7807 = vpop.f32.mrb[0].mxu0
    %7808 = vmatprep.mubr.f32.mxu0 %v6648
    %7809 = vmatmul.mubr.f32.gmra.mrb[0].mxu0 %v6584
    %v7810 = vpop.f32.mrb[0].mxu0
    %v7811 = vadd.f32 %v7426, %v7810
    %v7812 = vpop.f32.mrb[0].mxu0
    %7813 = vmatprep.mubr.f32.mxu0 %v6649
    %7814 = vmatmul.mubr.f32.gmra.mrb[0].mxu0 %v6585
    %v7815 = vpop.f32.mrb[0].mxu0
    %v7816 = vadd.f32 %v7431, %v7815
    %v7817 = vpop.f32.mrb[0].mxu0
    %7818 = vmatprep.mubr.f32.mxu0 %v6650
    %7819 = vmatmul.mubr.f32.gmra.mrb[0].mxu0 %v6586
    %v7820 = vpop.f32.mrb[0].mxu0
    %v7821 = vadd.f32 %v7436, %v7820
    %v7822 = vpop.f32.mrb[0].mxu0
    %7823 = vmatprep.mubr.f32.mxu0 %v6651
    %7824 = vmatmul.mubr.f32.gmra.mrb[0].mxu0 %v6587
    %v7825 = vpop.f32.mrb[0].mxu0
    %v7826 = vadd.f32 %v7441, %v7825
    %v7827 = vpop.f32.mrb[0].mxu0
    %7828 = vmatprep.mubr.f32.mxu0 %v6652
    %7829 = vmatmul.mubr.f32.gmra.mrb[0].mxu0 %v6588
    %v7830 = vpop.f32.mrb[0].mxu0
    %v7831 = vadd.f32 %v7446, %v7830
    %v7832 = vpop.f32.mrb[0].mxu0
    %7833 = vmatprep.mubr.f32.mxu0 %v6653
    %7834 = vmatmul.mubr.f32.gmra.mrb[0].mxu0 %v6589
    %v7835 = vpop.f32.mrb[0].mxu0
    %v7836 = vadd.f32 %v7451, %v7835
    %v7837 = vpop.f32.mrb[0].mxu0
    %7838 = vmatprep.mubr.f32.mxu0 %v6654
    %7839 = vmatmul.mubr.f32.gmra.mrb[0].mxu0 %v6590
    %v7840 = vpop.f32.mrb[0].mxu0
    %v7841 = vadd.f32 %v7456, %v7840
    %v7842 = vpop.f32.mrb[0].mxu0
    %7843 = vmatprep.mubr.f32.mxu0 %v6655
    %7844 = vmatmul.mubr.f32.gmra.mrb[0].mxu0 %v6591
    %v7845 = vpop.f32.mrb[0].mxu0
    %v7846 = vadd.f32 %v7461, %v7845
    %v7847 = vpop.f32.mrb[0].mxu0
    %7848 = vmatprep.mubr.f32.mxu0 %v6656
    %7849 = vmatmul.mubr.f32.gmra.mrb[0].mxu0 %v6592
    %v7850 = vpop.f32.mrb[0].mxu0
    %v7851 = vadd.f32 %v7466, %v7850
    %v7852 = vpop.f32.mrb[0].mxu0
    %7853 = vmatprep.mubr.f32.mxu0 %v6657
    %7854 = vmatmul.mubr.f32.gmra.mrb[0].mxu0 %v6593
    %v7855 = vpop.f32.mrb[0].mxu0
    %v7856 = vadd.f32 %v7471, %v7855
    %v7857 = vpop.f32.mrb[0].mxu0
    %7858 = vmatprep.mubr.f32.mxu0 %v6658
    %7859 = vmatmul.mubr.f32.gmra.mrb[0].mxu0 %v6594
    %v7860 = vpop.f32.mrb[0].mxu0
    %v7861 = vadd.f32 %v7476, %v7860
    %v7862 = vpop.f32.mrb[0].mxu0
    %7863 = vmatprep.mubr.f32.mxu0 %v6659
    %7864 = vmatmul.mubr.f32.gmra.mrb[0].mxu0 %v6595
    %v7865 = vpop.f32.mrb[0].mxu0
    %v7866 = vadd.f32 %v7481, %v7865
    %v7867 = vpop.f32.mrb[0].mxu0
    %7868 = vmatprep.mubr.f32.mxu0 %v6660
    %7869 = vmatmul.mubr.f32.gmra.mrb[0].mxu0 %v6596
    %v7870 = vpop.f32.mrb[0].mxu0
    %v7871 = vadd.f32 %v7486, %v7870
    %v7872 = vpop.f32.mrb[0].mxu0
    %7873 = vmatprep.mubr.f32.mxu0 %v6661
    %7874 = vmatmul.mubr.f32.gmra.mrb[0].mxu0 %v6597
    %v7875 = vpop.f32.mrb[0].mxu0
    %v7876 = vadd.f32 %v7491, %v7875
    %v7877 = vpop.f32.mrb[0].mxu0
    %7878 = vmatprep.mubr.f32.mxu0 %v6662
    %7879 = vmatmul.mubr.f32.gmra.mrb[0].mxu0 %v6598
    %v7880 = vpop.f32.mrb[0].mxu0
    %v7881 = vadd.f32 %v7496, %v7880
    %v7882 = vpop.f32.mrb[0].mxu0
    %7883 = vmatprep.mubr.f32.mxu0 %v6663
    %7884 = vmatmul.mubr.f32.gmra.mrb[0].mxu0 %v6599
    %v7885 = vpop.f32.mrb[0].mxu0
    %v7886 = vadd.f32 %v7501, %v7885
    %v7887 = vpop.f32.mrb[0].mxu0
    %7888 = vmatprep.mubr.f32.mxu0 %v6664
    %7889 = vmatmul.mubr.f32.gmra.mrb[0].mxu0 %v6600
    %v7890 = vpop.f32.mrb[0].mxu0
    %v7891 = vadd.f32 %v7506, %v7890
    %v7892 = vpop.f32.mrb[0].mxu0
    %7893 = vmatprep.mubr.f32.mxu0 %v6665
    %7894 = vmatmul.mubr.f32.gmra.mrb[0].mxu0 %v6601
    %v7895 = vpop.f32.mrb[0].mxu0
    %v7896 = vadd.f32 %v7511, %v7895
    %v7897 = vpop.f32.mrb[0].mxu0
    %7898 = vmatprep.mubr.f32.mxu0 %v6666
    %7899 = vmatmul.mubr.f32.gmra.mrb[0].mxu0 %v6602
    %v7900 = vpop.f32.mrb[0].mxu0
    %v7901 = vadd.f32 %v7516, %v7900
    %v7902 = vpop.f32.mrb[0].mxu0
    %7903 = vmatprep.mubr.f32.mxu0 %v6667
    %7904 = vmatmul.mubr.f32.gmra.mrb[0].mxu0 %v6603
    %v7905 = vpop.f32.mrb[0].mxu0
    %v7906 = vadd.f32 %v7521, %v7905
    %v7907 = vpop.f32.mrb[0].mxu0
    %7908 = vdwg.mxu0
    %7909 = vmatprep.subr.mxu0 0.0
    %7910 = vmatpush1.msra.mxu0 %v7052
    %7911 = vmatprep.subr.mxu0 0.0
    %7912 = vmatpush1.msra.mxu0 %v7053
    %7913 = vmatprep.subr.mxu0 0.0
    %7914 = vmatpush1.msra.mxu0 %v7054
    %7915 = vmatprep.subr.mxu0 0.0
    %7916 = vmatpush1.msra.mxu0 %v7055
    %7917 = vmatprep.subr.mxu0 0.0
    %7918 = vmatpush1.msra.mxu0 %v7056
    %7919 = vmatprep.subr.mxu0 0.0
    %7920 = vmatpush1.msra.mxu0 %v7057
    %7921 = vmatprep.subr.mxu0 0.0
    %7922 = vmatpush1.msra.mxu0 %v7058
    %7923 = vmatprep.subr.mxu0 0.0
    %7924 = vmatpush1.msra.mxu0 %v7059
    %7925 = vmatprep.subr.mxu0 0.0
    %7926 = vmatpush1.msra.mxu0 %v7060
    %7927 = vmatprep.subr.mxu0 0.0
    %7928 = vmatpush1.msra.mxu0 %v7061
    %7929 = vmatprep.subr.mxu0 0.0
    %7930 = vmatpush1.msra.mxu0 %v7062
    %7931 = vmatprep.subr.mxu0 0.0
    %7932 = vmatpush1.msra.mxu0 %v7063
    %7933 = vmatprep.subr.mxu0 0.0
    %7934 = vmatpush1.msra.mxu0 %v7064
    %7935 = vmatprep.subr.mxu0 0.0
    %7936 = vmatpush1.msra.mxu0 %v7065
    %7937 = vmatprep.subr.mxu0 0.0
    %7938 = vmatpush1.msra.mxu0 %v7066
    %7939 = vmatprep.subr.mxu0 0.0
    %7940 = vmatpush1.msra.mxu0 %v7067
    %7941 = vmatprep.subr.mxu0 0.0
    %7942 = vmatpush1.msra.mxu0 %v7068
    %7943 = vmatprep.subr.mxu0 0.0
    %7944 = vmatpush1.msra.mxu0 %v7069
    %7945 = vmatprep.subr.mxu0 0.0
    %7946 = vmatpush1.msra.mxu0 %v7070
    %7947 = vmatprep.subr.mxu0 0.0
    %7948 = vmatpush1.msra.mxu0 %v7071
    %7949 = vmatprep.subr.mxu0 0.0
    %7950 = vmatpush1.msra.mxu0 %v7072
    %7951 = vmatprep.subr.mxu0 0.0
    %7952 = vmatpush1.msra.mxu0 %v7073
    %7953 = vmatprep.subr.mxu0 0.0
    %7954 = vmatpush1.msra.mxu0 %v7074
    %7955 = vmatprep.subr.mxu0 0.0
    %7956 = vmatpush1.msra.mxu0 %v7075
    %7957 = vmatprep.subr.mxu0 0.0
    %7958 = vmatpush1.msra.mxu0 %v7076
    %7959 = vmatprep.subr.mxu0 0.0
    %7960 = vmatpush1.msra.mxu0 %v7077
    %7961 = vmatprep.subr.mxu0 0.0
    %7962 = vmatpush1.msra.mxu0 %v7078
    %7963 = vmatprep.subr.mxu0 0.0
    %7964 = vmatpush1.msra.mxu0 %v7079
    %7965 = vmatprep.subr.mxu0 0.0
    %7966 = vmatpush1.msra.mxu0 %v7080
    %7967 = vmatprep.subr.mxu0 0.0
    %7968 = vmatpush1.msra.mxu0 %v7081
    %7969 = vmatprep.subr.mxu0 0.0
    %7970 = vmatpush1.msra.mxu0 %v7082
    %7971 = vmatprep.subr.mxu0 0.0
    %7972 = vmatpush1.msra.mxu0 %v7083
    %7973 = vmatprep.mubr.f32.mxu0 %v6732
    %7974 = vmatmul.mubr.f32.gmra.mrb[0].mxu0 %v6668
    %v7975 = vpop.f32.mrb[0].mxu0
    %v7976 = vadd.f32 %v7591, %v7975
    %v7977 = vpop.f32.mrb[0].mxu0
    %7978 = vmatprep.mubr.f32.mxu0 %v6733
    %7979 = vmatmul.mubr.f32.gmra.mrb[0].mxu0 %v6669
    %v7980 = vpop.f32.mrb[0].mxu0
    %v7981 = vadd.f32 %v7596, %v7980
    %v7982 = vpop.f32.mrb[0].mxu0
    %7983 = vmatprep.mubr.f32.mxu0 %v6734
    %7984 = vmatmul.mubr.f32.gmra.mrb[0].mxu0 %v6670
    %v7985 = vpop.f32.mrb[0].mxu0
    %v7986 = vadd.f32 %v7601, %v7985
    %v7987 = vpop.f32.mrb[0].mxu0
    %7988 = vmatprep.mubr.f32.mxu0 %v6735
    %7989 = vmatmul.mubr.f32.gmra.mrb[0].mxu0 %v6671
    %v7990 = vpop.f32.mrb[0].mxu0
    %v7991 = vadd.f32 %v7606, %v7990
    %v7992 = vpop.f32.mrb[0].mxu0
    %7993 = vmatprep.mubr.f32.mxu0 %v6736
    %7994 = vmatmul.mubr.f32.gmra.mrb[0].mxu0 %v6672
    %v7995 = vpop.f32.mrb[0].mxu0
    %v7996 = vadd.f32 %v7611, %v7995
    %v7997 = vpop.f32.mrb[0].mxu0
    %7998 = vmatprep.mubr.f32.mxu0 %v6737
    %7999 = vmatmul.mubr.f32.gmra.mrb[0].mxu0 %v6673
    %v8000 = vpop.f32.mrb[0].mxu0
    %v8001 = vadd.f32 %v7616, %v8000
    %v8002 = vpop.f32.mrb[0].mxu0
    %8003 = vmatprep.mubr.f32.mxu0 %v6738
    %8004 = vmatmul.mubr.f32.gmra.mrb[0].mxu0 %v6674
    %v8005 = vpop.f32.mrb[0].mxu0
    %v8006 = vadd.f32 %v7621, %v8005
    %v8007 = vpop.f32.mrb[0].mxu0
    %8008 = vmatprep.mubr.f32.mxu0 %v6739
    %8009 = vmatmul.mubr.f32.gmra.mrb[0].mxu0 %v6675
    %v8010 = vpop.f32.mrb[0].mxu0
    %v8011 = vadd.f32 %v7626, %v8010
    %v8012 = vpop.f32.mrb[0].mxu0
    %8013 = vmatprep.mubr.f32.mxu0 %v6740
    %8014 = vmatmul.mubr.f32.gmra.mrb[0].mxu0 %v6676
    %v8015 = vpop.f32.mrb[0].mxu0
    %v8016 = vadd.f32 %v7631, %v8015
    %v8017 = vpop.f32.mrb[0].mxu0
    %8018 = vmatprep.mubr.f32.mxu0 %v6741
    %8019 = vmatmul.mubr.f32.gmra.mrb[0].mxu0 %v6677
    %v8020 = vpop.f32.mrb[0].mxu0
    %v8021 = vadd.f32 %v7636, %v8020
    %v8022 = vpop.f32.mrb[0].mxu0
    %8023 = vmatprep.mubr.f32.mxu0 %v6742
    %8024 = vmatmul.mubr.f32.gmra.mrb[0].mxu0 %v6678
    %v8025 = vpop.f32.mrb[0].mxu0
    %v8026 = vadd.f32 %v7641, %v8025
    %v8027 = vpop.f32.mrb[0].mxu0
    %8028 = vmatprep.mubr.f32.mxu0 %v6743
    %8029 = vmatmul.mubr.f32.gmra.mrb[0].mxu0 %v6679
    %v8030 = vpop.f32.mrb[0].mxu0
    %v8031 = vadd.f32 %v7646, %v8030
    %v8032 = vpop.f32.mrb[0].mxu0
    %8033 = vmatprep.mubr.f32.mxu0 %v6744
    %8034 = vmatmul.mubr.f32.gmra.mrb[0].mxu0 %v6680
    %v8035 = vpop.f32.mrb[0].mxu0
    %v8036 = vadd.f32 %v7651, %v8035
    %v8037 = vpop.f32.mrb[0].mxu0
    %8038 = vmatprep.mubr.f32.mxu0 %v6745
    %8039 = vmatmul.mubr.f32.gmra.mrb[0].mxu0 %v6681
    %v8040 = vpop.f32.mrb[0].mxu0
    %v8041 = vadd.f32 %v7656, %v8040
    %v8042 = vpop.f32.mrb[0].mxu0
    %8043 = vmatprep.mubr.f32.mxu0 %v6746
    %8044 = vmatmul.mubr.f32.gmra.mrb[0].mxu0 %v6682
    %v8045 = vpop.f32.mrb[0].mxu0
    %v8046 = vadd.f32 %v7661, %v8045
    %v8047 = vpop.f32.mrb[0].mxu0
    %8048 = vmatprep.mubr.f32.mxu0 %v6747
    %8049 = vmatmul.mubr.f32.gmra.mrb[0].mxu0 %v6683
    %v8050 = vpop.f32.mrb[0].mxu0
    %v8051 = vadd.f32 %v7666, %v8050
    %v8052 = vpop.f32.mrb[0].mxu0
    %8053 = vmatprep.mubr.f32.mxu0 %v6748
    %8054 = vmatmul.mubr.f32.gmra.mrb[0].mxu0 %v6684
    %v8055 = vpop.f32.mrb[0].mxu0
    %v8056 = vadd.f32 %v7671, %v8055
    %v8057 = vpop.f32.mrb[0].mxu0
    %8058 = vmatprep.mubr.f32.mxu0 %v6749
    %8059 = vmatmul.mubr.f32.gmra.mrb[0].mxu0 %v6685
    %v8060 = vpop.f32.mrb[0].mxu0
    %v8061 = vadd.f32 %v7676, %v8060
    %v8062 = vpop.f32.mrb[0].mxu0
    %8063 = vmatprep.mubr.f32.mxu0 %v6750
    %8064 = vmatmul.mubr.f32.gmra.mrb[0].mxu0 %v6686
    %v8065 = vpop.f32.mrb[0].mxu0
    %v8066 = vadd.f32 %v7681, %v8065
    %v8067 = vpop.f32.mrb[0].mxu0
    %8068 = vmatprep.mubr.f32.mxu0 %v6751
    %8069 = vmatmul.mubr.f32.gmra.mrb[0].mxu0 %v6687
    %v8070 = vpop.f32.mrb[0].mxu0
    %v8071 = vadd.f32 %v7686, %v8070
    %v8072 = vpop.f32.mrb[0].mxu0
    %8073 = vmatprep.mubr.f32.mxu0 %v6752
    %8074 = vmatmul.mubr.f32.gmra.mrb[0].mxu0 %v6688
    %v8075 = vpop.f32.mrb[0].mxu0
    %v8076 = vadd.f32 %v7691, %v8075
    %v8077 = vpop.f32.mrb[0].mxu0
    %8078 = vmatprep.mubr.f32.mxu0 %v6753
    %8079 = vmatmul.mubr.f32.gmra.mrb[0].mxu0 %v6689
    %v8080 = vpop.f32.mrb[0].mxu0
    %v8081 = vadd.f32 %v7696, %v8080
    %v8082 = vpop.f32.mrb[0].mxu0
    %8083 = vmatprep.mubr.f32.mxu0 %v6754
    %8084 = vmatmul.mubr.f32.gmra.mrb[0].mxu0 %v6690
    %v8085 = vpop.f32.mrb[0].mxu0
    %v8086 = vadd.f32 %v7701, %v8085
    %v8087 = vpop.f32.mrb[0].mxu0
    %8088 = vmatprep.mubr.f32.mxu0 %v6755
    %8089 = vmatmul.mubr.f32.gmra.mrb[0].mxu0 %v6691
    %v8090 = vpop.f32.mrb[0].mxu0
    %v8091 = vadd.f32 %v7706, %v8090
    %v8092 = vpop.f32.mrb[0].mxu0
    %8093 = vmatprep.mubr.f32.mxu0 %v6756
    %8094 = vmatmul.mubr.f32.gmra.mrb[0].mxu0 %v6692
    %v8095 = vpop.f32.mrb[0].mxu0
    %v8096 = vadd.f32 %v7711, %v8095
    %v8097 = vpop.f32.mrb[0].mxu0
    %8098 = vmatprep.mubr.f32.mxu0 %v6757
    %8099 = vmatmul.mubr.f32.gmra.mrb[0].mxu0 %v6693
    %v8100 = vpop.f32.mrb[0].mxu0
    %v8101 = vadd.f32 %v7716, %v8100
    %v8102 = vpop.f32.mrb[0].mxu0
    %8103 = vmatprep.mubr.f32.mxu0 %v6758
    %8104 = vmatmul.mubr.f32.gmra.mrb[0].mxu0 %v6694
    %v8105 = vpop.f32.mrb[0].mxu0
    %v8106 = vadd.f32 %v7721, %v8105
    %v8107 = vpop.f32.mrb[0].mxu0
    %8108 = vmatprep.mubr.f32.mxu0 %v6759
    %8109 = vmatmul.mubr.f32.gmra.mrb[0].mxu0 %v6695
    %v8110 = vpop.f32.mrb[0].mxu0
    %v8111 = vadd.f32 %v7726, %v8110
    %v8112 = vpop.f32.mrb[0].mxu0
    %8113 = vmatprep.mubr.f32.mxu0 %v6760
    %8114 = vmatmul.mubr.f32.gmra.mrb[0].mxu0 %v6696
    %v8115 = vpop.f32.mrb[0].mxu0
    %v8116 = vadd.f32 %v7731, %v8115
    %v8117 = vpop.f32.mrb[0].mxu0
    %8118 = vmatprep.mubr.f32.mxu0 %v6761
    %8119 = vmatmul.mubr.f32.gmra.mrb[0].mxu0 %v6697
    %v8120 = vpop.f32.mrb[0].mxu0
    %v8121 = vadd.f32 %v7736, %v8120
    %v8122 = vpop.f32.mrb[0].mxu0
    %8123 = vmatprep.mubr.f32.mxu0 %v6762
    %8124 = vmatmul.mubr.f32.gmra.mrb[0].mxu0 %v6698
    %v8125 = vpop.f32.mrb[0].mxu0
    %v8126 = vadd.f32 %v7741, %v8125
    %v8127 = vpop.f32.mrb[0].mxu0
    %8128 = vmatprep.mubr.f32.mxu0 %v6763
    %8129 = vmatmul.mubr.f32.gmra.mrb[0].mxu0 %v6699
    %v8130 = vpop.f32.mrb[0].mxu0
    %v8131 = vadd.f32 %v7746, %v8130
    %v8132 = vpop.f32.mrb[0].mxu0
    %8133 = vmatprep.mubr.f32.mxu0 %v6764
    %8134 = vmatmul.mubr.f32.gmra.mrb[0].mxu0 %v6700
    %v8135 = vpop.f32.mrb[0].mxu0
    %v8136 = vadd.f32 %v7751, %v8135
    %v8137 = vpop.f32.mrb[0].mxu0
    %8138 = vmatprep.mubr.f32.mxu0 %v6765
    %8139 = vmatmul.mubr.f32.gmra.mrb[0].mxu0 %v6701
    %v8140 = vpop.f32.mrb[0].mxu0
    %v8141 = vadd.f32 %v7756, %v8140
    %v8142 = vpop.f32.mrb[0].mxu0
    %8143 = vmatprep.mubr.f32.mxu0 %v6766
    %8144 = vmatmul.mubr.f32.gmra.mrb[0].mxu0 %v6702
    %v8145 = vpop.f32.mrb[0].mxu0
    %v8146 = vadd.f32 %v7761, %v8145
    %v8147 = vpop.f32.mrb[0].mxu0
    %8148 = vmatprep.mubr.f32.mxu0 %v6767
    %8149 = vmatmul.mubr.f32.gmra.mrb[0].mxu0 %v6703
    %v8150 = vpop.f32.mrb[0].mxu0
    %v8151 = vadd.f32 %v7766, %v8150
    %v8152 = vpop.f32.mrb[0].mxu0
    %8153 = vmatprep.mubr.f32.mxu0 %v6768
    %8154 = vmatmul.mubr.f32.gmra.mrb[0].mxu0 %v6704
    %v8155 = vpop.f32.mrb[0].mxu0
    %v8156 = vadd.f32 %v7771, %v8155
    %v8157 = vpop.f32.mrb[0].mxu0
    %8158 = vmatprep.mubr.f32.mxu0 %v6769
    %8159 = vmatmul.mubr.f32.gmra.mrb[0].mxu0 %v6705
    %v8160 = vpop.f32.mrb[0].mxu0
    %v8161 = vadd.f32 %v7776, %v8160
    %v8162 = vpop.f32.mrb[0].mxu0
    %8163 = vmatprep.mubr.f32.mxu0 %v6770
    %8164 = vmatmul.mubr.f32.gmra.mrb[0].mxu0 %v6706
    %v8165 = vpop.f32.mrb[0].mxu0
    %v8166 = vadd.f32 %v7781, %v8165
    %v8167 = vpop.f32.mrb[0].mxu0
    %8168 = vmatprep.mubr.f32.mxu0 %v6771
    %8169 = vmatmul.mubr.f32.gmra.mrb[0].mxu0 %v6707
    %v8170 = vpop.f32.mrb[0].mxu0
    %v8171 = vadd.f32 %v7786, %v8170
    %v8172 = vpop.f32.mrb[0].mxu0
    %8173 = vmatprep.mubr.f32.mxu0 %v6772
    %8174 = vmatmul.mubr.f32.gmra.mrb[0].mxu0 %v6708
    %v8175 = vpop.f32.mrb[0].mxu0
    %v8176 = vadd.f32 %v7791, %v8175
    %v8177 = vpop.f32.mrb[0].mxu0
    %8178 = vmatprep.mubr.f32.mxu0 %v6773
    %8179 = vmatmul.mubr.f32.gmra.mrb[0].mxu0 %v6709
    %v8180 = vpop.f32.mrb[0].mxu0
    %v8181 = vadd.f32 %v7796, %v8180
    %v8182 = vpop.f32.mrb[0].mxu0
    %8183 = vmatprep.mubr.f32.mxu0 %v6774
    %8184 = vmatmul.mubr.f32.gmra.mrb[0].mxu0 %v6710
    %v8185 = vpop.f32.mrb[0].mxu0
    %v8186 = vadd.f32 %v7801, %v8185
    %v8187 = vpop.f32.mrb[0].mxu0
    %8188 = vmatprep.mubr.f32.mxu0 %v6775
    %8189 = vmatmul.mubr.f32.gmra.mrb[0].mxu0 %v6711
    %v8190 = vpop.f32.mrb[0].mxu0
    %v8191 = vadd.f32 %v7806, %v8190
    %v8192 = vpop.f32.mrb[0].mxu0
    %8193 = vmatprep.mubr.f32.mxu0 %v6776
    %8194 = vmatmul.mubr.f32.gmra.mrb[0].mxu0 %v6712
    %v8195 = vpop.f32.mrb[0].mxu0
    %v8196 = vadd.f32 %v7811, %v8195
    %v8197 = vpop.f32.mrb[0].mxu0
    %8198 = vmatprep.mubr.f32.mxu0 %v6777
    %8199 = vmatmul.mubr.f32.gmra.mrb[0].mxu0 %v6713
    %v8200 = vpop.f32.mrb[0].mxu0
    %v8201 = vadd.f32 %v7816, %v8200
    %v8202 = vpop.f32.mrb[0].mxu0
    %8203 = vmatprep.mubr.f32.mxu0 %v6778
    %8204 = vmatmul.mubr.f32.gmra.mrb[0].mxu0 %v6714
    %v8205 = vpop.f32.mrb[0].mxu0
    %v8206 = vadd.f32 %v7821, %v8205
    %v8207 = vpop.f32.mrb[0].mxu0
    %8208 = vmatprep.mubr.f32.mxu0 %v6779
    %8209 = vmatmul.mubr.f32.gmra.mrb[0].mxu0 %v6715
    %v8210 = vpop.f32.mrb[0].mxu0
    %v8211 = vadd.f32 %v7826, %v8210
    %v8212 = vpop.f32.mrb[0].mxu0
    %8213 = vmatprep.mubr.f32.mxu0 %v6780
    %8214 = vmatmul.mubr.f32.gmra.mrb[0].mxu0 %v6716
    %v8215 = vpop.f32.mrb[0].mxu0
    %v8216 = vadd.f32 %v7831, %v8215
    %v8217 = vpop.f32.mrb[0].mxu0
    %8218 = vmatprep.mubr.f32.mxu0 %v6781
    %8219 = vmatmul.mubr.f32.gmra.mrb[0].mxu0 %v6717
    %v8220 = vpop.f32.mrb[0].mxu0
    %v8221 = vadd.f32 %v7836, %v8220
    %v8222 = vpop.f32.mrb[0].mxu0
    %8223 = vmatprep.mubr.f32.mxu0 %v6782
    %8224 = vmatmul.mubr.f32.gmra.mrb[0].mxu0 %v6718
    %v8225 = vpop.f32.mrb[0].mxu0
    %v8226 = vadd.f32 %v7841, %v8225
    %v8227 = vpop.f32.mrb[0].mxu0
    %8228 = vmatprep.mubr.f32.mxu0 %v6783
    %8229 = vmatmul.mubr.f32.gmra.mrb[0].mxu0 %v6719
    %v8230 = vpop.f32.mrb[0].mxu0
    %v8231 = vadd.f32 %v7846, %v8230
    %v8232 = vpop.f32.mrb[0].mxu0
    %8233 = vmatprep.mubr.f32.mxu0 %v6784
    %8234 = vmatmul.mubr.f32.gmra.mrb[0].mxu0 %v6720
    %v8235 = vpop.f32.mrb[0].mxu0
    %v8236 = vadd.f32 %v7851, %v8235
    %v8237 = vpop.f32.mrb[0].mxu0
    %8238 = vmatprep.mubr.f32.mxu0 %v6785
    %8239 = vmatmul.mubr.f32.gmra.mrb[0].mxu0 %v6721
    %v8240 = vpop.f32.mrb[0].mxu0
    %v8241 = vadd.f32 %v7856, %v8240
    %v8242 = vpop.f32.mrb[0].mxu0
    %8243 = vmatprep.mubr.f32.mxu0 %v6786
    %8244 = vmatmul.mubr.f32.gmra.mrb[0].mxu0 %v6722
    %v8245 = vpop.f32.mrb[0].mxu0
    %v8246 = vadd.f32 %v7861, %v8245
    %v8247 = vpop.f32.mrb[0].mxu0
    %8248 = vmatprep.mubr.f32.mxu0 %v6787
    %8249 = vmatmul.mubr.f32.gmra.mrb[0].mxu0 %v6723
    %v8250 = vpop.f32.mrb[0].mxu0
    %v8251 = vadd.f32 %v7866, %v8250
    %v8252 = vpop.f32.mrb[0].mxu0
    %8253 = vmatprep.mubr.f32.mxu0 %v6788
    %8254 = vmatmul.mubr.f32.gmra.mrb[0].mxu0 %v6724
    %v8255 = vpop.f32.mrb[0].mxu0
    %v8256 = vadd.f32 %v7871, %v8255
    %v8257 = vpop.f32.mrb[0].mxu0
    %8258 = vmatprep.mubr.f32.mxu0 %v6789
    %8259 = vmatmul.mubr.f32.gmra.mrb[0].mxu0 %v6725
    %v8260 = vpop.f32.mrb[0].mxu0
    %v8261 = vadd.f32 %v7876, %v8260
    %v8262 = vpop.f32.mrb[0].mxu0
    %8263 = vmatprep.mubr.f32.mxu0 %v6790
    %8264 = vmatmul.mubr.f32.gmra.mrb[0].mxu0 %v6726
    %v8265 = vpop.f32.mrb[0].mxu0
    %v8266 = vadd.f32 %v7881, %v8265
    %v8267 = vpop.f32.mrb[0].mxu0
    %8268 = vmatprep.mubr.f32.mxu0 %v6791
    %8269 = vmatmul.mubr.f32.gmra.mrb[0].mxu0 %v6727
    %v8270 = vpop.f32.mrb[0].mxu0
    %v8271 = vadd.f32 %v7886, %v8270
    %v8272 = vpop.f32.mrb[0].mxu0
    %8273 = vmatprep.mubr.f32.mxu0 %v6792
    %8274 = vmatmul.mubr.f32.gmra.mrb[0].mxu0 %v6728
    %v8275 = vpop.f32.mrb[0].mxu0
    %v8276 = vadd.f32 %v7891, %v8275
    %v8277 = vpop.f32.mrb[0].mxu0
    %8278 = vmatprep.mubr.f32.mxu0 %v6793
    %8279 = vmatmul.mubr.f32.gmra.mrb[0].mxu0 %v6729
    %v8280 = vpop.f32.mrb[0].mxu0
    %v8281 = vadd.f32 %v7896, %v8280
    %v8282 = vpop.f32.mrb[0].mxu0
    %8283 = vmatprep.mubr.f32.mxu0 %v6794
    %8284 = vmatmul.mubr.f32.gmra.mrb[0].mxu0 %v6730
    %v8285 = vpop.f32.mrb[0].mxu0
    %v8286 = vadd.f32 %v7901, %v8285
    %v8287 = vpop.f32.mrb[0].mxu0
    %8288 = vmatprep.mubr.f32.mxu0 %v6795
    %8289 = vmatmul.mubr.f32.gmra.mrb[0].mxu0 %v6731
    %v8290 = vpop.f32.mrb[0].mxu0
    %v8291 = vadd.f32 %v7906, %v8290
    %v8292 = vpop.f32.mrb[0].mxu0
    %8293 = vdwg.mxu0
    %8294 = vmatprep.subr.mxu0 0.0
    %8295 = vmatpush1.msra.mxu0 %v7084
    %8296 = vmatprep.subr.mxu0 0.0
    %8297 = vmatpush1.msra.mxu0 %v7085
    %8298 = vmatprep.subr.mxu0 0.0
    %8299 = vmatpush1.msra.mxu0 %v7086
    %8300 = vmatprep.subr.mxu0 0.0
    %8301 = vmatpush1.msra.mxu0 %v7087
    %8302 = vmatprep.subr.mxu0 0.0
    %8303 = vmatpush1.msra.mxu0 %v7088
    %8304 = vmatprep.subr.mxu0 0.0
    %8305 = vmatpush1.msra.mxu0 %v7089
    %8306 = vmatprep.subr.mxu0 0.0
    %8307 = vmatpush1.msra.mxu0 %v7090
    %8308 = vmatprep.subr.mxu0 0.0
    %8309 = vmatpush1.msra.mxu0 %v7091
    %8310 = vmatprep.subr.mxu0 0.0
    %8311 = vmatpush1.msra.mxu0 %v7092
    %8312 = vmatprep.subr.mxu0 0.0
    %8313 = vmatpush1.msra.mxu0 %v7093
    %8314 = vmatprep.subr.mxu0 0.0
    %8315 = vmatpush1.msra.mxu0 %v7094
    %8316 = vmatprep.subr.mxu0 0.0
    %8317 = vmatpush1.msra.mxu0 %v7095
    %8318 = vmatprep.subr.mxu0 0.0
    %8319 = vmatpush1.msra.mxu0 %v7096
    %8320 = vmatprep.subr.mxu0 0.0
    %8321 = vmatpush1.msra.mxu0 %v7097
    %8322 = vmatprep.subr.mxu0 0.0
    %8323 = vmatpush1.msra.mxu0 %v7098
    %8324 = vmatprep.subr.mxu0 0.0
    %8325 = vmatpush1.msra.mxu0 %v7099
    %8326 = vmatprep.subr.mxu0 0.0
    %8327 = vmatpush1.msra.mxu0 %v7100
    %8328 = vmatprep.subr.mxu0 0.0
    %8329 = vmatpush1.msra.mxu0 %v7101
    %8330 = vmatprep.subr.mxu0 0.0
    %8331 = vmatpush1.msra.mxu0 %v7102
    %8332 = vmatprep.subr.mxu0 0.0
    %8333 = vmatpush1.msra.mxu0 %v7103
    %8334 = vmatprep.subr.mxu0 0.0
    %8335 = vmatpush1.msra.mxu0 %v7104
    %8336 = vmatprep.subr.mxu0 0.0
    %8337 = vmatpush1.msra.mxu0 %v7105
    %8338 = vmatprep.subr.mxu0 0.0
    %8339 = vmatpush1.msra.mxu0 %v7106
    %8340 = vmatprep.subr.mxu0 0.0
    %8341 = vmatpush1.msra.mxu0 %v7107
    %8342 = vmatprep.subr.mxu0 0.0
    %8343 = vmatpush1.msra.mxu0 %v7108
    %8344 = vmatprep.subr.mxu0 0.0
    %8345 = vmatpush1.msra.mxu0 %v7109
    %8346 = vmatprep.subr.mxu0 0.0
    %8347 = vmatpush1.msra.mxu0 %v7110
    %8348 = vmatprep.subr.mxu0 0.0
    %8349 = vmatpush1.msra.mxu0 %v7111
    %8350 = vmatprep.subr.mxu0 0.0
    %8351 = vmatpush1.msra.mxu0 %v7112
    %8352 = vmatprep.subr.mxu0 0.0
    %8353 = vmatpush1.msra.mxu0 %v7113
    %8354 = vmatprep.subr.mxu0 0.0
    %8355 = vmatpush1.msra.mxu0 %v7114
    %8356 = vmatprep.subr.mxu0 0.0
    %8357 = vmatpush1.msra.mxu0 %v7115
    %8358 = vmatprep.mubr.f32.mxu0 %v6860
    %8359 = vmatmul.mubr.f32.gmra.mrb[0].mxu0 %v6796
    %v8360 = vpop.f32.mrb[0].mxu0
    %v8361 = vadd.f32 %v7976, %v8360
    %v8362 = vpop.f32.mrb[0].mxu0
    %8363 = vmatprep.mubr.f32.mxu0 %v6861
    %8364 = vmatmul.mubr.f32.gmra.mrb[0].mxu0 %v6797
    %v8365 = vpop.f32.mrb[0].mxu0
    %v8366 = vadd.f32 %v7981, %v8365
    %v8367 = vpop.f32.mrb[0].mxu0
    %8368 = vmatprep.mubr.f32.mxu0 %v6862
    %8369 = vmatmul.mubr.f32.gmra.mrb[0].mxu0 %v6798
    %v8370 = vpop.f32.mrb[0].mxu0
    %v8371 = vadd.f32 %v7986, %v8370
    %v8372 = vpop.f32.mrb[0].mxu0
    %8373 = vmatprep.mubr.f32.mxu0 %v6863
    %8374 = vmatmul.mubr.f32.gmra.mrb[0].mxu0 %v6799
    %v8375 = vpop.f32.mrb[0].mxu0
    %v8376 = vadd.f32 %v7991, %v8375
    %v8377 = vpop.f32.mrb[0].mxu0
    %8378 = vmatprep.mubr.f32.mxu0 %v6864
    %8379 = vmatmul.mubr.f32.gmra.mrb[0].mxu0 %v6800
    %v8380 = vpop.f32.mrb[0].mxu0
    %v8381 = vadd.f32 %v7996, %v8380
    %v8382 = vpop.f32.mrb[0].mxu0
    %8383 = vmatprep.mubr.f32.mxu0 %v6865
    %8384 = vmatmul.mubr.f32.gmra.mrb[0].mxu0 %v6801
    %v8385 = vpop.f32.mrb[0].mxu0
    %v8386 = vadd.f32 %v8001, %v8385
    %v8387 = vpop.f32.mrb[0].mxu0
    %8388 = vmatprep.mubr.f32.mxu0 %v6866
    %8389 = vmatmul.mubr.f32.gmra.mrb[0].mxu0 %v6802
    %v8390 = vpop.f32.mrb[0].mxu0
    %v8391 = vadd.f32 %v8006, %v8390
    %v8392 = vpop.f32.mrb[0].mxu0
    %8393 = vmatprep.mubr.f32.mxu0 %v6867
    %8394 = vmatmul.mubr.f32.gmra.mrb[0].mxu0 %v6803
    %v8395 = vpop.f32.mrb[0].mxu0
    %v8396 = vadd.f32 %v8011, %v8395
    %v8397 = vpop.f32.mrb[0].mxu0
    %8398 = vmatprep.mubr.f32.mxu0 %v6868
    %8399 = vmatmul.mubr.f32.gmra.mrb[0].mxu0 %v6804
    %v8400 = vpop.f32.mrb[0].mxu0
    %v8401 = vadd.f32 %v8016, %v8400
    %v8402 = vpop.f32.mrb[0].mxu0
    %8403 = vmatprep.mubr.f32.mxu0 %v6869
    %8404 = vmatmul.mubr.f32.gmra.mrb[0].mxu0 %v6805
    %v8405 = vpop.f32.mrb[0].mxu0
    %v8406 = vadd.f32 %v8021, %v8405
    %v8407 = vpop.f32.mrb[0].mxu0
    %8408 = vmatprep.mubr.f32.mxu0 %v6870
    %8409 = vmatmul.mubr.f32.gmra.mrb[0].mxu0 %v6806
    %v8410 = vpop.f32.mrb[0].mxu0
    %v8411 = vadd.f32 %v8026, %v8410
    %v8412 = vpop.f32.mrb[0].mxu0
    %8413 = vmatprep.mubr.f32.mxu0 %v6871
    %8414 = vmatmul.mubr.f32.gmra.mrb[0].mxu0 %v6807
    %v8415 = vpop.f32.mrb[0].mxu0
    %v8416 = vadd.f32 %v8031, %v8415
    %v8417 = vpop.f32.mrb[0].mxu0
    %8418 = vmatprep.mubr.f32.mxu0 %v6872
    %8419 = vmatmul.mubr.f32.gmra.mrb[0].mxu0 %v6808
    %v8420 = vpop.f32.mrb[0].mxu0
    %v8421 = vadd.f32 %v8036, %v8420
    %v8422 = vpop.f32.mrb[0].mxu0
    %8423 = vmatprep.mubr.f32.mxu0 %v6873
    %8424 = vmatmul.mubr.f32.gmra.mrb[0].mxu0 %v6809
    %v8425 = vpop.f32.mrb[0].mxu0
    %v8426 = vadd.f32 %v8041, %v8425
    %v8427 = vpop.f32.mrb[0].mxu0
    %8428 = vmatprep.mubr.f32.mxu0 %v6874
    %8429 = vmatmul.mubr.f32.gmra.mrb[0].mxu0 %v6810
    %v8430 = vpop.f32.mrb[0].mxu0
    %v8431 = vadd.f32 %v8046, %v8430
    %v8432 = vpop.f32.mrb[0].mxu0
    %8433 = vmatprep.mubr.f32.mxu0 %v6875
    %8434 = vmatmul.mubr.f32.gmra.mrb[0].mxu0 %v6811
    %v8435 = vpop.f32.mrb[0].mxu0
    %v8436 = vadd.f32 %v8051, %v8435
    %v8437 = vpop.f32.mrb[0].mxu0
    %8438 = vmatprep.mubr.f32.mxu0 %v6876
    %8439 = vmatmul.mubr.f32.gmra.mrb[0].mxu0 %v6812
    %v8440 = vpop.f32.mrb[0].mxu0
    %v8441 = vadd.f32 %v8056, %v8440
    %v8442 = vpop.f32.mrb[0].mxu0
    %8443 = vmatprep.mubr.f32.mxu0 %v6877
    %8444 = vmatmul.mubr.f32.gmra.mrb[0].mxu0 %v6813
    %v8445 = vpop.f32.mrb[0].mxu0
    %v8446 = vadd.f32 %v8061, %v8445
    %v8447 = vpop.f32.mrb[0].mxu0
    %8448 = vmatprep.mubr.f32.mxu0 %v6878
    %8449 = vmatmul.mubr.f32.gmra.mrb[0].mxu0 %v6814
    %v8450 = vpop.f32.mrb[0].mxu0
    %v8451 = vadd.f32 %v8066, %v8450
    %v8452 = vpop.f32.mrb[0].mxu0
    %8453 = vmatprep.mubr.f32.mxu0 %v6879
    %8454 = vmatmul.mubr.f32.gmra.mrb[0].mxu0 %v6815
    %v8455 = vpop.f32.mrb[0].mxu0
    %v8456 = vadd.f32 %v8071, %v8455
    %v8457 = vpop.f32.mrb[0].mxu0
    %8458 = vmatprep.mubr.f32.mxu0 %v6880
    %8459 = vmatmul.mubr.f32.gmra.mrb[0].mxu0 %v6816
    %v8460 = vpop.f32.mrb[0].mxu0
    %v8461 = vadd.f32 %v8076, %v8460
    %v8462 = vpop.f32.mrb[0].mxu0
    %8463 = vmatprep.mubr.f32.mxu0 %v6881
    %8464 = vmatmul.mubr.f32.gmra.mrb[0].mxu0 %v6817
    %v8465 = vpop.f32.mrb[0].mxu0
    %v8466 = vadd.f32 %v8081, %v8465
    %v8467 = vpop.f32.mrb[0].mxu0
    %8468 = vmatprep.mubr.f32.mxu0 %v6882
    %8469 = vmatmul.mubr.f32.gmra.mrb[0].mxu0 %v6818
    %v8470 = vpop.f32.mrb[0].mxu0
    %v8471 = vadd.f32 %v8086, %v8470
    %v8472 = vpop.f32.mrb[0].mxu0
    %8473 = vmatprep.mubr.f32.mxu0 %v6883
    %8474 = vmatmul.mubr.f32.gmra.mrb[0].mxu0 %v6819
    %v8475 = vpop.f32.mrb[0].mxu0
    %v8476 = vadd.f32 %v8091, %v8475
    %v8477 = vpop.f32.mrb[0].mxu0
    %8478 = vmatprep.mubr.f32.mxu0 %v6884
    %8479 = vmatmul.mubr.f32.gmra.mrb[0].mxu0 %v6820
    %v8480 = vpop.f32.mrb[0].mxu0
    %v8481 = vadd.f32 %v8096, %v8480
    %v8482 = vpop.f32.mrb[0].mxu0
    %8483 = vmatprep.mubr.f32.mxu0 %v6885
    %8484 = vmatmul.mubr.f32.gmra.mrb[0].mxu0 %v6821
    %v8485 = vpop.f32.mrb[0].mxu0
    %v8486 = vadd.f32 %v8101, %v8485
    %v8487 = vpop.f32.mrb[0].mxu0
    %8488 = vmatprep.mubr.f32.mxu0 %v6886
    %8489 = vmatmul.mubr.f32.gmra.mrb[0].mxu0 %v6822
    %v8490 = vpop.f32.mrb[0].mxu0
    %v8491 = vadd.f32 %v8106, %v8490
    %v8492 = vpop.f32.mrb[0].mxu0
    %8493 = vmatprep.mubr.f32.mxu0 %v6887
    %8494 = vmatmul.mubr.f32.gmra.mrb[0].mxu0 %v6823
    %v8495 = vpop.f32.mrb[0].mxu0
    %v8496 = vadd.f32 %v8111, %v8495
    %v8497 = vpop.f32.mrb[0].mxu0
    %8498 = vmatprep.mubr.f32.mxu0 %v6888
    %8499 = vmatmul.mubr.f32.gmra.mrb[0].mxu0 %v6824
    %v8500 = vpop.f32.mrb[0].mxu0
    %v8501 = vadd.f32 %v8116, %v8500
    %v8502 = vpop.f32.mrb[0].mxu0
    %8503 = vmatprep.mubr.f32.mxu0 %v6889
    %8504 = vmatmul.mubr.f32.gmra.mrb[0].mxu0 %v6825
    %v8505 = vpop.f32.mrb[0].mxu0
    %v8506 = vadd.f32 %v8121, %v8505
    %v8507 = vpop.f32.mrb[0].mxu0
    %8508 = vmatprep.mubr.f32.mxu0 %v6890
    %8509 = vmatmul.mubr.f32.gmra.mrb[0].mxu0 %v6826
    %v8510 = vpop.f32.mrb[0].mxu0
    %v8511 = vadd.f32 %v8126, %v8510
    %v8512 = vpop.f32.mrb[0].mxu0
    %8513 = vmatprep.mubr.f32.mxu0 %v6891
    %8514 = vmatmul.mubr.f32.gmra.mrb[0].mxu0 %v6827
    %v8515 = vpop.f32.mrb[0].mxu0
    %v8516 = vadd.f32 %v8131, %v8515
    %v8517 = vpop.f32.mrb[0].mxu0
    %8518 = vmatprep.mubr.f32.mxu0 %v6892
    %8519 = vmatmul.mubr.f32.gmra.mrb[0].mxu0 %v6828
    %v8520 = vpop.f32.mrb[0].mxu0
    %v8521 = vadd.f32 %v8136, %v8520
    %v8522 = vpop.f32.mrb[0].mxu0
    %8523 = vmatprep.mubr.f32.mxu0 %v6893
    %8524 = vmatmul.mubr.f32.gmra.mrb[0].mxu0 %v6829
    %v8525 = vpop.f32.mrb[0].mxu0
    %v8526 = vadd.f32 %v8141, %v8525
    %v8527 = vpop.f32.mrb[0].mxu0
    %8528 = vmatprep.mubr.f32.mxu0 %v6894
    %8529 = vmatmul.mubr.f32.gmra.mrb[0].mxu0 %v6830
    %v8530 = vpop.f32.mrb[0].mxu0
    %v8531 = vadd.f32 %v8146, %v8530
    %v8532 = vpop.f32.mrb[0].mxu0
    %8533 = vmatprep.mubr.f32.mxu0 %v6895
    %8534 = vmatmul.mubr.f32.gmra.mrb[0].mxu0 %v6831
    %v8535 = vpop.f32.mrb[0].mxu0
    %v8536 = vadd.f32 %v8151, %v8535
    %v8537 = vpop.f32.mrb[0].mxu0
    %8538 = vmatprep.mubr.f32.mxu0 %v6896
    %8539 = vmatmul.mubr.f32.gmra.mrb[0].mxu0 %v6832
    %v8540 = vpop.f32.mrb[0].mxu0
    %v8541 = vadd.f32 %v8156, %v8540
    %v8542 = vpop.f32.mrb[0].mxu0
    %8543 = vmatprep.mubr.f32.mxu0 %v6897
    %8544 = vmatmul.mubr.f32.gmra.mrb[0].mxu0 %v6833
    %v8545 = vpop.f32.mrb[0].mxu0
    %v8546 = vadd.f32 %v8161, %v8545
    %v8547 = vpop.f32.mrb[0].mxu0
    %8548 = vmatprep.mubr.f32.mxu0 %v6898
    %8549 = vmatmul.mubr.f32.gmra.mrb[0].mxu0 %v6834
    %v8550 = vpop.f32.mrb[0].mxu0
    %v8551 = vadd.f32 %v8166, %v8550
    %v8552 = vpop.f32.mrb[0].mxu0
    %8553 = vmatprep.mubr.f32.mxu0 %v6899
    %8554 = vmatmul.mubr.f32.gmra.mrb[0].mxu0 %v6835
    %v8555 = vpop.f32.mrb[0].mxu0
    %v8556 = vadd.f32 %v8171, %v8555
    %v8557 = vpop.f32.mrb[0].mxu0
    %8558 = vmatprep.mubr.f32.mxu0 %v6900
    %8559 = vmatmul.mubr.f32.gmra.mrb[0].mxu0 %v6836
    %v8560 = vpop.f32.mrb[0].mxu0
    %v8561 = vadd.f32 %v8176, %v8560
    %v8562 = vpop.f32.mrb[0].mxu0
    %8563 = vmatprep.mubr.f32.mxu0 %v6901
    %8564 = vmatmul.mubr.f32.gmra.mrb[0].mxu0 %v6837
    %v8565 = vpop.f32.mrb[0].mxu0
    %v8566 = vadd.f32 %v8181, %v8565
    %v8567 = vpop.f32.mrb[0].mxu0
    %8568 = vmatprep.mubr.f32.mxu0 %v6902
    %8569 = vmatmul.mubr.f32.gmra.mrb[0].mxu0 %v6838
    %v8570 = vpop.f32.mrb[0].mxu0
    %v8571 = vadd.f32 %v8186, %v8570
    %v8572 = vpop.f32.mrb[0].mxu0
    %8573 = vmatprep.mubr.f32.mxu0 %v6903
    %8574 = vmatmul.mubr.f32.gmra.mrb[0].mxu0 %v6839
    %v8575 = vpop.f32.mrb[0].mxu0
    %v8576 = vadd.f32 %v8191, %v8575
    %v8577 = vpop.f32.mrb[0].mxu0
    %8578 = vmatprep.mubr.f32.mxu0 %v6904
    %8579 = vmatmul.mubr.f32.gmra.mrb[0].mxu0 %v6840
    %v8580 = vpop.f32.mrb[0].mxu0
    %v8581 = vadd.f32 %v8196, %v8580
    %v8582 = vpop.f32.mrb[0].mxu0
    %8583 = vmatprep.mubr.f32.mxu0 %v6905
    %8584 = vmatmul.mubr.f32.gmra.mrb[0].mxu0 %v6841
    %v8585 = vpop.f32.mrb[0].mxu0
    %v8586 = vadd.f32 %v8201, %v8585
    %v8587 = vpop.f32.mrb[0].mxu0
    %8588 = vmatprep.mubr.f32.mxu0 %v6906
    %8589 = vmatmul.mubr.f32.gmra.mrb[0].mxu0 %v6842
    %v8590 = vpop.f32.mrb[0].mxu0
    %v8591 = vadd.f32 %v8206, %v8590
    %v8592 = vpop.f32.mrb[0].mxu0
    %8593 = vmatprep.mubr.f32.mxu0 %v6907
    %8594 = vmatmul.mubr.f32.gmra.mrb[0].mxu0 %v6843
    %v8595 = vpop.f32.mrb[0].mxu0
    %v8596 = vadd.f32 %v8211, %v8595
    %v8597 = vpop.f32.mrb[0].mxu0
    %8598 = vmatprep.mubr.f32.mxu0 %v6908
    %8599 = vmatmul.mubr.f32.gmra.mrb[0].mxu0 %v6844
    %v8600 = vpop.f32.mrb[0].mxu0
    %v8601 = vadd.f32 %v8216, %v8600
    %v8602 = vpop.f32.mrb[0].mxu0
    %8603 = vmatprep.mubr.f32.mxu0 %v6909
    %8604 = vmatmul.mubr.f32.gmra.mrb[0].mxu0 %v6845
    %v8605 = vpop.f32.mrb[0].mxu0
    %v8606 = vadd.f32 %v8221, %v8605
    %v8607 = vpop.f32.mrb[0].mxu0
    %8608 = vmatprep.mubr.f32.mxu0 %v6910
    %8609 = vmatmul.mubr.f32.gmra.mrb[0].mxu0 %v6846
    %v8610 = vpop.f32.mrb[0].mxu0
    %v8611 = vadd.f32 %v8226, %v8610
    %v8612 = vpop.f32.mrb[0].mxu0
    %8613 = vmatprep.mubr.f32.mxu0 %v6911
    %8614 = vmatmul.mubr.f32.gmra.mrb[0].mxu0 %v6847
    %v8615 = vpop.f32.mrb[0].mxu0
    %v8616 = vadd.f32 %v8231, %v8615
    %v8617 = vpop.f32.mrb[0].mxu0
    %8618 = vmatprep.mubr.f32.mxu0 %v6912
    %8619 = vmatmul.mubr.f32.gmra.mrb[0].mxu0 %v6848
    %v8620 = vpop.f32.mrb[0].mxu0
    %v8621 = vadd.f32 %v8236, %v8620
    %v8622 = vpop.f32.mrb[0].mxu0
    %8623 = vmatprep.mubr.f32.mxu0 %v6913
    %8624 = vmatmul.mubr.f32.gmra.mrb[0].mxu0 %v6849
    %v8625 = vpop.f32.mrb[0].mxu0
    %v8626 = vadd.f32 %v8241, %v8625
    %v8627 = vpop.f32.mrb[0].mxu0
    %8628 = vmatprep.mubr.f32.mxu0 %v6914
    %8629 = vmatmul.mubr.f32.gmra.mrb[0].mxu0 %v6850
    %v8630 = vpop.f32.mrb[0].mxu0
    %v8631 = vadd.f32 %v8246, %v8630
    %v8632 = vpop.f32.mrb[0].mxu0
    %8633 = vmatprep.mubr.f32.mxu0 %v6915
    %8634 = vmatmul.mubr.f32.gmra.mrb[0].mxu0 %v6851
    %v8635 = vpop.f32.mrb[0].mxu0
    %v8636 = vadd.f32 %v8251, %v8635
    %v8637 = vpop.f32.mrb[0].mxu0
    %8638 = vmatprep.mubr.f32.mxu0 %v6916
    %8639 = vmatmul.mubr.f32.gmra.mrb[0].mxu0 %v6852
    %v8640 = vpop.f32.mrb[0].mxu0
    %v8641 = vadd.f32 %v8256, %v8640
    %v8642 = vpop.f32.mrb[0].mxu0
    %8643 = vmatprep.mubr.f32.mxu0 %v6917
    %8644 = vmatmul.mubr.f32.gmra.mrb[0].mxu0 %v6853
    %v8645 = vpop.f32.mrb[0].mxu0
    %v8646 = vadd.f32 %v8261, %v8645
    %v8647 = vpop.f32.mrb[0].mxu0
    %8648 = vmatprep.mubr.f32.mxu0 %v6918
    %8649 = vmatmul.mubr.f32.gmra.mrb[0].mxu0 %v6854
    %v8650 = vpop.f32.mrb[0].mxu0
    %v8651 = vadd.f32 %v8266, %v8650
    %v8652 = vpop.f32.mrb[0].mxu0
    %8653 = vmatprep.mubr.f32.mxu0 %v6919
    %8654 = vmatmul.mubr.f32.gmra.mrb[0].mxu0 %v6855
    %v8655 = vpop.f32.mrb[0].mxu0
    %v8656 = vadd.f32 %v8271, %v8655
    %v8657 = vpop.f32.mrb[0].mxu0
    %8658 = vmatprep.mubr.f32.mxu0 %v6920
    %8659 = vmatmul.mubr.f32.gmra.mrb[0].mxu0 %v6856
    %v8660 = vpop.f32.mrb[0].mxu0
    %v8661 = vadd.f32 %v8276, %v8660
    %v8662 = vpop.f32.mrb[0].mxu0
    %8663 = vmatprep.mubr.f32.mxu0 %v6921
    %8664 = vmatmul.mubr.f32.gmra.mrb[0].mxu0 %v6857
    %v8665 = vpop.f32.mrb[0].mxu0
    %v8666 = vadd.f32 %v8281, %v8665
    %v8667 = vpop.f32.mrb[0].mxu0
    %8668 = vmatprep.mubr.f32.mxu0 %v6922
    %8669 = vmatmul.mubr.f32.gmra.mrb[0].mxu0 %v6858
    %v8670 = vpop.f32.mrb[0].mxu0
    %v8671 = vadd.f32 %v8286, %v8670
    %v8672 = vpop.f32.mrb[0].mxu0
    %8673 = vmatprep.mubr.f32.mxu0 %v6923
    %8674 = vmatmul.mubr.f32.gmra.mrb[0].mxu0 %v6859
    %v8675 = vpop.f32.mrb[0].mxu0
    %v8676 = vadd.f32 %v8291, %v8675
    %v8677 = vpop.f32.mrb[0].mxu0
    %8678 = vdwg.mxu0
    %8679 = vmatprep.subr.mxu0 0.0
    %8680 = vmatpush1.msra.mxu0 %v7116
    %8681 = vmatprep.subr.mxu0 0.0
    %8682 = vmatpush1.msra.mxu0 %v7117
    %8683 = vmatprep.subr.mxu0 0.0
    %8684 = vmatpush1.msra.mxu0 %v7118
    %8685 = vmatprep.subr.mxu0 0.0
    %8686 = vmatpush1.msra.mxu0 %v7119
    %8687 = vmatprep.subr.mxu0 0.0
    %8688 = vmatpush1.msra.mxu0 %v7120
    %8689 = vmatprep.subr.mxu0 0.0
    %8690 = vmatpush1.msra.mxu0 %v7121
    %8691 = vmatprep.subr.mxu0 0.0
    %8692 = vmatpush1.msra.mxu0 %v7122
    %8693 = vmatprep.subr.mxu0 0.0
    %8694 = vmatpush1.msra.mxu0 %v7123
    %8695 = vmatprep.subr.mxu0 0.0
    %8696 = vmatpush1.msra.mxu0 %v7124
    %8697 = vmatprep.subr.mxu0 0.0
    %8698 = vmatpush1.msra.mxu0 %v7125
    %8699 = vmatprep.subr.mxu0 0.0
    %8700 = vmatpush1.msra.mxu0 %v7126
    %8701 = vmatprep.subr.mxu0 0.0
    %8702 = vmatpush1.msra.mxu0 %v7127
    %8703 = vmatprep.subr.mxu0 0.0
    %8704 = vmatpush1.msra.mxu0 %v7128
    %8705 = vmatprep.subr.mxu0 0.0
    %8706 = vmatpush1.msra.mxu0 %v7129
    %8707 = vmatprep.subr.mxu0 0.0
    %8708 = vmatpush1.msra.mxu0 %v7130
    %8709 = vmatprep.subr.mxu0 0.0
    %8710 = vmatpush1.msra.mxu0 %v7131
    %8711 = vmatprep.subr.mxu0 0.0
    %8712 = vmatpush1.msra.mxu0 0.0
    %8713 = vmatprep.subr.mxu0 0.0
    %8714 = vmatpush1.msra.mxu0 0.0
    %8715 = vmatprep.subr.mxu0 0.0
    %8716 = vmatpush1.msra.mxu0 0.0
    %8717 = vmatprep.subr.mxu0 0.0
    %8718 = vmatpush1.msra.mxu0 0.0
    %8719 = vmatprep.subr.mxu0 0.0
    %8720 = vmatpush1.msra.mxu0 0.0
    %8721 = vmatprep.subr.mxu0 0.0
    %8722 = vmatpush1.msra.mxu0 0.0
    %8723 = vmatprep.subr.mxu0 0.0
    %8724 = vmatpush1.msra.mxu0 0.0
    %8725 = vmatprep.subr.mxu0 0.0
    %8726 = vmatpush1.msra.mxu0 0.0
    %8727 = vmatprep.subr.mxu0 0.0
    %8728 = vmatpush1.msra.mxu0 0.0
    %8729 = vmatprep.subr.mxu0 0.0
    %8730 = vmatpush1.msra.mxu0 0.0
    %8731 = vmatprep.subr.mxu0 0.0
    %8732 = vmatpush1.msra.mxu0 0.0
    %8733 = vmatprep.subr.mxu0 0.0
    %8734 = vmatpush1.msra.mxu0 0.0
    %8735 = vmatprep.subr.mxu0 0.0
    %8736 = vmatpush1.msra.mxu0 0.0
    %8737 = vmatprep.subr.mxu0 0.0
    %8738 = vmatpush1.msra.mxu0 0.0
    %8739 = vmatprep.subr.mxu0 0.0
    %8740 = vmatpush1.msra.mxu0 0.0
    %8741 = vmatprep.subr.mxu0 0.0
    %8742 = vmatpush1.msra.mxu0 0.0
    %8743 = vmatprep.mubr.f32.mxu0 0.0
    %8744 = vmatmul.mubr.f32.gmra.mrb[0].mxu0 %v6924
    %v8745 = vpop.f32.mrb[0].mxu0
    %v8746 = vadd.f32 %v8361, %v8745
    %v8747 = vpop.f32.mrb[0].mxu0
    %8748 = vmatprep.mubr.f32.mxu0 0.0
    %8749 = vmatmul.mubr.f32.gmra.mrb[0].mxu0 %v6925
    %v8750 = vpop.f32.mrb[0].mxu0
    %v8751 = vadd.f32 %v8366, %v8750
    %v8752 = vpop.f32.mrb[0].mxu0
    %8753 = vmatprep.mubr.f32.mxu0 0.0
    %8754 = vmatmul.mubr.f32.gmra.mrb[0].mxu0 %v6926
    %v8755 = vpop.f32.mrb[0].mxu0
    %v8756 = vadd.f32 %v8371, %v8755
    %v8757 = vpop.f32.mrb[0].mxu0
    %8758 = vmatprep.mubr.f32.mxu0 0.0
    %8759 = vmatmul.mubr.f32.gmra.mrb[0].mxu0 %v6927
    %v8760 = vpop.f32.mrb[0].mxu0
    %v8761 = vadd.f32 %v8376, %v8760
    %v8762 = vpop.f32.mrb[0].mxu0
    %8763 = vmatprep.mubr.f32.mxu0 0.0
    %8764 = vmatmul.mubr.f32.gmra.mrb[0].mxu0 %v6928
    %v8765 = vpop.f32.mrb[0].mxu0
    %v8766 = vadd.f32 %v8381, %v8765
    %v8767 = vpop.f32.mrb[0].mxu0
    %8768 = vmatprep.mubr.f32.mxu0 0.0
    %8769 = vmatmul.mubr.f32.gmra.mrb[0].mxu0 %v6929
    %v8770 = vpop.f32.mrb[0].mxu0
    %v8771 = vadd.f32 %v8386, %v8770
    %v8772 = vpop.f32.mrb[0].mxu0
    %8773 = vmatprep.mubr.f32.mxu0 0.0
    %8774 = vmatmul.mubr.f32.gmra.mrb[0].mxu0 %v6930
    %v8775 = vpop.f32.mrb[0].mxu0
    %v8776 = vadd.f32 %v8391, %v8775
    %v8777 = vpop.f32.mrb[0].mxu0
    %8778 = vmatprep.mubr.f32.mxu0 0.0
    %8779 = vmatmul.mubr.f32.gmra.mrb[0].mxu0 %v6931
    %v8780 = vpop.f32.mrb[0].mxu0
    %v8781 = vadd.f32 %v8396, %v8780
    %v8782 = vpop.f32.mrb[0].mxu0
    %8783 = vmatprep.mubr.f32.mxu0 0.0
    %8784 = vmatmul.mubr.f32.gmra.mrb[0].mxu0 %v6932
    %v8785 = vpop.f32.mrb[0].mxu0
    %v8786 = vadd.f32 %v8401, %v8785
    %v8787 = vpop.f32.mrb[0].mxu0
    %8788 = vmatprep.mubr.f32.mxu0 0.0
    %8789 = vmatmul.mubr.f32.gmra.mrb[0].mxu0 %v6933
    %v8790 = vpop.f32.mrb[0].mxu0
    %v8791 = vadd.f32 %v8406, %v8790
    %v8792 = vpop.f32.mrb[0].mxu0
    %8793 = vmatprep.mubr.f32.mxu0 0.0
    %8794 = vmatmul.mubr.f32.gmra.mrb[0].mxu0 %v6934
    %v8795 = vpop.f32.mrb[0].mxu0
    %v8796 = vadd.f32 %v8411, %v8795
    %v8797 = vpop.f32.mrb[0].mxu0
    %8798 = vmatprep.mubr.f32.mxu0 0.0
    %8799 = vmatmul.mubr.f32.gmra.mrb[0].mxu0 %v6935
    %v8800 = vpop.f32.mrb[0].mxu0
    %v8801 = vadd.f32 %v8416, %v8800
    %v8802 = vpop.f32.mrb[0].mxu0
    %8803 = vmatprep.mubr.f32.mxu0 0.0
    %8804 = vmatmul.mubr.f32.gmra.mrb[0].mxu0 %v6936
    %v8805 = vpop.f32.mrb[0].mxu0
    %v8806 = vadd.f32 %v8421, %v8805
    %v8807 = vpop.f32.mrb[0].mxu0
    %8808 = vmatprep.mubr.f32.mxu0 0.0
    %8809 = vmatmul.mubr.f32.gmra.mrb[0].mxu0 %v6937
    %v8810 = vpop.f32.mrb[0].mxu0
    %v8811 = vadd.f32 %v8426, %v8810
    %v8812 = vpop.f32.mrb[0].mxu0
    %8813 = vmatprep.mubr.f32.mxu0 0.0
    %8814 = vmatmul.mubr.f32.gmra.mrb[0].mxu0 %v6938
    %v8815 = vpop.f32.mrb[0].mxu0
    %v8816 = vadd.f32 %v8431, %v8815
    %v8817 = vpop.f32.mrb[0].mxu0
    %8818 = vmatprep.mubr.f32.mxu0 0.0
    %8819 = vmatmul.mubr.f32.gmra.mrb[0].mxu0 %v6939
    %v8820 = vpop.f32.mrb[0].mxu0
    %v8821 = vadd.f32 %v8436, %v8820
    %v8822 = vpop.f32.mrb[0].mxu0
    %8823 = vmatprep.mubr.f32.mxu0 0.0
    %8824 = vmatmul.mubr.f32.gmra.mrb[0].mxu0 %v6940
    %v8825 = vpop.f32.mrb[0].mxu0
    %v8826 = vadd.f32 %v8441, %v8825
    %v8827 = vpop.f32.mrb[0].mxu0
    %8828 = vmatprep.mubr.f32.mxu0 0.0
    %8829 = vmatmul.mubr.f32.gmra.mrb[0].mxu0 %v6941
    %v8830 = vpop.f32.mrb[0].mxu0
    %v8831 = vadd.f32 %v8446, %v8830
    %v8832 = vpop.f32.mrb[0].mxu0
    %8833 = vmatprep.mubr.f32.mxu0 0.0
    %8834 = vmatmul.mubr.f32.gmra.mrb[0].mxu0 %v6942
    %v8835 = vpop.f32.mrb[0].mxu0
    %v8836 = vadd.f32 %v8451, %v8835
    %v8837 = vpop.f32.mrb[0].mxu0
    %8838 = vmatprep.mubr.f32.mxu0 0.0
    %8839 = vmatmul.mubr.f32.gmra.mrb[0].mxu0 %v6943
    %v8840 = vpop.f32.mrb[0].mxu0
    %v8841 = vadd.f32 %v8456, %v8840
    %v8842 = vpop.f32.mrb[0].mxu0
    %8843 = vmatprep.mubr.f32.mxu0 0.0
    %8844 = vmatmul.mubr.f32.gmra.mrb[0].mxu0 %v6944
    %v8845 = vpop.f32.mrb[0].mxu0
    %v8846 = vadd.f32 %v8461, %v8845
    %v8847 = vpop.f32.mrb[0].mxu0
    %8848 = vmatprep.mubr.f32.mxu0 0.0
    %8849 = vmatmul.mubr.f32.gmra.mrb[0].mxu0 %v6945
    %v8850 = vpop.f32.mrb[0].mxu0
    %v8851 = vadd.f32 %v8466, %v8850
    %v8852 = vpop.f32.mrb[0].mxu0
    %8853 = vmatprep.mubr.f32.mxu0 0.0
    %8854 = vmatmul.mubr.f32.gmra.mrb[0].mxu0 %v6946
    %v8855 = vpop.f32.mrb[0].mxu0
    %v8856 = vadd.f32 %v8471, %v8855
    %v8857 = vpop.f32.mrb[0].mxu0
    %8858 = vmatprep.mubr.f32.mxu0 0.0
    %8859 = vmatmul.mubr.f32.gmra.mrb[0].mxu0 %v6947
    %v8860 = vpop.f32.mrb[0].mxu0
    %v8861 = vadd.f32 %v8476, %v8860
    %v8862 = vpop.f32.mrb[0].mxu0
    %8863 = vmatprep.mubr.f32.mxu0 0.0
    %8864 = vmatmul.mubr.f32.gmra.mrb[0].mxu0 %v6948
    %v8865 = vpop.f32.mrb[0].mxu0
    %v8866 = vadd.f32 %v8481, %v8865
    %v8867 = vpop.f32.mrb[0].mxu0
    %8868 = vmatprep.mubr.f32.mxu0 0.0
    %8869 = vmatmul.mubr.f32.gmra.mrb[0].mxu0 %v6949
    %v8870 = vpop.f32.mrb[0].mxu0
    %v8871 = vadd.f32 %v8486, %v8870
    %v8872 = vpop.f32.mrb[0].mxu0
    %8873 = vmatprep.mubr.f32.mxu0 0.0
    %8874 = vmatmul.mubr.f32.gmra.mrb[0].mxu0 %v6950
    %v8875 = vpop.f32.mrb[0].mxu0
    %v8876 = vadd.f32 %v8491, %v8875
    %v8877 = vpop.f32.mrb[0].mxu0
    %8878 = vmatprep.mubr.f32.mxu0 0.0
    %8879 = vmatmul.mubr.f32.gmra.mrb[0].mxu0 %v6951
    %v8880 = vpop.f32.mrb[0].mxu0
    %v8881 = vadd.f32 %v8496, %v8880
    %v8882 = vpop.f32.mrb[0].mxu0
    %8883 = vmatprep.mubr.f32.mxu0 0.0
    %8884 = vmatmul.mubr.f32.gmra.mrb[0].mxu0 %v6952
    %v8885 = vpop.f32.mrb[0].mxu0
    %v8886 = vadd.f32 %v8501, %v8885
    %v8887 = vpop.f32.mrb[0].mxu0
    %8888 = vmatprep.mubr.f32.mxu0 0.0
    %8889 = vmatmul.mubr.f32.gmra.mrb[0].mxu0 %v6953
    %v8890 = vpop.f32.mrb[0].mxu0
    %v8891 = vadd.f32 %v8506, %v8890
    %v8892 = vpop.f32.mrb[0].mxu0
    %8893 = vmatprep.mubr.f32.mxu0 0.0
    %8894 = vmatmul.mubr.f32.gmra.mrb[0].mxu0 %v6954
    %v8895 = vpop.f32.mrb[0].mxu0
    %v8896 = vadd.f32 %v8511, %v8895
    %v8897 = vpop.f32.mrb[0].mxu0
    %8898 = vmatprep.mubr.f32.mxu0 0.0
    %8899 = vmatmul.mubr.f32.gmra.mrb[0].mxu0 %v6955
    %v8900 = vpop.f32.mrb[0].mxu0
    %v8901 = vadd.f32 %v8516, %v8900
    %v8902 = vpop.f32.mrb[0].mxu0
    %8903 = vmatprep.mubr.f32.mxu0 0.0
    %8904 = vmatmul.mubr.f32.gmra.mrb[0].mxu0 %v6956
    %v8905 = vpop.f32.mrb[0].mxu0
    %v8906 = vadd.f32 %v8521, %v8905
    %v8907 = vpop.f32.mrb[0].mxu0
    %8908 = vmatprep.mubr.f32.mxu0 0.0
    %8909 = vmatmul.mubr.f32.gmra.mrb[0].mxu0 %v6957
    %v8910 = vpop.f32.mrb[0].mxu0
    %v8911 = vadd.f32 %v8526, %v8910
    %v8912 = vpop.f32.mrb[0].mxu0
    %8913 = vmatprep.mubr.f32.mxu0 0.0
    %8914 = vmatmul.mubr.f32.gmra.mrb[0].mxu0 %v6958
    %v8915 = vpop.f32.mrb[0].mxu0
    %v8916 = vadd.f32 %v8531, %v8915
    %v8917 = vpop.f32.mrb[0].mxu0
    %8918 = vmatprep.mubr.f32.mxu0 0.0
    %8919 = vmatmul.mubr.f32.gmra.mrb[0].mxu0 %v6959
    %v8920 = vpop.f32.mrb[0].mxu0
    %v8921 = vadd.f32 %v8536, %v8920
    %v8922 = vpop.f32.mrb[0].mxu0
    %8923 = vmatprep.mubr.f32.mxu0 0.0
    %8924 = vmatmul.mubr.f32.gmra.mrb[0].mxu0 %v6960
    %v8925 = vpop.f32.mrb[0].mxu0
    %v8926 = vadd.f32 %v8541, %v8925
    %v8927 = vpop.f32.mrb[0].mxu0
    %8928 = vmatprep.mubr.f32.mxu0 0.0
    %8929 = vmatmul.mubr.f32.gmra.mrb[0].mxu0 %v6961
    %v8930 = vpop.f32.mrb[0].mxu0
    %v8931 = vadd.f32 %v8546, %v8930
    %v8932 = vpop.f32.mrb[0].mxu0
    %8933 = vmatprep.mubr.f32.mxu0 0.0
    %8934 = vmatmul.mubr.f32.gmra.mrb[0].mxu0 %v6962
    %v8935 = vpop.f32.mrb[0].mxu0
    %v8936 = vadd.f32 %v8551, %v8935
    %v8937 = vpop.f32.mrb[0].mxu0
    %8938 = vmatprep.mubr.f32.mxu0 0.0
    %8939 = vmatmul.mubr.f32.gmra.mrb[0].mxu0 %v6963
    %v8940 = vpop.f32.mrb[0].mxu0
    %v8941 = vadd.f32 %v8556, %v8940
    %v8942 = vpop.f32.mrb[0].mxu0
    %8943 = vmatprep.mubr.f32.mxu0 0.0
    %8944 = vmatmul.mubr.f32.gmra.mrb[0].mxu0 %v6964
    %v8945 = vpop.f32.mrb[0].mxu0
    %v8946 = vadd.f32 %v8561, %v8945
    %v8947 = vpop.f32.mrb[0].mxu0
    %8948 = vmatprep.mubr.f32.mxu0 0.0
    %8949 = vmatmul.mubr.f32.gmra.mrb[0].mxu0 %v6965
    %v8950 = vpop.f32.mrb[0].mxu0
    %v8951 = vadd.f32 %v8566, %v8950
    %v8952 = vpop.f32.mrb[0].mxu0
    %8953 = vmatprep.mubr.f32.mxu0 0.0
    %8954 = vmatmul.mubr.f32.gmra.mrb[0].mxu0 %v6966
    %v8955 = vpop.f32.mrb[0].mxu0
    %v8956 = vadd.f32 %v8571, %v8955
    %v8957 = vpop.f32.mrb[0].mxu0
    %8958 = vmatprep.mubr.f32.mxu0 0.0
    %8959 = vmatmul.mubr.f32.gmra.mrb[0].mxu0 %v6967
    %v8960 = vpop.f32.mrb[0].mxu0
    %v8961 = vadd.f32 %v8576, %v8960
    %v8962 = vpop.f32.mrb[0].mxu0
    %8963 = vmatprep.mubr.f32.mxu0 0.0
    %8964 = vmatmul.mubr.f32.gmra.mrb[0].mxu0 %v6968
    %v8965 = vpop.f32.mrb[0].mxu0
    %v8966 = vadd.f32 %v8581, %v8965
    %v8967 = vpop.f32.mrb[0].mxu0
    %8968 = vmatprep.mubr.f32.mxu0 0.0
    %8969 = vmatmul.mubr.f32.gmra.mrb[0].mxu0 %v6969
    %v8970 = vpop.f32.mrb[0].mxu0
    %v8971 = vadd.f32 %v8586, %v8970
    %v8972 = vpop.f32.mrb[0].mxu0
    %8973 = vmatprep.mubr.f32.mxu0 0.0
    %8974 = vmatmul.mubr.f32.gmra.mrb[0].mxu0 %v6970
    %v8975 = vpop.f32.mrb[0].mxu0
    %v8976 = vadd.f32 %v8591, %v8975
    %v8977 = vpop.f32.mrb[0].mxu0
    %8978 = vmatprep.mubr.f32.mxu0 0.0
    %8979 = vmatmul.mubr.f32.gmra.mrb[0].mxu0 %v6971
    %v8980 = vpop.f32.mrb[0].mxu0
    %v8981 = vadd.f32 %v8596, %v8980
    %v8982 = vpop.f32.mrb[0].mxu0
    %8983 = vmatprep.mubr.f32.mxu0 0.0
    %8984 = vmatmul.mubr.f32.gmra.mrb[0].mxu0 %v6972
    %v8985 = vpop.f32.mrb[0].mxu0
    %v8986 = vadd.f32 %v8601, %v8985
    %v8987 = vpop.f32.mrb[0].mxu0
    %8988 = vmatprep.mubr.f32.mxu0 0.0
    %8989 = vmatmul.mubr.f32.gmra.mrb[0].mxu0 %v6973
    %v8990 = vpop.f32.mrb[0].mxu0
    %v8991 = vadd.f32 %v8606, %v8990
    %v8992 = vpop.f32.mrb[0].mxu0
    %8993 = vmatprep.mubr.f32.mxu0 0.0
    %8994 = vmatmul.mubr.f32.gmra.mrb[0].mxu0 %v6974
    %v8995 = vpop.f32.mrb[0].mxu0
    %v8996 = vadd.f32 %v8611, %v8995
    %v8997 = vpop.f32.mrb[0].mxu0
    %8998 = vmatprep.mubr.f32.mxu0 0.0
    %8999 = vmatmul.mubr.f32.gmra.mrb[0].mxu0 %v6975
    %v9000 = vpop.f32.mrb[0].mxu0
    %v9001 = vadd.f32 %v8616, %v9000
    %v9002 = vpop.f32.mrb[0].mxu0
    %9003 = vmatprep.mubr.f32.mxu0 0.0
    %9004 = vmatmul.mubr.f32.gmra.mrb[0].mxu0 %v6976
    %v9005 = vpop.f32.mrb[0].mxu0
    %v9006 = vadd.f32 %v8621, %v9005
    %v9007 = vpop.f32.mrb[0].mxu0
    %9008 = vmatprep.mubr.f32.mxu0 0.0
    %9009 = vmatmul.mubr.f32.gmra.mrb[0].mxu0 %v6977
    %v9010 = vpop.f32.mrb[0].mxu0
    %v9011 = vadd.f32 %v8626, %v9010
    %v9012 = vpop.f32.mrb[0].mxu0
    %9013 = vmatprep.mubr.f32.mxu0 0.0
    %9014 = vmatmul.mubr.f32.gmra.mrb[0].mxu0 %v6978
    %v9015 = vpop.f32.mrb[0].mxu0
    %v9016 = vadd.f32 %v8631, %v9015
    %v9017 = vpop.f32.mrb[0].mxu0
    %9018 = vmatprep.mubr.f32.mxu0 0.0
    %9019 = vmatmul.mubr.f32.gmra.mrb[0].mxu0 %v6979
    %v9020 = vpop.f32.mrb[0].mxu0
    %v9021 = vadd.f32 %v8636, %v9020
    %v9022 = vpop.f32.mrb[0].mxu0
    %9023 = vmatprep.mubr.f32.mxu0 0.0
    %9024 = vmatmul.mubr.f32.gmra.mrb[0].mxu0 %v6980
    %v9025 = vpop.f32.mrb[0].mxu0
    %v9026 = vadd.f32 %v8641, %v9025
    %v9027 = vpop.f32.mrb[0].mxu0
    %9028 = vmatprep.mubr.f32.mxu0 0.0
    %9029 = vmatmul.mubr.f32.gmra.mrb[0].mxu0 %v6981
    %v9030 = vpop.f32.mrb[0].mxu0
    %v9031 = vadd.f32 %v8646, %v9030
    %v9032 = vpop.f32.mrb[0].mxu0
    %9033 = vmatprep.mubr.f32.mxu0 0.0
    %9034 = vmatmul.mubr.f32.gmra.mrb[0].mxu0 %v6982
    %v9035 = vpop.f32.mrb[0].mxu0
    %v9036 = vadd.f32 %v8651, %v9035
    %v9037 = vpop.f32.mrb[0].mxu0
    %9038 = vmatprep.mubr.f32.mxu0 0.0
    %9039 = vmatmul.mubr.f32.gmra.mrb[0].mxu0 %v6983
    %v9040 = vpop.f32.mrb[0].mxu0
    %v9041 = vadd.f32 %v8656, %v9040
    %v9042 = vpop.f32.mrb[0].mxu0
    %9043 = vmatprep.mubr.f32.mxu0 0.0
    %9044 = vmatmul.mubr.f32.gmra.mrb[0].mxu0 %v6984
    %v9045 = vpop.f32.mrb[0].mxu0
    %v9046 = vadd.f32 %v8661, %v9045
    %v9047 = vpop.f32.mrb[0].mxu0
    %9048 = vmatprep.mubr.f32.mxu0 0.0
    %9049 = vmatmul.mubr.f32.gmra.mrb[0].mxu0 %v6985
    %v9050 = vpop.f32.mrb[0].mxu0
    %v9051 = vadd.f32 %v8666, %v9050
    %v9052 = vpop.f32.mrb[0].mxu0
    %9053 = vmatprep.mubr.f32.mxu0 0.0
    %9054 = vmatmul.mubr.f32.gmra.mrb[0].mxu0 %v6986
    %v9055 = vpop.f32.mrb[0].mxu0
    %v9056 = vadd.f32 %v8671, %v9055
    %v9057 = vpop.f32.mrb[0].mxu0
    %9058 = vmatprep.mubr.f32.mxu0 0.0
    %9059 = vmatmul.mubr.f32.gmra.mrb[0].mxu0 %v6987
    %v9060 = vpop.f32.mrb[0].mxu0
    %v9061 = vadd.f32 %v8676, %v9060
    %v9062 = vpop.f32.mrb[0].mxu0
    %9063 = vdwg.mxu0
    %v9064 = vtanh.pop %v8746
    %v9065 = vtanh.pop %v8751
    %v9066 = vtanh.pop %v8756
    %v9067 = vtanh.pop %v8761
    %v9068 = vtanh.pop %v8766
    %v9069 = vtanh.pop %v8771
    %v9070 = vtanh.pop %v8776
    %v9071 = vtanh.pop %v8781
    %v9072 = vtanh.pop %v8786
    %v9073 = vtanh.pop %v8791
    %v9074 = vtanh.pop %v8796
    %v9075 = vtanh.pop %v8801
    %v9076 = vtanh.pop %v8806
    %v9077 = vtanh.pop %v8811
    %v9078 = vtanh.pop %v8816
    %v9079 = vtanh.pop %v8821
    %v9080 = vtanh.pop %v8826
    %v9081 = vtanh.pop %v8831
    %v9082 = vtanh.pop %v8836
    %v9083 = vtanh.pop %v8841
    %v9084 = vtanh.pop %v8846
    %v9085 = vtanh.pop %v8851
    %v9086 = vtanh.pop %v8856
    %v9087 = vtanh.pop %v8861
    %v9088 = vtanh.pop %v8866
    %v9089 = vtanh.pop %v8871
    %v9090 = vtanh.pop %v8876
    %v9091 = vtanh.pop %v8881
    %v9092 = vtanh.pop %v8886
    %v9093 = vtanh.pop %v8891
    %v9094 = vtanh.pop %v8896
    %v9095 = vtanh.pop %v8901
    %v9096 = vtanh.pop %v8906
    %v9097 = vtanh.pop %v8911
    %v9098 = vtanh.pop %v8916
    %v9099 = vtanh.pop %v8921
    %v9100 = vtanh.pop %v8926
    %v9101 = vtanh.pop %v8931
    %v9102 = vtanh.pop %v8936
    %v9103 = vtanh.pop %v8941
    %v9104 = vtanh.pop %v8946
    %v9105 = vtanh.pop %v8951
    %v9106 = vtanh.pop %v8956
    %v9107 = vtanh.pop %v8961
    %v9108 = vtanh.pop %v8966
    %v9109 = vtanh.pop %v8971
    %v9110 = vtanh.pop %v8976
    %v9111 = vtanh.pop %v8981
    %v9112 = vtanh.pop %v8986
    %v9113 = vtanh.pop %v8991
    %v9114 = vtanh.pop %v8996
    %v9115 = vtanh.pop %v9001
    %v9116 = vtanh.pop %v9006
    %v9117 = vtanh.pop %v9011
    %v9118 = vtanh.pop %v9016
    %v9119 = vtanh.pop %v9021
    %v9120 = vtanh.pop %v9026
    %v9121 = vtanh.pop %v9031
    %v9122 = vtanh.pop %v9036
    %v9123 = vtanh.pop %v9041
    %v9124 = vtanh.pop %v9046
    %v9125 = vtanh.pop %v9051
    %v9126 = vtanh.pop %v9056
    %v9127 = vtanh.pop %v9061
    %9128 = vst [vmem:[%s17] sm:$0xff] %v9064
    %9129 = vst [vmem:[%s17 + $0x8] sm:$0xff] %v9065
    %9130 = vst [vmem:[%s17 + $0x10] sm:$0xff] %v9066
    %9131 = vst [vmem:[%s17 + $0x18] sm:$0xff] %v9067
    %9132 = vst [vmem:[%s17 + $0x20] sm:$0xff] %v9068
    %9133 = vst [vmem:[%s17 + $0x28] sm:$0xff] %v9069
    %9134 = vst [vmem:[%s17 + $0x30] sm:$0xff] %v9070
    %9135 = vst [vmem:[%s17 + $0x38] sm:$0xff] %v9071
    %9136 = vst [vmem:[%s17 + $0x40] sm:$0xff] %v9072
    %9137 = vst [vmem:[%s17 + $0x48] sm:$0xff] %v9073
    %9138 = vst [vmem:[%s17 + $0x50] sm:$0xff] %v9074
    %9139 = vst [vmem:[%s17 + $0x58] sm:$0xff] %v9075
    %9140 = vst [vmem:[%s17 + $0x60] sm:$0xff] %v9076
    %9141 = vst [vmem:[%s17 + $0x68] sm:$0xff] %v9077
    %9142 = vst [vmem:[%s17 + $0x70] sm:$0xff] %v9078
    %9143 = vst [vmem:[%s17 + $0x78] sm:$0xff] %v9079
    %9144 = vst [vmem:[%s17 + $0x80] sm:$0xff] %v9080
    %9145 = vst [vmem:[%s17 + $0x88] sm:$0xff] %v9081
    %9146 = vst [vmem:[%s17 + $0x90] sm:$0xff] %v9082
    %9147 = vst [vmem:[%s17 + $0x98] sm:$0xff] %v9083
    %9148 = vst [vmem:[%s17 + $0xa0] sm:$0xff] %v9084
    %9149 = vst [vmem:[%s17 + $0xa8] sm:$0xff] %v9085
    %9150 = vst [vmem:[%s17 + $0xb0] sm:$0xff] %v9086
    %9151 = vst [vmem:[%s17 + $0xb8] sm:$0xff] %v9087
    %9152 = vst [vmem:[%s17 + $0xc0] sm:$0xff] %v9088
    %9153 = vst [vmem:[%s17 + $0xc8] sm:$0xff] %v9089
    %9154 = vst [vmem:[%s17 + $0xd0] sm:$0xff] %v9090
    %9155 = vst [vmem:[%s17 + $0xd8] sm:$0xff] %v9091
    %9156 = vst [vmem:[%s17 + $0xe0] sm:$0xff] %v9092
    %9157 = vst [vmem:[%s17 + $0xe8] sm:$0xff] %v9093
    %9158 = vst [vmem:[%s17 + $0xf0] sm:$0xff] %v9094
    %9159 = vst [vmem:[%s17 + $0xf8] sm:$0xff] %v9095
    %9160 = vst [vmem:[%s17 + $0x100] sm:$0xff] %v9096
    %9161 = vst [vmem:[%s17 + $0x108] sm:$0xff] %v9097
    %9162 = vst [vmem:[%s17 + $0x110] sm:$0xff] %v9098
    %9163 = vst [vmem:[%s17 + $0x118] sm:$0xff] %v9099
    %9164 = vst [vmem:[%s17 + $0x120] sm:$0xff] %v9100
    %9165 = vst [vmem:[%s17 + $0x128] sm:$0xff] %v9101
    %9166 = vst [vmem:[%s17 + $0x130] sm:$0xff] %v9102
    %9167 = vst [vmem:[%s17 + $0x138] sm:$0xff] %v9103
    %9168 = vst [vmem:[%s17 + $0x140] sm:$0xff] %v9104
    %9169 = vst [vmem:[%s17 + $0x148] sm:$0xff] %v9105
    %9170 = vst [vmem:[%s17 + $0x150] sm:$0xff] %v9106
    %9171 = vst [vmem:[%s17 + $0x158] sm:$0xff] %v9107
    %9172 = vst [vmem:[%s17 + $0x160] sm:$0xff] %v9108
    %9173 = vst [vmem:[%s17 + $0x168] sm:$0xff] %v9109
    %9174 = vst [vmem:[%s17 + $0x170] sm:$0xff] %v9110
    %9175 = vst [vmem:[%s17 + $0x178] sm:$0xff] %v9111
    %9176 = vst [vmem:[%s17 + $0x180] sm:$0xff] %v9112
    %9177 = vst [vmem:[%s17 + $0x188] sm:$0xff] %v9113
    %9178 = vst [vmem:[%s17 + $0x190] sm:$0xff] %v9114
    %9179 = vst [vmem:[%s17 + $0x198] sm:$0xff] %v9115
    %9180 = vst [vmem:[%s17 + $0x1a0] sm:$0xff] %v9116
    %9181 = vst [vmem:[%s17 + $0x1a8] sm:$0xff] %v9117
    %9182 = vst [vmem:[%s17 + $0x1b0] sm:$0xff] %v9118
    %9183 = vst [vmem:[%s17 + $0x1b8] sm:$0xff] %v9119
    %9184 = vst [vmem:[%s17 + $0x1c0] sm:$0xff] %v9120
    %9185 = vst [vmem:[%s17 + $0x1c8] sm:$0xff] %v9121
    %9186 = vst [vmem:[%s17 + $0x1d0] sm:$0xff] %v9122
    %9187 = vst [vmem:[%s17 + $0x1d8] sm:$0xff] %v9123
    %9188 = vst [vmem:[%s17 + $0x1e0] sm:$0xff] %v9124
    %9189 = vst [vmem:[%s17 + $0x1e8] sm:$0xff] %v9125
    %9190 = vst [vmem:[%s17 + $0x1f0] sm:$0xff] %v9126
    %9191 = vst [vmem:[%s17 + $0x1f8] sm:$0xff] %v9127
    // Predicated region
    $region94: #{forward.1} parent=1 // pred_check
      _
    $region95: #{forward.1} parent=1 // pred_check_branch
      %9193 = sbr.rel (0) target = $region97
    $region96: #{forward.1} parent=1 // pred_region
      _
    $region97: #{forward.1} parent=1 // pred_fallthru
      _
    // Predicated region
    $region98: #{forward.1} parent=1 // pred_check
      _
    $region99: #{forward.1} parent=1 // pred_check_branch
      %9195 = sbr.rel (0) target = $region101
    $region100: #{forward.1} parent=1 // pred_region
      _
    $region101: #{forward.1} parent=1 // pred_fallthru
      _
    %9196 = vsyncpa [#allocation4], 1
    %9197 = vsyncpa [#allocation6], 1
    %9198 = vsyncpa [#allocation9], 1
    %9199 = vsyncpa [#allocation12], 1

</llo_original>
